<compile_context>
chip_gen: v7x
topology: tpu7x:2x2x1
jax: 0.10.0
libtpu: 0.0.40
codegen_flags: <defaults>
</compile_context>

<pallas_src>
import jax
import jax.numpy as jnp
from jax import lax
from jax.experimental import pallas as pl
from jax.experimental.pallas import tpu as pltpu


def _round_up(x, m):
    return ((x + m - 1) // m) * m


# ------------------------------ fused kernel ------------------------------- #
def _lk_fused_kernel(xp_ref, w1_ref, b1_ref, wh_ref, wv_ref, blk_ref,
                     w2_ref, b2_ref, o_ref, s1_ref, s2_ref):
    """One batch image: conv1(3x3) -> cat(lk_h(1xK), lk_v(Kx1)) -> conv2(3x3).

    xp_ref : (H+2, W+2, CK)   input, spatially pre-padded by 1 (conv1 halo),
                              channels zero-padded to CK.
    w*_ref : (taps, CK, C)    tap-major BN-folded weights; b*_ref: (1, C).
    o_ref  : (H*W, CP)        lane-dense (128-padded channels) output.
    s1_ref : (H+2P, W+2P, CM) conv1 output with zero border P = K//2 (LK halo).
    s2_ref : (H+2,  W+2,  CM) cat(h_x, v_x) with zero border 1 (conv2 halo).
    """
    H = xp_ref.shape[0] - 2
    W = xp_ref.shape[1] - 2
    ck = xp_ref.shape[2]
    K = wh_ref.shape[0]
    P = K // 2
    cm = w1_ref.shape[2]
    cp = w2_ref.shape[2]
    M = H * W

    # Zero the padded scratches every step (a few KiB of VMEM stores); keeps
    # every grid step independent so batch-axis core sharding is always safe.
    s1_ref[...] = jnp.zeros_like(s1_ref)
    s2_ref[...] = jnp.zeros_like(s2_ref)

    # ---- conv1: 3x3 'same' + BN + ReLU (9 shifted tap dots, K = CK) ----
    acc = jnp.zeros((M, cm), jnp.float32)
    for di in range(3):
        for dj in range(3):
            a = xp_ref[di:di + H, dj:dj + W, :].reshape(M, ck)
            acc = acc + jnp.dot(a, w1_ref[di * 3 + dj],
                                preferred_element_type=jnp.float32)
    y1 = jnp.maximum(acc + b1_ref[...], 0.0)
    s1_ref[P:P + H, P:P + W, :] = y1.reshape(H, W, cm)

    # ---- fused LK branches: h_x (1xK) -> columns [0, Cmid),
    #      v_x (Kx1) -> columns [Cmid, 2*Cmid).  A single relu(acc + bias)
    #      equals the per-branch relus because each output column only ever
    #      receives contributions from one branch; the column placement IS
    #      torch.cat((h_x, v_x), 1). ----
    acc = jnp.zeros((M, cm), jnp.float32)
    for t in range(K):
        ah = s1_ref[P:P + H, t:t + W, :].reshape(M, cm)     # 1xK taps (W shift)
        acc = acc + jnp.dot(ah, wh_ref[t], preferred_element_type=jnp.float32)
        av = s1_ref[t:t + H, P:P + W, :].reshape(M, cm)     # Kx1 taps (H shift)
        acc = acc + jnp.dot(av, wv_ref[t], preferred_element_type=jnp.float32)
    y2 = jnp.maximum(acc + blk_ref[...], 0.0)
    s2_ref[1:1 + H, 1:1 + W, :] = y2.reshape(H, W, cm)

    # ---- conv2: 3x3 'same' + BN + ReLU, lane-dense 128-padded output ----
    acc = jnp.zeros((M, cp), jnp.float32)
    for di in range(3):
        for dj in range(3):
            a = s2_ref[di:di + H, dj:dj + W, :].reshape(M, cm)
            acc = acc + jnp.dot(a, w2_ref[di * 3 + dj],
                                preferred_element_type=jnp.float32)
    o_ref[...] = jnp.maximum(acc + b2_ref[...], 0.0).astype(o_ref.dtype)


# ------------------------------ forward wrapper ---------------------------- #
def _lk_forward(x_nchw, prep, out_planes):
    N, cin, H, W = x_nchw.shape
    w1, b1 = prep["w1"], prep["b1"]
    wh, wv, blk = prep["wh"], prep["wv"], prep["blk"]
    w2, b2 = prep["w2"], prep["b2"]
    ck, cm, cp = w1.shape[1], w1.shape[2], w2.shape[2]
    K = wh.shape[0]
    P = K // 2

    # NCHW -> NHWC; add conv1's 1-pixel halo and pad channels to CK (a few KiB,
    # no im2col amplification).
    x = jnp.transpose(x_nchw, (0, 2, 3, 1))
    xp = jnp.pad(x, ((0, 0), (1, 1), (1, 1), (0, ck - cin)))

    out = pl.pallas_call(
        _lk_fused_kernel,
        out_shape=jax.ShapeDtypeStruct((N, H * W, cp), x.dtype),
        grid_spec=pltpu.PrefetchScalarGridSpec(
            num_scalar_prefetch=0,
            grid=(N,),
            in_specs=[
                pl.BlockSpec((None, H + 2, W + 2, ck), lambda n: (n, 0, 0, 0)),
                pl.BlockSpec(w1.shape, lambda n: (0, 0, 0)),
                pl.BlockSpec(b1.shape, lambda n: (0, 0)),
                pl.BlockSpec(wh.shape, lambda n: (0, 0, 0)),
                pl.BlockSpec(wv.shape, lambda n: (0, 0, 0)),
                pl.BlockSpec(blk.shape, lambda n: (0, 0)),
                pl.BlockSpec(w2.shape, lambda n: (0, 0, 0)),
                pl.BlockSpec(b2.shape, lambda n: (0, 0)),
            ],
            out_specs=pl.BlockSpec((None, H * W, cp), lambda n: (n, 0, 0)),
            scratch_shapes=[
                pltpu.VMEM((H + 2 * P, W + 2 * P, cm), jnp.float32),
                pltpu.VMEM((H + 2, W + 2, cm), jnp.float32),
            ],
        ),
        compiler_params=pltpu.CompilerParams(
            dimension_semantics=("parallel",),      # batch images independent
            vmem_limit_bytes=32 << 20,              # safe on v5e/v6e/v7x
        ),
    )(xp, w1, b1, wh, wv, blk, w2, b2)

    y = out[:, :, :out_planes].reshape(N, H, W, out_planes)
    return jnp.transpose(y, (0, 3, 1, 2))           # back to NCHW


lk_conv_forward = jax.jit(_lk_forward, static_argnames=("out_planes",))


# --------------------- one-time parameter preparation ---------------------- #
def _fold_conv_bn(p, eps=1e-5):
    """Conv2d(bias=False) + BatchNorm(eval) -> tap-major weight & bias.

    Returns (w_t, bias): w_t[a, b, ci, co] = w[co, ci, a, b] * scale[co].
    """
    w = p["w"].astype(jnp.float32)                   # (Cout, Cin, KH, KW)
    scale = p["gamma"] / jnp.sqrt(p["var"] + eps)
    bias = p["beta"] - p["mean"] * scale
    w_t = jnp.transpose(w, (2, 3, 1, 0)) * scale     # (KH, KW, Cin, Cout)
    return w_t, bias


def prepare_lk_params(params, *, lane=128, eps=1e-5):
    """BN fold + tap-major packing + channel padding, done once (inference)."""
    w1t, b1v = _fold_conv_bn(params["conv1"], eps)   # (3, 3, Cin,   Cmid)
    wht, bhv = _fold_conv_bn(params["lk_h"], eps)    # (1, K, Cmid,  Cmid)
    wvt, bvv = _fold_conv_bn(params["lk_v"], eps)    # (K, 1, Cmid,  Cmid)
    w2t, b2v = _fold_conv_bn(params["conv2"], eps)   # (3, 3, 2Cmid, Cout)

    cin, cm = w1t.shape[2], w1t.shape[3]
    K = wht.shape[1]
    cout = w2t.shape[3]
    ck = _round_up(max(cin, 2 * cm, 8), 8)           # working channel width
    cp = _round_up(cout, lane)                       # lane-dense output width

    w1 = jnp.zeros((9, ck, ck), jnp.float32).at[:, :cin, :cm].set(
        w1t.reshape(9, cin, cm))
    b1 = jnp.zeros((1, ck), jnp.float32).at[0, :cm].set(b1v)

    # h_x -> output columns [0, cm); v_x -> [cm, 2*cm): realizes torch.cat.
    wh = jnp.zeros((K, ck, ck), jnp.float32).at[:, :cm, :cm].set(wht[0])
    wv = jnp.zeros((K, ck, ck), jnp.float32).at[:, :cm, cm:2 * cm].set(wvt[:, 0])
    blk = (jnp.zeros((1, ck), jnp.float32)
           .at[0, :cm].set(bhv).at[0, cm:2 * cm].set(bvv))

    w2 = jnp.zeros((9, ck, cp), jnp.float32).at[:, :2 * cm, :cout].set(
        w2t.reshape(9, 2 * cm, cout))
    b2 = jnp.zeros((1, cp), jnp.float32).at[0, :cout].set(b2v)

    return {"w1": w1, "b1": b1, "wh": wh, "wv": wv, "blk": blk,
            "w2": w2, "b2": b2}


# ------------------------------ init & reference --------------------------- #
def init_basic_conv(key, cin, cout, kh, kw):
    k1, k2, k3, k4, k5 = jax.random.split(key, 5)
    return {
        "w": 0.1 * jax.random.normal(k1, (cout, cin, kh, kw), jnp.float32),
        "gamma": 1.0 + 0.1 * jax.random.normal(k2, (cout,), jnp.float32),
        "beta": 0.1 * jax.random.normal(k3, (cout,), jnp.float32),
        "mean": 0.1 * jax.random.normal(k4, (cout,), jnp.float32),
        "var": 1.0 + 0.1 * jnp.abs(jax.random.normal(k5, (cout,), jnp.float32)),
    }


def init_lk_conv(key, in_planes, out_planes, kernel_size):
    half = in_planes // 2
    k1, k2, k3, k4 = jax.random.split(key, 4)
    return {
        "conv1": init_basic_conv(k1, in_planes, half, 3, 3),
        "conv2": init_basic_conv(k2, in_planes, out_planes, 3, 3),
        "lk_v": init_basic_conv(k3, half, half, kernel_size, 1),   # (K, 1)
        "lk_h": init_basic_conv(k4, half, half, 1, kernel_size),   # (1, K)
    }


def _ref_basic_conv(x_nchw, p, pad, eps=1e-5):
    z = lax.conv_general_dilated(
        x_nchw, p["w"], window_strides=(1, 1),
        padding=((pad[0], pad[0]), (pad[1], pad[1])),
        dimension_numbers=("NCHW", "OIHW", "NCHW"),
        precision=lax.Precision.HIGHEST)
    scale = p["gamma"] / jnp.sqrt(p["var"] + eps)
    bias = p["beta"] - p["mean"] * scale
    return jnp.maximum(z * scale[None, :, None, None]
                       + bias[None, :, None, None], 0.0)


def _ref_lk_forward(x, params, k):
    x1 = _ref_basic_conv(x, params["conv1"], (1, 1))
    hx = _ref_basic_conv(x1, params["lk_h"], (0, k // 2))
    vx = _ref_basic_conv(x1, params["lk_v"], (k // 2, 0))
    return _ref_basic_conv(jnp.concatenate([hx, vx], axis=1),
                           params["conv2"], (1, 1))


# ----------------------------------- main ---------------------------------- #
if __name__ == "__main__":
    in_planes, out_planes, kernel_size = 4, 8, 5
    N, H, W = 2, 16, 16

    key = jax.random.PRNGKey(0)
    k_params, k_x = jax.random.split(key)
    params = init_lk_conv(k_params, in_planes, out_planes, kernel_size)
    x = jax.random.normal(k_x, (N, in_planes, H, W), jnp.float32)   # NCHW

    prep = prepare_lk_params(params)        # one-time BN fold / weight packing
    out = lk_conv_forward(x, prep, out_planes=out_planes)
    out = jax.block_until_ready(out)

    assert out.shape == (N, out_planes, H, W), out.shape
    assert out.dtype == jnp.float32
    assert bool(jnp.all(jnp.isfinite(out)))

    ref = _ref_lk_forward(x, params, kernel_size)
    assert float(jnp.max(jnp.abs(out - ref))) < 2e-3
    print("KERNEL_OK")
</pallas_src>

<mosaic_0001>
module attributes {stable_mosaic.version = 11 : i64} {
  func.func @_lk_fused_kernel(%arg0: i32, %arg1: memref<1x18x18x8xf32, #tpu.memory_space<vmem>>, %arg2: memref<9x8x8xf32, #tpu.memory_space<vmem>>, %arg3: memref<1x8xf32, #tpu.memory_space<vmem>>, %arg4: memref<5x8x8xf32, #tpu.memory_space<vmem>>, %arg5: memref<5x8x8xf32, #tpu.memory_space<vmem>>, %arg6: memref<1x8xf32, #tpu.memory_space<vmem>>, %arg7: memref<9x8x128xf32, #tpu.memory_space<vmem>>, %arg8: memref<1x128xf32, #tpu.memory_space<vmem>>, %arg9: memref<1x256x128xf32, #tpu.memory_space<vmem>>, %arg10: memref<20x20x8xf32, #tpu.memory_space<vmem>>, %arg11: memref<18x18x8xf32, #tpu.memory_space<vmem>>) attributes {dimension_semantics = [#tpu.dimension_semantics<parallel>], iteration_bounds = array<i64: 2>, scalar_prefetch = 0 : i64, scratch_operands = 2 : i64, tpu.core_type = #tpu.core_type<tc>, window_params = [{transform_indices = @transform_0, window_bounds = array<i64: 1, 18, 18, 8>}, {pipeline_mode = #tpu.pipeline_mode<synchronous>, transform_indices = @transform_1, window_bounds = array<i64: 9, 8, 8>}, {pipeline_mode = #tpu.pipeline_mode<synchronous>, transform_indices = @transform_2, window_bounds = array<i64: 1, 8>}, {pipeline_mode = #tpu.pipeline_mode<synchronous>, transform_indices = @transform_3, window_bounds = array<i64: 5, 8, 8>}, {pipeline_mode = #tpu.pipeline_mode<synchronous>, transform_indices = @transform_4, window_bounds = array<i64: 5, 8, 8>}, {pipeline_mode = #tpu.pipeline_mode<synchronous>, transform_indices = @transform_5, window_bounds = array<i64: 1, 8>}, {pipeline_mode = #tpu.pipeline_mode<synchronous>, transform_indices = @transform_6, window_bounds = array<i64: 9, 8, 128>}, {pipeline_mode = #tpu.pipeline_mode<synchronous>, transform_indices = @transform_7, window_bounds = array<i64: 1, 128>}, {transform_indices = @transform_8, window_bounds = array<i64: 1, 256, 128>}]} {
    %cst = arith.constant 0.000000e+00 : f32
    %0 = vector.broadcast %cst : f32 to vector<20x20x8xf32>
    %c0 = arith.constant 0 : index
    %c0_0 = arith.constant 0 : index
    %c0_1 = arith.constant 0 : index
    %1 = vector.load %arg10[%c0, %c0_0, %c0_1] : memref<20x20x8xf32, #tpu.memory_space<vmem>>, vector<20x20x8xf32>
    tpu.vector_store %arg10[%c0, %c0_0, %c0_1], %0 {strides = array<i32>} : memref<20x20x8xf32, #tpu.memory_space<vmem>>, vector<20x20x8xf32>,
    %cst_2 = arith.constant 0.000000e+00 : f32
    %2 = vector.broadcast %cst_2 : f32 to vector<18x18x8xf32>
    %c0_3 = arith.constant 0 : index
    %c0_4 = arith.constant 0 : index
    %c0_5 = arith.constant 0 : index
    %3 = vector.load %arg11[%c0_3, %c0_4, %c0_5] : memref<18x18x8xf32, #tpu.memory_space<vmem>>, vector<18x18x8xf32>
    tpu.vector_store %arg11[%c0_3, %c0_4, %c0_5], %2 {strides = array<i32>} : memref<18x18x8xf32, #tpu.memory_space<vmem>>, vector<18x18x8xf32>,
    %cst_6 = arith.constant 0.000000e+00 : f32
    %4 = vector.broadcast %cst_6 : f32 to vector<256x8xf32>
    %c0_7 = arith.constant 0 : index
    %c0_8 = arith.constant 0 : index
    %c0_9 = arith.constant 0 : index
    %c0_10 = arith.constant 0 : index
    %5 = vector.load %arg1[%c0_7, %c0_8, %c0_9, %c0_10] : memref<1x18x18x8xf32, #tpu.memory_space<vmem>>, vector<1x16x16x8xf32>
    %6 = vector.shape_cast %5 : vector<1x16x16x8xf32> to vector<16x16x8xf32>
    %7 = vector.shape_cast %6 : vector<16x16x8xf32> to vector<256x8xf32>
    %c0_11 = arith.constant 0 : index
    %c0_12 = arith.constant 0 : index
    %c0_13 = arith.constant 0 : index
    %8 = vector.load %arg2[%c0_11, %c0_12, %c0_13] : memref<9x8x8xf32, #tpu.memory_space<vmem>>, vector<1x8x8xf32>
    %9 = vector.shape_cast %8 : vector<1x8x8xf32> to vector<8x8xf32>
    %cst_14 = arith.constant dense<0.000000e+00> : vector<256x8xf32>
    %10 = tpu.matmul %7, %9, %cst_14 {dimension_numbers = #tpu.dot_dimension_numbers<[1], [0], [0], [1], [0, 0, 1, 1], [], []>} : vector<256x8xf32>, vector<8x8xf32>, vector<256x8xf32> -> vector<256x8xf32>
    %11 = arith.addf %4, %10 : vector<256x8xf32>
    %c0_15 = arith.constant 0 : index
    %c0_16 = arith.constant 0 : index
    %c1 = arith.constant 1 : index
    %c0_17 = arith.constant 0 : index
    %12 = vector.load %arg1[%c0_15, %c0_16, %c1, %c0_17] : memref<1x18x18x8xf32, #tpu.memory_space<vmem>>, vector<1x16x16x8xf32>
    %13 = vector.shape_cast %12 : vector<1x16x16x8xf32> to vector<16x16x8xf32>
    %14 = vector.shape_cast %13 : vector<16x16x8xf32> to vector<256x8xf32>
    %c1_18 = arith.constant 1 : index
    %c0_19 = arith.constant 0 : index
    %c0_20 = arith.constant 0 : index
    %15 = vector.load %arg2[%c1_18, %c0_19, %c0_20] : memref<9x8x8xf32, #tpu.memory_space<vmem>>, vector<1x8x8xf32>
    %16 = vector.shape_cast %15 : vector<1x8x8xf32> to vector<8x8xf32>
    %cst_21 = arith.constant dense<0.000000e+00> : vector<256x8xf32>
    %17 = tpu.matmul %14, %16, %cst_21 {dimension_numbers = #tpu.dot_dimension_numbers<[1], [0], [0], [1], [0, 0, 1, 1], [], []>} : vector<256x8xf32>, vector<8x8xf32>, vector<256x8xf32> -> vector<256x8xf32>
    %18 = arith.addf %11, %17 : vector<256x8xf32>
    %c0_22 = arith.constant 0 : index
    %c0_23 = arith.constant 0 : index
    %c2 = arith.constant 2 : index
    %c0_24 = arith.constant 0 : index
    %19 = vector.load %arg1[%c0_22, %c0_23, %c2, %c0_24] : memref<1x18x18x8xf32, #tpu.memory_space<vmem>>, vector<1x16x16x8xf32>
    %20 = vector.shape_cast %19 : vector<1x16x16x8xf32> to vector<16x16x8xf32>
    %21 = vector.shape_cast %20 : vector<16x16x8xf32> to vector<256x8xf32>
    %c2_25 = arith.constant 2 : index
    %c0_26 = arith.constant 0 : index
    %c0_27 = arith.constant 0 : index
    %22 = vector.load %arg2[%c2_25, %c0_26, %c0_27] : memref<9x8x8xf32, #tpu.memory_space<vmem>>, vector<1x8x8xf32>
    %23 = vector.shape_cast %22 : vector<1x8x8xf32> to vector<8x8xf32>
    %cst_28 = arith.constant dense<0.000000e+00> : vector<256x8xf32>
    %24 = tpu.matmul %21, %23, %cst_28 {dimension_numbers = #tpu.dot_dimension_numbers<[1], [0], [0], [1], [0, 0, 1, 1], [], []>} : vector<256x8xf32>, vector<8x8xf32>, vector<256x8xf32> -> vector<256x8xf32>
    %25 = arith.addf %18, %24 : vector<256x8xf32>
    %c0_29 = arith.constant 0 : index
    %c1_30 = arith.constant 1 : index
    %c0_31 = arith.constant 0 : index
    %c0_32 = arith.constant 0 : index
    %26 = vector.load %arg1[%c0_29, %c1_30, %c0_31, %c0_32] : memref<1x18x18x8xf32, #tpu.memory_space<vmem>>, vector<1x16x16x8xf32>
    %27 = vector.shape_cast %26 : vector<1x16x16x8xf32> to vector<16x16x8xf32>
    %28 = vector.shape_cast %27 : vector<16x16x8xf32> to vector<256x8xf32>
    %c3 = arith.constant 3 : index
    %c0_33 = arith.constant 0 : index
    %c0_34 = arith.constant 0 : index
    %29 = vector.load %arg2[%c3, %c0_33, %c0_34] : memref<9x8x8xf32, #tpu.memory_space<vmem>>, vector<1x8x8xf32>
    %30 = vector.shape_cast %29 : vector<1x8x8xf32> to vector<8x8xf32>
    %cst_35 = arith.constant dense<0.000000e+00> : vector<256x8xf32>
    %31 = tpu.matmul %28, %30, %cst_35 {dimension_numbers = #tpu.dot_dimension_numbers<[1], [0], [0], [1], [0, 0, 1, 1], [], []>} : vector<256x8xf32>, vector<8x8xf32>, vector<256x8xf32> -> vector<256x8xf32>
    %32 = arith.addf %25, %31 : vector<256x8xf32>
    %c0_36 = arith.constant 0 : index
    %c1_37 = arith.constant 1 : index
    %c1_38 = arith.constant 1 : index
    %c0_39 = arith.constant 0 : index
    %33 = vector.load %arg1[%c0_36, %c1_37, %c1_38, %c0_39] : memref<1x18x18x8xf32, #tpu.memory_space<vmem>>, vector<1x16x16x8xf32>
    %34 = vector.shape_cast %33 : vector<1x16x16x8xf32> to vector<16x16x8xf32>
    %35 = vector.shape_cast %34 : vector<16x16x8xf32> to vector<256x8xf32>
    %c4 = arith.constant 4 : index
    %c0_40 = arith.constant 0 : index
    %c0_41 = arith.constant 0 : index
    %36 = vector.load %arg2[%c4, %c0_40, %c0_41] : memref<9x8x8xf32, #tpu.memory_space<vmem>>, vector<1x8x8xf32>
    %37 = vector.shape_cast %36 : vector<1x8x8xf32> to vector<8x8xf32>
    %cst_42 = arith.constant dense<0.000000e+00> : vector<256x8xf32>
    %38 = tpu.matmul %35, %37, %cst_42 {dimension_numbers = #tpu.dot_dimension_numbers<[1], [0], [0], [1], [0, 0, 1, 1], [], []>} : vector<256x8xf32>, vector<8x8xf32>, vector<256x8xf32> -> vector<256x8xf32>
    %39 = arith.addf %32, %38 : vector<256x8xf32>
    %c0_43 = arith.constant 0 : index
    %c1_44 = arith.constant 1 : index
    %c2_45 = arith.constant 2 : index
    %c0_46 = arith.constant 0 : index
    %40 = vector.load %arg1[%c0_43, %c1_44, %c2_45, %c0_46] : memref<1x18x18x8xf32, #tpu.memory_space<vmem>>, vector<1x16x16x8xf32>
    %41 = vector.shape_cast %40 : vector<1x16x16x8xf32> to vector<16x16x8xf32>
    %42 = vector.shape_cast %41 : vector<16x16x8xf32> to vector<256x8xf32>
    %c5 = arith.constant 5 : index
    %c0_47 = arith.constant 0 : index
    %c0_48 = arith.constant 0 : index
    %43 = vector.load %arg2[%c5, %c0_47, %c0_48] : memref<9x8x8xf32, #tpu.memory_space<vmem>>, vector<1x8x8xf32>
    %44 = vector.shape_cast %43 : vector<1x8x8xf32> to vector<8x8xf32>
    %cst_49 = arith.constant dense<0.000000e+00> : vector<256x8xf32>
    %45 = tpu.matmul %42, %44, %cst_49 {dimension_numbers = #tpu.dot_dimension_numbers<[1], [0], [0], [1], [0, 0, 1, 1], [], []>} : vector<256x8xf32>, vector<8x8xf32>, vector<256x8xf32> -> vector<256x8xf32>
    %46 = arith.addf %39, %45 : vector<256x8xf32>
    %c0_50 = arith.constant 0 : index
    %c2_51 = arith.constant 2 : index
    %c0_52 = arith.constant 0 : index
    %c0_53 = arith.constant 0 : index
    %47 = vector.load %arg1[%c0_50, %c2_51, %c0_52, %c0_53] : memref<1x18x18x8xf32, #tpu.memory_space<vmem>>, vector<1x16x16x8xf32>
    %48 = vector.shape_cast %47 : vector<1x16x16x8xf32> to vector<16x16x8xf32>
    %49 = vector.shape_cast %48 : vector<16x16x8xf32> to vector<256x8xf32>
    %c6 = arith.constant 6 : index
    %c0_54 = arith.constant 0 : index
    %c0_55 = arith.constant 0 : index
    %50 = vector.load %arg2[%c6, %c0_54, %c0_55] : memref<9x8x8xf32, #tpu.memory_space<vmem>>, vector<1x8x8xf32>
    %51 = vector.shape_cast %50 : vector<1x8x8xf32> to vector<8x8xf32>
    %cst_56 = arith.constant dense<0.000000e+00> : vector<256x8xf32>
    %52 = tpu.matmul %49, %51, %cst_56 {dimension_numbers = #tpu.dot_dimension_numbers<[1], [0], [0], [1], [0, 0, 1, 1], [], []>} : vector<256x8xf32>, vector<8x8xf32>, vector<256x8xf32> -> vector<256x8xf32>
    %53 = arith.addf %46, %52 : vector<256x8xf32>
    %c0_57 = arith.constant 0 : index
    %c2_58 = arith.constant 2 : index
    %c1_59 = arith.constant 1 : index
    %c0_60 = arith.constant 0 : index
    %54 = vector.load %arg1[%c0_57, %c2_58, %c1_59, %c0_60] : memref<1x18x18x8xf32, #tpu.memory_space<vmem>>, vector<1x16x16x8xf32>
    %55 = vector.shape_cast %54 : vector<1x16x16x8xf32> to vector<16x16x8xf32>
    %56 = vector.shape_cast %55 : vector<16x16x8xf32> to vector<256x8xf32>
    %c7 = arith.constant 7 : index
    %c0_61 = arith.constant 0 : index
    %c0_62 = arith.constant 0 : index
    %57 = vector.load %arg2[%c7, %c0_61, %c0_62] : memref<9x8x8xf32, #tpu.memory_space<vmem>>, vector<1x8x8xf32>
    %58 = vector.shape_cast %57 : vector<1x8x8xf32> to vector<8x8xf32>
    %cst_63 = arith.constant dense<0.000000e+00> : vector<256x8xf32>
    %59 = tpu.matmul %56, %58, %cst_63 {dimension_numbers = #tpu.dot_dimension_numbers<[1], [0], [0], [1], [0, 0, 1, 1], [], []>} : vector<256x8xf32>, vector<8x8xf32>, vector<256x8xf32> -> vector<256x8xf32>
    %60 = arith.addf %53, %59 : vector<256x8xf32>
    %c0_64 = arith.constant 0 : index
    %c2_65 = arith.constant 2 : index
    %c2_66 = arith.constant 2 : index
    %c0_67 = arith.constant 0 : index
    %61 = vector.load %arg1[%c0_64, %c2_65, %c2_66, %c0_67] : memref<1x18x18x8xf32, #tpu.memory_space<vmem>>, vector<1x16x16x8xf32>
    %62 = vector.shape_cast %61 : vector<1x16x16x8xf32> to vector<16x16x8xf32>
    %63 = vector.shape_cast %62 : vector<16x16x8xf32> to vector<256x8xf32>
    %c8 = arith.constant 8 : index
    %c0_68 = arith.constant 0 : index
    %c0_69 = arith.constant 0 : index
    %64 = vector.load %arg2[%c8, %c0_68, %c0_69] : memref<9x8x8xf32, #tpu.memory_space<vmem>>, vector<1x8x8xf32>
    %65 = vector.shape_cast %64 : vector<1x8x8xf32> to vector<8x8xf32>
    %cst_70 = arith.constant dense<0.000000e+00> : vector<256x8xf32>
    %66 = tpu.matmul %63, %65, %cst_70 {dimension_numbers = #tpu.dot_dimension_numbers<[1], [0], [0], [1], [0, 0, 1, 1], [], []>} : vector<256x8xf32>, vector<8x8xf32>, vector<256x8xf32> -> vector<256x8xf32>
    %67 = arith.addf %60, %66 : vector<256x8xf32>
    %c0_71 = arith.constant 0 : index
    %c0_72 = arith.constant 0 : index
    %68 = vector.load %arg3[%c0_71, %c0_72] : memref<1x8xf32, #tpu.memory_space<vmem>>, vector<1x8xf32>
    %69 = vector.broadcast %68 : vector<1x8xf32> to vector<256x8xf32>
    %70 = arith.addf %67, %69 : vector<256x8xf32>
    %cst_73 = arith.constant 0.000000e+00 : f32
    %71 = vector.broadcast %cst_73 : f32 to vector<256x8xf32>
    %72 = arith.maximumf %70, %71 : vector<256x8xf32>
    %73 = vector.shape_cast %72 : vector<256x8xf32> to vector<16x16x8xf32>
    %c2_74 = arith.constant 2 : index
    %c2_75 = arith.constant 2 : index
    %c0_76 = arith.constant 0 : index
    %74 = vector.load %arg10[%c2_74, %c2_75, %c0_76] : memref<20x20x8xf32, #tpu.memory_space<vmem>>, vector<16x16x8xf32>
    tpu.vector_store %arg10[%c2_74, %c2_75, %c0_76], %73 {strides = array<i32>} : memref<20x20x8xf32, #tpu.memory_space<vmem>>, vector<16x16x8xf32>,
    %cst_77 = arith.constant 0.000000e+00 : f32
    %75 = vector.broadcast %cst_77 : f32 to vector<256x8xf32>
    %c2_78 = arith.constant 2 : index
    %c0_79 = arith.constant 0 : index
    %c0_80 = arith.constant 0 : index
    %76 = vector.load %arg10[%c2_78, %c0_79, %c0_80] : memref<20x20x8xf32, #tpu.memory_space<vmem>>, vector<16x16x8xf32>
    %77 = vector.shape_cast %76 : vector<16x16x8xf32> to vector<256x8xf32>
    %c0_81 = arith.constant 0 : index
    %c0_82 = arith.constant 0 : index
    %c0_83 = arith.constant 0 : index
    %78 = vector.load %arg4[%c0_81, %c0_82, %c0_83] : memref<5x8x8xf32, #tpu.memory_space<vmem>>, vector<1x8x8xf32>
    %79 = vector.shape_cast %78 : vector<1x8x8xf32> to vector<8x8xf32>
    %cst_84 = arith.constant dense<0.000000e+00> : vector<256x8xf32>
    %80 = tpu.matmul %77, %79, %cst_84 {dimension_numbers = #tpu.dot_dimension_numbers<[1], [0], [0], [1], [0, 0, 1, 1], [], []>} : vector<256x8xf32>, vector<8x8xf32>, vector<256x8xf32> -> vector<256x8xf32>
    %81 = arith.addf %75, %80 : vector<256x8xf32>
    %c0_85 = arith.constant 0 : index
    %c2_86 = arith.constant 2 : index
    %c0_87 = arith.constant 0 : index
    %82 = vector.load %arg10[%c0_85, %c2_86, %c0_87] : memref<20x20x8xf32, #tpu.memory_space<vmem>>, vector<16x16x8xf32>
    %83 = vector.shape_cast %82 : vector<16x16x8xf32> to vector<256x8xf32>
    %c0_88 = arith.constant 0 : index
    %c0_89 = arith.constant 0 : index
    %c0_90 = arith.constant 0 : index
    %84 = vector.load %arg5[%c0_88, %c0_89, %c0_90] : memref<5x8x8xf32, #tpu.memory_space<vmem>>, vector<1x8x8xf32>
    %85 = vector.shape_cast %84 : vector<1x8x8xf32> to vector<8x8xf32>
    %cst_91 = arith.constant dense<0.000000e+00> : vector<256x8xf32>
    %86 = tpu.matmul %83, %85, %cst_91 {dimension_numbers = #tpu.dot_dimension_numbers<[1], [0], [0], [1], [0, 0, 1, 1], [], []>} : vector<256x8xf32>, vector<8x8xf32>, vector<256x8xf32> -> vector<256x8xf32>
    %87 = arith.addf %81, %86 : vector<256x8xf32>
    %c2_92 = arith.constant 2 : index
    %c1_93 = arith.constant 1 : index
    %c0_94 = arith.constant 0 : index
    %88 = vector.load %arg10[%c2_92, %c1_93, %c0_94] : memref<20x20x8xf32, #tpu.memory_space<vmem>>, vector<16x16x8xf32>
    %89 = vector.shape_cast %88 : vector<16x16x8xf32> to vector<256x8xf32>
    %c1_95 = arith.constant 1 : index
    %c0_96 = arith.constant 0 : index
    %c0_97 = arith.constant 0 : index
    %90 = vector.load %arg4[%c1_95, %c0_96, %c0_97] : memref<5x8x8xf32, #tpu.memory_space<vmem>>, vector<1x8x8xf32>
    %91 = vector.shape_cast %90 : vector<1x8x8xf32> to vector<8x8xf32>
    %cst_98 = arith.constant dense<0.000000e+00> : vector<256x8xf32>
    %92 = tpu.matmul %89, %91, %cst_98 {dimension_numbers = #tpu.dot_dimension_numbers<[1], [0], [0], [1], [0, 0, 1, 1], [], []>} : vector<256x8xf32>, vector<8x8xf32>, vector<256x8xf32> -> vector<256x8xf32>
    %93 = arith.addf %87, %92 : vector<256x8xf32>
    %c1_99 = arith.constant 1 : index
    %c2_100 = arith.constant 2 : index
    %c0_101 = arith.constant 0 : index
    %94 = vector.load %arg10[%c1_99, %c2_100, %c0_101] : memref<20x20x8xf32, #tpu.memory_space<vmem>>, vector<16x16x8xf32>
    %95 = vector.shape_cast %94 : vector<16x16x8xf32> to vector<256x8xf32>
    %c1_102 = arith.constant 1 : index
    %c0_103 = arith.constant 0 : index
    %c0_104 = arith.constant 0 : index
    %96 = vector.load %arg5[%c1_102, %c0_103, %c0_104] : memref<5x8x8xf32, #tpu.memory_space<vmem>>, vector<1x8x8xf32>
    %97 = vector.shape_cast %96 : vector<1x8x8xf32> to vector<8x8xf32>
    %cst_105 = arith.constant dense<0.000000e+00> : vector<256x8xf32>
    %98 = tpu.matmul %95, %97, %cst_105 {dimension_numbers = #tpu.dot_dimension_numbers<[1], [0], [0], [1], [0, 0, 1, 1], [], []>} : vector<256x8xf32>, vector<8x8xf32>, vector<256x8xf32> -> vector<256x8xf32>
    %99 = arith.addf %93, %98 : vector<256x8xf32>
    %c2_106 = arith.constant 2 : index
    %c2_107 = arith.constant 2 : index
    %c0_108 = arith.constant 0 : index
    %100 = vector.load %arg10[%c2_106, %c2_107, %c0_108] : memref<20x20x8xf32, #tpu.memory_space<vmem>>, vector<16x16x8xf32>
    %101 = vector.shape_cast %100 : vector<16x16x8xf32> to vector<256x8xf32>
    %c2_109 = arith.constant 2 : index
    %c0_110 = arith.constant 0 : index
    %c0_111 = arith.constant 0 : index
    %102 = vector.load %arg4[%c2_109, %c0_110, %c0_111] : memref<5x8x8xf32, #tpu.memory_space<vmem>>, vector<1x8x8xf32>
    %103 = vector.shape_cast %102 : vector<1x8x8xf32> to vector<8x8xf32>
    %cst_112 = arith.constant dense<0.000000e+00> : vector<256x8xf32>
    %104 = tpu.matmul %101, %103, %cst_112 {dimension_numbers = #tpu.dot_dimension_numbers<[1], [0], [0], [1], [0, 0, 1, 1], [], []>} : vector<256x8xf32>, vector<8x8xf32>, vector<256x8xf32> -> vector<256x8xf32>
    %105 = arith.addf %99, %104 : vector<256x8xf32>
    %c2_113 = arith.constant 2 : index
    %c2_114 = arith.constant 2 : index
    %c0_115 = arith.constant 0 : index
    %106 = vector.load %arg10[%c2_113, %c2_114, %c0_115] : memref<20x20x8xf32, #tpu.memory_space<vmem>>, vector<16x16x8xf32>
    %107 = vector.shape_cast %106 : vector<16x16x8xf32> to vector<256x8xf32>
    %c2_116 = arith.constant 2 : index
    %c0_117 = arith.constant 0 : index
    %c0_118 = arith.constant 0 : index
    %108 = vector.load %arg5[%c2_116, %c0_117, %c0_118] : memref<5x8x8xf32, #tpu.memory_space<vmem>>, vector<1x8x8xf32>
    %109 = vector.shape_cast %108 : vector<1x8x8xf32> to vector<8x8xf32>
    %cst_119 = arith.constant dense<0.000000e+00> : vector<256x8xf32>
    %110 = tpu.matmul %107, %109, %cst_119 {dimension_numbers = #tpu.dot_dimension_numbers<[1], [0], [0], [1], [0, 0, 1, 1], [], []>} : vector<256x8xf32>, vector<8x8xf32>, vector<256x8xf32> -> vector<256x8xf32>
    %111 = arith.addf %105, %110 : vector<256x8xf32>
    %c2_120 = arith.constant 2 : index
    %c3_121 = arith.constant 3 : index
    %c0_122 = arith.constant 0 : index
    %112 = vector.load %arg10[%c2_120, %c3_121, %c0_122] : memref<20x20x8xf32, #tpu.memory_space<vmem>>, vector<16x16x8xf32>
    %113 = vector.shape_cast %112 : vector<16x16x8xf32> to vector<256x8xf32>
    %c3_123 = arith.constant 3 : index
    %c0_124 = arith.constant 0 : index
    %c0_125 = arith.constant 0 : index
    %114 = vector.load %arg4[%c3_123, %c0_124, %c0_125] : memref<5x8x8xf32, #tpu.memory_space<vmem>>, vector<1x8x8xf32>
    %115 = vector.shape_cast %114 : vector<1x8x8xf32> to vector<8x8xf32>
    %cst_126 = arith.constant dense<0.000000e+00> : vector<256x8xf32>
    %116 = tpu.matmul %113, %115, %cst_126 {dimension_numbers = #tpu.dot_dimension_numbers<[1], [0], [0], [1], [0, 0, 1, 1], [], []>} : vector<256x8xf32>, vector<8x8xf32>, vector<256x8xf32> -> vector<256x8xf32>
    %117 = arith.addf %111, %116 : vector<256x8xf32>
    %c3_127 = arith.constant 3 : index
    %c2_128 = arith.constant 2 : index
    %c0_129 = arith.constant 0 : index
    %118 = vector.load %arg10[%c3_127, %c2_128, %c0_129] : memref<20x20x8xf32, #tpu.memory_space<vmem>>, vector<16x16x8xf32>
    %119 = vector.shape_cast %118 : vector<16x16x8xf32> to vector<256x8xf32>
    %c3_130 = arith.constant 3 : index
    %c0_131 = arith.constant 0 : index
    %c0_132 = arith.constant 0 : index
    %120 = vector.load %arg5[%c3_130, %c0_131, %c0_132] : memref<5x8x8xf32, #tpu.memory_space<vmem>>, vector<1x8x8xf32>
    %121 = vector.shape_cast %120 : vector<1x8x8xf32> to vector<8x8xf32>
    %cst_133 = arith.constant dense<0.000000e+00> : vector<256x8xf32>
    %122 = tpu.matmul %119, %121, %cst_133 {dimension_numbers = #tpu.dot_dimension_numbers<[1], [0], [0], [1], [0, 0, 1, 1], [], []>} : vector<256x8xf32>, vector<8x8xf32>, vector<256x8xf32> -> vector<256x8xf32>
    %123 = arith.addf %117, %122 : vector<256x8xf32>
    %c2_134 = arith.constant 2 : index
    %c4_135 = arith.constant 4 : index
    %c0_136 = arith.constant 0 : index
    %124 = vector.load %arg10[%c2_134, %c4_135, %c0_136] : memref<20x20x8xf32, #tpu.memory_space<vmem>>, vector<16x16x8xf32>
    %125 = vector.shape_cast %124 : vector<16x16x8xf32> to vector<256x8xf32>
    %c4_137 = arith.constant 4 : index
    %c0_138 = arith.constant 0 : index
    %c0_139 = arith.constant 0 : index
    %126 = vector.load %arg4[%c4_137, %c0_138, %c0_139] : memref<5x8x8xf32, #tpu.memory_space<vmem>>, vector<1x8x8xf32>
    %127 = vector.shape_cast %126 : vector<1x8x8xf32> to vector<8x8xf32>
    %cst_140 = arith.constant dense<0.000000e+00> : vector<256x8xf32>
    %128 = tpu.matmul %125, %127, %cst_140 {dimension_numbers = #tpu.dot_dimension_numbers<[1], [0], [0], [1], [0, 0, 1, 1], [], []>} : vector<256x8xf32>, vector<8x8xf32>, vector<256x8xf32> -> vector<256x8xf32>
    %129 = arith.addf %123, %128 : vector<256x8xf32>
    %c4_141 = arith.constant 4 : index
    %c2_142 = arith.constant 2 : index
    %c0_143 = arith.constant 0 : index
    %130 = vector.load %arg10[%c4_141, %c2_142, %c0_143] : memref<20x20x8xf32, #tpu.memory_space<vmem>>, vector<16x16x8xf32>
    %131 = vector.shape_cast %130 : vector<16x16x8xf32> to vector<256x8xf32>
    %c4_144 = arith.constant 4 : index
    %c0_145 = arith.constant 0 : index
    %c0_146 = arith.constant 0 : index
    %132 = vector.load %arg5[%c4_144, %c0_145, %c0_146] : memref<5x8x8xf32, #tpu.memory_space<vmem>>, vector<1x8x8xf32>
    %133 = vector.shape_cast %132 : vector<1x8x8xf32> to vector<8x8xf32>
    %cst_147 = arith.constant dense<0.000000e+00> : vector<256x8xf32>
    %134 = tpu.matmul %131, %133, %cst_147 {dimension_numbers = #tpu.dot_dimension_numbers<[1], [0], [0], [1], [0, 0, 1, 1], [], []>} : vector<256x8xf32>, vector<8x8xf32>, vector<256x8xf32> -> vector<256x8xf32>
    %135 = arith.addf %129, %134 : vector<256x8xf32>
    %c0_148 = arith.constant 0 : index
    %c0_149 = arith.constant 0 : index
    %136 = vector.load %arg6[%c0_148, %c0_149] : memref<1x8xf32, #tpu.memory_space<vmem>>, vector<1x8xf32>
    %137 = vector.broadcast %136 : vector<1x8xf32> to vector<256x8xf32>
    %138 = arith.addf %135, %137 : vector<256x8xf32>
    %cst_150 = arith.constant 0.000000e+00 : f32
    %139 = vector.broadcast %cst_150 : f32 to vector<256x8xf32>
    %140 = arith.maximumf %138, %139 : vector<256x8xf32>
    %141 = vector.shape_cast %140 : vector<256x8xf32> to vector<16x16x8xf32>
    %c1_151 = arith.constant 1 : index
    %c1_152 = arith.constant 1 : index
    %c0_153 = arith.constant 0 : index
    %142 = vector.load %arg11[%c1_151, %c1_152, %c0_153] : memref<18x18x8xf32, #tpu.memory_space<vmem>>, vector<16x16x8xf32>
    tpu.vector_store %arg11[%c1_151, %c1_152, %c0_153], %141 {strides = array<i32>} : memref<18x18x8xf32, #tpu.memory_space<vmem>>, vector<16x16x8xf32>,
    %cst_154 = arith.constant 0.000000e+00 : f32
    %143 = vector.broadcast %cst_154 : f32 to vector<256x128xf32>
    %c0_155 = arith.constant 0 : index
    %c0_156 = arith.constant 0 : index
    %c0_157 = arith.constant 0 : index
    %144 = vector.load %arg11[%c0_155, %c0_156, %c0_157] : memref<18x18x8xf32, #tpu.memory_space<vmem>>, vector<16x16x8xf32>
    %145 = vector.shape_cast %144 : vector<16x16x8xf32> to vector<256x8xf32>
    %c0_158 = arith.constant 0 : index
    %c0_159 = arith.constant 0 : index
    %c0_160 = arith.constant 0 : index
    %146 = vector.load %arg7[%c0_158, %c0_159, %c0_160] : memref<9x8x128xf32, #tpu.memory_space<vmem>>, vector<1x8x128xf32>
    %147 = vector.shape_cast %146 : vector<1x8x128xf32> to vector<8x128xf32>
    %cst_161 = arith.constant dense<0.000000e+00> : vector<256x128xf32>
    %148 = tpu.matmul %145, %147, %cst_161 {dimension_numbers = #tpu.dot_dimension_numbers<[1], [0], [0], [1], [0, 0, 1, 1], [], []>} : vector<256x8xf32>, vector<8x128xf32>, vector<256x128xf32> -> vector<256x128xf32>
    %149 = arith.addf %143, %148 : vector<256x128xf32>
    %c0_162 = arith.constant 0 : index
    %c1_163 = arith.constant 1 : index
    %c0_164 = arith.constant 0 : index
    %150 = vector.load %arg11[%c0_162, %c1_163, %c0_164] : memref<18x18x8xf32, #tpu.memory_space<vmem>>, vector<16x16x8xf32>
    %151 = vector.shape_cast %150 : vector<16x16x8xf32> to vector<256x8xf32>
    %c1_165 = arith.constant 1 : index
    %c0_166 = arith.constant 0 : index
    %c0_167 = arith.constant 0 : index
    %152 = vector.load %arg7[%c1_165, %c0_166, %c0_167] : memref<9x8x128xf32, #tpu.memory_space<vmem>>, vector<1x8x128xf32>
    %153 = vector.shape_cast %152 : vector<1x8x128xf32> to vector<8x128xf32>
    %cst_168 = arith.constant dense<0.000000e+00> : vector<256x128xf32>
    %154 = tpu.matmul %151, %153, %cst_168 {dimension_numbers = #tpu.dot_dimension_numbers<[1], [0], [0], [1], [0, 0, 1, 1], [], []>} : vector<256x8xf32>, vector<8x128xf32>, vector<256x128xf32> -> vector<256x128xf32>
    %155 = arith.addf %149, %154 : vector<256x128xf32>
    %c0_169 = arith.constant 0 : index
    %c2_170 = arith.constant 2 : index
    %c0_171 = arith.constant 0 : index
    %156 = vector.load %arg11[%c0_169, %c2_170, %c0_171] : memref<18x18x8xf32, #tpu.memory_space<vmem>>, vector<16x16x8xf32>
    %157 = vector.shape_cast %156 : vector<16x16x8xf32> to vector<256x8xf32>
    %c2_172 = arith.constant 2 : index
    %c0_173 = arith.constant 0 : index
    %c0_174 = arith.constant 0 : index
    %158 = vector.load %arg7[%c2_172, %c0_173, %c0_174] : memref<9x8x128xf32, #tpu.memory_space<vmem>>, vector<1x8x128xf32>
    %159 = vector.shape_cast %158 : vector<1x8x128xf32> to vector<8x128xf32>
    %cst_175 = arith.constant dense<0.000000e+00> : vector<256x128xf32>
    %160 = tpu.matmul %157, %159, %cst_175 {dimension_numbers = #tpu.dot_dimension_numbers<[1], [0], [0], [1], [0, 0, 1, 1], [], []>} : vector<256x8xf32>, vector<8x128xf32>, vector<256x128xf32> -> vector<256x128xf32>
    %161 = arith.addf %155, %160 : vector<256x128xf32>
    %c1_176 = arith.constant 1 : index
    %c0_177 = arith.constant 0 : index
    %c0_178 = arith.constant 0 : index
    %162 = vector.load %arg11[%c1_176, %c0_177, %c0_178] : memref<18x18x8xf32, #tpu.memory_space<vmem>>, vector<16x16x8xf32>
    %163 = vector.shape_cast %162 : vector<16x16x8xf32> to vector<256x8xf32>
    %c3_179 = arith.constant 3 : index
    %c0_180 = arith.constant 0 : index
    %c0_181 = arith.constant 0 : index
    %164 = vector.load %arg7[%c3_179, %c0_180, %c0_181] : memref<9x8x128xf32, #tpu.memory_space<vmem>>, vector<1x8x128xf32>
    %165 = vector.shape_cast %164 : vector<1x8x128xf32> to vector<8x128xf32>
    %cst_182 = arith.constant dense<0.000000e+00> : vector<256x128xf32>
    %166 = tpu.matmul %163, %165, %cst_182 {dimension_numbers = #tpu.dot_dimension_numbers<[1], [0], [0], [1], [0, 0, 1, 1], [], []>} : vector<256x8xf32>, vector<8x128xf32>, vector<256x128xf32> -> vector<256x128xf32>
    %167 = arith.addf %161, %166 : vector<256x128xf32>
    %c1_183 = arith.constant 1 : index
    %c1_184 = arith.constant 1 : index
    %c0_185 = arith.constant 0 : index
    %168 = vector.load %arg11[%c1_183, %c1_184, %c0_185] : memref<18x18x8xf32, #tpu.memory_space<vmem>>, vector<16x16x8xf32>
    %169 = vector.shape_cast %168 : vector<16x16x8xf32> to vector<256x8xf32>
    %c4_186 = arith.constant 4 : index
    %c0_187 = arith.constant 0 : index
    %c0_188 = arith.constant 0 : index
    %170 = vector.load %arg7[%c4_186, %c0_187, %c0_188] : memref<9x8x128xf32, #tpu.memory_space<vmem>>, vector<1x8x128xf32>
    %171 = vector.shape_cast %170 : vector<1x8x128xf32> to vector<8x128xf32>
    %cst_189 = arith.constant dense<0.000000e+00> : vector<256x128xf32>
    %172 = tpu.matmul %169, %171, %cst_189 {dimension_numbers = #tpu.dot_dimension_numbers<[1], [0], [0], [1], [0, 0, 1, 1], [], []>} : vector<256x8xf32>, vector<8x128xf32>, vector<256x128xf32> -> vector<256x128xf32>
    %173 = arith.addf %167, %172 : vector<256x128xf32>
    %c1_190 = arith.constant 1 : index
    %c2_191 = arith.constant 2 : index
    %c0_192 = arith.constant 0 : index
    %174 = vector.load %arg11[%c1_190, %c2_191, %c0_192] : memref<18x18x8xf32, #tpu.memory_space<vmem>>, vector<16x16x8xf32>
    %175 = vector.shape_cast %174 : vector<16x16x8xf32> to vector<256x8xf32>
    %c5_193 = arith.constant 5 : index
    %c0_194 = arith.constant 0 : index
    %c0_195 = arith.constant 0 : index
    %176 = vector.load %arg7[%c5_193, %c0_194, %c0_195] : memref<9x8x128xf32, #tpu.memory_space<vmem>>, vector<1x8x128xf32>
    %177 = vector.shape_cast %176 : vector<1x8x128xf32> to vector<8x128xf32>
    %cst_196 = arith.constant dense<0.000000e+00> : vector<256x128xf32>
    %178 = tpu.matmul %175, %177, %cst_196 {dimension_numbers = #tpu.dot_dimension_numbers<[1], [0], [0], [1], [0, 0, 1, 1], [], []>} : vector<256x8xf32>, vector<8x128xf32>, vector<256x128xf32> -> vector<256x128xf32>
    %179 = arith.addf %173, %178 : vector<256x128xf32>
    %c2_197 = arith.constant 2 : index
    %c0_198 = arith.constant 0 : index
    %c0_199 = arith.constant 0 : index
    %180 = vector.load %arg11[%c2_197, %c0_198, %c0_199] : memref<18x18x8xf32, #tpu.memory_space<vmem>>, vector<16x16x8xf32>
    %181 = vector.shape_cast %180 : vector<16x16x8xf32> to vector<256x8xf32>
    %c6_200 = arith.constant 6 : index
    %c0_201 = arith.constant 0 : index
    %c0_202 = arith.constant 0 : index
    %182 = vector.load %arg7[%c6_200, %c0_201, %c0_202] : memref<9x8x128xf32, #tpu.memory_space<vmem>>, vector<1x8x128xf32>
    %183 = vector.shape_cast %182 : vector<1x8x128xf32> to vector<8x128xf32>
    %cst_203 = arith.constant dense<0.000000e+00> : vector<256x128xf32>
    %184 = tpu.matmul %181, %183, %cst_203 {dimension_numbers = #tpu.dot_dimension_numbers<[1], [0], [0], [1], [0, 0, 1, 1], [], []>} : vector<256x8xf32>, vector<8x128xf32>, vector<256x128xf32> -> vector<256x128xf32>
    %185 = arith.addf %179, %184 : vector<256x128xf32>
    %c2_204 = arith.constant 2 : index
    %c1_205 = arith.constant 1 : index
    %c0_206 = arith.constant 0 : index
    %186 = vector.load %arg11[%c2_204, %c1_205, %c0_206] : memref<18x18x8xf32, #tpu.memory_space<vmem>>, vector<16x16x8xf32>
    %187 = vector.shape_cast %186 : vector<16x16x8xf32> to vector<256x8xf32>
    %c7_207 = arith.constant 7 : index
    %c0_208 = arith.constant 0 : index
    %c0_209 = arith.constant 0 : index
    %188 = vector.load %arg7[%c7_207, %c0_208, %c0_209] : memref<9x8x128xf32, #tpu.memory_space<vmem>>, vector<1x8x128xf32>
    %189 = vector.shape_cast %188 : vector<1x8x128xf32> to vector<8x128xf32>
    %cst_210 = arith.constant dense<0.000000e+00> : vector<256x128xf32>
    %190 = tpu.matmul %187, %189, %cst_210 {dimension_numbers = #tpu.dot_dimension_numbers<[1], [0], [0], [1], [0, 0, 1, 1], [], []>} : vector<256x8xf32>, vector<8x128xf32>, vector<256x128xf32> -> vector<256x128xf32>
    %191 = arith.addf %185, %190 : vector<256x128xf32>
    %c2_211 = arith.constant 2 : index
    %c2_212 = arith.constant 2 : index
    %c0_213 = arith.constant 0 : index
    %192 = vector.load %arg11[%c2_211, %c2_212, %c0_213] : memref<18x18x8xf32, #tpu.memory_space<vmem>>, vector<16x16x8xf32>
    %193 = vector.shape_cast %192 : vector<16x16x8xf32> to vector<256x8xf32>
    %c8_214 = arith.constant 8 : index
    %c0_215 = arith.constant 0 : index
    %c0_216 = arith.constant 0 : index
    %194 = vector.load %arg7[%c8_214, %c0_215, %c0_216] : memref<9x8x128xf32, #tpu.memory_space<vmem>>, vector<1x8x128xf32>
    %195 = vector.shape_cast %194 : vector<1x8x128xf32> to vector<8x128xf32>
    %cst_217 = arith.constant dense<0.000000e+00> : vector<256x128xf32>
    %196 = tpu.matmul %193, %195, %cst_217 {dimension_numbers = #tpu.dot_dimension_numbers<[1], [0], [0], [1], [0, 0, 1, 1], [], []>} : vector<256x8xf32>, vector<8x128xf32>, vector<256x128xf32> -> vector<256x128xf32>
    %197 = arith.addf %191, %196 : vector<256x128xf32>
    %c0_218 = arith.constant 0 : index
    %c0_219 = arith.constant 0 : index
    %198 = vector.load %arg8[%c0_218, %c0_219] : memref<1x128xf32, #tpu.memory_space<vmem>>, vector<1x128xf32>
    %199 = vector.broadcast %198 : vector<1x128xf32> to vector<256x128xf32>
    %200 = arith.addf %197, %199 : vector<256x128xf32>
    %cst_220 = arith.constant 0.000000e+00 : f32
    %201 = vector.broadcast %cst_220 : f32 to vector<256x128xf32>
    %202 = arith.maximumf %200, %201 : vector<256x128xf32>
    %c0_221 = arith.constant 0 : index
    %c0_222 = arith.constant 0 : index
    %c0_223 = arith.constant 0 : index
    %203 = vector.load %arg9[%c0_221, %c0_222, %c0_223] : memref<1x256x128xf32, #tpu.memory_space<vmem>>, vector<1x256x128xf32>
    %204 = vector.shape_cast %203 : vector<1x256x128xf32> to vector<256x128xf32>
    %205 = vector.shape_cast %202 : vector<256x128xf32> to vector<1x256x128xf32>
    tpu.vector_store %arg9[%c0_221, %c0_222, %c0_223], %205 {strides = array<i32>} : memref<1x256x128xf32, #tpu.memory_space<vmem>>, vector<1x256x128xf32>,
    return
  }
  func.func @transform_0(%arg0: i32) -> (i32, i32, i32, i32) {
    %c0_i32 = arith.constant 0 : i32
    %c0_i32_0 = arith.constant 0 : i32
    %c0_i32_1 = arith.constant 0 : i32
    %c0_i32_2 = arith.constant 0 : i32
    return %arg0, %c0_i32, %c0_i32_0, %c0_i32_1 : i32, i32, i32, i32
  }
  func.func @transform_1(%arg0: i32) -> (i32, i32, i32) {
    %c0_i32 = arith.constant 0 : i32
    %c0_i32_0 = arith.constant 0 : i32
    %c0_i32_1 = arith.constant 0 : i32
    %c0_i32_2 = arith.constant 0 : i32
    return %c0_i32, %c0_i32_0, %c0_i32_1 : i32, i32, i32
  }
  func.func @transform_2(%arg0: i32) -> (i32, i32) {
    %c0_i32 = arith.constant 0 : i32
    %c0_i32_0 = arith.constant 0 : i32
    %c0_i32_1 = arith.constant 0 : i32
    return %c0_i32, %c0_i32_0 : i32, i32
  }
  func.func @transform_3(%arg0: i32) -> (i32, i32, i32) {
    %c0_i32 = arith.constant 0 : i32
    %c0_i32_0 = arith.constant 0 : i32
    %c0_i32_1 = arith.constant 0 : i32
    %c0_i32_2 = arith.constant 0 : i32
    return %c0_i32, %c0_i32_0, %c0_i32_1 : i32, i32, i32
  }
  func.func @transform_4(%arg0: i32) -> (i32, i32, i32) {
    %c0_i32 = arith.constant 0 : i32
    %c0_i32_0 = arith.constant 0 : i32
    %c0_i32_1 = arith.constant 0 : i32
    %c0_i32_2 = arith.constant 0 : i32
    return %c0_i32, %c0_i32_0, %c0_i32_1 : i32, i32, i32
  }
  func.func @transform_5(%arg0: i32) -> (i32, i32) {
    %c0_i32 = arith.constant 0 : i32
    %c0_i32_0 = arith.constant 0 : i32
    %c0_i32_1 = arith.constant 0 : i32
    return %c0_i32, %c0_i32_0 : i32, i32
  }
  func.func @transform_6(%arg0: i32) -> (i32, i32, i32) {
    %c0_i32 = arith.constant 0 : i32
    %c0_i32_0 = arith.constant 0 : i32
    %c0_i32_1 = arith.constant 0 : i32
    %c0_i32_2 = arith.constant 0 : i32
    return %c0_i32, %c0_i32_0, %c0_i32_1 : i32, i32, i32
  }
  func.func @transform_7(%arg0: i32) -> (i32, i32) {
    %c0_i32 = arith.constant 0 : i32
    %c0_i32_0 = arith.constant 0 : i32
    %c0_i32_1 = arith.constant 0 : i32
    return %c0_i32, %c0_i32_0 : i32, i32
  }
  func.func @transform_8(%arg0: i32) -> (i32, i32, i32) {
    %c0_i32 = arith.constant 0 : i32
    %c0_i32_0 = arith.constant 0 : i32
    %c0_i32_1 = arith.constant 0 : i32
    return %arg0, %c0_i32, %c0_i32_0 : i32, i32, i32
  }
}

</mosaic_0001>

<llo_original>
// kernel: _lk_forward.1
$region0: #{_lk_forward.1}
  #allocation0 [shape = 'u32[]', space=smem, size = 0x4, offset = 0x4, fixed_abs, tag = 'smem constant byte address 0x4 - core index']
  #allocation1 [shape = 'u32[144,128]{1,0:T(1,128)}', space=vmem, size = 0x12000, scoped, tag = 'internal scratch']
  #allocation2 [shape = 'f32[20,20,8]{2,1,0:T(8,128)}', space=vmem, size = 0x3c000, scoped, tag = 'scratch operand']
  #allocation3 [shape = 'f32[18,18,8]{2,1,0:T(8,128)}', space=vmem, size = 0x36000, scoped, tag = 'scratch operand']
  %s0 = inlined_call_operand.vmem [shape: f32[2,18,18,8], index: 0, kind: input, shape index: {}]
  %s1 = inlined_call_operand.vmem [shape: f32[9,8,8], index: 1, kind: input, shape index: {}]
  %s2 = inlined_call_operand.vmem [shape: f32[1,8], index: 2, kind: input, shape index: {}]
  %s3 = inlined_call_operand.vmem [shape: f32[5,8,8], index: 3, kind: input, shape index: {}]
  %s4 = inlined_call_operand.vmem [shape: f32[5,8,8], index: 4, kind: input, shape index: {}]
  %s5 = inlined_call_operand.vmem [shape: f32[1,8], index: 5, kind: input, shape index: {}]
  %s6 = inlined_call_operand.vmem [shape: f32[9,8,128], index: 6, kind: input, shape index: {}]
  %s7 = inlined_call_operand.vmem [shape: f32[1,128], index: 7, kind: input, shape index: {}]
  %s8 = inlined_call_operand.vmem [shape: f32[2,256,128], index: 8, kind: output, shape index: {}]
  %s9 = sld [smem:[#allocation0]]
  $region65: #{_lk_forward.1} parent=0
    _
  %s11 = ssub.s32 1, %s9
  %s12 = scalar_select 0, %s11, %s9
  loop: start=0, step=1, limit=4
  $region2: #{_lk_forward.1} parent=0 // loop_pre_header
    _
  $region3: #{_lk_forward.1} parent=0 // loop_header
    %s14 = sphi 0, %s18
    %p15 = scmp.ge.s32.totalorder %s14, 4
    %s24 = sphi 0, %s26
    %s27 = sphi 0, %s24
    %s28 = sphi 0, %s27
    %s44 = sphi 0, %s28
    %s48 = sphi 0, %s48
    %s50 = sphi 0, %s48
    %s51 = sphi 0, %s50
    %s65 = sphi 0, %s51
    %s69 = sphi 0, %s69
    %s71 = sphi 0, %s69
    %s72 = sphi 0, %s71
    %s86 = sphi 0, %s72
    %s90 = sphi 0, %s90
    %s92 = sphi 0, %s90
    %s93 = sphi 0, %s92
    %s107 = sphi 0, %s93
    %s111 = sphi 0, %s111
    %s113 = sphi 0, %s111
    %s114 = sphi 0, %s113
    %s128 = sphi 0, %s114
    %s132 = sphi 0, %s132
    %s134 = sphi 0, %s132
    %s135 = sphi 0, %s134
    %s149 = sphi 0, %s135
    %s153 = sphi 0, %s153
    %s155 = sphi 0, %s153
    %s156 = sphi 0, %s155
    %s170 = sphi 0, %s156
    %s174 = sphi 0, %s174
    %s176 = sphi 0, %s174
    %s177 = sphi 0, %s176
    %s191 = sphi 0, %s177
    %s197 = sphi 0, %s199
    %s200 = sphi 0, %s197
    %s201 = sphi 0, %s200
    %s217 = sphi 0, %s201
  $region4: #{_lk_forward.1} parent=0 // loop_header_branch
    %17 = sbr.rel (%p15) target = $region8
  $region5: #{_lk_forward.1} parent=0 // loop_body
    %s19 = ssub.s32 %s14, 1
    %s20 = ssub.s32 %s14, 2
    %s21 = sadd.s32 %s14, 1
    %s22 = ssub.s32 %s14, %s21
    %p23 = scmp.eq.s32.totalorder %s22, 0
    %s25 = sadd.s32 %s24, 1
    %s26 = scalar_select %p23, %s24, %s25
    %p29 = pneg %p23
    %p30 = scmp.eq.s32.totalorder %s14, 1
    %p31 = por %p29, %p30
    %p32 = scmp.ne.s32.totalorder %s24, %s27
    %p33 = scmp.eq.s32.totalorder %s14, 0
    %p34 = por %p32, %p33
    %p35 = scmp.ne.s32.totalorder %s24, %s27
    %p36 = scmp.eq.s32.totalorder %s19, 1
    %p37 = por %p35, %p36
    %p38 = scmp.ne.s32.totalorder %s27, %s28
    %p39 = scmp.eq.s32.totalorder %s19, 0
    %p40 = por %p38, %p39
    %p41 = scmp.ne.s32.totalorder %s27, %s28
    %p42 = scmp.eq.s32.totalorder %s20, 1
    %p43 = por %p41, %p42
    %p45 = scmp.ne.s32.totalorder %s28, %s44
    %p46 = scmp.eq.s32.totalorder %s20, 0
    %p47 = por %p45, %p46
    %s49 = sadd.s32 %s48, 1
    %p52 = scmp.eq.s32.totalorder %s14, 1
    %p53 = scmp.ne.s32.totalorder %s48, %s50
    %p54 = scmp.eq.s32.totalorder %s14, 0
    %p55 = por %p53, %p54
    %p56 = scmp.ne.s32.totalorder %s48, %s50
    %p57 = scmp.eq.s32.totalorder %s19, 1
    %p58 = por %p56, %p57
    %p59 = scmp.ne.s32.totalorder %s50, %s51
    %p60 = scmp.eq.s32.totalorder %s19, 0
    %p61 = por %p59, %p60
    %p62 = scmp.ne.s32.totalorder %s50, %s51
    %p63 = scmp.eq.s32.totalorder %s20, 1
    %p64 = por %p62, %p63
    %p66 = scmp.ne.s32.totalorder %s51, %s65
    %p67 = scmp.eq.s32.totalorder %s20, 0
    %p68 = por %p66, %p67
    %s70 = sadd.s32 %s69, 1
    %p73 = scmp.eq.s32.totalorder %s14, 1
    %p74 = scmp.ne.s32.totalorder %s69, %s71
    %p75 = scmp.eq.s32.totalorder %s14, 0
    %p76 = por %p74, %p75
    %p77 = scmp.ne.s32.totalorder %s69, %s71
    %p78 = scmp.eq.s32.totalorder %s19, 1
    %p79 = por %p77, %p78
    %p80 = scmp.ne.s32.totalorder %s71, %s72
    %p81 = scmp.eq.s32.totalorder %s19, 0
    %p82 = por %p80, %p81
    %p83 = scmp.ne.s32.totalorder %s71, %s72
    %p84 = scmp.eq.s32.totalorder %s20, 1
    %p85 = por %p83, %p84
    %p87 = scmp.ne.s32.totalorder %s72, %s86
    %p88 = scmp.eq.s32.totalorder %s20, 0
    %p89 = por %p87, %p88
    %s91 = sadd.s32 %s90, 1
    %p94 = scmp.eq.s32.totalorder %s14, 1
    %p95 = scmp.ne.s32.totalorder %s90, %s92
    %p96 = scmp.eq.s32.totalorder %s14, 0
    %p97 = por %p95, %p96
    %p98 = scmp.ne.s32.totalorder %s90, %s92
    %p99 = scmp.eq.s32.totalorder %s19, 1
    %p100 = por %p98, %p99
    %p101 = scmp.ne.s32.totalorder %s92, %s93
    %p102 = scmp.eq.s32.totalorder %s19, 0
    %p103 = por %p101, %p102
    %p104 = scmp.ne.s32.totalorder %s92, %s93
    %p105 = scmp.eq.s32.totalorder %s20, 1
    %p106 = por %p104, %p105
    %p108 = scmp.ne.s32.totalorder %s93, %s107
    %p109 = scmp.eq.s32.totalorder %s20, 0
    %p110 = por %p108, %p109
    %s112 = sadd.s32 %s111, 1
    %p115 = scmp.eq.s32.totalorder %s14, 1
    %p116 = scmp.ne.s32.totalorder %s111, %s113
    %p117 = scmp.eq.s32.totalorder %s14, 0
    %p118 = por %p116, %p117
    %p119 = scmp.ne.s32.totalorder %s111, %s113
    %p120 = scmp.eq.s32.totalorder %s19, 1
    %p121 = por %p119, %p120
    %p122 = scmp.ne.s32.totalorder %s113, %s114
    %p123 = scmp.eq.s32.totalorder %s19, 0
    %p124 = por %p122, %p123
    %p125 = scmp.ne.s32.totalorder %s113, %s114
    %p126 = scmp.eq.s32.totalorder %s20, 1
    %p127 = por %p125, %p126
    %p129 = scmp.ne.s32.totalorder %s114, %s128
    %p130 = scmp.eq.s32.totalorder %s20, 0
    %p131 = por %p129, %p130
    %s133 = sadd.s32 %s132, 1
    %p136 = scmp.eq.s32.totalorder %s14, 1
    %p137 = scmp.ne.s32.totalorder %s132, %s134
    %p138 = scmp.eq.s32.totalorder %s14, 0
    %p139 = por %p137, %p138
    %p140 = scmp.ne.s32.totalorder %s132, %s134
    %p141 = scmp.eq.s32.totalorder %s19, 1
    %p142 = por %p140, %p141
    %p143 = scmp.ne.s32.totalorder %s134, %s135
    %p144 = scmp.eq.s32.totalorder %s19, 0
    %p145 = por %p143, %p144
    %p146 = scmp.ne.s32.totalorder %s134, %s135
    %p147 = scmp.eq.s32.totalorder %s20, 1
    %p148 = por %p146, %p147
    %p150 = scmp.ne.s32.totalorder %s135, %s149
    %p151 = scmp.eq.s32.totalorder %s20, 0
    %p152 = por %p150, %p151
    %s154 = sadd.s32 %s153, 1
    %p157 = scmp.eq.s32.totalorder %s14, 1
    %p158 = scmp.ne.s32.totalorder %s153, %s155
    %p159 = scmp.eq.s32.totalorder %s14, 0
    %p160 = por %p158, %p159
    %p161 = scmp.ne.s32.totalorder %s153, %s155
    %p162 = scmp.eq.s32.totalorder %s19, 1
    %p163 = por %p161, %p162
    %p164 = scmp.ne.s32.totalorder %s155, %s156
    %p165 = scmp.eq.s32.totalorder %s19, 0
    %p166 = por %p164, %p165
    %p167 = scmp.ne.s32.totalorder %s155, %s156
    %p168 = scmp.eq.s32.totalorder %s20, 1
    %p169 = por %p167, %p168
    %p171 = scmp.ne.s32.totalorder %s156, %s170
    %p172 = scmp.eq.s32.totalorder %s20, 0
    %p173 = por %p171, %p172
    %s175 = sadd.s32 %s174, 1
    %p178 = scmp.eq.s32.totalorder %s14, 1
    %p179 = scmp.ne.s32.totalorder %s174, %s176
    %p180 = scmp.eq.s32.totalorder %s14, 0
    %p181 = por %p179, %p180
    %p182 = scmp.ne.s32.totalorder %s174, %s176
    %p183 = scmp.eq.s32.totalorder %s19, 1
    %p184 = por %p182, %p183
    %p185 = scmp.ne.s32.totalorder %s176, %s177
    %p186 = scmp.eq.s32.totalorder %s19, 0
    %p187 = por %p185, %p186
    %p188 = scmp.ne.s32.totalorder %s176, %s177
    %p189 = scmp.eq.s32.totalorder %s20, 1
    %p190 = por %p188, %p189
    %p192 = scmp.ne.s32.totalorder %s177, %s191
    %p193 = scmp.eq.s32.totalorder %s20, 0
    %p194 = por %p192, %p193
    %s195 = ssub.s32 %s14, %s21
    %p196 = scmp.eq.s32.totalorder %s195, 0
    %s198 = sadd.s32 %s197, 1
    %s199 = scalar_select %p196, %s197, %s198
    %p202 = pneg %p196
    %p203 = scmp.eq.s32.totalorder %s14, 1
    %p204 = por %p202, %p203
    %p205 = scmp.ne.s32.totalorder %s197, %s200
    %p206 = scmp.eq.s32.totalorder %s14, 0
    %p207 = por %p205, %p206
    %p208 = scmp.ne.s32.totalorder %s197, %s200
    %p209 = scmp.eq.s32.totalorder %s19, 1
    %p210 = por %p208, %p209
    %p211 = scmp.ne.s32.totalorder %s200, %s201
    %p212 = scmp.eq.s32.totalorder %s19, 0
    %p213 = por %p211, %p212
    %p214 = scmp.ne.s32.totalorder %s200, %s201
    %p215 = scmp.eq.s32.totalorder %s20, 1
    %p216 = por %p214, %p215
    %p218 = scmp.ne.s32.totalorder %s201, %s217
    %p219 = scmp.eq.s32.totalorder %s20, 0
    %p220 = por %p218, %p219
    %p221 = scmp.le.s32.totalorder 1, %s14
    %p222 = scmp.lt.s32.totalorder %s14, 3
    %p223 = pnand %p221, %p222
    %p224 = pneg %p223
    // Predicated region
    $region9: #{_lk_forward.1} parent=5 // pred_check
      _
    $region10: #{_lk_forward.1} parent=5 // pred_check_branch
      %226 = sbr.rel (%p223) target = $region12
    $region11: #{_lk_forward.1} parent=5 // pred_region
      %s227 = ssub.s32 %s14, 1
      // Predicated region
      $region13: #{_lk_forward.1} parent=11 // pred_check
        %p228 = pneg %p61
      $region14: #{_lk_forward.1} parent=11 // pred_check_branch
        %230 = sbr.rel (%p228) target = $region16
      $region15: #{_lk_forward.1} parent=11 // pred_region
        _
      $region16: #{_lk_forward.1} parent=11 // pred_fallthru
        _
      // Predicated region
      $region17: #{_lk_forward.1} parent=11 // pred_check
        %p231 = pneg %p82
      $region18: #{_lk_forward.1} parent=11 // pred_check_branch
        %233 = sbr.rel (%p231) target = $region20
      $region19: #{_lk_forward.1} parent=11 // pred_region
        _
      $region20: #{_lk_forward.1} parent=11 // pred_fallthru
        _
      // Predicated region
      $region21: #{_lk_forward.1} parent=11 // pred_check
        %p234 = pneg %p103
      $region22: #{_lk_forward.1} parent=11 // pred_check_branch
        %236 = sbr.rel (%p234) target = $region24
      $region23: #{_lk_forward.1} parent=11 // pred_region
        _
      $region24: #{_lk_forward.1} parent=11 // pred_fallthru
        _
      // Predicated region
      $region25: #{_lk_forward.1} parent=11 // pred_check
        %p237 = pneg %p124
      $region26: #{_lk_forward.1} parent=11 // pred_check_branch
        %239 = sbr.rel (%p237) target = $region28
      $region27: #{_lk_forward.1} parent=11 // pred_region
        _
      $region28: #{_lk_forward.1} parent=11 // pred_fallthru
        _
      // Predicated region
      $region29: #{_lk_forward.1} parent=11 // pred_check
        %p240 = pneg %p145
      $region30: #{_lk_forward.1} parent=11 // pred_check_branch
        %242 = sbr.rel (%p240) target = $region32
      $region31: #{_lk_forward.1} parent=11 // pred_region
        _
      $region32: #{_lk_forward.1} parent=11 // pred_fallthru
        _
      // Predicated region
      $region33: #{_lk_forward.1} parent=11 // pred_check
        %p243 = pneg %p166
      $region34: #{_lk_forward.1} parent=11 // pred_check_branch
        %245 = sbr.rel (%p243) target = $region36
      $region35: #{_lk_forward.1} parent=11 // pred_region
        _
      $region36: #{_lk_forward.1} parent=11 // pred_fallthru
        _
      // Predicated region
      $region37: #{_lk_forward.1} parent=11 // pred_check
        %p246 = pneg %p187
      $region38: #{_lk_forward.1} parent=11 // pred_check_branch
        %248 = sbr.rel (%p246) target = $region40
      $region39: #{_lk_forward.1} parent=11 // pred_region
        _
      $region40: #{_lk_forward.1} parent=11 // pred_fallthru
        _
    $region12: #{_lk_forward.1} parent=5 // pred_fallthru
      _
    %p249 = scmp.lt.s32.totalorder %s14, 2
    // Predicated region
    $region41: #{_lk_forward.1} parent=5 // pred_check
      %p250 = pneg %p249
    $region42: #{_lk_forward.1} parent=5 // pred_check_branch
      %252 = sbr.rel (%p250) target = $region44
    $region43: #{_lk_forward.1} parent=5 // pred_region
      // Predicated region
      $region45: #{_lk_forward.1} parent=43 // pred_check
        %p253 = pneg %p34
      $region46: #{_lk_forward.1} parent=43 // pred_check_branch
        %255 = sbr.rel (%p253) target = $region48
      $region47: #{_lk_forward.1} parent=43 // pred_region
        %p256 = scmp.lt.s32.totalorder %s14, 1
        %s257 = scalar_select %p256, %s14, 1
        %s258 = smul.addr %s257, 54
        %s259 = smul.addr %s258, 8
        %s260 = scalar_lea.vmem %s0, %s259
      $region48: #{_lk_forward.1} parent=43 // pred_fallthru
        _
    $region44: #{_lk_forward.1} parent=5 // pred_fallthru
      _
    %p261 = scmp.le.s32.totalorder 1, %s14
    %p262 = scmp.lt.s32.totalorder %s14, 3
    %p263 = pnand %p261, %p262
    %p264 = pneg %p263
    // Predicated region
    $region49: #{_lk_forward.1} parent=5 // pred_check
      _
    $region50: #{_lk_forward.1} parent=5 // pred_check_branch
      %266 = sbr.rel (%p263) target = $region52
    $region51: #{_lk_forward.1} parent=5 // pred_region
      %s267 = ssub.s32 %s14, 1
      %p268 = scmp.lt.s32.totalorder %s19, 1
      %s269 = scalar_select %p268, %s19, 1
      %s270 = smul.addr %s269, 54
      %s271 = smul.addr %s270, 8
      %s272 = scalar_lea.vmem %s0, %s271
      %p273 = pneg %p40
      %p274 = pneg %p37
      %p275 = pneg %p61
      %p276 = pneg %p58
      %p277 = pneg %p82
      %p278 = pneg %p79
      %p279 = pneg %p103
      %p280 = pneg %p100
      %p281 = pneg %p124
      %p282 = pneg %p121
      %p283 = pneg %p145
      %p284 = pneg %p142
      %p285 = pneg %p166
      %p286 = pneg %p163
      %p287 = pneg %p187
      %p288 = pneg %p184
      %p289 = pneg %p213
      %p290 = pneg %p210
      %p291 = scmp.lt.s32.totalorder %s19, 1
      %s292 = scalar_select %p291, %s19, 1
      %s293 = smul.addr %s292, 32
      %s294 = smul.addr %s293, 8
      %s295 = scalar_lea.vmem %s8, %s294
      %p296 = scmp.lt.s32.totalorder %s19, 1
      %s297 = scalar_select %p296, %s19, 1
      %s298 = smul.addr %s297, 54
      %s299 = smul.addr %s298, 8
      %s300 = scalar_lea.vmem %s0, %s299
      %p301 = scmp.lt.s32.totalorder %s19, 1
      %s302 = scalar_select %p301, %s19, 1
      %s303 = smul.addr %s302, 32
      %s304 = smul.addr %s303, 8
      %s305 = scalar_lea.vmem %s8, %s304
      %vm306 = vcmask 64512
      %307 = vst.msk [vmem:[#allocation2] sm:$0xff] %vm306, 0.0
      %308 = vst.msk [vmem:[#allocation2 + $0x8] sm:$0xff] %vm306, 0.0
      %vm309 = vcmask 60416
      %310 = vst.msk [vmem:[#allocation2 + $0x10] sm:$0xf] %vm309, 0.0
      %311 = vst.msk [vmem:[#allocation2 + $0x18] sm:$0xff] %vm306, 0.0
      %312 = vst.msk [vmem:[#allocation2 + $0x20] sm:$0xff] %vm306, 0.0
      %313 = vst.msk [vmem:[#allocation2 + $0x28] sm:$0xf] %vm309, 0.0
      %314 = vst.msk [vmem:[#allocation2 + $0x30] sm:$0xff] %vm306, 0.0
      %315 = vst.msk [vmem:[#allocation2 + $0x38] sm:$0xff] %vm306, 0.0
      %316 = vst.msk [vmem:[#allocation2 + $0x40] sm:$0xf] %vm309, 0.0
      %317 = vst.msk [vmem:[#allocation2 + $0x48] sm:$0xff] %vm306, 0.0
      %318 = vst.msk [vmem:[#allocation2 + $0x50] sm:$0xff] %vm306, 0.0
      %319 = vst.msk [vmem:[#allocation2 + $0x58] sm:$0xf] %vm309, 0.0
      %320 = vst.msk [vmem:[#allocation2 + $0x60] sm:$0xff] %vm306, 0.0
      %321 = vst.msk [vmem:[#allocation2 + $0x68] sm:$0xff] %vm306, 0.0
      %322 = vst.msk [vmem:[#allocation2 + $0x70] sm:$0xf] %vm309, 0.0
      %323 = vst.msk [vmem:[#allocation2 + $0x78] sm:$0xff] %vm306, 0.0
      %324 = vst.msk [vmem:[#allocation2 + $0x80] sm:$0xff] %vm306, 0.0
      %325 = vst.msk [vmem:[#allocation2 + $0x88] sm:$0xf] %vm309, 0.0
      %326 = vst.msk [vmem:[#allocation2 + $0x90] sm:$0xff] %vm306, 0.0
      %327 = vst.msk [vmem:[#allocation2 + $0x98] sm:$0xff] %vm306, 0.0
      %328 = vst.msk [vmem:[#allocation2 + $0xa0] sm:$0xf] %vm309, 0.0
      %329 = vst.msk [vmem:[#allocation2 + $0xa8] sm:$0xff] %vm306, 0.0
      %330 = vst.msk [vmem:[#allocation2 + $0xb0] sm:$0xff] %vm306, 0.0
      %331 = vst.msk [vmem:[#allocation2 + $0xb8] sm:$0xf] %vm309, 0.0
      %332 = vst.msk [vmem:[#allocation2 + $0xc0] sm:$0xff] %vm306, 0.0
      %333 = vst.msk [vmem:[#allocation2 + $0xc8] sm:$0xff] %vm306, 0.0
      %334 = vst.msk [vmem:[#allocation2 + $0xd0] sm:$0xf] %vm309, 0.0
      %335 = vst.msk [vmem:[#allocation2 + $0xd8] sm:$0xff] %vm306, 0.0
      %336 = vst.msk [vmem:[#allocation2 + $0xe0] sm:$0xff] %vm306, 0.0
      %337 = vst.msk [vmem:[#allocation2 + $0xe8] sm:$0xf] %vm309, 0.0
      %338 = vst.msk [vmem:[#allocation2 + $0xf0] sm:$0xff] %vm306, 0.0
      %339 = vst.msk [vmem:[#allocation2 + $0xf8] sm:$0xff] %vm306, 0.0
      %340 = vst.msk [vmem:[#allocation2 + $0x100] sm:$0xf] %vm309, 0.0
      %341 = vst.msk [vmem:[#allocation2 + $0x108] sm:$0xff] %vm306, 0.0
      %342 = vst.msk [vmem:[#allocation2 + $0x110] sm:$0xff] %vm306, 0.0
      %343 = vst.msk [vmem:[#allocation2 + $0x118] sm:$0xf] %vm309, 0.0
      %344 = vst.msk [vmem:[#allocation2 + $0x120] sm:$0xff] %vm306, 0.0
      %345 = vst.msk [vmem:[#allocation2 + $0x128] sm:$0xff] %vm306, 0.0
      %346 = vst.msk [vmem:[#allocation2 + $0x130] sm:$0xf] %vm309, 0.0
      %347 = vst.msk [vmem:[#allocation2 + $0x138] sm:$0xff] %vm306, 0.0
      %348 = vst.msk [vmem:[#allocation2 + $0x140] sm:$0xff] %vm306, 0.0
      %349 = vst.msk [vmem:[#allocation2 + $0x148] sm:$0xf] %vm309, 0.0
      %350 = vst.msk [vmem:[#allocation2 + $0x150] sm:$0xff] %vm306, 0.0
      %351 = vst.msk [vmem:[#allocation2 + $0x158] sm:$0xff] %vm306, 0.0
      %352 = vst.msk [vmem:[#allocation2 + $0x160] sm:$0xf] %vm309, 0.0
      %353 = vst.msk [vmem:[#allocation2 + $0x168] sm:$0xff] %vm306, 0.0
      %354 = vst.msk [vmem:[#allocation2 + $0x170] sm:$0xff] %vm306, 0.0
      %355 = vst.msk [vmem:[#allocation2 + $0x178] sm:$0xf] %vm309, 0.0
      %356 = vst.msk [vmem:[#allocation2 + $0x180] sm:$0xff] %vm306, 0.0
      %357 = vst.msk [vmem:[#allocation2 + $0x188] sm:$0xff] %vm306, 0.0
      %358 = vst.msk [vmem:[#allocation2 + $0x190] sm:$0xf] %vm309, 0.0
      %359 = vst.msk [vmem:[#allocation2 + $0x198] sm:$0xff] %vm306, 0.0
      %360 = vst.msk [vmem:[#allocation2 + $0x1a0] sm:$0xff] %vm306, 0.0
      %361 = vst.msk [vmem:[#allocation2 + $0x1a8] sm:$0xf] %vm309, 0.0
      %362 = vst.msk [vmem:[#allocation2 + $0x1b0] sm:$0xff] %vm306, 0.0
      %363 = vst.msk [vmem:[#allocation2 + $0x1b8] sm:$0xff] %vm306, 0.0
      %364 = vst.msk [vmem:[#allocation2 + $0x1c0] sm:$0xf] %vm309, 0.0
      %365 = vst.msk [vmem:[#allocation2 + $0x1c8] sm:$0xff] %vm306, 0.0
      %366 = vst.msk [vmem:[#allocation2 + $0x1d0] sm:$0xff] %vm306, 0.0
      %367 = vst.msk [vmem:[#allocation2 + $0x1d8] sm:$0xf] %vm309, 0.0
      %368 = vst.msk [vmem:[#allocation3] sm:$0xff] %vm306, 0.0
      %369 = vst.msk [vmem:[#allocation3 + $0x8] sm:$0xff] %vm306, 0.0
      %vm370 = vcmask 58368
      %371 = vst.msk [vmem:[#allocation3 + $0x10] sm:$0x3] %vm370, 0.0
      %372 = vst.msk [vmem:[#allocation3 + $0x18] sm:$0xff] %vm306, 0.0
      %373 = vst.msk [vmem:[#allocation3 + $0x20] sm:$0xff] %vm306, 0.0
      %374 = vst.msk [vmem:[#allocation3 + $0x28] sm:$0x3] %vm370, 0.0
      %375 = vst.msk [vmem:[#allocation3 + $0x30] sm:$0xff] %vm306, 0.0
      %376 = vst.msk [vmem:[#allocation3 + $0x38] sm:$0xff] %vm306, 0.0
      %377 = vst.msk [vmem:[#allocation3 + $0x40] sm:$0x3] %vm370, 0.0
      %378 = vst.msk [vmem:[#allocation3 + $0x48] sm:$0xff] %vm306, 0.0
      %379 = vst.msk [vmem:[#allocation3 + $0x50] sm:$0xff] %vm306, 0.0
      %380 = vst.msk [vmem:[#allocation3 + $0x58] sm:$0x3] %vm370, 0.0
      %381 = vst.msk [vmem:[#allocation3 + $0x60] sm:$0xff] %vm306, 0.0
      %382 = vst.msk [vmem:[#allocation3 + $0x68] sm:$0xff] %vm306, 0.0
      %383 = vst.msk [vmem:[#allocation3 + $0x70] sm:$0x3] %vm370, 0.0
      %384 = vst.msk [vmem:[#allocation3 + $0x78] sm:$0xff] %vm306, 0.0
      %385 = vst.msk [vmem:[#allocation3 + $0x80] sm:$0xff] %vm306, 0.0
      %386 = vst.msk [vmem:[#allocation3 + $0x88] sm:$0x3] %vm370, 0.0
      %387 = vst.msk [vmem:[#allocation3 + $0x90] sm:$0xff] %vm306, 0.0
      %388 = vst.msk [vmem:[#allocation3 + $0x98] sm:$0xff] %vm306, 0.0
      %389 = vst.msk [vmem:[#allocation3 + $0xa0] sm:$0x3] %vm370, 0.0
      %390 = vst.msk [vmem:[#allocation3 + $0xa8] sm:$0xff] %vm306, 0.0
      %391 = vst.msk [vmem:[#allocation3 + $0xb0] sm:$0xff] %vm306, 0.0
      %392 = vst.msk [vmem:[#allocation3 + $0xb8] sm:$0x3] %vm370, 0.0
      %393 = vst.msk [vmem:[#allocation3 + $0xc0] sm:$0xff] %vm306, 0.0
      %394 = vst.msk [vmem:[#allocation3 + $0xc8] sm:$0xff] %vm306, 0.0
      %395 = vst.msk [vmem:[#allocation3 + $0xd0] sm:$0x3] %vm370, 0.0
      %396 = vst.msk [vmem:[#allocation3 + $0xd8] sm:$0xff] %vm306, 0.0
      %397 = vst.msk [vmem:[#allocation3 + $0xe0] sm:$0xff] %vm306, 0.0
      %398 = vst.msk [vmem:[#allocation3 + $0xe8] sm:$0x3] %vm370, 0.0
      %399 = vst.msk [vmem:[#allocation3 + $0xf0] sm:$0xff] %vm306, 0.0
      %400 = vst.msk [vmem:[#allocation3 + $0xf8] sm:$0xff] %vm306, 0.0
      %401 = vst.msk [vmem:[#allocation3 + $0x100] sm:$0x3] %vm370, 0.0
      %402 = vst.msk [vmem:[#allocation3 + $0x108] sm:$0xff] %vm306, 0.0
      %403 = vst.msk [vmem:[#allocation3 + $0x110] sm:$0xff] %vm306, 0.0
      %404 = vst.msk [vmem:[#allocation3 + $0x118] sm:$0x3] %vm370, 0.0
      %405 = vst.msk [vmem:[#allocation3 + $0x120] sm:$0xff] %vm306, 0.0
      %406 = vst.msk [vmem:[#allocation3 + $0x128] sm:$0xff] %vm306, 0.0
      %407 = vst.msk [vmem:[#allocation3 + $0x130] sm:$0x3] %vm370, 0.0
      %408 = vst.msk [vmem:[#allocation3 + $0x138] sm:$0xff] %vm306, 0.0
      %409 = vst.msk [vmem:[#allocation3 + $0x140] sm:$0xff] %vm306, 0.0
      %410 = vst.msk [vmem:[#allocation3 + $0x148] sm:$0x3] %vm370, 0.0
      %411 = vst.msk [vmem:[#allocation3 + $0x150] sm:$0xff] %vm306, 0.0
      %412 = vst.msk [vmem:[#allocation3 + $0x158] sm:$0xff] %vm306, 0.0
      %413 = vst.msk [vmem:[#allocation3 + $0x160] sm:$0x3] %vm370, 0.0
      %414 = vst.msk [vmem:[#allocation3 + $0x168] sm:$0xff] %vm306, 0.0
      %415 = vst.msk [vmem:[#allocation3 + $0x170] sm:$0xff] %vm306, 0.0
      %416 = vst.msk [vmem:[#allocation3 + $0x178] sm:$0x3] %vm370, 0.0
      %417 = vst.msk [vmem:[#allocation3 + $0x180] sm:$0xff] %vm306, 0.0
      %418 = vst.msk [vmem:[#allocation3 + $0x188] sm:$0xff] %vm306, 0.0
      %419 = vst.msk [vmem:[#allocation3 + $0x190] sm:$0x3] %vm370, 0.0
      %420 = vst.msk [vmem:[#allocation3 + $0x198] sm:$0xff] %vm306, 0.0
      %421 = vst.msk [vmem:[#allocation3 + $0x1a0] sm:$0xff] %vm306, 0.0
      %422 = vst.msk [vmem:[#allocation3 + $0x1a8] sm:$0x3] %vm370, 0.0
      %v423 = vld [vmem:[%s300] sm:$0xff]
      %v424 = vld [vmem:[%s300 + $0x8] sm:$0xff]
      %v425 = vld [vmem:[%s300 + $0x18] sm:$0xff]
      %v426 = vld [vmem:[%s300 + $0x20] sm:$0xff]
      %v427 = vld [vmem:[%s300 + $0x30] sm:$0xff]
      %v428 = vld [vmem:[%s300 + $0x38] sm:$0xff]
      %v429 = vld [vmem:[%s300 + $0x48] sm:$0xff]
      %v430 = vld [vmem:[%s300 + $0x50] sm:$0xff]
      %v431 = vld [vmem:[%s300 + $0x60] sm:$0xff]
      %v432 = vld [vmem:[%s300 + $0x68] sm:$0xff]
      %v433 = vld [vmem:[%s300 + $0x78] sm:$0xff]
      %v434 = vld [vmem:[%s300 + $0x80] sm:$0xff]
      %v435 = vld [vmem:[%s300 + $0x90] sm:$0xff]
      %v436 = vld [vmem:[%s300 + $0x98] sm:$0xff]
      %v437 = vld [vmem:[%s300 + $0xa8] sm:$0xff]
      %v438 = vld [vmem:[%s300 + $0xb0] sm:$0xff]
      %v439 = vld [vmem:[%s300 + $0xc0] sm:$0xff]
      %v440 = vld [vmem:[%s300 + $0xc8] sm:$0xff]
      %v441 = vld [vmem:[%s300 + $0xd8] sm:$0xff]
      %v442 = vld [vmem:[%s300 + $0xe0] sm:$0xff]
      %v443 = vld [vmem:[%s300 + $0xf0] sm:$0xff]
      %v444 = vld [vmem:[%s300 + $0xf8] sm:$0xff]
      %v445 = vld [vmem:[%s300 + $0x108] sm:$0xff]
      %v446 = vld [vmem:[%s300 + $0x110] sm:$0xff]
      %v447 = vld [vmem:[%s300 + $0x120] sm:$0xff]
      %v448 = vld [vmem:[%s300 + $0x128] sm:$0xff]
      %v449 = vld [vmem:[%s300 + $0x138] sm:$0xff]
      %v450 = vld [vmem:[%s300 + $0x140] sm:$0xff]
      %v451 = vld [vmem:[%s300 + $0x150] sm:$0xff]
      %v452 = vld [vmem:[%s300 + $0x158] sm:$0xff]
      %v453 = vld [vmem:[%s300 + $0x168] sm:$0xff]
      %v454 = vld [vmem:[%s300 + $0x170] sm:$0xff]
      %v455 = vld [vmem:[%s1] sm:$0xff]
      %v456 = vld [vmem:[%s300 + $0x1] sm:$0xff]
      %v457 = vld [vmem:[%s300 + $0x9] sm:$0xff]
      %v458 = vld [vmem:[%s300 + $0x19] sm:$0xff]
      %v459 = vld [vmem:[%s300 + $0x21] sm:$0xff]
      %v460 = vld [vmem:[%s300 + $0x31] sm:$0xff]
      %v461 = vld [vmem:[%s300 + $0x39] sm:$0xff]
      %v462 = vld [vmem:[%s300 + $0x49] sm:$0xff]
      %v463 = vld [vmem:[%s300 + $0x51] sm:$0xff]
      %v464 = vld [vmem:[%s300 + $0x61] sm:$0xff]
      %v465 = vld [vmem:[%s300 + $0x69] sm:$0xff]
      %v466 = vld [vmem:[%s300 + $0x79] sm:$0xff]
      %v467 = vld [vmem:[%s300 + $0x81] sm:$0xff]
      %v468 = vld [vmem:[%s300 + $0x91] sm:$0xff]
      %v469 = vld [vmem:[%s300 + $0x99] sm:$0xff]
      %v470 = vld [vmem:[%s300 + $0xa9] sm:$0xff]
      %v471 = vld [vmem:[%s300 + $0xb1] sm:$0xff]
      %v472 = vld [vmem:[%s300 + $0xc1] sm:$0xff]
      %v473 = vld [vmem:[%s300 + $0xc9] sm:$0xff]
      %v474 = vld [vmem:[%s300 + $0xd9] sm:$0xff]
      %v475 = vld [vmem:[%s300 + $0xe1] sm:$0xff]
      %v476 = vld [vmem:[%s300 + $0xf1] sm:$0xff]
      %v477 = vld [vmem:[%s300 + $0xf9] sm:$0xff]
      %v478 = vld [vmem:[%s300 + $0x109] sm:$0xff]
      %v479 = vld [vmem:[%s300 + $0x111] sm:$0xff]
      %v480 = vld [vmem:[%s300 + $0x121] sm:$0xff]
      %v481 = vld [vmem:[%s300 + $0x129] sm:$0xff]
      %v482 = vld [vmem:[%s300 + $0x139] sm:$0xff]
      %v483 = vld [vmem:[%s300 + $0x141] sm:$0xff]
      %v484 = vld [vmem:[%s300 + $0x151] sm:$0xff]
      %v485 = vld [vmem:[%s300 + $0x159] sm:$0xff]
      %v486 = vld [vmem:[%s300 + $0x169] sm:$0xff]
      %v487 = vld [vmem:[%s300 + $0x171] sm:$0xff]
      %s488 = scalar_lea.vmem %s1, 8
      %v489 = vld [vmem:[%s488] sm:$0xff]
      %v491 = vsel %vm306, %v456, 0
      %v494 = vsel %vm306, %v457, 0
      %v497 = vsel %vm306, %v458, 0
      %v500 = vsel %vm306, %v459, 0
      %v503 = vsel %vm306, %v460, 0
      %v506 = vsel %vm306, %v461, 0
      %v509 = vsel %vm306, %v462, 0
      %v512 = vsel %vm306, %v463, 0
      %v515 = vsel %vm306, %v464, 0
      %v518 = vsel %vm306, %v465, 0
      %v521 = vsel %vm306, %v466, 0
      %v524 = vsel %vm306, %v467, 0
      %v527 = vsel %vm306, %v468, 0
      %v530 = vsel %vm306, %v469, 0
      %v533 = vsel %vm306, %v470, 0
      %v536 = vsel %vm306, %v471, 0
      %v539 = vsel %vm306, %v472, 0
      %v542 = vsel %vm306, %v473, 0
      %v545 = vsel %vm306, %v474, 0
      %v548 = vsel %vm306, %v475, 0
      %v551 = vsel %vm306, %v476, 0
      %v554 = vsel %vm306, %v477, 0
      %v557 = vsel %vm306, %v478, 0
      %v560 = vsel %vm306, %v479, 0
      %v563 = vsel %vm306, %v480, 0
      %v566 = vsel %vm306, %v481, 0
      %v569 = vsel %vm306, %v482, 0
      %v572 = vsel %vm306, %v483, 0
      %v575 = vsel %vm306, %v484, 0
      %v578 = vsel %vm306, %v485, 0
      %v581 = vsel %vm306, %v486, 0
      %v584 = vsel %vm306, %v487, 0
      %586 = vmatprep.subr.mxu0 0.0
      %587 = vmatpush1.msra.mxu0 %v489
      %588 = vmatprep.subr.mxu0 0.0
      %589 = vmatpush1.msra.mxu0 0.0
      %590 = vmatprep.subr.mxu0 0.0
      %591 = vmatpush1.msra.mxu0 0.0
      %592 = vmatprep.subr.mxu0 0.0
      %593 = vmatpush1.msra.mxu0 0.0
      %594 = vmatprep.subr.mxu0 0.0
      %595 = vmatpush1.msra.mxu0 0.0
      %596 = vmatprep.subr.mxu0 0.0
      %597 = vmatpush1.msra.mxu0 0.0
      %598 = vmatprep.subr.mxu0 0.0
      %599 = vmatpush1.msra.mxu0 0.0
      %600 = vmatprep.subr.mxu0 0.0
      %601 = vmatpush1.msra.mxu0 0.0
      %602 = vmatprep.subr.mxu0 0.0
      %603 = vmatpush1.msra.mxu0 0.0
      %604 = vmatprep.subr.mxu0 0.0
      %605 = vmatpush1.msra.mxu0 0.0
      %606 = vmatprep.subr.mxu0 0.0
      %607 = vmatpush1.msra.mxu0 0.0
      %608 = vmatprep.subr.mxu0 0.0
      %609 = vmatpush1.msra.mxu0 0.0
      %610 = vmatprep.subr.mxu0 0.0
      %611 = vmatpush1.msra.mxu0 0.0
      %612 = vmatprep.subr.mxu0 0.0
      %613 = vmatpush1.msra.mxu0 0.0
      %614 = vmatprep.subr.mxu0 0.0
      %615 = vmatpush1.msra.mxu0 0.0
      %616 = vmatprep.subr.mxu0 0.0
      %617 = vmatpush1.msra.mxu0 0.0
      %618 = vmatprep.subr.mxu0 0.0
      %619 = vmatpush1.msra.mxu0 0.0
      %620 = vmatprep.subr.mxu0 0.0
      %621 = vmatpush1.msra.mxu0 0.0
      %622 = vmatprep.subr.mxu0 0.0
      %623 = vmatpush1.msra.mxu0 0.0
      %624 = vmatprep.subr.mxu0 0.0
      %625 = vmatpush1.msra.mxu0 0.0
      %626 = vmatprep.subr.mxu0 0.0
      %627 = vmatpush1.msra.mxu0 0.0
      %628 = vmatprep.subr.mxu0 0.0
      %629 = vmatpush1.msra.mxu0 0.0
      %630 = vmatprep.subr.mxu0 0.0
      %631 = vmatpush1.msra.mxu0 0.0
      %632 = vmatprep.subr.mxu0 0.0
      %633 = vmatpush1.msra.mxu0 0.0
      %634 = vmatprep.subr.mxu0 0.0
      %635 = vmatpush1.msra.mxu0 0.0
      %636 = vmatprep.subr.mxu0 0.0
      %637 = vmatpush1.msra.mxu0 0.0
      %638 = vmatprep.subr.mxu0 0.0
      %639 = vmatpush1.msra.mxu0 0.0
      %640 = vmatprep.subr.mxu0 0.0
      %641 = vmatpush1.msra.mxu0 0.0
      %642 = vmatprep.subr.mxu0 0.0
      %643 = vmatpush1.msra.mxu0 0.0
      %644 = vmatprep.subr.mxu0 0.0
      %645 = vmatpush1.msra.mxu0 0.0
      %646 = vmatprep.subr.mxu0 0.0
      %647 = vmatpush1.msra.mxu0 0.0
      %648 = vmatprep.subr.mxu0 0.0
      %649 = vmatpush1.msra.mxu0 0.0
      %650 = vmatprep.mubr.f32.mxu0 0.0
      %651 = vmatmul.mubr.f32.gmra.mrb[0].mxu0 %v491
      %v652 = vpop.f32.mrb[0].mxu0
      %v653 = vadd.f32 0.0, %v652
      %v654 = vpop.f32.mrb[0].mxu0
      %655 = vmatprep.mubr.f32.mxu0 0.0
      %656 = vmatmul.mubr.f32.gmra.mrb[0].mxu0 %v494
      %v657 = vpop.f32.mrb[0].mxu0
      %v658 = vadd.f32 0.0, %v657
      %v659 = vpop.f32.mrb[0].mxu0
      %660 = vmatprep.mubr.f32.mxu0 0.0
      %661 = vmatmul.mubr.f32.gmra.mrb[0].mxu0 %v497
      %v662 = vpop.f32.mrb[0].mxu0
      %v663 = vadd.f32 0.0, %v662
      %v664 = vpop.f32.mrb[0].mxu0
      %665 = vmatprep.mubr.f32.mxu0 0.0
      %666 = vmatmul.mubr.f32.gmra.mrb[0].mxu0 %v500
      %v667 = vpop.f32.mrb[0].mxu0
      %v668 = vadd.f32 0.0, %v667
      %v669 = vpop.f32.mrb[0].mxu0
      %670 = vmatprep.mubr.f32.mxu0 0.0
      %671 = vmatmul.mubr.f32.gmra.mrb[0].mxu0 %v503
      %v672 = vpop.f32.mrb[0].mxu0
      %v673 = vadd.f32 0.0, %v672
      %v674 = vpop.f32.mrb[0].mxu0
      %675 = vmatprep.mubr.f32.mxu0 0.0
      %676 = vmatmul.mubr.f32.gmra.mrb[0].mxu0 %v506
      %v677 = vpop.f32.mrb[0].mxu0
      %v678 = vadd.f32 0.0, %v677
      %v679 = vpop.f32.mrb[0].mxu0
      %680 = vmatprep.mubr.f32.mxu0 0.0
      %681 = vmatmul.mubr.f32.gmra.mrb[0].mxu0 %v509
      %v682 = vpop.f32.mrb[0].mxu0
      %v683 = vadd.f32 0.0, %v682
      %v684 = vpop.f32.mrb[0].mxu0
      %685 = vmatprep.mubr.f32.mxu0 0.0
      %686 = vmatmul.mubr.f32.gmra.mrb[0].mxu0 %v512
      %v687 = vpop.f32.mrb[0].mxu0
      %v688 = vadd.f32 0.0, %v687
      %v689 = vpop.f32.mrb[0].mxu0
      %690 = vmatprep.mubr.f32.mxu0 0.0
      %691 = vmatmul.mubr.f32.gmra.mrb[0].mxu0 %v515
      %v692 = vpop.f32.mrb[0].mxu0
      %v693 = vadd.f32 0.0, %v692
      %v694 = vpop.f32.mrb[0].mxu0
      %695 = vmatprep.mubr.f32.mxu0 0.0
      %696 = vmatmul.mubr.f32.gmra.mrb[0].mxu0 %v518
      %v697 = vpop.f32.mrb[0].mxu0
      %v698 = vadd.f32 0.0, %v697
      %v699 = vpop.f32.mrb[0].mxu0
      %700 = vmatprep.mubr.f32.mxu0 0.0
      %701 = vmatmul.mubr.f32.gmra.mrb[0].mxu0 %v521
      %v702 = vpop.f32.mrb[0].mxu0
      %v703 = vadd.f32 0.0, %v702
      %v704 = vpop.f32.mrb[0].mxu0
      %705 = vmatprep.mubr.f32.mxu0 0.0
      %706 = vmatmul.mubr.f32.gmra.mrb[0].mxu0 %v524
      %v707 = vpop.f32.mrb[0].mxu0
      %v708 = vadd.f32 0.0, %v707
      %v709 = vpop.f32.mrb[0].mxu0
      %710 = vmatprep.mubr.f32.mxu0 0.0
      %711 = vmatmul.mubr.f32.gmra.mrb[0].mxu0 %v527
      %v712 = vpop.f32.mrb[0].mxu0
      %v713 = vadd.f32 0.0, %v712
      %v714 = vpop.f32.mrb[0].mxu0
      %715 = vmatprep.mubr.f32.mxu0 0.0
      %716 = vmatmul.mubr.f32.gmra.mrb[0].mxu0 %v530
      %v717 = vpop.f32.mrb[0].mxu0
      %v718 = vadd.f32 0.0, %v717
      %v719 = vpop.f32.mrb[0].mxu0
      %720 = vmatprep.mubr.f32.mxu0 0.0
      %721 = vmatmul.mubr.f32.gmra.mrb[0].mxu0 %v533
      %v722 = vpop.f32.mrb[0].mxu0
      %v723 = vadd.f32 0.0, %v722
      %v724 = vpop.f32.mrb[0].mxu0
      %725 = vmatprep.mubr.f32.mxu0 0.0
      %726 = vmatmul.mubr.f32.gmra.mrb[0].mxu0 %v536
      %v727 = vpop.f32.mrb[0].mxu0
      %v728 = vadd.f32 0.0, %v727
      %v729 = vpop.f32.mrb[0].mxu0
      %730 = vmatprep.mubr.f32.mxu0 0.0
      %731 = vmatmul.mubr.f32.gmra.mrb[0].mxu0 %v539
      %v732 = vpop.f32.mrb[0].mxu0
      %v733 = vadd.f32 0.0, %v732
      %v734 = vpop.f32.mrb[0].mxu0
      %735 = vmatprep.mubr.f32.mxu0 0.0
      %736 = vmatmul.mubr.f32.gmra.mrb[0].mxu0 %v542
      %v737 = vpop.f32.mrb[0].mxu0
      %v738 = vadd.f32 0.0, %v737
      %v739 = vpop.f32.mrb[0].mxu0
      %740 = vmatprep.mubr.f32.mxu0 0.0
      %741 = vmatmul.mubr.f32.gmra.mrb[0].mxu0 %v545
      %v742 = vpop.f32.mrb[0].mxu0
      %v743 = vadd.f32 0.0, %v742
      %v744 = vpop.f32.mrb[0].mxu0
      %745 = vmatprep.mubr.f32.mxu0 0.0
      %746 = vmatmul.mubr.f32.gmra.mrb[0].mxu0 %v548
      %v747 = vpop.f32.mrb[0].mxu0
      %v748 = vadd.f32 0.0, %v747
      %v749 = vpop.f32.mrb[0].mxu0
      %750 = vmatprep.mubr.f32.mxu0 0.0
      %751 = vmatmul.mubr.f32.gmra.mrb[0].mxu0 %v551
      %v752 = vpop.f32.mrb[0].mxu0
      %v753 = vadd.f32 0.0, %v752
      %v754 = vpop.f32.mrb[0].mxu0
      %755 = vmatprep.mubr.f32.mxu0 0.0
      %756 = vmatmul.mubr.f32.gmra.mrb[0].mxu0 %v554
      %v757 = vpop.f32.mrb[0].mxu0
      %v758 = vadd.f32 0.0, %v757
      %v759 = vpop.f32.mrb[0].mxu0
      %760 = vmatprep.mubr.f32.mxu0 0.0
      %761 = vmatmul.mubr.f32.gmra.mrb[0].mxu0 %v557
      %v762 = vpop.f32.mrb[0].mxu0
      %v763 = vadd.f32 0.0, %v762
      %v764 = vpop.f32.mrb[0].mxu0
      %765 = vmatprep.mubr.f32.mxu0 0.0
      %766 = vmatmul.mubr.f32.gmra.mrb[0].mxu0 %v560
      %v767 = vpop.f32.mrb[0].mxu0
      %v768 = vadd.f32 0.0, %v767
      %v769 = vpop.f32.mrb[0].mxu0
      %770 = vmatprep.mubr.f32.mxu0 0.0
      %771 = vmatmul.mubr.f32.gmra.mrb[0].mxu0 %v563
      %v772 = vpop.f32.mrb[0].mxu0
      %v773 = vadd.f32 0.0, %v772
      %v774 = vpop.f32.mrb[0].mxu0
      %775 = vmatprep.mubr.f32.mxu0 0.0
      %776 = vmatmul.mubr.f32.gmra.mrb[0].mxu0 %v566
      %v777 = vpop.f32.mrb[0].mxu0
      %v778 = vadd.f32 0.0, %v777
      %v779 = vpop.f32.mrb[0].mxu0
      %780 = vmatprep.mubr.f32.mxu0 0.0
      %781 = vmatmul.mubr.f32.gmra.mrb[0].mxu0 %v569
      %v782 = vpop.f32.mrb[0].mxu0
      %v783 = vadd.f32 0.0, %v782
      %v784 = vpop.f32.mrb[0].mxu0
      %785 = vmatprep.mubr.f32.mxu0 0.0
      %786 = vmatmul.mubr.f32.gmra.mrb[0].mxu0 %v572
      %v787 = vpop.f32.mrb[0].mxu0
      %v788 = vadd.f32 0.0, %v787
      %v789 = vpop.f32.mrb[0].mxu0
      %790 = vmatprep.mubr.f32.mxu0 0.0
      %791 = vmatmul.mubr.f32.gmra.mrb[0].mxu0 %v575
      %v792 = vpop.f32.mrb[0].mxu0
      %v793 = vadd.f32 0.0, %v792
      %v794 = vpop.f32.mrb[0].mxu0
      %795 = vmatprep.mubr.f32.mxu0 0.0
      %796 = vmatmul.mubr.f32.gmra.mrb[0].mxu0 %v578
      %v797 = vpop.f32.mrb[0].mxu0
      %v798 = vadd.f32 0.0, %v797
      %v799 = vpop.f32.mrb[0].mxu0
      %800 = vmatprep.mubr.f32.mxu0 0.0
      %801 = vmatmul.mubr.f32.gmra.mrb[0].mxu0 %v581
      %v802 = vpop.f32.mrb[0].mxu0
      %v803 = vadd.f32 0.0, %v802
      %v804 = vpop.f32.mrb[0].mxu0
      %805 = vmatprep.mubr.f32.mxu0 0.0
      %806 = vmatmul.mubr.f32.gmra.mrb[0].mxu0 %v584
      %v807 = vpop.f32.mrb[0].mxu0
      %v808 = vadd.f32 0.0, %v807
      %v809 = vpop.f32.mrb[0].mxu0
      %810 = vdwg.mxu0
      %v812 = vsel %vm306, %v423, 0
      %v815 = vsel %vm306, %v424, 0
      %v818 = vsel %vm306, %v425, 0
      %v821 = vsel %vm306, %v426, 0
      %v824 = vsel %vm306, %v427, 0
      %v827 = vsel %vm306, %v428, 0
      %v830 = vsel %vm306, %v429, 0
      %v833 = vsel %vm306, %v430, 0
      %v836 = vsel %vm306, %v431, 0
      %v839 = vsel %vm306, %v432, 0
      %v842 = vsel %vm306, %v433, 0
      %v845 = vsel %vm306, %v434, 0
      %v848 = vsel %vm306, %v435, 0
      %v851 = vsel %vm306, %v436, 0
      %v854 = vsel %vm306, %v437, 0
      %v857 = vsel %vm306, %v438, 0
      %v860 = vsel %vm306, %v439, 0
      %v863 = vsel %vm306, %v440, 0
      %v866 = vsel %vm306, %v441, 0
      %v869 = vsel %vm306, %v442, 0
      %v872 = vsel %vm306, %v443, 0
      %v875 = vsel %vm306, %v444, 0
      %v878 = vsel %vm306, %v445, 0
      %v881 = vsel %vm306, %v446, 0
      %v884 = vsel %vm306, %v447, 0
      %v887 = vsel %vm306, %v448, 0
      %v890 = vsel %vm306, %v449, 0
      %v893 = vsel %vm306, %v450, 0
      %v896 = vsel %vm306, %v451, 0
      %v899 = vsel %vm306, %v452, 0
      %v902 = vsel %vm306, %v453, 0
      %v905 = vsel %vm306, %v454, 0
      %907 = vmatprep.subr.mxu0 0.0
      %908 = vmatpush1.msra.mxu0 %v455
      %909 = vmatprep.subr.mxu0 0.0
      %910 = vmatpush1.msra.mxu0 0.0
      %911 = vmatprep.subr.mxu0 0.0
      %912 = vmatpush1.msra.mxu0 0.0
      %913 = vmatprep.subr.mxu0 0.0
      %914 = vmatpush1.msra.mxu0 0.0
      %915 = vmatprep.subr.mxu0 0.0
      %916 = vmatpush1.msra.mxu0 0.0
      %917 = vmatprep.subr.mxu0 0.0
      %918 = vmatpush1.msra.mxu0 0.0
      %919 = vmatprep.subr.mxu0 0.0
      %920 = vmatpush1.msra.mxu0 0.0
      %921 = vmatprep.subr.mxu0 0.0
      %922 = vmatpush1.msra.mxu0 0.0
      %923 = vmatprep.subr.mxu0 0.0
      %924 = vmatpush1.msra.mxu0 0.0
      %925 = vmatprep.subr.mxu0 0.0
      %926 = vmatpush1.msra.mxu0 0.0
      %927 = vmatprep.subr.mxu0 0.0
      %928 = vmatpush1.msra.mxu0 0.0
      %929 = vmatprep.subr.mxu0 0.0
      %930 = vmatpush1.msra.mxu0 0.0
      %931 = vmatprep.subr.mxu0 0.0
      %932 = vmatpush1.msra.mxu0 0.0
      %933 = vmatprep.subr.mxu0 0.0
      %934 = vmatpush1.msra.mxu0 0.0
      %935 = vmatprep.subr.mxu0 0.0
      %936 = vmatpush1.msra.mxu0 0.0
      %937 = vmatprep.subr.mxu0 0.0
      %938 = vmatpush1.msra.mxu0 0.0
      %939 = vmatprep.subr.mxu0 0.0
      %940 = vmatpush1.msra.mxu0 0.0
      %941 = vmatprep.subr.mxu0 0.0
      %942 = vmatpush1.msra.mxu0 0.0
      %943 = vmatprep.subr.mxu0 0.0
      %944 = vmatpush1.msra.mxu0 0.0
      %945 = vmatprep.subr.mxu0 0.0
      %946 = vmatpush1.msra.mxu0 0.0
      %947 = vmatprep.subr.mxu0 0.0
      %948 = vmatpush1.msra.mxu0 0.0
      %949 = vmatprep.subr.mxu0 0.0
      %950 = vmatpush1.msra.mxu0 0.0
      %951 = vmatprep.subr.mxu0 0.0
      %952 = vmatpush1.msra.mxu0 0.0
      %953 = vmatprep.subr.mxu0 0.0
      %954 = vmatpush1.msra.mxu0 0.0
      %955 = vmatprep.subr.mxu0 0.0
      %956 = vmatpush1.msra.mxu0 0.0
      %957 = vmatprep.subr.mxu0 0.0
      %958 = vmatpush1.msra.mxu0 0.0
      %959 = vmatprep.subr.mxu0 0.0
      %960 = vmatpush1.msra.mxu0 0.0
      %961 = vmatprep.subr.mxu0 0.0
      %962 = vmatpush1.msra.mxu0 0.0
      %963 = vmatprep.subr.mxu0 0.0
      %964 = vmatpush1.msra.mxu0 0.0
      %965 = vmatprep.subr.mxu0 0.0
      %966 = vmatpush1.msra.mxu0 0.0
      %967 = vmatprep.subr.mxu0 0.0
      %968 = vmatpush1.msra.mxu0 0.0
      %969 = vmatprep.subr.mxu0 0.0
      %970 = vmatpush1.msra.mxu0 0.0
      %971 = vmatprep.mubr.f32.mxu0 0.0
      %972 = vmatmul.mubr.f32.gmra.mrb[0].mxu0 %v812
      %v973 = vpop.f32.mrb[0].mxu0
      %v974 = vadd.f32 %v653, %v973
      %v975 = vpop.f32.mrb[0].mxu0
      %976 = vmatprep.mubr.f32.mxu0 0.0
      %977 = vmatmul.mubr.f32.gmra.mrb[0].mxu0 %v815
      %v978 = vpop.f32.mrb[0].mxu0
      %v979 = vadd.f32 %v658, %v978
      %v980 = vpop.f32.mrb[0].mxu0
      %981 = vmatprep.mubr.f32.mxu0 0.0
      %982 = vmatmul.mubr.f32.gmra.mrb[0].mxu0 %v818
      %v983 = vpop.f32.mrb[0].mxu0
      %v984 = vadd.f32 %v663, %v983
      %v985 = vpop.f32.mrb[0].mxu0
      %986 = vmatprep.mubr.f32.mxu0 0.0
      %987 = vmatmul.mubr.f32.gmra.mrb[0].mxu0 %v821
      %v988 = vpop.f32.mrb[0].mxu0
      %v989 = vadd.f32 %v668, %v988
      %v990 = vpop.f32.mrb[0].mxu0
      %991 = vmatprep.mubr.f32.mxu0 0.0
      %992 = vmatmul.mubr.f32.gmra.mrb[0].mxu0 %v824
      %v993 = vpop.f32.mrb[0].mxu0
      %v994 = vadd.f32 %v673, %v993
      %v995 = vpop.f32.mrb[0].mxu0
      %996 = vmatprep.mubr.f32.mxu0 0.0
      %997 = vmatmul.mubr.f32.gmra.mrb[0].mxu0 %v827
      %v998 = vpop.f32.mrb[0].mxu0
      %v999 = vadd.f32 %v678, %v998
      %v1000 = vpop.f32.mrb[0].mxu0
      %1001 = vmatprep.mubr.f32.mxu0 0.0
      %1002 = vmatmul.mubr.f32.gmra.mrb[0].mxu0 %v830
      %v1003 = vpop.f32.mrb[0].mxu0
      %v1004 = vadd.f32 %v683, %v1003
      %v1005 = vpop.f32.mrb[0].mxu0
      %1006 = vmatprep.mubr.f32.mxu0 0.0
      %1007 = vmatmul.mubr.f32.gmra.mrb[0].mxu0 %v833
      %v1008 = vpop.f32.mrb[0].mxu0
      %v1009 = vadd.f32 %v688, %v1008
      %v1010 = vpop.f32.mrb[0].mxu0
      %1011 = vmatprep.mubr.f32.mxu0 0.0
      %1012 = vmatmul.mubr.f32.gmra.mrb[0].mxu0 %v836
      %v1013 = vpop.f32.mrb[0].mxu0
      %v1014 = vadd.f32 %v693, %v1013
      %v1015 = vpop.f32.mrb[0].mxu0
      %1016 = vmatprep.mubr.f32.mxu0 0.0
      %1017 = vmatmul.mubr.f32.gmra.mrb[0].mxu0 %v839
      %v1018 = vpop.f32.mrb[0].mxu0
      %v1019 = vadd.f32 %v698, %v1018
      %v1020 = vpop.f32.mrb[0].mxu0
      %1021 = vmatprep.mubr.f32.mxu0 0.0
      %1022 = vmatmul.mubr.f32.gmra.mrb[0].mxu0 %v842
      %v1023 = vpop.f32.mrb[0].mxu0
      %v1024 = vadd.f32 %v703, %v1023
      %v1025 = vpop.f32.mrb[0].mxu0
      %1026 = vmatprep.mubr.f32.mxu0 0.0
      %1027 = vmatmul.mubr.f32.gmra.mrb[0].mxu0 %v845
      %v1028 = vpop.f32.mrb[0].mxu0
      %v1029 = vadd.f32 %v708, %v1028
      %v1030 = vpop.f32.mrb[0].mxu0
      %1031 = vmatprep.mubr.f32.mxu0 0.0
      %1032 = vmatmul.mubr.f32.gmra.mrb[0].mxu0 %v848
      %v1033 = vpop.f32.mrb[0].mxu0
      %v1034 = vadd.f32 %v713, %v1033
      %v1035 = vpop.f32.mrb[0].mxu0
      %1036 = vmatprep.mubr.f32.mxu0 0.0
      %1037 = vmatmul.mubr.f32.gmra.mrb[0].mxu0 %v851
      %v1038 = vpop.f32.mrb[0].mxu0
      %v1039 = vadd.f32 %v718, %v1038
      %v1040 = vpop.f32.mrb[0].mxu0
      %1041 = vmatprep.mubr.f32.mxu0 0.0
      %1042 = vmatmul.mubr.f32.gmra.mrb[0].mxu0 %v854
      %v1043 = vpop.f32.mrb[0].mxu0
      %v1044 = vadd.f32 %v723, %v1043
      %v1045 = vpop.f32.mrb[0].mxu0
      %1046 = vmatprep.mubr.f32.mxu0 0.0
      %1047 = vmatmul.mubr.f32.gmra.mrb[0].mxu0 %v857
      %v1048 = vpop.f32.mrb[0].mxu0
      %v1049 = vadd.f32 %v728, %v1048
      %v1050 = vpop.f32.mrb[0].mxu0
      %1051 = vmatprep.mubr.f32.mxu0 0.0
      %1052 = vmatmul.mubr.f32.gmra.mrb[0].mxu0 %v860
      %v1053 = vpop.f32.mrb[0].mxu0
      %v1054 = vadd.f32 %v733, %v1053
      %v1055 = vpop.f32.mrb[0].mxu0
      %1056 = vmatprep.mubr.f32.mxu0 0.0
      %1057 = vmatmul.mubr.f32.gmra.mrb[0].mxu0 %v863
      %v1058 = vpop.f32.mrb[0].mxu0
      %v1059 = vadd.f32 %v738, %v1058
      %v1060 = vpop.f32.mrb[0].mxu0
      %1061 = vmatprep.mubr.f32.mxu0 0.0
      %1062 = vmatmul.mubr.f32.gmra.mrb[0].mxu0 %v866
      %v1063 = vpop.f32.mrb[0].mxu0
      %v1064 = vadd.f32 %v743, %v1063
      %v1065 = vpop.f32.mrb[0].mxu0
      %1066 = vmatprep.mubr.f32.mxu0 0.0
      %1067 = vmatmul.mubr.f32.gmra.mrb[0].mxu0 %v869
      %v1068 = vpop.f32.mrb[0].mxu0
      %v1069 = vadd.f32 %v748, %v1068
      %v1070 = vpop.f32.mrb[0].mxu0
      %1071 = vmatprep.mubr.f32.mxu0 0.0
      %1072 = vmatmul.mubr.f32.gmra.mrb[0].mxu0 %v872
      %v1073 = vpop.f32.mrb[0].mxu0
      %v1074 = vadd.f32 %v753, %v1073
      %v1075 = vpop.f32.mrb[0].mxu0
      %1076 = vmatprep.mubr.f32.mxu0 0.0
      %1077 = vmatmul.mubr.f32.gmra.mrb[0].mxu0 %v875
      %v1078 = vpop.f32.mrb[0].mxu0
      %v1079 = vadd.f32 %v758, %v1078
      %v1080 = vpop.f32.mrb[0].mxu0
      %1081 = vmatprep.mubr.f32.mxu0 0.0
      %1082 = vmatmul.mubr.f32.gmra.mrb[0].mxu0 %v878
      %v1083 = vpop.f32.mrb[0].mxu0
      %v1084 = vadd.f32 %v763, %v1083
      %v1085 = vpop.f32.mrb[0].mxu0
      %1086 = vmatprep.mubr.f32.mxu0 0.0
      %1087 = vmatmul.mubr.f32.gmra.mrb[0].mxu0 %v881
      %v1088 = vpop.f32.mrb[0].mxu0
      %v1089 = vadd.f32 %v768, %v1088
      %v1090 = vpop.f32.mrb[0].mxu0
      %1091 = vmatprep.mubr.f32.mxu0 0.0
      %1092 = vmatmul.mubr.f32.gmra.mrb[0].mxu0 %v884
      %v1093 = vpop.f32.mrb[0].mxu0
      %v1094 = vadd.f32 %v773, %v1093
      %v1095 = vpop.f32.mrb[0].mxu0
      %1096 = vmatprep.mubr.f32.mxu0 0.0
      %1097 = vmatmul.mubr.f32.gmra.mrb[0].mxu0 %v887
      %v1098 = vpop.f32.mrb[0].mxu0
      %v1099 = vadd.f32 %v778, %v1098
      %v1100 = vpop.f32.mrb[0].mxu0
      %1101 = vmatprep.mubr.f32.mxu0 0.0
      %1102 = vmatmul.mubr.f32.gmra.mrb[0].mxu0 %v890
      %v1103 = vpop.f32.mrb[0].mxu0
      %v1104 = vadd.f32 %v783, %v1103
      %v1105 = vpop.f32.mrb[0].mxu0
      %1106 = vmatprep.mubr.f32.mxu0 0.0
      %1107 = vmatmul.mubr.f32.gmra.mrb[0].mxu0 %v893
      %v1108 = vpop.f32.mrb[0].mxu0
      %v1109 = vadd.f32 %v788, %v1108
      %v1110 = vpop.f32.mrb[0].mxu0
      %1111 = vmatprep.mubr.f32.mxu0 0.0
      %1112 = vmatmul.mubr.f32.gmra.mrb[0].mxu0 %v896
      %v1113 = vpop.f32.mrb[0].mxu0
      %v1114 = vadd.f32 %v793, %v1113
      %v1115 = vpop.f32.mrb[0].mxu0
      %1116 = vmatprep.mubr.f32.mxu0 0.0
      %1117 = vmatmul.mubr.f32.gmra.mrb[0].mxu0 %v899
      %v1118 = vpop.f32.mrb[0].mxu0
      %v1119 = vadd.f32 %v798, %v1118
      %v1120 = vpop.f32.mrb[0].mxu0
      %1121 = vmatprep.mubr.f32.mxu0 0.0
      %1122 = vmatmul.mubr.f32.gmra.mrb[0].mxu0 %v902
      %v1123 = vpop.f32.mrb[0].mxu0
      %v1124 = vadd.f32 %v803, %v1123
      %v1125 = vpop.f32.mrb[0].mxu0
      %1126 = vmatprep.mubr.f32.mxu0 0.0
      %1127 = vmatmul.mubr.f32.gmra.mrb[0].mxu0 %v905
      %v1128 = vpop.f32.mrb[0].mxu0
      %v1129 = vadd.f32 %v808, %v1128
      %v1130 = vpop.f32.mrb[0].mxu0
      %1131 = vdwg.mxu0
      %v1132 = vld [vmem:[%s300 + $0x2] sm:$0xff]
      %v1133 = vld [vmem:[%s300 + $0xa] sm:$0xff]
      %v1134 = vld [vmem:[%s300 + $0x1a] sm:$0xff]
      %v1135 = vld [vmem:[%s300 + $0x22] sm:$0xff]
      %v1136 = vld [vmem:[%s300 + $0x32] sm:$0xff]
      %v1137 = vld [vmem:[%s300 + $0x3a] sm:$0xff]
      %v1138 = vld [vmem:[%s300 + $0x4a] sm:$0xff]
      %v1139 = vld [vmem:[%s300 + $0x52] sm:$0xff]
      %v1140 = vld [vmem:[%s300 + $0x62] sm:$0xff]
      %v1141 = vld [vmem:[%s300 + $0x6a] sm:$0xff]
      %v1142 = vld [vmem:[%s300 + $0x7a] sm:$0xff]
      %v1143 = vld [vmem:[%s300 + $0x82] sm:$0xff]
      %v1144 = vld [vmem:[%s300 + $0x92] sm:$0xff]
      %v1145 = vld [vmem:[%s300 + $0x9a] sm:$0xff]
      %v1146 = vld [vmem:[%s300 + $0xaa] sm:$0xff]
      %v1147 = vld [vmem:[%s300 + $0xb2] sm:$0xff]
      %v1148 = vld [vmem:[%s300 + $0xc2] sm:$0xff]
      %v1149 = vld [vmem:[%s300 + $0xca] sm:$0xff]
      %v1150 = vld [vmem:[%s300 + $0xda] sm:$0xff]
      %v1151 = vld [vmem:[%s300 + $0xe2] sm:$0xff]
      %v1152 = vld [vmem:[%s300 + $0xf2] sm:$0xff]
      %v1153 = vld [vmem:[%s300 + $0xfa] sm:$0xff]
      %v1154 = vld [vmem:[%s300 + $0x10a] sm:$0xff]
      %v1155 = vld [vmem:[%s300 + $0x112] sm:$0xff]
      %v1156 = vld [vmem:[%s300 + $0x122] sm:$0xff]
      %v1157 = vld [vmem:[%s300 + $0x12a] sm:$0xff]
      %v1158 = vld [vmem:[%s300 + $0x13a] sm:$0xff]
      %v1159 = vld [vmem:[%s300 + $0x142] sm:$0xff]
      %v1160 = vld [vmem:[%s300 + $0x152] sm:$0xff]
      %v1161 = vld [vmem:[%s300 + $0x15a] sm:$0xff]
      %v1162 = vld [vmem:[%s300 + $0x16a] sm:$0xff]
      %v1163 = vld [vmem:[%s300 + $0x172] sm:$0xff]
      %s1164 = scalar_lea.vmem %s1, 16
      %v1165 = vld [vmem:[%s1164] sm:$0xff]
      %v1167 = vsel %vm306, %v1132, 0
      %v1170 = vsel %vm306, %v1133, 0
      %v1173 = vsel %vm306, %v1134, 0
      %v1176 = vsel %vm306, %v1135, 0
      %v1179 = vsel %vm306, %v1136, 0
      %v1182 = vsel %vm306, %v1137, 0
      %v1185 = vsel %vm306, %v1138, 0
      %v1188 = vsel %vm306, %v1139, 0
      %v1191 = vsel %vm306, %v1140, 0
      %v1194 = vsel %vm306, %v1141, 0
      %v1197 = vsel %vm306, %v1142, 0
      %v1200 = vsel %vm306, %v1143, 0
      %v1203 = vsel %vm306, %v1144, 0
      %v1206 = vsel %vm306, %v1145, 0
      %v1209 = vsel %vm306, %v1146, 0
      %v1212 = vsel %vm306, %v1147, 0
      %v1215 = vsel %vm306, %v1148, 0
      %v1218 = vsel %vm306, %v1149, 0
      %v1221 = vsel %vm306, %v1150, 0
      %v1224 = vsel %vm306, %v1151, 0
      %v1227 = vsel %vm306, %v1152, 0
      %v1230 = vsel %vm306, %v1153, 0
      %v1233 = vsel %vm306, %v1154, 0
      %v1236 = vsel %vm306, %v1155, 0
      %v1239 = vsel %vm306, %v1156, 0
      %v1242 = vsel %vm306, %v1157, 0
      %v1245 = vsel %vm306, %v1158, 0
      %v1248 = vsel %vm306, %v1159, 0
      %v1251 = vsel %vm306, %v1160, 0
      %v1254 = vsel %vm306, %v1161, 0
      %v1257 = vsel %vm306, %v1162, 0
      %v1260 = vsel %vm306, %v1163, 0
      %1262 = vmatprep.subr.mxu0 0.0
      %1263 = vmatpush1.msra.mxu0 %v1165
      %1264 = vmatprep.subr.mxu0 0.0
      %1265 = vmatpush1.msra.mxu0 0.0
      %1266 = vmatprep.subr.mxu0 0.0
      %1267 = vmatpush1.msra.mxu0 0.0
      %1268 = vmatprep.subr.mxu0 0.0
      %1269 = vmatpush1.msra.mxu0 0.0
      %1270 = vmatprep.subr.mxu0 0.0
      %1271 = vmatpush1.msra.mxu0 0.0
      %1272 = vmatprep.subr.mxu0 0.0
      %1273 = vmatpush1.msra.mxu0 0.0
      %1274 = vmatprep.subr.mxu0 0.0
      %1275 = vmatpush1.msra.mxu0 0.0
      %1276 = vmatprep.subr.mxu0 0.0
      %1277 = vmatpush1.msra.mxu0 0.0
      %1278 = vmatprep.subr.mxu0 0.0
      %1279 = vmatpush1.msra.mxu0 0.0
      %1280 = vmatprep.subr.mxu0 0.0
      %1281 = vmatpush1.msra.mxu0 0.0
      %1282 = vmatprep.subr.mxu0 0.0
      %1283 = vmatpush1.msra.mxu0 0.0
      %1284 = vmatprep.subr.mxu0 0.0
      %1285 = vmatpush1.msra.mxu0 0.0
      %1286 = vmatprep.subr.mxu0 0.0
      %1287 = vmatpush1.msra.mxu0 0.0
      %1288 = vmatprep.subr.mxu0 0.0
      %1289 = vmatpush1.msra.mxu0 0.0
      %1290 = vmatprep.subr.mxu0 0.0
      %1291 = vmatpush1.msra.mxu0 0.0
      %1292 = vmatprep.subr.mxu0 0.0
      %1293 = vmatpush1.msra.mxu0 0.0
      %1294 = vmatprep.subr.mxu0 0.0
      %1295 = vmatpush1.msra.mxu0 0.0
      %1296 = vmatprep.subr.mxu0 0.0
      %1297 = vmatpush1.msra.mxu0 0.0
      %1298 = vmatprep.subr.mxu0 0.0
      %1299 = vmatpush1.msra.mxu0 0.0
      %1300 = vmatprep.subr.mxu0 0.0
      %1301 = vmatpush1.msra.mxu0 0.0
      %1302 = vmatprep.subr.mxu0 0.0
      %1303 = vmatpush1.msra.mxu0 0.0
      %1304 = vmatprep.subr.mxu0 0.0
      %1305 = vmatpush1.msra.mxu0 0.0
      %1306 = vmatprep.subr.mxu0 0.0
      %1307 = vmatpush1.msra.mxu0 0.0
      %1308 = vmatprep.subr.mxu0 0.0
      %1309 = vmatpush1.msra.mxu0 0.0
      %1310 = vmatprep.subr.mxu0 0.0
      %1311 = vmatpush1.msra.mxu0 0.0
      %1312 = vmatprep.subr.mxu0 0.0
      %1313 = vmatpush1.msra.mxu0 0.0
      %1314 = vmatprep.subr.mxu0 0.0
      %1315 = vmatpush1.msra.mxu0 0.0
      %1316 = vmatprep.subr.mxu0 0.0
      %1317 = vmatpush1.msra.mxu0 0.0
      %1318 = vmatprep.subr.mxu0 0.0
      %1319 = vmatpush1.msra.mxu0 0.0
      %1320 = vmatprep.subr.mxu0 0.0
      %1321 = vmatpush1.msra.mxu0 0.0
      %1322 = vmatprep.subr.mxu0 0.0
      %1323 = vmatpush1.msra.mxu0 0.0
      %1324 = vmatprep.subr.mxu0 0.0
      %1325 = vmatpush1.msra.mxu0 0.0
      %1326 = vmatprep.mubr.f32.mxu0 0.0
      %1327 = vmatmul.mubr.f32.gmra.mrb[0].mxu0 %v1167
      %v1328 = vpop.f32.mrb[0].mxu0
      %v1329 = vadd.f32 0.0, %v1328
      %v1330 = vpop.f32.mrb[0].mxu0
      %1331 = vmatprep.mubr.f32.mxu0 0.0
      %1332 = vmatmul.mubr.f32.gmra.mrb[0].mxu0 %v1170
      %v1333 = vpop.f32.mrb[0].mxu0
      %v1334 = vadd.f32 0.0, %v1333
      %v1335 = vpop.f32.mrb[0].mxu0
      %1336 = vmatprep.mubr.f32.mxu0 0.0
      %1337 = vmatmul.mubr.f32.gmra.mrb[0].mxu0 %v1173
      %v1338 = vpop.f32.mrb[0].mxu0
      %v1339 = vadd.f32 0.0, %v1338
      %v1340 = vpop.f32.mrb[0].mxu0
      %1341 = vmatprep.mubr.f32.mxu0 0.0
      %1342 = vmatmul.mubr.f32.gmra.mrb[0].mxu0 %v1176
      %v1343 = vpop.f32.mrb[0].mxu0
      %v1344 = vadd.f32 0.0, %v1343
      %v1345 = vpop.f32.mrb[0].mxu0
      %1346 = vmatprep.mubr.f32.mxu0 0.0
      %1347 = vmatmul.mubr.f32.gmra.mrb[0].mxu0 %v1179
      %v1348 = vpop.f32.mrb[0].mxu0
      %v1349 = vadd.f32 0.0, %v1348
      %v1350 = vpop.f32.mrb[0].mxu0
      %1351 = vmatprep.mubr.f32.mxu0 0.0
      %1352 = vmatmul.mubr.f32.gmra.mrb[0].mxu0 %v1182
      %v1353 = vpop.f32.mrb[0].mxu0
      %v1354 = vadd.f32 0.0, %v1353
      %v1355 = vpop.f32.mrb[0].mxu0
      %1356 = vmatprep.mubr.f32.mxu0 0.0
      %1357 = vmatmul.mubr.f32.gmra.mrb[0].mxu0 %v1185
      %v1358 = vpop.f32.mrb[0].mxu0
      %v1359 = vadd.f32 0.0, %v1358
      %v1360 = vpop.f32.mrb[0].mxu0
      %1361 = vmatprep.mubr.f32.mxu0 0.0
      %1362 = vmatmul.mubr.f32.gmra.mrb[0].mxu0 %v1188
      %v1363 = vpop.f32.mrb[0].mxu0
      %v1364 = vadd.f32 0.0, %v1363
      %v1365 = vpop.f32.mrb[0].mxu0
      %1366 = vmatprep.mubr.f32.mxu0 0.0
      %1367 = vmatmul.mubr.f32.gmra.mrb[0].mxu0 %v1191
      %v1368 = vpop.f32.mrb[0].mxu0
      %v1369 = vadd.f32 0.0, %v1368
      %v1370 = vpop.f32.mrb[0].mxu0
      %1371 = vmatprep.mubr.f32.mxu0 0.0
      %1372 = vmatmul.mubr.f32.gmra.mrb[0].mxu0 %v1194
      %v1373 = vpop.f32.mrb[0].mxu0
      %v1374 = vadd.f32 0.0, %v1373
      %v1375 = vpop.f32.mrb[0].mxu0
      %1376 = vmatprep.mubr.f32.mxu0 0.0
      %1377 = vmatmul.mubr.f32.gmra.mrb[0].mxu0 %v1197
      %v1378 = vpop.f32.mrb[0].mxu0
      %v1379 = vadd.f32 0.0, %v1378
      %v1380 = vpop.f32.mrb[0].mxu0
      %1381 = vmatprep.mubr.f32.mxu0 0.0
      %1382 = vmatmul.mubr.f32.gmra.mrb[0].mxu0 %v1200
      %v1383 = vpop.f32.mrb[0].mxu0
      %v1384 = vadd.f32 0.0, %v1383
      %v1385 = vpop.f32.mrb[0].mxu0
      %1386 = vmatprep.mubr.f32.mxu0 0.0
      %1387 = vmatmul.mubr.f32.gmra.mrb[0].mxu0 %v1203
      %v1388 = vpop.f32.mrb[0].mxu0
      %v1389 = vadd.f32 0.0, %v1388
      %v1390 = vpop.f32.mrb[0].mxu0
      %1391 = vmatprep.mubr.f32.mxu0 0.0
      %1392 = vmatmul.mubr.f32.gmra.mrb[0].mxu0 %v1206
      %v1393 = vpop.f32.mrb[0].mxu0
      %v1394 = vadd.f32 0.0, %v1393
      %v1395 = vpop.f32.mrb[0].mxu0
      %1396 = vmatprep.mubr.f32.mxu0 0.0
      %1397 = vmatmul.mubr.f32.gmra.mrb[0].mxu0 %v1209
      %v1398 = vpop.f32.mrb[0].mxu0
      %v1399 = vadd.f32 0.0, %v1398
      %v1400 = vpop.f32.mrb[0].mxu0
      %1401 = vmatprep.mubr.f32.mxu0 0.0
      %1402 = vmatmul.mubr.f32.gmra.mrb[0].mxu0 %v1212
      %v1403 = vpop.f32.mrb[0].mxu0
      %v1404 = vadd.f32 0.0, %v1403
      %v1405 = vpop.f32.mrb[0].mxu0
      %1406 = vmatprep.mubr.f32.mxu0 0.0
      %1407 = vmatmul.mubr.f32.gmra.mrb[0].mxu0 %v1215
      %v1408 = vpop.f32.mrb[0].mxu0
      %v1409 = vadd.f32 0.0, %v1408
      %v1410 = vpop.f32.mrb[0].mxu0
      %1411 = vmatprep.mubr.f32.mxu0 0.0
      %1412 = vmatmul.mubr.f32.gmra.mrb[0].mxu0 %v1218
      %v1413 = vpop.f32.mrb[0].mxu0
      %v1414 = vadd.f32 0.0, %v1413
      %v1415 = vpop.f32.mrb[0].mxu0
      %1416 = vmatprep.mubr.f32.mxu0 0.0
      %1417 = vmatmul.mubr.f32.gmra.mrb[0].mxu0 %v1221
      %v1418 = vpop.f32.mrb[0].mxu0
      %v1419 = vadd.f32 0.0, %v1418
      %v1420 = vpop.f32.mrb[0].mxu0
      %1421 = vmatprep.mubr.f32.mxu0 0.0
      %1422 = vmatmul.mubr.f32.gmra.mrb[0].mxu0 %v1224
      %v1423 = vpop.f32.mrb[0].mxu0
      %v1424 = vadd.f32 0.0, %v1423
      %v1425 = vpop.f32.mrb[0].mxu0
      %1426 = vmatprep.mubr.f32.mxu0 0.0
      %1427 = vmatmul.mubr.f32.gmra.mrb[0].mxu0 %v1227
      %v1428 = vpop.f32.mrb[0].mxu0
      %v1429 = vadd.f32 0.0, %v1428
      %v1430 = vpop.f32.mrb[0].mxu0
      %1431 = vmatprep.mubr.f32.mxu0 0.0
      %1432 = vmatmul.mubr.f32.gmra.mrb[0].mxu0 %v1230
      %v1433 = vpop.f32.mrb[0].mxu0
      %v1434 = vadd.f32 0.0, %v1433
      %v1435 = vpop.f32.mrb[0].mxu0
      %1436 = vmatprep.mubr.f32.mxu0 0.0
      %1437 = vmatmul.mubr.f32.gmra.mrb[0].mxu0 %v1233
      %v1438 = vpop.f32.mrb[0].mxu0
      %v1439 = vadd.f32 0.0, %v1438
      %v1440 = vpop.f32.mrb[0].mxu0
      %1441 = vmatprep.mubr.f32.mxu0 0.0
      %1442 = vmatmul.mubr.f32.gmra.mrb[0].mxu0 %v1236
      %v1443 = vpop.f32.mrb[0].mxu0
      %v1444 = vadd.f32 0.0, %v1443
      %v1445 = vpop.f32.mrb[0].mxu0
      %1446 = vmatprep.mubr.f32.mxu0 0.0
      %1447 = vmatmul.mubr.f32.gmra.mrb[0].mxu0 %v1239
      %v1448 = vpop.f32.mrb[0].mxu0
      %v1449 = vadd.f32 0.0, %v1448
      %v1450 = vpop.f32.mrb[0].mxu0
      %1451 = vmatprep.mubr.f32.mxu0 0.0
      %1452 = vmatmul.mubr.f32.gmra.mrb[0].mxu0 %v1242
      %v1453 = vpop.f32.mrb[0].mxu0
      %v1454 = vadd.f32 0.0, %v1453
      %v1455 = vpop.f32.mrb[0].mxu0
      %1456 = vmatprep.mubr.f32.mxu0 0.0
      %1457 = vmatmul.mubr.f32.gmra.mrb[0].mxu0 %v1245
      %v1458 = vpop.f32.mrb[0].mxu0
      %v1459 = vadd.f32 0.0, %v1458
      %v1460 = vpop.f32.mrb[0].mxu0
      %1461 = vmatprep.mubr.f32.mxu0 0.0
      %1462 = vmatmul.mubr.f32.gmra.mrb[0].mxu0 %v1248
      %v1463 = vpop.f32.mrb[0].mxu0
      %v1464 = vadd.f32 0.0, %v1463
      %v1465 = vpop.f32.mrb[0].mxu0
      %1466 = vmatprep.mubr.f32.mxu0 0.0
      %1467 = vmatmul.mubr.f32.gmra.mrb[0].mxu0 %v1251
      %v1468 = vpop.f32.mrb[0].mxu0
      %v1469 = vadd.f32 0.0, %v1468
      %v1470 = vpop.f32.mrb[0].mxu0
      %1471 = vmatprep.mubr.f32.mxu0 0.0
      %1472 = vmatmul.mubr.f32.gmra.mrb[0].mxu0 %v1254
      %v1473 = vpop.f32.mrb[0].mxu0
      %v1474 = vadd.f32 0.0, %v1473
      %v1475 = vpop.f32.mrb[0].mxu0
      %1476 = vmatprep.mubr.f32.mxu0 0.0
      %1477 = vmatmul.mubr.f32.gmra.mrb[0].mxu0 %v1257
      %v1478 = vpop.f32.mrb[0].mxu0
      %v1479 = vadd.f32 0.0, %v1478
      %v1480 = vpop.f32.mrb[0].mxu0
      %1481 = vmatprep.mubr.f32.mxu0 0.0
      %1482 = vmatmul.mubr.f32.gmra.mrb[0].mxu0 %v1260
      %v1483 = vpop.f32.mrb[0].mxu0
      %v1484 = vadd.f32 0.0, %v1483
      %v1485 = vpop.f32.mrb[0].mxu0
      %1486 = vdwg.mxu0
      %v1487 = vadd.f32 %v974, %v1329
      %v1488 = vadd.f32 %v979, %v1334
      %v1489 = vadd.f32 %v984, %v1339
      %v1490 = vadd.f32 %v989, %v1344
      %v1491 = vadd.f32 %v994, %v1349
      %v1492 = vadd.f32 %v999, %v1354
      %v1493 = vadd.f32 %v1004, %v1359
      %v1494 = vadd.f32 %v1009, %v1364
      %v1495 = vadd.f32 %v1014, %v1369
      %v1496 = vadd.f32 %v1019, %v1374
      %v1497 = vadd.f32 %v1024, %v1379
      %v1498 = vadd.f32 %v1029, %v1384
      %v1499 = vadd.f32 %v1034, %v1389
      %v1500 = vadd.f32 %v1039, %v1394
      %v1501 = vadd.f32 %v1044, %v1399
      %v1502 = vadd.f32 %v1049, %v1404
      %v1503 = vadd.f32 %v1054, %v1409
      %v1504 = vadd.f32 %v1059, %v1414
      %v1505 = vadd.f32 %v1064, %v1419
      %v1506 = vadd.f32 %v1069, %v1424
      %v1507 = vadd.f32 %v1074, %v1429
      %v1508 = vadd.f32 %v1079, %v1434
      %v1509 = vadd.f32 %v1084, %v1439
      %v1510 = vadd.f32 %v1089, %v1444
      %v1511 = vadd.f32 %v1094, %v1449
      %v1512 = vadd.f32 %v1099, %v1454
      %v1513 = vadd.f32 %v1104, %v1459
      %v1514 = vadd.f32 %v1109, %v1464
      %v1515 = vadd.f32 %v1114, %v1469
      %v1516 = vadd.f32 %v1119, %v1474
      %v1517 = vadd.f32 %v1124, %v1479
      %v1518 = vadd.f32 %v1129, %v1484
      %s1519 = scalar_lea.vmem %s300, 24
      %v1520 = vld [vmem:[%s1519] sm:$0xff]
      %v1521 = vld [vmem:[%s1519 + $0x8] sm:$0xff]
      %v1522 = vld [vmem:[%s1519 + $0x18] sm:$0xff]
      %v1523 = vld [vmem:[%s1519 + $0x20] sm:$0xff]
      %v1524 = vld [vmem:[%s1519 + $0x30] sm:$0xff]
      %v1525 = vld [vmem:[%s1519 + $0x38] sm:$0xff]
      %v1526 = vld [vmem:[%s1519 + $0x48] sm:$0xff]
      %v1527 = vld [vmem:[%s1519 + $0x50] sm:$0xff]
      %v1528 = vld [vmem:[%s1519 + $0x60] sm:$0xff]
      %v1529 = vld [vmem:[%s1519 + $0x68] sm:$0xff]
      %v1530 = vld [vmem:[%s1519 + $0x78] sm:$0xff]
      %v1531 = vld [vmem:[%s1519 + $0x80] sm:$0xff]
      %v1532 = vld [vmem:[%s1519 + $0x90] sm:$0xff]
      %v1533 = vld [vmem:[%s1519 + $0x98] sm:$0xff]
      %v1534 = vld [vmem:[%s1519 + $0xa8] sm:$0xff]
      %v1535 = vld [vmem:[%s1519 + $0xb0] sm:$0xff]
      %v1536 = vld [vmem:[%s1519 + $0xc0] sm:$0xff]
      %v1537 = vld [vmem:[%s1519 + $0xc8] sm:$0xff]
      %v1538 = vld [vmem:[%s1519 + $0xd8] sm:$0xff]
      %v1539 = vld [vmem:[%s1519 + $0xe0] sm:$0xff]
      %v1540 = vld [vmem:[%s1519 + $0xf0] sm:$0xff]
      %v1541 = vld [vmem:[%s1519 + $0xf8] sm:$0xff]
      %v1542 = vld [vmem:[%s1519 + $0x108] sm:$0xff]
      %v1543 = vld [vmem:[%s1519 + $0x110] sm:$0xff]
      %v1544 = vld [vmem:[%s1519 + $0x120] sm:$0xff]
      %v1545 = vld [vmem:[%s1519 + $0x128] sm:$0xff]
      %v1546 = vld [vmem:[%s1519 + $0x138] sm:$0xff]
      %v1547 = vld [vmem:[%s1519 + $0x140] sm:$0xff]
      %v1548 = vld [vmem:[%s1519 + $0x150] sm:$0xff]
      %v1549 = vld [vmem:[%s1519 + $0x158] sm:$0xff]
      %v1550 = vld [vmem:[%s1519 + $0x168] sm:$0xff]
      %v1551 = vld [vmem:[%s1519 + $0x170] sm:$0xff]
      %s1552 = scalar_lea.vmem %s1, 24
      %v1553 = vld [vmem:[%s1552] sm:$0xff]
      %v1555 = vsel %vm306, %v1520, 0
      %v1558 = vsel %vm306, %v1521, 0
      %v1561 = vsel %vm306, %v1522, 0
      %v1564 = vsel %vm306, %v1523, 0
      %v1567 = vsel %vm306, %v1524, 0
      %v1570 = vsel %vm306, %v1525, 0
      %v1573 = vsel %vm306, %v1526, 0
      %v1576 = vsel %vm306, %v1527, 0
      %v1579 = vsel %vm306, %v1528, 0
      %v1582 = vsel %vm306, %v1529, 0
      %v1585 = vsel %vm306, %v1530, 0
      %v1588 = vsel %vm306, %v1531, 0
      %v1591 = vsel %vm306, %v1532, 0
      %v1594 = vsel %vm306, %v1533, 0
      %v1597 = vsel %vm306, %v1534, 0
      %v1600 = vsel %vm306, %v1535, 0
      %v1603 = vsel %vm306, %v1536, 0
      %v1606 = vsel %vm306, %v1537, 0
      %v1609 = vsel %vm306, %v1538, 0
      %v1612 = vsel %vm306, %v1539, 0
      %v1615 = vsel %vm306, %v1540, 0
      %v1618 = vsel %vm306, %v1541, 0
      %v1621 = vsel %vm306, %v1542, 0
      %v1624 = vsel %vm306, %v1543, 0
      %v1627 = vsel %vm306, %v1544, 0
      %v1630 = vsel %vm306, %v1545, 0
      %v1633 = vsel %vm306, %v1546, 0
      %v1636 = vsel %vm306, %v1547, 0
      %v1639 = vsel %vm306, %v1548, 0
      %v1642 = vsel %vm306, %v1549, 0
      %v1645 = vsel %vm306, %v1550, 0
      %v1648 = vsel %vm306, %v1551, 0
      %1650 = vmatprep.subr.mxu0 0.0
      %1651 = vmatpush1.msra.mxu0 %v1553
      %1652 = vmatprep.subr.mxu0 0.0
      %1653 = vmatpush1.msra.mxu0 0.0
      %1654 = vmatprep.subr.mxu0 0.0
      %1655 = vmatpush1.msra.mxu0 0.0
      %1656 = vmatprep.subr.mxu0 0.0
      %1657 = vmatpush1.msra.mxu0 0.0
      %1658 = vmatprep.subr.mxu0 0.0
      %1659 = vmatpush1.msra.mxu0 0.0
      %1660 = vmatprep.subr.mxu0 0.0
      %1661 = vmatpush1.msra.mxu0 0.0
      %1662 = vmatprep.subr.mxu0 0.0
      %1663 = vmatpush1.msra.mxu0 0.0
      %1664 = vmatprep.subr.mxu0 0.0
      %1665 = vmatpush1.msra.mxu0 0.0
      %1666 = vmatprep.subr.mxu0 0.0
      %1667 = vmatpush1.msra.mxu0 0.0
      %1668 = vmatprep.subr.mxu0 0.0
      %1669 = vmatpush1.msra.mxu0 0.0
      %1670 = vmatprep.subr.mxu0 0.0
      %1671 = vmatpush1.msra.mxu0 0.0
      %1672 = vmatprep.subr.mxu0 0.0
      %1673 = vmatpush1.msra.mxu0 0.0
      %1674 = vmatprep.subr.mxu0 0.0
      %1675 = vmatpush1.msra.mxu0 0.0
      %1676 = vmatprep.subr.mxu0 0.0
      %1677 = vmatpush1.msra.mxu0 0.0
      %1678 = vmatprep.subr.mxu0 0.0
      %1679 = vmatpush1.msra.mxu0 0.0
      %1680 = vmatprep.subr.mxu0 0.0
      %1681 = vmatpush1.msra.mxu0 0.0
      %1682 = vmatprep.subr.mxu0 0.0
      %1683 = vmatpush1.msra.mxu0 0.0
      %1684 = vmatprep.subr.mxu0 0.0
      %1685 = vmatpush1.msra.mxu0 0.0
      %1686 = vmatprep.subr.mxu0 0.0
      %1687 = vmatpush1.msra.mxu0 0.0
      %1688 = vmatprep.subr.mxu0 0.0
      %1689 = vmatpush1.msra.mxu0 0.0
      %1690 = vmatprep.subr.mxu0 0.0
      %1691 = vmatpush1.msra.mxu0 0.0
      %1692 = vmatprep.subr.mxu0 0.0
      %1693 = vmatpush1.msra.mxu0 0.0
      %1694 = vmatprep.subr.mxu0 0.0
      %1695 = vmatpush1.msra.mxu0 0.0
      %1696 = vmatprep.subr.mxu0 0.0
      %1697 = vmatpush1.msra.mxu0 0.0
      %1698 = vmatprep.subr.mxu0 0.0
      %1699 = vmatpush1.msra.mxu0 0.0
      %1700 = vmatprep.subr.mxu0 0.0
      %1701 = vmatpush1.msra.mxu0 0.0
      %1702 = vmatprep.subr.mxu0 0.0
      %1703 = vmatpush1.msra.mxu0 0.0
      %1704 = vmatprep.subr.mxu0 0.0
      %1705 = vmatpush1.msra.mxu0 0.0
      %1706 = vmatprep.subr.mxu0 0.0
      %1707 = vmatpush1.msra.mxu0 0.0
      %1708 = vmatprep.subr.mxu0 0.0
      %1709 = vmatpush1.msra.mxu0 0.0
      %1710 = vmatprep.subr.mxu0 0.0
      %1711 = vmatpush1.msra.mxu0 0.0
      %1712 = vmatprep.subr.mxu0 0.0
      %1713 = vmatpush1.msra.mxu0 0.0
      %1714 = vmatprep.mubr.f32.mxu0 0.0
      %1715 = vmatmul.mubr.f32.gmra.mrb[0].mxu0 %v1555
      %v1716 = vpop.f32.mrb[0].mxu0
      %v1717 = vadd.f32 0.0, %v1716
      %v1718 = vpop.f32.mrb[0].mxu0
      %1719 = vmatprep.mubr.f32.mxu0 0.0
      %1720 = vmatmul.mubr.f32.gmra.mrb[0].mxu0 %v1558
      %v1721 = vpop.f32.mrb[0].mxu0
      %v1722 = vadd.f32 0.0, %v1721
      %v1723 = vpop.f32.mrb[0].mxu0
      %1724 = vmatprep.mubr.f32.mxu0 0.0
      %1725 = vmatmul.mubr.f32.gmra.mrb[0].mxu0 %v1561
      %v1726 = vpop.f32.mrb[0].mxu0
      %v1727 = vadd.f32 0.0, %v1726
      %v1728 = vpop.f32.mrb[0].mxu0
      %1729 = vmatprep.mubr.f32.mxu0 0.0
      %1730 = vmatmul.mubr.f32.gmra.mrb[0].mxu0 %v1564
      %v1731 = vpop.f32.mrb[0].mxu0
      %v1732 = vadd.f32 0.0, %v1731
      %v1733 = vpop.f32.mrb[0].mxu0
      %1734 = vmatprep.mubr.f32.mxu0 0.0
      %1735 = vmatmul.mubr.f32.gmra.mrb[0].mxu0 %v1567
      %v1736 = vpop.f32.mrb[0].mxu0
      %v1737 = vadd.f32 0.0, %v1736
      %v1738 = vpop.f32.mrb[0].mxu0
      %1739 = vmatprep.mubr.f32.mxu0 0.0
      %1740 = vmatmul.mubr.f32.gmra.mrb[0].mxu0 %v1570
      %v1741 = vpop.f32.mrb[0].mxu0
      %v1742 = vadd.f32 0.0, %v1741
      %v1743 = vpop.f32.mrb[0].mxu0
      %1744 = vmatprep.mubr.f32.mxu0 0.0
      %1745 = vmatmul.mubr.f32.gmra.mrb[0].mxu0 %v1573
      %v1746 = vpop.f32.mrb[0].mxu0
      %v1747 = vadd.f32 0.0, %v1746
      %v1748 = vpop.f32.mrb[0].mxu0
      %1749 = vmatprep.mubr.f32.mxu0 0.0
      %1750 = vmatmul.mubr.f32.gmra.mrb[0].mxu0 %v1576
      %v1751 = vpop.f32.mrb[0].mxu0
      %v1752 = vadd.f32 0.0, %v1751
      %v1753 = vpop.f32.mrb[0].mxu0
      %1754 = vmatprep.mubr.f32.mxu0 0.0
      %1755 = vmatmul.mubr.f32.gmra.mrb[0].mxu0 %v1579
      %v1756 = vpop.f32.mrb[0].mxu0
      %v1757 = vadd.f32 0.0, %v1756
      %v1758 = vpop.f32.mrb[0].mxu0
      %1759 = vmatprep.mubr.f32.mxu0 0.0
      %1760 = vmatmul.mubr.f32.gmra.mrb[0].mxu0 %v1582
      %v1761 = vpop.f32.mrb[0].mxu0
      %v1762 = vadd.f32 0.0, %v1761
      %v1763 = vpop.f32.mrb[0].mxu0
      %1764 = vmatprep.mubr.f32.mxu0 0.0
      %1765 = vmatmul.mubr.f32.gmra.mrb[0].mxu0 %v1585
      %v1766 = vpop.f32.mrb[0].mxu0
      %v1767 = vadd.f32 0.0, %v1766
      %v1768 = vpop.f32.mrb[0].mxu0
      %1769 = vmatprep.mubr.f32.mxu0 0.0
      %1770 = vmatmul.mubr.f32.gmra.mrb[0].mxu0 %v1588
      %v1771 = vpop.f32.mrb[0].mxu0
      %v1772 = vadd.f32 0.0, %v1771
      %v1773 = vpop.f32.mrb[0].mxu0
      %1774 = vmatprep.mubr.f32.mxu0 0.0
      %1775 = vmatmul.mubr.f32.gmra.mrb[0].mxu0 %v1591
      %v1776 = vpop.f32.mrb[0].mxu0
      %v1777 = vadd.f32 0.0, %v1776
      %v1778 = vpop.f32.mrb[0].mxu0
      %1779 = vmatprep.mubr.f32.mxu0 0.0
      %1780 = vmatmul.mubr.f32.gmra.mrb[0].mxu0 %v1594
      %v1781 = vpop.f32.mrb[0].mxu0
      %v1782 = vadd.f32 0.0, %v1781
      %v1783 = vpop.f32.mrb[0].mxu0
      %1784 = vmatprep.mubr.f32.mxu0 0.0
      %1785 = vmatmul.mubr.f32.gmra.mrb[0].mxu0 %v1597
      %v1786 = vpop.f32.mrb[0].mxu0
      %v1787 = vadd.f32 0.0, %v1786
      %v1788 = vpop.f32.mrb[0].mxu0
      %1789 = vmatprep.mubr.f32.mxu0 0.0
      %1790 = vmatmul.mubr.f32.gmra.mrb[0].mxu0 %v1600
      %v1791 = vpop.f32.mrb[0].mxu0
      %v1792 = vadd.f32 0.0, %v1791
      %v1793 = vpop.f32.mrb[0].mxu0
      %1794 = vmatprep.mubr.f32.mxu0 0.0
      %1795 = vmatmul.mubr.f32.gmra.mrb[0].mxu0 %v1603
      %v1796 = vpop.f32.mrb[0].mxu0
      %v1797 = vadd.f32 0.0, %v1796
      %v1798 = vpop.f32.mrb[0].mxu0
      %1799 = vmatprep.mubr.f32.mxu0 0.0
      %1800 = vmatmul.mubr.f32.gmra.mrb[0].mxu0 %v1606
      %v1801 = vpop.f32.mrb[0].mxu0
      %v1802 = vadd.f32 0.0, %v1801
      %v1803 = vpop.f32.mrb[0].mxu0
      %1804 = vmatprep.mubr.f32.mxu0 0.0
      %1805 = vmatmul.mubr.f32.gmra.mrb[0].mxu0 %v1609
      %v1806 = vpop.f32.mrb[0].mxu0
      %v1807 = vadd.f32 0.0, %v1806
      %v1808 = vpop.f32.mrb[0].mxu0
      %1809 = vmatprep.mubr.f32.mxu0 0.0
      %1810 = vmatmul.mubr.f32.gmra.mrb[0].mxu0 %v1612
      %v1811 = vpop.f32.mrb[0].mxu0
      %v1812 = vadd.f32 0.0, %v1811
      %v1813 = vpop.f32.mrb[0].mxu0
      %1814 = vmatprep.mubr.f32.mxu0 0.0
      %1815 = vmatmul.mubr.f32.gmra.mrb[0].mxu0 %v1615
      %v1816 = vpop.f32.mrb[0].mxu0
      %v1817 = vadd.f32 0.0, %v1816
      %v1818 = vpop.f32.mrb[0].mxu0
      %1819 = vmatprep.mubr.f32.mxu0 0.0
      %1820 = vmatmul.mubr.f32.gmra.mrb[0].mxu0 %v1618
      %v1821 = vpop.f32.mrb[0].mxu0
      %v1822 = vadd.f32 0.0, %v1821
      %v1823 = vpop.f32.mrb[0].mxu0
      %1824 = vmatprep.mubr.f32.mxu0 0.0
      %1825 = vmatmul.mubr.f32.gmra.mrb[0].mxu0 %v1621
      %v1826 = vpop.f32.mrb[0].mxu0
      %v1827 = vadd.f32 0.0, %v1826
      %v1828 = vpop.f32.mrb[0].mxu0
      %1829 = vmatprep.mubr.f32.mxu0 0.0
      %1830 = vmatmul.mubr.f32.gmra.mrb[0].mxu0 %v1624
      %v1831 = vpop.f32.mrb[0].mxu0
      %v1832 = vadd.f32 0.0, %v1831
      %v1833 = vpop.f32.mrb[0].mxu0
      %1834 = vmatprep.mubr.f32.mxu0 0.0
      %1835 = vmatmul.mubr.f32.gmra.mrb[0].mxu0 %v1627
      %v1836 = vpop.f32.mrb[0].mxu0
      %v1837 = vadd.f32 0.0, %v1836
      %v1838 = vpop.f32.mrb[0].mxu0
      %1839 = vmatprep.mubr.f32.mxu0 0.0
      %1840 = vmatmul.mubr.f32.gmra.mrb[0].mxu0 %v1630
      %v1841 = vpop.f32.mrb[0].mxu0
      %v1842 = vadd.f32 0.0, %v1841
      %v1843 = vpop.f32.mrb[0].mxu0
      %1844 = vmatprep.mubr.f32.mxu0 0.0
      %1845 = vmatmul.mubr.f32.gmra.mrb[0].mxu0 %v1633
      %v1846 = vpop.f32.mrb[0].mxu0
      %v1847 = vadd.f32 0.0, %v1846
      %v1848 = vpop.f32.mrb[0].mxu0
      %1849 = vmatprep.mubr.f32.mxu0 0.0
      %1850 = vmatmul.mubr.f32.gmra.mrb[0].mxu0 %v1636
      %v1851 = vpop.f32.mrb[0].mxu0
      %v1852 = vadd.f32 0.0, %v1851
      %v1853 = vpop.f32.mrb[0].mxu0
      %1854 = vmatprep.mubr.f32.mxu0 0.0
      %1855 = vmatmul.mubr.f32.gmra.mrb[0].mxu0 %v1639
      %v1856 = vpop.f32.mrb[0].mxu0
      %v1857 = vadd.f32 0.0, %v1856
      %v1858 = vpop.f32.mrb[0].mxu0
      %1859 = vmatprep.mubr.f32.mxu0 0.0
      %1860 = vmatmul.mubr.f32.gmra.mrb[0].mxu0 %v1642
      %v1861 = vpop.f32.mrb[0].mxu0
      %v1862 = vadd.f32 0.0, %v1861
      %v1863 = vpop.f32.mrb[0].mxu0
      %1864 = vmatprep.mubr.f32.mxu0 0.0
      %1865 = vmatmul.mubr.f32.gmra.mrb[0].mxu0 %v1645
      %v1866 = vpop.f32.mrb[0].mxu0
      %v1867 = vadd.f32 0.0, %v1866
      %v1868 = vpop.f32.mrb[0].mxu0
      %1869 = vmatprep.mubr.f32.mxu0 0.0
      %1870 = vmatmul.mubr.f32.gmra.mrb[0].mxu0 %v1648
      %v1871 = vpop.f32.mrb[0].mxu0
      %v1872 = vadd.f32 0.0, %v1871
      %v1873 = vpop.f32.mrb[0].mxu0
      %1874 = vdwg.mxu0
      %v1875 = vadd.f32 %v1487, %v1717
      %v1876 = vadd.f32 %v1488, %v1722
      %v1877 = vadd.f32 %v1489, %v1727
      %v1878 = vadd.f32 %v1490, %v1732
      %v1879 = vadd.f32 %v1491, %v1737
      %v1880 = vadd.f32 %v1492, %v1742
      %v1881 = vadd.f32 %v1493, %v1747
      %v1882 = vadd.f32 %v1494, %v1752
      %v1883 = vadd.f32 %v1495, %v1757
      %v1884 = vadd.f32 %v1496, %v1762
      %v1885 = vadd.f32 %v1497, %v1767
      %v1886 = vadd.f32 %v1498, %v1772
      %v1887 = vadd.f32 %v1499, %v1777
      %v1888 = vadd.f32 %v1500, %v1782
      %v1889 = vadd.f32 %v1501, %v1787
      %v1890 = vadd.f32 %v1502, %v1792
      %v1891 = vadd.f32 %v1503, %v1797
      %v1892 = vadd.f32 %v1504, %v1802
      %v1893 = vadd.f32 %v1505, %v1807
      %v1894 = vadd.f32 %v1506, %v1812
      %v1895 = vadd.f32 %v1507, %v1817
      %v1896 = vadd.f32 %v1508, %v1822
      %v1897 = vadd.f32 %v1509, %v1827
      %v1898 = vadd.f32 %v1510, %v1832
      %v1899 = vadd.f32 %v1511, %v1837
      %v1900 = vadd.f32 %v1512, %v1842
      %v1901 = vadd.f32 %v1513, %v1847
      %v1902 = vadd.f32 %v1514, %v1852
      %v1903 = vadd.f32 %v1515, %v1857
      %v1904 = vadd.f32 %v1516, %v1862
      %v1905 = vadd.f32 %v1517, %v1867
      %v1906 = vadd.f32 %v1518, %v1872
      %v1907 = vld [vmem:[%s1519 + $0x1] sm:$0xff]
      %v1908 = vld [vmem:[%s1519 + $0x9] sm:$0xff]
      %v1909 = vld [vmem:[%s1519 + $0x19] sm:$0xff]
      %v1910 = vld [vmem:[%s1519 + $0x21] sm:$0xff]
      %v1911 = vld [vmem:[%s1519 + $0x31] sm:$0xff]
      %v1912 = vld [vmem:[%s1519 + $0x39] sm:$0xff]
      %v1913 = vld [vmem:[%s1519 + $0x49] sm:$0xff]
      %v1914 = vld [vmem:[%s1519 + $0x51] sm:$0xff]
      %v1915 = vld [vmem:[%s1519 + $0x61] sm:$0xff]
      %v1916 = vld [vmem:[%s1519 + $0x69] sm:$0xff]
      %v1917 = vld [vmem:[%s1519 + $0x79] sm:$0xff]
      %v1918 = vld [vmem:[%s1519 + $0x81] sm:$0xff]
      %v1919 = vld [vmem:[%s1519 + $0x91] sm:$0xff]
      %v1920 = vld [vmem:[%s1519 + $0x99] sm:$0xff]
      %v1921 = vld [vmem:[%s1519 + $0xa9] sm:$0xff]
      %v1922 = vld [vmem:[%s1519 + $0xb1] sm:$0xff]
      %v1923 = vld [vmem:[%s1519 + $0xc1] sm:$0xff]
      %v1924 = vld [vmem:[%s1519 + $0xc9] sm:$0xff]
      %v1925 = vld [vmem:[%s1519 + $0xd9] sm:$0xff]
      %v1926 = vld [vmem:[%s1519 + $0xe1] sm:$0xff]
      %v1927 = vld [vmem:[%s1519 + $0xf1] sm:$0xff]
      %v1928 = vld [vmem:[%s1519 + $0xf9] sm:$0xff]
      %v1929 = vld [vmem:[%s1519 + $0x109] sm:$0xff]
      %v1930 = vld [vmem:[%s1519 + $0x111] sm:$0xff]
      %v1931 = vld [vmem:[%s1519 + $0x121] sm:$0xff]
      %v1932 = vld [vmem:[%s1519 + $0x129] sm:$0xff]
      %v1933 = vld [vmem:[%s1519 + $0x139] sm:$0xff]
      %v1934 = vld [vmem:[%s1519 + $0x141] sm:$0xff]
      %v1935 = vld [vmem:[%s1519 + $0x151] sm:$0xff]
      %v1936 = vld [vmem:[%s1519 + $0x159] sm:$0xff]
      %v1937 = vld [vmem:[%s1519 + $0x169] sm:$0xff]
      %v1938 = vld [vmem:[%s1519 + $0x171] sm:$0xff]
      %s1939 = scalar_lea.vmem %s1, 32
      %v1940 = vld [vmem:[%s1939] sm:$0xff]
      %v1942 = vsel %vm306, %v1907, 0
      %v1945 = vsel %vm306, %v1908, 0
      %v1948 = vsel %vm306, %v1909, 0
      %v1951 = vsel %vm306, %v1910, 0
      %v1954 = vsel %vm306, %v1911, 0
      %v1957 = vsel %vm306, %v1912, 0
      %v1960 = vsel %vm306, %v1913, 0
      %v1963 = vsel %vm306, %v1914, 0
      %v1966 = vsel %vm306, %v1915, 0
      %v1969 = vsel %vm306, %v1916, 0
      %v1972 = vsel %vm306, %v1917, 0
      %v1975 = vsel %vm306, %v1918, 0
      %v1978 = vsel %vm306, %v1919, 0
      %v1981 = vsel %vm306, %v1920, 0
      %v1984 = vsel %vm306, %v1921, 0
      %v1987 = vsel %vm306, %v1922, 0
      %v1990 = vsel %vm306, %v1923, 0
      %v1993 = vsel %vm306, %v1924, 0
      %v1996 = vsel %vm306, %v1925, 0
      %v1999 = vsel %vm306, %v1926, 0
      %v2002 = vsel %vm306, %v1927, 0
      %v2005 = vsel %vm306, %v1928, 0
      %v2008 = vsel %vm306, %v1929, 0
      %v2011 = vsel %vm306, %v1930, 0
      %v2014 = vsel %vm306, %v1931, 0
      %v2017 = vsel %vm306, %v1932, 0
      %v2020 = vsel %vm306, %v1933, 0
      %v2023 = vsel %vm306, %v1934, 0
      %v2026 = vsel %vm306, %v1935, 0
      %v2029 = vsel %vm306, %v1936, 0
      %v2032 = vsel %vm306, %v1937, 0
      %v2035 = vsel %vm306, %v1938, 0
      %2037 = vmatprep.subr.mxu0 0.0
      %2038 = vmatpush1.msra.mxu0 %v1940
      %2039 = vmatprep.subr.mxu0 0.0
      %2040 = vmatpush1.msra.mxu0 0.0
      %2041 = vmatprep.subr.mxu0 0.0
      %2042 = vmatpush1.msra.mxu0 0.0
      %2043 = vmatprep.subr.mxu0 0.0
      %2044 = vmatpush1.msra.mxu0 0.0
      %2045 = vmatprep.subr.mxu0 0.0
      %2046 = vmatpush1.msra.mxu0 0.0
      %2047 = vmatprep.subr.mxu0 0.0
      %2048 = vmatpush1.msra.mxu0 0.0
      %2049 = vmatprep.subr.mxu0 0.0
      %2050 = vmatpush1.msra.mxu0 0.0
      %2051 = vmatprep.subr.mxu0 0.0
      %2052 = vmatpush1.msra.mxu0 0.0
      %2053 = vmatprep.subr.mxu0 0.0
      %2054 = vmatpush1.msra.mxu0 0.0
      %2055 = vmatprep.subr.mxu0 0.0
      %2056 = vmatpush1.msra.mxu0 0.0
      %2057 = vmatprep.subr.mxu0 0.0
      %2058 = vmatpush1.msra.mxu0 0.0
      %2059 = vmatprep.subr.mxu0 0.0
      %2060 = vmatpush1.msra.mxu0 0.0
      %2061 = vmatprep.subr.mxu0 0.0
      %2062 = vmatpush1.msra.mxu0 0.0
      %2063 = vmatprep.subr.mxu0 0.0
      %2064 = vmatpush1.msra.mxu0 0.0
      %2065 = vmatprep.subr.mxu0 0.0
      %2066 = vmatpush1.msra.mxu0 0.0
      %2067 = vmatprep.subr.mxu0 0.0
      %2068 = vmatpush1.msra.mxu0 0.0
      %2069 = vmatprep.subr.mxu0 0.0
      %2070 = vmatpush1.msra.mxu0 0.0
      %2071 = vmatprep.subr.mxu0 0.0
      %2072 = vmatpush1.msra.mxu0 0.0
      %2073 = vmatprep.subr.mxu0 0.0
      %2074 = vmatpush1.msra.mxu0 0.0
      %2075 = vmatprep.subr.mxu0 0.0
      %2076 = vmatpush1.msra.mxu0 0.0
      %2077 = vmatprep.subr.mxu0 0.0
      %2078 = vmatpush1.msra.mxu0 0.0
      %2079 = vmatprep.subr.mxu0 0.0
      %2080 = vmatpush1.msra.mxu0 0.0
      %2081 = vmatprep.subr.mxu0 0.0
      %2082 = vmatpush1.msra.mxu0 0.0
      %2083 = vmatprep.subr.mxu0 0.0
      %2084 = vmatpush1.msra.mxu0 0.0
      %2085 = vmatprep.subr.mxu0 0.0
      %2086 = vmatpush1.msra.mxu0 0.0
      %2087 = vmatprep.subr.mxu0 0.0
      %2088 = vmatpush1.msra.mxu0 0.0
      %2089 = vmatprep.subr.mxu0 0.0
      %2090 = vmatpush1.msra.mxu0 0.0
      %2091 = vmatprep.subr.mxu0 0.0
      %2092 = vmatpush1.msra.mxu0 0.0
      %2093 = vmatprep.subr.mxu0 0.0
      %2094 = vmatpush1.msra.mxu0 0.0
      %2095 = vmatprep.subr.mxu0 0.0
      %2096 = vmatpush1.msra.mxu0 0.0
      %2097 = vmatprep.subr.mxu0 0.0
      %2098 = vmatpush1.msra.mxu0 0.0
      %2099 = vmatprep.subr.mxu0 0.0
      %2100 = vmatpush1.msra.mxu0 0.0
      %2101 = vmatprep.mubr.f32.mxu0 0.0
      %2102 = vmatmul.mubr.f32.gmra.mrb[0].mxu0 %v1942
      %v2103 = vpop.f32.mrb[0].mxu0
      %v2104 = vadd.f32 0.0, %v2103
      %v2105 = vpop.f32.mrb[0].mxu0
      %2106 = vmatprep.mubr.f32.mxu0 0.0
      %2107 = vmatmul.mubr.f32.gmra.mrb[0].mxu0 %v1945
      %v2108 = vpop.f32.mrb[0].mxu0
      %v2109 = vadd.f32 0.0, %v2108
      %v2110 = vpop.f32.mrb[0].mxu0
      %2111 = vmatprep.mubr.f32.mxu0 0.0
      %2112 = vmatmul.mubr.f32.gmra.mrb[0].mxu0 %v1948
      %v2113 = vpop.f32.mrb[0].mxu0
      %v2114 = vadd.f32 0.0, %v2113
      %v2115 = vpop.f32.mrb[0].mxu0
      %2116 = vmatprep.mubr.f32.mxu0 0.0
      %2117 = vmatmul.mubr.f32.gmra.mrb[0].mxu0 %v1951
      %v2118 = vpop.f32.mrb[0].mxu0
      %v2119 = vadd.f32 0.0, %v2118
      %v2120 = vpop.f32.mrb[0].mxu0
      %2121 = vmatprep.mubr.f32.mxu0 0.0
      %2122 = vmatmul.mubr.f32.gmra.mrb[0].mxu0 %v1954
      %v2123 = vpop.f32.mrb[0].mxu0
      %v2124 = vadd.f32 0.0, %v2123
      %v2125 = vpop.f32.mrb[0].mxu0
      %2126 = vmatprep.mubr.f32.mxu0 0.0
      %2127 = vmatmul.mubr.f32.gmra.mrb[0].mxu0 %v1957
      %v2128 = vpop.f32.mrb[0].mxu0
      %v2129 = vadd.f32 0.0, %v2128
      %v2130 = vpop.f32.mrb[0].mxu0
      %2131 = vmatprep.mubr.f32.mxu0 0.0
      %2132 = vmatmul.mubr.f32.gmra.mrb[0].mxu0 %v1960
      %v2133 = vpop.f32.mrb[0].mxu0
      %v2134 = vadd.f32 0.0, %v2133
      %v2135 = vpop.f32.mrb[0].mxu0
      %2136 = vmatprep.mubr.f32.mxu0 0.0
      %2137 = vmatmul.mubr.f32.gmra.mrb[0].mxu0 %v1963
      %v2138 = vpop.f32.mrb[0].mxu0
      %v2139 = vadd.f32 0.0, %v2138
      %v2140 = vpop.f32.mrb[0].mxu0
      %2141 = vmatprep.mubr.f32.mxu0 0.0
      %2142 = vmatmul.mubr.f32.gmra.mrb[0].mxu0 %v1966
      %v2143 = vpop.f32.mrb[0].mxu0
      %v2144 = vadd.f32 0.0, %v2143
      %v2145 = vpop.f32.mrb[0].mxu0
      %2146 = vmatprep.mubr.f32.mxu0 0.0
      %2147 = vmatmul.mubr.f32.gmra.mrb[0].mxu0 %v1969
      %v2148 = vpop.f32.mrb[0].mxu0
      %v2149 = vadd.f32 0.0, %v2148
      %v2150 = vpop.f32.mrb[0].mxu0
      %2151 = vmatprep.mubr.f32.mxu0 0.0
      %2152 = vmatmul.mubr.f32.gmra.mrb[0].mxu0 %v1972
      %v2153 = vpop.f32.mrb[0].mxu0
      %v2154 = vadd.f32 0.0, %v2153
      %v2155 = vpop.f32.mrb[0].mxu0
      %2156 = vmatprep.mubr.f32.mxu0 0.0
      %2157 = vmatmul.mubr.f32.gmra.mrb[0].mxu0 %v1975
      %v2158 = vpop.f32.mrb[0].mxu0
      %v2159 = vadd.f32 0.0, %v2158
      %v2160 = vpop.f32.mrb[0].mxu0
      %2161 = vmatprep.mubr.f32.mxu0 0.0
      %2162 = vmatmul.mubr.f32.gmra.mrb[0].mxu0 %v1978
      %v2163 = vpop.f32.mrb[0].mxu0
      %v2164 = vadd.f32 0.0, %v2163
      %v2165 = vpop.f32.mrb[0].mxu0
      %2166 = vmatprep.mubr.f32.mxu0 0.0
      %2167 = vmatmul.mubr.f32.gmra.mrb[0].mxu0 %v1981
      %v2168 = vpop.f32.mrb[0].mxu0
      %v2169 = vadd.f32 0.0, %v2168
      %v2170 = vpop.f32.mrb[0].mxu0
      %2171 = vmatprep.mubr.f32.mxu0 0.0
      %2172 = vmatmul.mubr.f32.gmra.mrb[0].mxu0 %v1984
      %v2173 = vpop.f32.mrb[0].mxu0
      %v2174 = vadd.f32 0.0, %v2173
      %v2175 = vpop.f32.mrb[0].mxu0
      %2176 = vmatprep.mubr.f32.mxu0 0.0
      %2177 = vmatmul.mubr.f32.gmra.mrb[0].mxu0 %v1987
      %v2178 = vpop.f32.mrb[0].mxu0
      %v2179 = vadd.f32 0.0, %v2178
      %v2180 = vpop.f32.mrb[0].mxu0
      %2181 = vmatprep.mubr.f32.mxu0 0.0
      %2182 = vmatmul.mubr.f32.gmra.mrb[0].mxu0 %v1990
      %v2183 = vpop.f32.mrb[0].mxu0
      %v2184 = vadd.f32 0.0, %v2183
      %v2185 = vpop.f32.mrb[0].mxu0
      %2186 = vmatprep.mubr.f32.mxu0 0.0
      %2187 = vmatmul.mubr.f32.gmra.mrb[0].mxu0 %v1993
      %v2188 = vpop.f32.mrb[0].mxu0
      %v2189 = vadd.f32 0.0, %v2188
      %v2190 = vpop.f32.mrb[0].mxu0
      %2191 = vmatprep.mubr.f32.mxu0 0.0
      %2192 = vmatmul.mubr.f32.gmra.mrb[0].mxu0 %v1996
      %v2193 = vpop.f32.mrb[0].mxu0
      %v2194 = vadd.f32 0.0, %v2193
      %v2195 = vpop.f32.mrb[0].mxu0
      %2196 = vmatprep.mubr.f32.mxu0 0.0
      %2197 = vmatmul.mubr.f32.gmra.mrb[0].mxu0 %v1999
      %v2198 = vpop.f32.mrb[0].mxu0
      %v2199 = vadd.f32 0.0, %v2198
      %v2200 = vpop.f32.mrb[0].mxu0
      %2201 = vmatprep.mubr.f32.mxu0 0.0
      %2202 = vmatmul.mubr.f32.gmra.mrb[0].mxu0 %v2002
      %v2203 = vpop.f32.mrb[0].mxu0
      %v2204 = vadd.f32 0.0, %v2203
      %v2205 = vpop.f32.mrb[0].mxu0
      %2206 = vmatprep.mubr.f32.mxu0 0.0
      %2207 = vmatmul.mubr.f32.gmra.mrb[0].mxu0 %v2005
      %v2208 = vpop.f32.mrb[0].mxu0
      %v2209 = vadd.f32 0.0, %v2208
      %v2210 = vpop.f32.mrb[0].mxu0
      %2211 = vmatprep.mubr.f32.mxu0 0.0
      %2212 = vmatmul.mubr.f32.gmra.mrb[0].mxu0 %v2008
      %v2213 = vpop.f32.mrb[0].mxu0
      %v2214 = vadd.f32 0.0, %v2213
      %v2215 = vpop.f32.mrb[0].mxu0
      %2216 = vmatprep.mubr.f32.mxu0 0.0
      %2217 = vmatmul.mubr.f32.gmra.mrb[0].mxu0 %v2011
      %v2218 = vpop.f32.mrb[0].mxu0
      %v2219 = vadd.f32 0.0, %v2218
      %v2220 = vpop.f32.mrb[0].mxu0
      %2221 = vmatprep.mubr.f32.mxu0 0.0
      %2222 = vmatmul.mubr.f32.gmra.mrb[0].mxu0 %v2014
      %v2223 = vpop.f32.mrb[0].mxu0
      %v2224 = vadd.f32 0.0, %v2223
      %v2225 = vpop.f32.mrb[0].mxu0
      %2226 = vmatprep.mubr.f32.mxu0 0.0
      %2227 = vmatmul.mubr.f32.gmra.mrb[0].mxu0 %v2017
      %v2228 = vpop.f32.mrb[0].mxu0
      %v2229 = vadd.f32 0.0, %v2228
      %v2230 = vpop.f32.mrb[0].mxu0
      %2231 = vmatprep.mubr.f32.mxu0 0.0
      %2232 = vmatmul.mubr.f32.gmra.mrb[0].mxu0 %v2020
      %v2233 = vpop.f32.mrb[0].mxu0
      %v2234 = vadd.f32 0.0, %v2233
      %v2235 = vpop.f32.mrb[0].mxu0
      %2236 = vmatprep.mubr.f32.mxu0 0.0
      %2237 = vmatmul.mubr.f32.gmra.mrb[0].mxu0 %v2023
      %v2238 = vpop.f32.mrb[0].mxu0
      %v2239 = vadd.f32 0.0, %v2238
      %v2240 = vpop.f32.mrb[0].mxu0
      %2241 = vmatprep.mubr.f32.mxu0 0.0
      %2242 = vmatmul.mubr.f32.gmra.mrb[0].mxu0 %v2026
      %v2243 = vpop.f32.mrb[0].mxu0
      %v2244 = vadd.f32 0.0, %v2243
      %v2245 = vpop.f32.mrb[0].mxu0
      %2246 = vmatprep.mubr.f32.mxu0 0.0
      %2247 = vmatmul.mubr.f32.gmra.mrb[0].mxu0 %v2029
      %v2248 = vpop.f32.mrb[0].mxu0
      %v2249 = vadd.f32 0.0, %v2248
      %v2250 = vpop.f32.mrb[0].mxu0
      %2251 = vmatprep.mubr.f32.mxu0 0.0
      %2252 = vmatmul.mubr.f32.gmra.mrb[0].mxu0 %v2032
      %v2253 = vpop.f32.mrb[0].mxu0
      %v2254 = vadd.f32 0.0, %v2253
      %v2255 = vpop.f32.mrb[0].mxu0
      %2256 = vmatprep.mubr.f32.mxu0 0.0
      %2257 = vmatmul.mubr.f32.gmra.mrb[0].mxu0 %v2035
      %v2258 = vpop.f32.mrb[0].mxu0
      %v2259 = vadd.f32 0.0, %v2258
      %v2260 = vpop.f32.mrb[0].mxu0
      %2261 = vdwg.mxu0
      %v2262 = vadd.f32 %v1875, %v2104
      %v2263 = vadd.f32 %v1876, %v2109
      %v2264 = vadd.f32 %v1877, %v2114
      %v2265 = vadd.f32 %v1878, %v2119
      %v2266 = vadd.f32 %v1879, %v2124
      %v2267 = vadd.f32 %v1880, %v2129
      %v2268 = vadd.f32 %v1881, %v2134
      %v2269 = vadd.f32 %v1882, %v2139
      %v2270 = vadd.f32 %v1883, %v2144
      %v2271 = vadd.f32 %v1884, %v2149
      %v2272 = vadd.f32 %v1885, %v2154
      %v2273 = vadd.f32 %v1886, %v2159
      %v2274 = vadd.f32 %v1887, %v2164
      %v2275 = vadd.f32 %v1888, %v2169
      %v2276 = vadd.f32 %v1889, %v2174
      %v2277 = vadd.f32 %v1890, %v2179
      %v2278 = vadd.f32 %v1891, %v2184
      %v2279 = vadd.f32 %v1892, %v2189
      %v2280 = vadd.f32 %v1893, %v2194
      %v2281 = vadd.f32 %v1894, %v2199
      %v2282 = vadd.f32 %v1895, %v2204
      %v2283 = vadd.f32 %v1896, %v2209
      %v2284 = vadd.f32 %v1897, %v2214
      %v2285 = vadd.f32 %v1898, %v2219
      %v2286 = vadd.f32 %v1899, %v2224
      %v2287 = vadd.f32 %v1900, %v2229
      %v2288 = vadd.f32 %v1901, %v2234
      %v2289 = vadd.f32 %v1902, %v2239
      %v2290 = vadd.f32 %v1903, %v2244
      %v2291 = vadd.f32 %v1904, %v2249
      %v2292 = vadd.f32 %v1905, %v2254
      %v2293 = vadd.f32 %v1906, %v2259
      %v2294 = vld [vmem:[%s1519 + $0x2] sm:$0xff]
      %v2295 = vld [vmem:[%s1519 + $0xa] sm:$0xff]
      %v2296 = vld [vmem:[%s1519 + $0x1a] sm:$0xff]
      %v2297 = vld [vmem:[%s1519 + $0x22] sm:$0xff]
      %v2298 = vld [vmem:[%s1519 + $0x32] sm:$0xff]
      %v2299 = vld [vmem:[%s1519 + $0x3a] sm:$0xff]
      %v2300 = vld [vmem:[%s1519 + $0x4a] sm:$0xff]
      %v2301 = vld [vmem:[%s1519 + $0x52] sm:$0xff]
      %v2302 = vld [vmem:[%s1519 + $0x62] sm:$0xff]
      %v2303 = vld [vmem:[%s1519 + $0x6a] sm:$0xff]
      %v2304 = vld [vmem:[%s1519 + $0x7a] sm:$0xff]
      %v2305 = vld [vmem:[%s1519 + $0x82] sm:$0xff]
      %v2306 = vld [vmem:[%s1519 + $0x92] sm:$0xff]
      %v2307 = vld [vmem:[%s1519 + $0x9a] sm:$0xff]
      %v2308 = vld [vmem:[%s1519 + $0xaa] sm:$0xff]
      %v2309 = vld [vmem:[%s1519 + $0xb2] sm:$0xff]
      %v2310 = vld [vmem:[%s1519 + $0xc2] sm:$0xff]
      %v2311 = vld [vmem:[%s1519 + $0xca] sm:$0xff]
      %v2312 = vld [vmem:[%s1519 + $0xda] sm:$0xff]
      %v2313 = vld [vmem:[%s1519 + $0xe2] sm:$0xff]
      %v2314 = vld [vmem:[%s1519 + $0xf2] sm:$0xff]
      %v2315 = vld [vmem:[%s1519 + $0xfa] sm:$0xff]
      %v2316 = vld [vmem:[%s1519 + $0x10a] sm:$0xff]
      %v2317 = vld [vmem:[%s1519 + $0x112] sm:$0xff]
      %v2318 = vld [vmem:[%s1519 + $0x122] sm:$0xff]
      %v2319 = vld [vmem:[%s1519 + $0x12a] sm:$0xff]
      %v2320 = vld [vmem:[%s1519 + $0x13a] sm:$0xff]
      %v2321 = vld [vmem:[%s1519 + $0x142] sm:$0xff]
      %v2322 = vld [vmem:[%s1519 + $0x152] sm:$0xff]
      %v2323 = vld [vmem:[%s1519 + $0x15a] sm:$0xff]
      %v2324 = vld [vmem:[%s1519 + $0x16a] sm:$0xff]
      %v2325 = vld [vmem:[%s1519 + $0x172] sm:$0xff]
      %s2326 = scalar_lea.vmem %s1, 40
      %v2327 = vld [vmem:[%s2326] sm:$0xff]
      %v2329 = vsel %vm306, %v2294, 0
      %v2332 = vsel %vm306, %v2295, 0
      %v2335 = vsel %vm306, %v2296, 0
      %v2338 = vsel %vm306, %v2297, 0
      %v2341 = vsel %vm306, %v2298, 0
      %v2344 = vsel %vm306, %v2299, 0
      %v2347 = vsel %vm306, %v2300, 0
      %v2350 = vsel %vm306, %v2301, 0
      %v2353 = vsel %vm306, %v2302, 0
      %v2356 = vsel %vm306, %v2303, 0
      %v2359 = vsel %vm306, %v2304, 0
      %v2362 = vsel %vm306, %v2305, 0
      %v2365 = vsel %vm306, %v2306, 0
      %v2368 = vsel %vm306, %v2307, 0
      %v2371 = vsel %vm306, %v2308, 0
      %v2374 = vsel %vm306, %v2309, 0
      %v2377 = vsel %vm306, %v2310, 0
      %v2380 = vsel %vm306, %v2311, 0
      %v2383 = vsel %vm306, %v2312, 0
      %v2386 = vsel %vm306, %v2313, 0
      %v2389 = vsel %vm306, %v2314, 0
      %v2392 = vsel %vm306, %v2315, 0
      %v2395 = vsel %vm306, %v2316, 0
      %v2398 = vsel %vm306, %v2317, 0
      %v2401 = vsel %vm306, %v2318, 0
      %v2404 = vsel %vm306, %v2319, 0
      %v2407 = vsel %vm306, %v2320, 0
      %v2410 = vsel %vm306, %v2321, 0
      %v2413 = vsel %vm306, %v2322, 0
      %v2416 = vsel %vm306, %v2323, 0
      %v2419 = vsel %vm306, %v2324, 0
      %v2422 = vsel %vm306, %v2325, 0
      %2424 = vmatprep.subr.mxu0 0.0
      %2425 = vmatpush1.msra.mxu0 %v2327
      %2426 = vmatprep.subr.mxu0 0.0
      %2427 = vmatpush1.msra.mxu0 0.0
      %2428 = vmatprep.subr.mxu0 0.0
      %2429 = vmatpush1.msra.mxu0 0.0
      %2430 = vmatprep.subr.mxu0 0.0
      %2431 = vmatpush1.msra.mxu0 0.0
      %2432 = vmatprep.subr.mxu0 0.0
      %2433 = vmatpush1.msra.mxu0 0.0
      %2434 = vmatprep.subr.mxu0 0.0
      %2435 = vmatpush1.msra.mxu0 0.0
      %2436 = vmatprep.subr.mxu0 0.0
      %2437 = vmatpush1.msra.mxu0 0.0
      %2438 = vmatprep.subr.mxu0 0.0
      %2439 = vmatpush1.msra.mxu0 0.0
      %2440 = vmatprep.subr.mxu0 0.0
      %2441 = vmatpush1.msra.mxu0 0.0
      %2442 = vmatprep.subr.mxu0 0.0
      %2443 = vmatpush1.msra.mxu0 0.0
      %2444 = vmatprep.subr.mxu0 0.0
      %2445 = vmatpush1.msra.mxu0 0.0
      %2446 = vmatprep.subr.mxu0 0.0
      %2447 = vmatpush1.msra.mxu0 0.0
      %2448 = vmatprep.subr.mxu0 0.0
      %2449 = vmatpush1.msra.mxu0 0.0
      %2450 = vmatprep.subr.mxu0 0.0
      %2451 = vmatpush1.msra.mxu0 0.0
      %2452 = vmatprep.subr.mxu0 0.0
      %2453 = vmatpush1.msra.mxu0 0.0
      %2454 = vmatprep.subr.mxu0 0.0
      %2455 = vmatpush1.msra.mxu0 0.0
      %2456 = vmatprep.subr.mxu0 0.0
      %2457 = vmatpush1.msra.mxu0 0.0
      %2458 = vmatprep.subr.mxu0 0.0
      %2459 = vmatpush1.msra.mxu0 0.0
      %2460 = vmatprep.subr.mxu0 0.0
      %2461 = vmatpush1.msra.mxu0 0.0
      %2462 = vmatprep.subr.mxu0 0.0
      %2463 = vmatpush1.msra.mxu0 0.0
      %2464 = vmatprep.subr.mxu0 0.0
      %2465 = vmatpush1.msra.mxu0 0.0
      %2466 = vmatprep.subr.mxu0 0.0
      %2467 = vmatpush1.msra.mxu0 0.0
      %2468 = vmatprep.subr.mxu0 0.0
      %2469 = vmatpush1.msra.mxu0 0.0
      %2470 = vmatprep.subr.mxu0 0.0
      %2471 = vmatpush1.msra.mxu0 0.0
      %2472 = vmatprep.subr.mxu0 0.0
      %2473 = vmatpush1.msra.mxu0 0.0
      %2474 = vmatprep.subr.mxu0 0.0
      %2475 = vmatpush1.msra.mxu0 0.0
      %2476 = vmatprep.subr.mxu0 0.0
      %2477 = vmatpush1.msra.mxu0 0.0
      %2478 = vmatprep.subr.mxu0 0.0
      %2479 = vmatpush1.msra.mxu0 0.0
      %2480 = vmatprep.subr.mxu0 0.0
      %2481 = vmatpush1.msra.mxu0 0.0
      %2482 = vmatprep.subr.mxu0 0.0
      %2483 = vmatpush1.msra.mxu0 0.0
      %2484 = vmatprep.subr.mxu0 0.0
      %2485 = vmatpush1.msra.mxu0 0.0
      %2486 = vmatprep.subr.mxu0 0.0
      %2487 = vmatpush1.msra.mxu0 0.0
      %2488 = vmatprep.mubr.f32.mxu0 0.0
      %2489 = vmatmul.mubr.f32.gmra.mrb[0].mxu0 %v2329
      %v2490 = vpop.f32.mrb[0].mxu0
      %v2491 = vadd.f32 0.0, %v2490
      %v2492 = vpop.f32.mrb[0].mxu0
      %2493 = vmatprep.mubr.f32.mxu0 0.0
      %2494 = vmatmul.mubr.f32.gmra.mrb[0].mxu0 %v2332
      %v2495 = vpop.f32.mrb[0].mxu0
      %v2496 = vadd.f32 0.0, %v2495
      %v2497 = vpop.f32.mrb[0].mxu0
      %2498 = vmatprep.mubr.f32.mxu0 0.0
      %2499 = vmatmul.mubr.f32.gmra.mrb[0].mxu0 %v2335
      %v2500 = vpop.f32.mrb[0].mxu0
      %v2501 = vadd.f32 0.0, %v2500
      %v2502 = vpop.f32.mrb[0].mxu0
      %2503 = vmatprep.mubr.f32.mxu0 0.0
      %2504 = vmatmul.mubr.f32.gmra.mrb[0].mxu0 %v2338
      %v2505 = vpop.f32.mrb[0].mxu0
      %v2506 = vadd.f32 0.0, %v2505
      %v2507 = vpop.f32.mrb[0].mxu0
      %2508 = vmatprep.mubr.f32.mxu0 0.0
      %2509 = vmatmul.mubr.f32.gmra.mrb[0].mxu0 %v2341
      %v2510 = vpop.f32.mrb[0].mxu0
      %v2511 = vadd.f32 0.0, %v2510
      %v2512 = vpop.f32.mrb[0].mxu0
      %2513 = vmatprep.mubr.f32.mxu0 0.0
      %2514 = vmatmul.mubr.f32.gmra.mrb[0].mxu0 %v2344
      %v2515 = vpop.f32.mrb[0].mxu0
      %v2516 = vadd.f32 0.0, %v2515
      %v2517 = vpop.f32.mrb[0].mxu0
      %2518 = vmatprep.mubr.f32.mxu0 0.0
      %2519 = vmatmul.mubr.f32.gmra.mrb[0].mxu0 %v2347
      %v2520 = vpop.f32.mrb[0].mxu0
      %v2521 = vadd.f32 0.0, %v2520
      %v2522 = vpop.f32.mrb[0].mxu0
      %2523 = vmatprep.mubr.f32.mxu0 0.0
      %2524 = vmatmul.mubr.f32.gmra.mrb[0].mxu0 %v2350
      %v2525 = vpop.f32.mrb[0].mxu0
      %v2526 = vadd.f32 0.0, %v2525
      %v2527 = vpop.f32.mrb[0].mxu0
      %2528 = vmatprep.mubr.f32.mxu0 0.0
      %2529 = vmatmul.mubr.f32.gmra.mrb[0].mxu0 %v2353
      %v2530 = vpop.f32.mrb[0].mxu0
      %v2531 = vadd.f32 0.0, %v2530
      %v2532 = vpop.f32.mrb[0].mxu0
      %2533 = vmatprep.mubr.f32.mxu0 0.0
      %2534 = vmatmul.mubr.f32.gmra.mrb[0].mxu0 %v2356
      %v2535 = vpop.f32.mrb[0].mxu0
      %v2536 = vadd.f32 0.0, %v2535
      %v2537 = vpop.f32.mrb[0].mxu0
      %2538 = vmatprep.mubr.f32.mxu0 0.0
      %2539 = vmatmul.mubr.f32.gmra.mrb[0].mxu0 %v2359
      %v2540 = vpop.f32.mrb[0].mxu0
      %v2541 = vadd.f32 0.0, %v2540
      %v2542 = vpop.f32.mrb[0].mxu0
      %2543 = vmatprep.mubr.f32.mxu0 0.0
      %2544 = vmatmul.mubr.f32.gmra.mrb[0].mxu0 %v2362
      %v2545 = vpop.f32.mrb[0].mxu0
      %v2546 = vadd.f32 0.0, %v2545
      %v2547 = vpop.f32.mrb[0].mxu0
      %2548 = vmatprep.mubr.f32.mxu0 0.0
      %2549 = vmatmul.mubr.f32.gmra.mrb[0].mxu0 %v2365
      %v2550 = vpop.f32.mrb[0].mxu0
      %v2551 = vadd.f32 0.0, %v2550
      %v2552 = vpop.f32.mrb[0].mxu0
      %2553 = vmatprep.mubr.f32.mxu0 0.0
      %2554 = vmatmul.mubr.f32.gmra.mrb[0].mxu0 %v2368
      %v2555 = vpop.f32.mrb[0].mxu0
      %v2556 = vadd.f32 0.0, %v2555
      %v2557 = vpop.f32.mrb[0].mxu0
      %2558 = vmatprep.mubr.f32.mxu0 0.0
      %2559 = vmatmul.mubr.f32.gmra.mrb[0].mxu0 %v2371
      %v2560 = vpop.f32.mrb[0].mxu0
      %v2561 = vadd.f32 0.0, %v2560
      %v2562 = vpop.f32.mrb[0].mxu0
      %2563 = vmatprep.mubr.f32.mxu0 0.0
      %2564 = vmatmul.mubr.f32.gmra.mrb[0].mxu0 %v2374
      %v2565 = vpop.f32.mrb[0].mxu0
      %v2566 = vadd.f32 0.0, %v2565
      %v2567 = vpop.f32.mrb[0].mxu0
      %2568 = vmatprep.mubr.f32.mxu0 0.0
      %2569 = vmatmul.mubr.f32.gmra.mrb[0].mxu0 %v2377
      %v2570 = vpop.f32.mrb[0].mxu0
      %v2571 = vadd.f32 0.0, %v2570
      %v2572 = vpop.f32.mrb[0].mxu0
      %2573 = vmatprep.mubr.f32.mxu0 0.0
      %2574 = vmatmul.mubr.f32.gmra.mrb[0].mxu0 %v2380
      %v2575 = vpop.f32.mrb[0].mxu0
      %v2576 = vadd.f32 0.0, %v2575
      %v2577 = vpop.f32.mrb[0].mxu0
      %2578 = vmatprep.mubr.f32.mxu0 0.0
      %2579 = vmatmul.mubr.f32.gmra.mrb[0].mxu0 %v2383
      %v2580 = vpop.f32.mrb[0].mxu0
      %v2581 = vadd.f32 0.0, %v2580
      %v2582 = vpop.f32.mrb[0].mxu0
      %2583 = vmatprep.mubr.f32.mxu0 0.0
      %2584 = vmatmul.mubr.f32.gmra.mrb[0].mxu0 %v2386
      %v2585 = vpop.f32.mrb[0].mxu0
      %v2586 = vadd.f32 0.0, %v2585
      %v2587 = vpop.f32.mrb[0].mxu0
      %2588 = vmatprep.mubr.f32.mxu0 0.0
      %2589 = vmatmul.mubr.f32.gmra.mrb[0].mxu0 %v2389
      %v2590 = vpop.f32.mrb[0].mxu0
      %v2591 = vadd.f32 0.0, %v2590
      %v2592 = vpop.f32.mrb[0].mxu0
      %2593 = vmatprep.mubr.f32.mxu0 0.0
      %2594 = vmatmul.mubr.f32.gmra.mrb[0].mxu0 %v2392
      %v2595 = vpop.f32.mrb[0].mxu0
      %v2596 = vadd.f32 0.0, %v2595
      %v2597 = vpop.f32.mrb[0].mxu0
      %2598 = vmatprep.mubr.f32.mxu0 0.0
      %2599 = vmatmul.mubr.f32.gmra.mrb[0].mxu0 %v2395
      %v2600 = vpop.f32.mrb[0].mxu0
      %v2601 = vadd.f32 0.0, %v2600
      %v2602 = vpop.f32.mrb[0].mxu0
      %2603 = vmatprep.mubr.f32.mxu0 0.0
      %2604 = vmatmul.mubr.f32.gmra.mrb[0].mxu0 %v2398
      %v2605 = vpop.f32.mrb[0].mxu0
      %v2606 = vadd.f32 0.0, %v2605
      %v2607 = vpop.f32.mrb[0].mxu0
      %2608 = vmatprep.mubr.f32.mxu0 0.0
      %2609 = vmatmul.mubr.f32.gmra.mrb[0].mxu0 %v2401
      %v2610 = vpop.f32.mrb[0].mxu0
      %v2611 = vadd.f32 0.0, %v2610
      %v2612 = vpop.f32.mrb[0].mxu0
      %2613 = vmatprep.mubr.f32.mxu0 0.0
      %2614 = vmatmul.mubr.f32.gmra.mrb[0].mxu0 %v2404
      %v2615 = vpop.f32.mrb[0].mxu0
      %v2616 = vadd.f32 0.0, %v2615
      %v2617 = vpop.f32.mrb[0].mxu0
      %2618 = vmatprep.mubr.f32.mxu0 0.0
      %2619 = vmatmul.mubr.f32.gmra.mrb[0].mxu0 %v2407
      %v2620 = vpop.f32.mrb[0].mxu0
      %v2621 = vadd.f32 0.0, %v2620
      %v2622 = vpop.f32.mrb[0].mxu0
      %2623 = vmatprep.mubr.f32.mxu0 0.0
      %2624 = vmatmul.mubr.f32.gmra.mrb[0].mxu0 %v2410
      %v2625 = vpop.f32.mrb[0].mxu0
      %v2626 = vadd.f32 0.0, %v2625
      %v2627 = vpop.f32.mrb[0].mxu0
      %2628 = vmatprep.mubr.f32.mxu0 0.0
      %2629 = vmatmul.mubr.f32.gmra.mrb[0].mxu0 %v2413
      %v2630 = vpop.f32.mrb[0].mxu0
      %v2631 = vadd.f32 0.0, %v2630
      %v2632 = vpop.f32.mrb[0].mxu0
      %2633 = vmatprep.mubr.f32.mxu0 0.0
      %2634 = vmatmul.mubr.f32.gmra.mrb[0].mxu0 %v2416
      %v2635 = vpop.f32.mrb[0].mxu0
      %v2636 = vadd.f32 0.0, %v2635
      %v2637 = vpop.f32.mrb[0].mxu0
      %2638 = vmatprep.mubr.f32.mxu0 0.0
      %2639 = vmatmul.mubr.f32.gmra.mrb[0].mxu0 %v2419
      %v2640 = vpop.f32.mrb[0].mxu0
      %v2641 = vadd.f32 0.0, %v2640
      %v2642 = vpop.f32.mrb[0].mxu0
      %2643 = vmatprep.mubr.f32.mxu0 0.0
      %2644 = vmatmul.mubr.f32.gmra.mrb[0].mxu0 %v2422
      %v2645 = vpop.f32.mrb[0].mxu0
      %v2646 = vadd.f32 0.0, %v2645
      %v2647 = vpop.f32.mrb[0].mxu0
      %2648 = vdwg.mxu0
      %v2649 = vadd.f32 %v2262, %v2491
      %v2650 = vadd.f32 %v2263, %v2496
      %v2651 = vadd.f32 %v2264, %v2501
      %v2652 = vadd.f32 %v2265, %v2506
      %v2653 = vadd.f32 %v2266, %v2511
      %v2654 = vadd.f32 %v2267, %v2516
      %v2655 = vadd.f32 %v2268, %v2521
      %v2656 = vadd.f32 %v2269, %v2526
      %v2657 = vadd.f32 %v2270, %v2531
      %v2658 = vadd.f32 %v2271, %v2536
      %v2659 = vadd.f32 %v2272, %v2541
      %v2660 = vadd.f32 %v2273, %v2546
      %v2661 = vadd.f32 %v2274, %v2551
      %v2662 = vadd.f32 %v2275, %v2556
      %v2663 = vadd.f32 %v2276, %v2561
      %v2664 = vadd.f32 %v2277, %v2566
      %v2665 = vadd.f32 %v2278, %v2571
      %v2666 = vadd.f32 %v2279, %v2576
      %v2667 = vadd.f32 %v2280, %v2581
      %v2668 = vadd.f32 %v2281, %v2586
      %v2669 = vadd.f32 %v2282, %v2591
      %v2670 = vadd.f32 %v2283, %v2596
      %v2671 = vadd.f32 %v2284, %v2601
      %v2672 = vadd.f32 %v2285, %v2606
      %v2673 = vadd.f32 %v2286, %v2611
      %v2674 = vadd.f32 %v2287, %v2616
      %v2675 = vadd.f32 %v2288, %v2621
      %v2676 = vadd.f32 %v2289, %v2626
      %v2677 = vadd.f32 %v2290, %v2631
      %v2678 = vadd.f32 %v2291, %v2636
      %v2679 = vadd.f32 %v2292, %v2641
      %v2680 = vadd.f32 %v2293, %v2646
      %s2681 = scalar_lea.vmem %s300, 48
      %v2682 = vld [vmem:[%s2681] sm:$0xff]
      %v2683 = vld [vmem:[%s2681 + $0x8] sm:$0xff]
      %v2684 = vld [vmem:[%s2681 + $0x18] sm:$0xff]
      %v2685 = vld [vmem:[%s2681 + $0x20] sm:$0xff]
      %v2686 = vld [vmem:[%s2681 + $0x30] sm:$0xff]
      %v2687 = vld [vmem:[%s2681 + $0x38] sm:$0xff]
      %v2688 = vld [vmem:[%s2681 + $0x48] sm:$0xff]
      %v2689 = vld [vmem:[%s2681 + $0x50] sm:$0xff]
      %v2690 = vld [vmem:[%s2681 + $0x60] sm:$0xff]
      %v2691 = vld [vmem:[%s2681 + $0x68] sm:$0xff]
      %v2692 = vld [vmem:[%s2681 + $0x78] sm:$0xff]
      %v2693 = vld [vmem:[%s2681 + $0x80] sm:$0xff]
      %v2694 = vld [vmem:[%s2681 + $0x90] sm:$0xff]
      %v2695 = vld [vmem:[%s2681 + $0x98] sm:$0xff]
      %v2696 = vld [vmem:[%s2681 + $0xa8] sm:$0xff]
      %v2697 = vld [vmem:[%s2681 + $0xb0] sm:$0xff]
      %v2698 = vld [vmem:[%s2681 + $0xc0] sm:$0xff]
      %v2699 = vld [vmem:[%s2681 + $0xc8] sm:$0xff]
      %v2700 = vld [vmem:[%s2681 + $0xd8] sm:$0xff]
      %v2701 = vld [vmem:[%s2681 + $0xe0] sm:$0xff]
      %v2702 = vld [vmem:[%s2681 + $0xf0] sm:$0xff]
      %v2703 = vld [vmem:[%s2681 + $0xf8] sm:$0xff]
      %v2704 = vld [vmem:[%s2681 + $0x108] sm:$0xff]
      %v2705 = vld [vmem:[%s2681 + $0x110] sm:$0xff]
      %v2706 = vld [vmem:[%s2681 + $0x120] sm:$0xff]
      %v2707 = vld [vmem:[%s2681 + $0x128] sm:$0xff]
      %v2708 = vld [vmem:[%s2681 + $0x138] sm:$0xff]
      %v2709 = vld [vmem:[%s2681 + $0x140] sm:$0xff]
      %v2710 = vld [vmem:[%s2681 + $0x150] sm:$0xff]
      %v2711 = vld [vmem:[%s2681 + $0x158] sm:$0xff]
      %v2712 = vld [vmem:[%s2681 + $0x168] sm:$0xff]
      %v2713 = vld [vmem:[%s2681 + $0x170] sm:$0xff]
      %s2714 = scalar_lea.vmem %s1, 48
      %v2715 = vld [vmem:[%s2714] sm:$0xff]
      %v2717 = vsel %vm306, %v2682, 0
      %v2720 = vsel %vm306, %v2683, 0
      %v2723 = vsel %vm306, %v2684, 0
      %v2726 = vsel %vm306, %v2685, 0
      %v2729 = vsel %vm306, %v2686, 0
      %v2732 = vsel %vm306, %v2687, 0
      %v2735 = vsel %vm306, %v2688, 0
      %v2738 = vsel %vm306, %v2689, 0
      %v2741 = vsel %vm306, %v2690, 0
      %v2744 = vsel %vm306, %v2691, 0
      %v2747 = vsel %vm306, %v2692, 0
      %v2750 = vsel %vm306, %v2693, 0
      %v2753 = vsel %vm306, %v2694, 0
      %v2756 = vsel %vm306, %v2695, 0
      %v2759 = vsel %vm306, %v2696, 0
      %v2762 = vsel %vm306, %v2697, 0
      %v2765 = vsel %vm306, %v2698, 0
      %v2768 = vsel %vm306, %v2699, 0
      %v2771 = vsel %vm306, %v2700, 0
      %v2774 = vsel %vm306, %v2701, 0
      %v2777 = vsel %vm306, %v2702, 0
      %v2780 = vsel %vm306, %v2703, 0
      %v2783 = vsel %vm306, %v2704, 0
      %v2786 = vsel %vm306, %v2705, 0
      %v2789 = vsel %vm306, %v2706, 0
      %v2792 = vsel %vm306, %v2707, 0
      %v2795 = vsel %vm306, %v2708, 0
      %v2798 = vsel %vm306, %v2709, 0
      %v2801 = vsel %vm306, %v2710, 0
      %v2804 = vsel %vm306, %v2711, 0
      %v2807 = vsel %vm306, %v2712, 0
      %v2810 = vsel %vm306, %v2713, 0
      %2812 = vmatprep.subr.mxu0 0.0
      %2813 = vmatpush1.msra.mxu0 %v2715
      %2814 = vmatprep.subr.mxu0 0.0
      %2815 = vmatpush1.msra.mxu0 0.0
      %2816 = vmatprep.subr.mxu0 0.0
      %2817 = vmatpush1.msra.mxu0 0.0
      %2818 = vmatprep.subr.mxu0 0.0
      %2819 = vmatpush1.msra.mxu0 0.0
      %2820 = vmatprep.subr.mxu0 0.0
      %2821 = vmatpush1.msra.mxu0 0.0
      %2822 = vmatprep.subr.mxu0 0.0
      %2823 = vmatpush1.msra.mxu0 0.0
      %2824 = vmatprep.subr.mxu0 0.0
      %2825 = vmatpush1.msra.mxu0 0.0
      %2826 = vmatprep.subr.mxu0 0.0
      %2827 = vmatpush1.msra.mxu0 0.0
      %2828 = vmatprep.subr.mxu0 0.0
      %2829 = vmatpush1.msra.mxu0 0.0
      %2830 = vmatprep.subr.mxu0 0.0
      %2831 = vmatpush1.msra.mxu0 0.0
      %2832 = vmatprep.subr.mxu0 0.0
      %2833 = vmatpush1.msra.mxu0 0.0
      %2834 = vmatprep.subr.mxu0 0.0
      %2835 = vmatpush1.msra.mxu0 0.0
      %2836 = vmatprep.subr.mxu0 0.0
      %2837 = vmatpush1.msra.mxu0 0.0
      %2838 = vmatprep.subr.mxu0 0.0
      %2839 = vmatpush1.msra.mxu0 0.0
      %2840 = vmatprep.subr.mxu0 0.0
      %2841 = vmatpush1.msra.mxu0 0.0
      %2842 = vmatprep.subr.mxu0 0.0
      %2843 = vmatpush1.msra.mxu0 0.0
      %2844 = vmatprep.subr.mxu0 0.0
      %2845 = vmatpush1.msra.mxu0 0.0
      %2846 = vmatprep.subr.mxu0 0.0
      %2847 = vmatpush1.msra.mxu0 0.0
      %2848 = vmatprep.subr.mxu0 0.0
      %2849 = vmatpush1.msra.mxu0 0.0
      %2850 = vmatprep.subr.mxu0 0.0
      %2851 = vmatpush1.msra.mxu0 0.0
      %2852 = vmatprep.subr.mxu0 0.0
      %2853 = vmatpush1.msra.mxu0 0.0
      %2854 = vmatprep.subr.mxu0 0.0
      %2855 = vmatpush1.msra.mxu0 0.0
      %2856 = vmatprep.subr.mxu0 0.0
      %2857 = vmatpush1.msra.mxu0 0.0
      %2858 = vmatprep.subr.mxu0 0.0
      %2859 = vmatpush1.msra.mxu0 0.0
      %2860 = vmatprep.subr.mxu0 0.0
      %2861 = vmatpush1.msra.mxu0 0.0
      %2862 = vmatprep.subr.mxu0 0.0
      %2863 = vmatpush1.msra.mxu0 0.0
      %2864 = vmatprep.subr.mxu0 0.0
      %2865 = vmatpush1.msra.mxu0 0.0
      %2866 = vmatprep.subr.mxu0 0.0
      %2867 = vmatpush1.msra.mxu0 0.0
      %2868 = vmatprep.subr.mxu0 0.0
      %2869 = vmatpush1.msra.mxu0 0.0
      %2870 = vmatprep.subr.mxu0 0.0
      %2871 = vmatpush1.msra.mxu0 0.0
      %2872 = vmatprep.subr.mxu0 0.0
      %2873 = vmatpush1.msra.mxu0 0.0
      %2874 = vmatprep.subr.mxu0 0.0
      %2875 = vmatpush1.msra.mxu0 0.0
      %2876 = vmatprep.mubr.f32.mxu0 0.0
      %2877 = vmatmul.mubr.f32.gmra.mrb[0].mxu0 %v2717
      %v2878 = vpop.f32.mrb[0].mxu0
      %v2879 = vadd.f32 0.0, %v2878
      %v2880 = vpop.f32.mrb[0].mxu0
      %2881 = vmatprep.mubr.f32.mxu0 0.0
      %2882 = vmatmul.mubr.f32.gmra.mrb[0].mxu0 %v2720
      %v2883 = vpop.f32.mrb[0].mxu0
      %v2884 = vadd.f32 0.0, %v2883
      %v2885 = vpop.f32.mrb[0].mxu0
      %2886 = vmatprep.mubr.f32.mxu0 0.0
      %2887 = vmatmul.mubr.f32.gmra.mrb[0].mxu0 %v2723
      %v2888 = vpop.f32.mrb[0].mxu0
      %v2889 = vadd.f32 0.0, %v2888
      %v2890 = vpop.f32.mrb[0].mxu0
      %2891 = vmatprep.mubr.f32.mxu0 0.0
      %2892 = vmatmul.mubr.f32.gmra.mrb[0].mxu0 %v2726
      %v2893 = vpop.f32.mrb[0].mxu0
      %v2894 = vadd.f32 0.0, %v2893
      %v2895 = vpop.f32.mrb[0].mxu0
      %2896 = vmatprep.mubr.f32.mxu0 0.0
      %2897 = vmatmul.mubr.f32.gmra.mrb[0].mxu0 %v2729
      %v2898 = vpop.f32.mrb[0].mxu0
      %v2899 = vadd.f32 0.0, %v2898
      %v2900 = vpop.f32.mrb[0].mxu0
      %2901 = vmatprep.mubr.f32.mxu0 0.0
      %2902 = vmatmul.mubr.f32.gmra.mrb[0].mxu0 %v2732
      %v2903 = vpop.f32.mrb[0].mxu0
      %v2904 = vadd.f32 0.0, %v2903
      %v2905 = vpop.f32.mrb[0].mxu0
      %2906 = vmatprep.mubr.f32.mxu0 0.0
      %2907 = vmatmul.mubr.f32.gmra.mrb[0].mxu0 %v2735
      %v2908 = vpop.f32.mrb[0].mxu0
      %v2909 = vadd.f32 0.0, %v2908
      %v2910 = vpop.f32.mrb[0].mxu0
      %2911 = vmatprep.mubr.f32.mxu0 0.0
      %2912 = vmatmul.mubr.f32.gmra.mrb[0].mxu0 %v2738
      %v2913 = vpop.f32.mrb[0].mxu0
      %v2914 = vadd.f32 0.0, %v2913
      %v2915 = vpop.f32.mrb[0].mxu0
      %2916 = vmatprep.mubr.f32.mxu0 0.0
      %2917 = vmatmul.mubr.f32.gmra.mrb[0].mxu0 %v2741
      %v2918 = vpop.f32.mrb[0].mxu0
      %v2919 = vadd.f32 0.0, %v2918
      %v2920 = vpop.f32.mrb[0].mxu0
      %2921 = vmatprep.mubr.f32.mxu0 0.0
      %2922 = vmatmul.mubr.f32.gmra.mrb[0].mxu0 %v2744
      %v2923 = vpop.f32.mrb[0].mxu0
      %v2924 = vadd.f32 0.0, %v2923
      %v2925 = vpop.f32.mrb[0].mxu0
      %2926 = vmatprep.mubr.f32.mxu0 0.0
      %2927 = vmatmul.mubr.f32.gmra.mrb[0].mxu0 %v2747
      %v2928 = vpop.f32.mrb[0].mxu0
      %v2929 = vadd.f32 0.0, %v2928
      %v2930 = vpop.f32.mrb[0].mxu0
      %2931 = vmatprep.mubr.f32.mxu0 0.0
      %2932 = vmatmul.mubr.f32.gmra.mrb[0].mxu0 %v2750
      %v2933 = vpop.f32.mrb[0].mxu0
      %v2934 = vadd.f32 0.0, %v2933
      %v2935 = vpop.f32.mrb[0].mxu0
      %2936 = vmatprep.mubr.f32.mxu0 0.0
      %2937 = vmatmul.mubr.f32.gmra.mrb[0].mxu0 %v2753
      %v2938 = vpop.f32.mrb[0].mxu0
      %v2939 = vadd.f32 0.0, %v2938
      %v2940 = vpop.f32.mrb[0].mxu0
      %2941 = vmatprep.mubr.f32.mxu0 0.0
      %2942 = vmatmul.mubr.f32.gmra.mrb[0].mxu0 %v2756
      %v2943 = vpop.f32.mrb[0].mxu0
      %v2944 = vadd.f32 0.0, %v2943
      %v2945 = vpop.f32.mrb[0].mxu0
      %2946 = vmatprep.mubr.f32.mxu0 0.0
      %2947 = vmatmul.mubr.f32.gmra.mrb[0].mxu0 %v2759
      %v2948 = vpop.f32.mrb[0].mxu0
      %v2949 = vadd.f32 0.0, %v2948
      %v2950 = vpop.f32.mrb[0].mxu0
      %2951 = vmatprep.mubr.f32.mxu0 0.0
      %2952 = vmatmul.mubr.f32.gmra.mrb[0].mxu0 %v2762
      %v2953 = vpop.f32.mrb[0].mxu0
      %v2954 = vadd.f32 0.0, %v2953
      %v2955 = vpop.f32.mrb[0].mxu0
      %2956 = vmatprep.mubr.f32.mxu0 0.0
      %2957 = vmatmul.mubr.f32.gmra.mrb[0].mxu0 %v2765
      %v2958 = vpop.f32.mrb[0].mxu0
      %v2959 = vadd.f32 0.0, %v2958
      %v2960 = vpop.f32.mrb[0].mxu0
      %2961 = vmatprep.mubr.f32.mxu0 0.0
      %2962 = vmatmul.mubr.f32.gmra.mrb[0].mxu0 %v2768
      %v2963 = vpop.f32.mrb[0].mxu0
      %v2964 = vadd.f32 0.0, %v2963
      %v2965 = vpop.f32.mrb[0].mxu0
      %2966 = vmatprep.mubr.f32.mxu0 0.0
      %2967 = vmatmul.mubr.f32.gmra.mrb[0].mxu0 %v2771
      %v2968 = vpop.f32.mrb[0].mxu0
      %v2969 = vadd.f32 0.0, %v2968
      %v2970 = vpop.f32.mrb[0].mxu0
      %2971 = vmatprep.mubr.f32.mxu0 0.0
      %2972 = vmatmul.mubr.f32.gmra.mrb[0].mxu0 %v2774
      %v2973 = vpop.f32.mrb[0].mxu0
      %v2974 = vadd.f32 0.0, %v2973
      %v2975 = vpop.f32.mrb[0].mxu0
      %2976 = vmatprep.mubr.f32.mxu0 0.0
      %2977 = vmatmul.mubr.f32.gmra.mrb[0].mxu0 %v2777
      %v2978 = vpop.f32.mrb[0].mxu0
      %v2979 = vadd.f32 0.0, %v2978
      %v2980 = vpop.f32.mrb[0].mxu0
      %2981 = vmatprep.mubr.f32.mxu0 0.0
      %2982 = vmatmul.mubr.f32.gmra.mrb[0].mxu0 %v2780
      %v2983 = vpop.f32.mrb[0].mxu0
      %v2984 = vadd.f32 0.0, %v2983
      %v2985 = vpop.f32.mrb[0].mxu0
      %2986 = vmatprep.mubr.f32.mxu0 0.0
      %2987 = vmatmul.mubr.f32.gmra.mrb[0].mxu0 %v2783
      %v2988 = vpop.f32.mrb[0].mxu0
      %v2989 = vadd.f32 0.0, %v2988
      %v2990 = vpop.f32.mrb[0].mxu0
      %2991 = vmatprep.mubr.f32.mxu0 0.0
      %2992 = vmatmul.mubr.f32.gmra.mrb[0].mxu0 %v2786
      %v2993 = vpop.f32.mrb[0].mxu0
      %v2994 = vadd.f32 0.0, %v2993
      %v2995 = vpop.f32.mrb[0].mxu0
      %2996 = vmatprep.mubr.f32.mxu0 0.0
      %2997 = vmatmul.mubr.f32.gmra.mrb[0].mxu0 %v2789
      %v2998 = vpop.f32.mrb[0].mxu0
      %v2999 = vadd.f32 0.0, %v2998
      %v3000 = vpop.f32.mrb[0].mxu0
      %3001 = vmatprep.mubr.f32.mxu0 0.0
      %3002 = vmatmul.mubr.f32.gmra.mrb[0].mxu0 %v2792
      %v3003 = vpop.f32.mrb[0].mxu0
      %v3004 = vadd.f32 0.0, %v3003
      %v3005 = vpop.f32.mrb[0].mxu0
      %3006 = vmatprep.mubr.f32.mxu0 0.0
      %3007 = vmatmul.mubr.f32.gmra.mrb[0].mxu0 %v2795
      %v3008 = vpop.f32.mrb[0].mxu0
      %v3009 = vadd.f32 0.0, %v3008
      %v3010 = vpop.f32.mrb[0].mxu0
      %3011 = vmatprep.mubr.f32.mxu0 0.0
      %3012 = vmatmul.mubr.f32.gmra.mrb[0].mxu0 %v2798
      %v3013 = vpop.f32.mrb[0].mxu0
      %v3014 = vadd.f32 0.0, %v3013
      %v3015 = vpop.f32.mrb[0].mxu0
      %3016 = vmatprep.mubr.f32.mxu0 0.0
      %3017 = vmatmul.mubr.f32.gmra.mrb[0].mxu0 %v2801
      %v3018 = vpop.f32.mrb[0].mxu0
      %v3019 = vadd.f32 0.0, %v3018
      %v3020 = vpop.f32.mrb[0].mxu0
      %3021 = vmatprep.mubr.f32.mxu0 0.0
      %3022 = vmatmul.mubr.f32.gmra.mrb[0].mxu0 %v2804
      %v3023 = vpop.f32.mrb[0].mxu0
      %v3024 = vadd.f32 0.0, %v3023
      %v3025 = vpop.f32.mrb[0].mxu0
      %3026 = vmatprep.mubr.f32.mxu0 0.0
      %3027 = vmatmul.mubr.f32.gmra.mrb[0].mxu0 %v2807
      %v3028 = vpop.f32.mrb[0].mxu0
      %v3029 = vadd.f32 0.0, %v3028
      %v3030 = vpop.f32.mrb[0].mxu0
      %3031 = vmatprep.mubr.f32.mxu0 0.0
      %3032 = vmatmul.mubr.f32.gmra.mrb[0].mxu0 %v2810
      %v3033 = vpop.f32.mrb[0].mxu0
      %v3034 = vadd.f32 0.0, %v3033
      %v3035 = vpop.f32.mrb[0].mxu0
      %3036 = vdwg.mxu0
      %v3037 = vadd.f32 %v2649, %v2879
      %v3038 = vadd.f32 %v2650, %v2884
      %v3039 = vadd.f32 %v2651, %v2889
      %v3040 = vadd.f32 %v2652, %v2894
      %v3041 = vadd.f32 %v2653, %v2899
      %v3042 = vadd.f32 %v2654, %v2904
      %v3043 = vadd.f32 %v2655, %v2909
      %v3044 = vadd.f32 %v2656, %v2914
      %v3045 = vadd.f32 %v2657, %v2919
      %v3046 = vadd.f32 %v2658, %v2924
      %v3047 = vadd.f32 %v2659, %v2929
      %v3048 = vadd.f32 %v2660, %v2934
      %v3049 = vadd.f32 %v2661, %v2939
      %v3050 = vadd.f32 %v2662, %v2944
      %v3051 = vadd.f32 %v2663, %v2949
      %v3052 = vadd.f32 %v2664, %v2954
      %v3053 = vadd.f32 %v2665, %v2959
      %v3054 = vadd.f32 %v2666, %v2964
      %v3055 = vadd.f32 %v2667, %v2969
      %v3056 = vadd.f32 %v2668, %v2974
      %v3057 = vadd.f32 %v2669, %v2979
      %v3058 = vadd.f32 %v2670, %v2984
      %v3059 = vadd.f32 %v2671, %v2989
      %v3060 = vadd.f32 %v2672, %v2994
      %v3061 = vadd.f32 %v2673, %v2999
      %v3062 = vadd.f32 %v2674, %v3004
      %v3063 = vadd.f32 %v2675, %v3009
      %v3064 = vadd.f32 %v2676, %v3014
      %v3065 = vadd.f32 %v2677, %v3019
      %v3066 = vadd.f32 %v2678, %v3024
      %v3067 = vadd.f32 %v2679, %v3029
      %v3068 = vadd.f32 %v2680, %v3034
      %v3069 = vld [vmem:[%s2681 + $0x1] sm:$0xff]
      %v3070 = vld [vmem:[%s2681 + $0x9] sm:$0xff]
      %v3071 = vld [vmem:[%s2681 + $0x19] sm:$0xff]
      %v3072 = vld [vmem:[%s2681 + $0x21] sm:$0xff]
      %v3073 = vld [vmem:[%s2681 + $0x31] sm:$0xff]
      %v3074 = vld [vmem:[%s2681 + $0x39] sm:$0xff]
      %v3075 = vld [vmem:[%s2681 + $0x49] sm:$0xff]
      %v3076 = vld [vmem:[%s2681 + $0x51] sm:$0xff]
      %v3077 = vld [vmem:[%s2681 + $0x61] sm:$0xff]
      %v3078 = vld [vmem:[%s2681 + $0x69] sm:$0xff]
      %v3079 = vld [vmem:[%s2681 + $0x79] sm:$0xff]
      %v3080 = vld [vmem:[%s2681 + $0x81] sm:$0xff]
      %v3081 = vld [vmem:[%s2681 + $0x91] sm:$0xff]
      %v3082 = vld [vmem:[%s2681 + $0x99] sm:$0xff]
      %v3083 = vld [vmem:[%s2681 + $0xa9] sm:$0xff]
      %v3084 = vld [vmem:[%s2681 + $0xb1] sm:$0xff]
      %v3085 = vld [vmem:[%s2681 + $0xc1] sm:$0xff]
      %v3086 = vld [vmem:[%s2681 + $0xc9] sm:$0xff]
      %v3087 = vld [vmem:[%s2681 + $0xd9] sm:$0xff]
      %v3088 = vld [vmem:[%s2681 + $0xe1] sm:$0xff]
      %v3089 = vld [vmem:[%s2681 + $0xf1] sm:$0xff]
      %v3090 = vld [vmem:[%s2681 + $0xf9] sm:$0xff]
      %v3091 = vld [vmem:[%s2681 + $0x109] sm:$0xff]
      %v3092 = vld [vmem:[%s2681 + $0x111] sm:$0xff]
      %v3093 = vld [vmem:[%s2681 + $0x121] sm:$0xff]
      %v3094 = vld [vmem:[%s2681 + $0x129] sm:$0xff]
      %v3095 = vld [vmem:[%s2681 + $0x139] sm:$0xff]
      %v3096 = vld [vmem:[%s2681 + $0x141] sm:$0xff]
      %v3097 = vld [vmem:[%s2681 + $0x151] sm:$0xff]
      %v3098 = vld [vmem:[%s2681 + $0x159] sm:$0xff]
      %v3099 = vld [vmem:[%s2681 + $0x169] sm:$0xff]
      %v3100 = vld [vmem:[%s2681 + $0x171] sm:$0xff]
      %s3101 = scalar_lea.vmem %s1, 56
      %v3102 = vld [vmem:[%s3101] sm:$0xff]
      %v3104 = vsel %vm306, %v3069, 0
      %v3107 = vsel %vm306, %v3070, 0
      %v3110 = vsel %vm306, %v3071, 0
      %v3113 = vsel %vm306, %v3072, 0
      %v3116 = vsel %vm306, %v3073, 0
      %v3119 = vsel %vm306, %v3074, 0
      %v3122 = vsel %vm306, %v3075, 0
      %v3125 = vsel %vm306, %v3076, 0
      %v3128 = vsel %vm306, %v3077, 0
      %v3131 = vsel %vm306, %v3078, 0
      %v3134 = vsel %vm306, %v3079, 0
      %v3137 = vsel %vm306, %v3080, 0
      %v3140 = vsel %vm306, %v3081, 0
      %v3143 = vsel %vm306, %v3082, 0
      %v3146 = vsel %vm306, %v3083, 0
      %v3149 = vsel %vm306, %v3084, 0
      %v3152 = vsel %vm306, %v3085, 0
      %v3155 = vsel %vm306, %v3086, 0
      %v3158 = vsel %vm306, %v3087, 0
      %v3161 = vsel %vm306, %v3088, 0
      %v3164 = vsel %vm306, %v3089, 0
      %v3167 = vsel %vm306, %v3090, 0
      %v3170 = vsel %vm306, %v3091, 0
      %v3173 = vsel %vm306, %v3092, 0
      %v3176 = vsel %vm306, %v3093, 0
      %v3179 = vsel %vm306, %v3094, 0
      %v3182 = vsel %vm306, %v3095, 0
      %v3185 = vsel %vm306, %v3096, 0
      %v3188 = vsel %vm306, %v3097, 0
      %v3191 = vsel %vm306, %v3098, 0
      %v3194 = vsel %vm306, %v3099, 0
      %v3197 = vsel %vm306, %v3100, 0
      %3199 = vmatprep.subr.mxu0 0.0
      %3200 = vmatpush1.msra.mxu0 %v3102
      %3201 = vmatprep.subr.mxu0 0.0
      %3202 = vmatpush1.msra.mxu0 0.0
      %3203 = vmatprep.subr.mxu0 0.0
      %3204 = vmatpush1.msra.mxu0 0.0
      %3205 = vmatprep.subr.mxu0 0.0
      %3206 = vmatpush1.msra.mxu0 0.0
      %3207 = vmatprep.subr.mxu0 0.0
      %3208 = vmatpush1.msra.mxu0 0.0
      %3209 = vmatprep.subr.mxu0 0.0
      %3210 = vmatpush1.msra.mxu0 0.0
      %3211 = vmatprep.subr.mxu0 0.0
      %3212 = vmatpush1.msra.mxu0 0.0
      %3213 = vmatprep.subr.mxu0 0.0
      %3214 = vmatpush1.msra.mxu0 0.0
      %3215 = vmatprep.subr.mxu0 0.0
      %3216 = vmatpush1.msra.mxu0 0.0
      %3217 = vmatprep.subr.mxu0 0.0
      %3218 = vmatpush1.msra.mxu0 0.0
      %3219 = vmatprep.subr.mxu0 0.0
      %3220 = vmatpush1.msra.mxu0 0.0
      %3221 = vmatprep.subr.mxu0 0.0
      %3222 = vmatpush1.msra.mxu0 0.0
      %3223 = vmatprep.subr.mxu0 0.0
      %3224 = vmatpush1.msra.mxu0 0.0
      %3225 = vmatprep.subr.mxu0 0.0
      %3226 = vmatpush1.msra.mxu0 0.0
      %3227 = vmatprep.subr.mxu0 0.0
      %3228 = vmatpush1.msra.mxu0 0.0
      %3229 = vmatprep.subr.mxu0 0.0
      %3230 = vmatpush1.msra.mxu0 0.0
      %3231 = vmatprep.subr.mxu0 0.0
      %3232 = vmatpush1.msra.mxu0 0.0
      %3233 = vmatprep.subr.mxu0 0.0
      %3234 = vmatpush1.msra.mxu0 0.0
      %3235 = vmatprep.subr.mxu0 0.0
      %3236 = vmatpush1.msra.mxu0 0.0
      %3237 = vmatprep.subr.mxu0 0.0
      %3238 = vmatpush1.msra.mxu0 0.0
      %3239 = vmatprep.subr.mxu0 0.0
      %3240 = vmatpush1.msra.mxu0 0.0
      %3241 = vmatprep.subr.mxu0 0.0
      %3242 = vmatpush1.msra.mxu0 0.0
      %3243 = vmatprep.subr.mxu0 0.0
      %3244 = vmatpush1.msra.mxu0 0.0
      %3245 = vmatprep.subr.mxu0 0.0
      %3246 = vmatpush1.msra.mxu0 0.0
      %3247 = vmatprep.subr.mxu0 0.0
      %3248 = vmatpush1.msra.mxu0 0.0
      %3249 = vmatprep.subr.mxu0 0.0
      %3250 = vmatpush1.msra.mxu0 0.0
      %3251 = vmatprep.subr.mxu0 0.0
      %3252 = vmatpush1.msra.mxu0 0.0
      %3253 = vmatprep.subr.mxu0 0.0
      %3254 = vmatpush1.msra.mxu0 0.0
      %3255 = vmatprep.subr.mxu0 0.0
      %3256 = vmatpush1.msra.mxu0 0.0
      %3257 = vmatprep.subr.mxu0 0.0
      %3258 = vmatpush1.msra.mxu0 0.0
      %3259 = vmatprep.subr.mxu0 0.0
      %3260 = vmatpush1.msra.mxu0 0.0
      %3261 = vmatprep.subr.mxu0 0.0
      %3262 = vmatpush1.msra.mxu0 0.0
      %3263 = vmatprep.mubr.f32.mxu0 0.0
      %3264 = vmatmul.mubr.f32.gmra.mrb[0].mxu0 %v3104
      %v3265 = vpop.f32.mrb[0].mxu0
      %v3266 = vadd.f32 0.0, %v3265
      %v3267 = vpop.f32.mrb[0].mxu0
      %3268 = vmatprep.mubr.f32.mxu0 0.0
      %3269 = vmatmul.mubr.f32.gmra.mrb[0].mxu0 %v3107
      %v3270 = vpop.f32.mrb[0].mxu0
      %v3271 = vadd.f32 0.0, %v3270
      %v3272 = vpop.f32.mrb[0].mxu0
      %3273 = vmatprep.mubr.f32.mxu0 0.0
      %3274 = vmatmul.mubr.f32.gmra.mrb[0].mxu0 %v3110
      %v3275 = vpop.f32.mrb[0].mxu0
      %v3276 = vadd.f32 0.0, %v3275
      %v3277 = vpop.f32.mrb[0].mxu0
      %3278 = vmatprep.mubr.f32.mxu0 0.0
      %3279 = vmatmul.mubr.f32.gmra.mrb[0].mxu0 %v3113
      %v3280 = vpop.f32.mrb[0].mxu0
      %v3281 = vadd.f32 0.0, %v3280
      %v3282 = vpop.f32.mrb[0].mxu0
      %3283 = vmatprep.mubr.f32.mxu0 0.0
      %3284 = vmatmul.mubr.f32.gmra.mrb[0].mxu0 %v3116
      %v3285 = vpop.f32.mrb[0].mxu0
      %v3286 = vadd.f32 0.0, %v3285
      %v3287 = vpop.f32.mrb[0].mxu0
      %3288 = vmatprep.mubr.f32.mxu0 0.0
      %3289 = vmatmul.mubr.f32.gmra.mrb[0].mxu0 %v3119
      %v3290 = vpop.f32.mrb[0].mxu0
      %v3291 = vadd.f32 0.0, %v3290
      %v3292 = vpop.f32.mrb[0].mxu0
      %3293 = vmatprep.mubr.f32.mxu0 0.0
      %3294 = vmatmul.mubr.f32.gmra.mrb[0].mxu0 %v3122
      %v3295 = vpop.f32.mrb[0].mxu0
      %v3296 = vadd.f32 0.0, %v3295
      %v3297 = vpop.f32.mrb[0].mxu0
      %3298 = vmatprep.mubr.f32.mxu0 0.0
      %3299 = vmatmul.mubr.f32.gmra.mrb[0].mxu0 %v3125
      %v3300 = vpop.f32.mrb[0].mxu0
      %v3301 = vadd.f32 0.0, %v3300
      %v3302 = vpop.f32.mrb[0].mxu0
      %3303 = vmatprep.mubr.f32.mxu0 0.0
      %3304 = vmatmul.mubr.f32.gmra.mrb[0].mxu0 %v3128
      %v3305 = vpop.f32.mrb[0].mxu0
      %v3306 = vadd.f32 0.0, %v3305
      %v3307 = vpop.f32.mrb[0].mxu0
      %3308 = vmatprep.mubr.f32.mxu0 0.0
      %3309 = vmatmul.mubr.f32.gmra.mrb[0].mxu0 %v3131
      %v3310 = vpop.f32.mrb[0].mxu0
      %v3311 = vadd.f32 0.0, %v3310
      %v3312 = vpop.f32.mrb[0].mxu0
      %3313 = vmatprep.mubr.f32.mxu0 0.0
      %3314 = vmatmul.mubr.f32.gmra.mrb[0].mxu0 %v3134
      %v3315 = vpop.f32.mrb[0].mxu0
      %v3316 = vadd.f32 0.0, %v3315
      %v3317 = vpop.f32.mrb[0].mxu0
      %3318 = vmatprep.mubr.f32.mxu0 0.0
      %3319 = vmatmul.mubr.f32.gmra.mrb[0].mxu0 %v3137
      %v3320 = vpop.f32.mrb[0].mxu0
      %v3321 = vadd.f32 0.0, %v3320
      %v3322 = vpop.f32.mrb[0].mxu0
      %3323 = vmatprep.mubr.f32.mxu0 0.0
      %3324 = vmatmul.mubr.f32.gmra.mrb[0].mxu0 %v3140
      %v3325 = vpop.f32.mrb[0].mxu0
      %v3326 = vadd.f32 0.0, %v3325
      %v3327 = vpop.f32.mrb[0].mxu0
      %3328 = vmatprep.mubr.f32.mxu0 0.0
      %3329 = vmatmul.mubr.f32.gmra.mrb[0].mxu0 %v3143
      %v3330 = vpop.f32.mrb[0].mxu0
      %v3331 = vadd.f32 0.0, %v3330
      %v3332 = vpop.f32.mrb[0].mxu0
      %3333 = vmatprep.mubr.f32.mxu0 0.0
      %3334 = vmatmul.mubr.f32.gmra.mrb[0].mxu0 %v3146
      %v3335 = vpop.f32.mrb[0].mxu0
      %v3336 = vadd.f32 0.0, %v3335
      %v3337 = vpop.f32.mrb[0].mxu0
      %3338 = vmatprep.mubr.f32.mxu0 0.0
      %3339 = vmatmul.mubr.f32.gmra.mrb[0].mxu0 %v3149
      %v3340 = vpop.f32.mrb[0].mxu0
      %v3341 = vadd.f32 0.0, %v3340
      %v3342 = vpop.f32.mrb[0].mxu0
      %3343 = vmatprep.mubr.f32.mxu0 0.0
      %3344 = vmatmul.mubr.f32.gmra.mrb[0].mxu0 %v3152
      %v3345 = vpop.f32.mrb[0].mxu0
      %v3346 = vadd.f32 0.0, %v3345
      %v3347 = vpop.f32.mrb[0].mxu0
      %3348 = vmatprep.mubr.f32.mxu0 0.0
      %3349 = vmatmul.mubr.f32.gmra.mrb[0].mxu0 %v3155
      %v3350 = vpop.f32.mrb[0].mxu0
      %v3351 = vadd.f32 0.0, %v3350
      %v3352 = vpop.f32.mrb[0].mxu0
      %3353 = vmatprep.mubr.f32.mxu0 0.0
      %3354 = vmatmul.mubr.f32.gmra.mrb[0].mxu0 %v3158
      %v3355 = vpop.f32.mrb[0].mxu0
      %v3356 = vadd.f32 0.0, %v3355
      %v3357 = vpop.f32.mrb[0].mxu0
      %3358 = vmatprep.mubr.f32.mxu0 0.0
      %3359 = vmatmul.mubr.f32.gmra.mrb[0].mxu0 %v3161
      %v3360 = vpop.f32.mrb[0].mxu0
      %v3361 = vadd.f32 0.0, %v3360
      %v3362 = vpop.f32.mrb[0].mxu0
      %3363 = vmatprep.mubr.f32.mxu0 0.0
      %3364 = vmatmul.mubr.f32.gmra.mrb[0].mxu0 %v3164
      %v3365 = vpop.f32.mrb[0].mxu0
      %v3366 = vadd.f32 0.0, %v3365
      %v3367 = vpop.f32.mrb[0].mxu0
      %3368 = vmatprep.mubr.f32.mxu0 0.0
      %3369 = vmatmul.mubr.f32.gmra.mrb[0].mxu0 %v3167
      %v3370 = vpop.f32.mrb[0].mxu0
      %v3371 = vadd.f32 0.0, %v3370
      %v3372 = vpop.f32.mrb[0].mxu0
      %3373 = vmatprep.mubr.f32.mxu0 0.0
      %3374 = vmatmul.mubr.f32.gmra.mrb[0].mxu0 %v3170
      %v3375 = vpop.f32.mrb[0].mxu0
      %v3376 = vadd.f32 0.0, %v3375
      %v3377 = vpop.f32.mrb[0].mxu0
      %3378 = vmatprep.mubr.f32.mxu0 0.0
      %3379 = vmatmul.mubr.f32.gmra.mrb[0].mxu0 %v3173
      %v3380 = vpop.f32.mrb[0].mxu0
      %v3381 = vadd.f32 0.0, %v3380
      %v3382 = vpop.f32.mrb[0].mxu0
      %3383 = vmatprep.mubr.f32.mxu0 0.0
      %3384 = vmatmul.mubr.f32.gmra.mrb[0].mxu0 %v3176
      %v3385 = vpop.f32.mrb[0].mxu0
      %v3386 = vadd.f32 0.0, %v3385
      %v3387 = vpop.f32.mrb[0].mxu0
      %3388 = vmatprep.mubr.f32.mxu0 0.0
      %3389 = vmatmul.mubr.f32.gmra.mrb[0].mxu0 %v3179
      %v3390 = vpop.f32.mrb[0].mxu0
      %v3391 = vadd.f32 0.0, %v3390
      %v3392 = vpop.f32.mrb[0].mxu0
      %3393 = vmatprep.mubr.f32.mxu0 0.0
      %3394 = vmatmul.mubr.f32.gmra.mrb[0].mxu0 %v3182
      %v3395 = vpop.f32.mrb[0].mxu0
      %v3396 = vadd.f32 0.0, %v3395
      %v3397 = vpop.f32.mrb[0].mxu0
      %3398 = vmatprep.mubr.f32.mxu0 0.0
      %3399 = vmatmul.mubr.f32.gmra.mrb[0].mxu0 %v3185
      %v3400 = vpop.f32.mrb[0].mxu0
      %v3401 = vadd.f32 0.0, %v3400
      %v3402 = vpop.f32.mrb[0].mxu0
      %3403 = vmatprep.mubr.f32.mxu0 0.0
      %3404 = vmatmul.mubr.f32.gmra.mrb[0].mxu0 %v3188
      %v3405 = vpop.f32.mrb[0].mxu0
      %v3406 = vadd.f32 0.0, %v3405
      %v3407 = vpop.f32.mrb[0].mxu0
      %3408 = vmatprep.mubr.f32.mxu0 0.0
      %3409 = vmatmul.mubr.f32.gmra.mrb[0].mxu0 %v3191
      %v3410 = vpop.f32.mrb[0].mxu0
      %v3411 = vadd.f32 0.0, %v3410
      %v3412 = vpop.f32.mrb[0].mxu0
      %3413 = vmatprep.mubr.f32.mxu0 0.0
      %3414 = vmatmul.mubr.f32.gmra.mrb[0].mxu0 %v3194
      %v3415 = vpop.f32.mrb[0].mxu0
      %v3416 = vadd.f32 0.0, %v3415
      %v3417 = vpop.f32.mrb[0].mxu0
      %3418 = vmatprep.mubr.f32.mxu0 0.0
      %3419 = vmatmul.mubr.f32.gmra.mrb[0].mxu0 %v3197
      %v3420 = vpop.f32.mrb[0].mxu0
      %v3421 = vadd.f32 0.0, %v3420
      %v3422 = vpop.f32.mrb[0].mxu0
      %3423 = vdwg.mxu0
      %v3424 = vadd.f32 %v3037, %v3266
      %v3425 = vadd.f32 %v3038, %v3271
      %v3426 = vadd.f32 %v3039, %v3276
      %v3427 = vadd.f32 %v3040, %v3281
      %v3428 = vadd.f32 %v3041, %v3286
      %v3429 = vadd.f32 %v3042, %v3291
      %v3430 = vadd.f32 %v3043, %v3296
      %v3431 = vadd.f32 %v3044, %v3301
      %v3432 = vadd.f32 %v3045, %v3306
      %v3433 = vadd.f32 %v3046, %v3311
      %v3434 = vadd.f32 %v3047, %v3316
      %v3435 = vadd.f32 %v3048, %v3321
      %v3436 = vadd.f32 %v3049, %v3326
      %v3437 = vadd.f32 %v3050, %v3331
      %v3438 = vadd.f32 %v3051, %v3336
      %v3439 = vadd.f32 %v3052, %v3341
      %v3440 = vadd.f32 %v3053, %v3346
      %v3441 = vadd.f32 %v3054, %v3351
      %v3442 = vadd.f32 %v3055, %v3356
      %v3443 = vadd.f32 %v3056, %v3361
      %v3444 = vadd.f32 %v3057, %v3366
      %v3445 = vadd.f32 %v3058, %v3371
      %v3446 = vadd.f32 %v3059, %v3376
      %v3447 = vadd.f32 %v3060, %v3381
      %v3448 = vadd.f32 %v3061, %v3386
      %v3449 = vadd.f32 %v3062, %v3391
      %v3450 = vadd.f32 %v3063, %v3396
      %v3451 = vadd.f32 %v3064, %v3401
      %v3452 = vadd.f32 %v3065, %v3406
      %v3453 = vadd.f32 %v3066, %v3411
      %v3454 = vadd.f32 %v3067, %v3416
      %v3455 = vadd.f32 %v3068, %v3421
      %v3456 = vld [vmem:[%s2681 + $0x2] sm:$0xff]
      %v3457 = vld [vmem:[%s2681 + $0xa] sm:$0xff]
      %v3458 = vld [vmem:[%s2681 + $0x1a] sm:$0xff]
      %v3459 = vld [vmem:[%s2681 + $0x22] sm:$0xff]
      %v3460 = vld [vmem:[%s2681 + $0x32] sm:$0xff]
      %v3461 = vld [vmem:[%s2681 + $0x3a] sm:$0xff]
      %v3462 = vld [vmem:[%s2681 + $0x4a] sm:$0xff]
      %v3463 = vld [vmem:[%s2681 + $0x52] sm:$0xff]
      %v3464 = vld [vmem:[%s2681 + $0x62] sm:$0xff]
      %v3465 = vld [vmem:[%s2681 + $0x6a] sm:$0xff]
      %v3466 = vld [vmem:[%s2681 + $0x7a] sm:$0xff]
      %v3467 = vld [vmem:[%s2681 + $0x82] sm:$0xff]
      %v3468 = vld [vmem:[%s2681 + $0x92] sm:$0xff]
      %v3469 = vld [vmem:[%s2681 + $0x9a] sm:$0xff]
      %v3470 = vld [vmem:[%s2681 + $0xaa] sm:$0xff]
      %v3471 = vld [vmem:[%s2681 + $0xb2] sm:$0xff]
      %v3472 = vld [vmem:[%s2681 + $0xc2] sm:$0xff]
      %v3473 = vld [vmem:[%s2681 + $0xca] sm:$0xff]
      %v3474 = vld [vmem:[%s2681 + $0xda] sm:$0xff]
      %v3475 = vld [vmem:[%s2681 + $0xe2] sm:$0xff]
      %v3476 = vld [vmem:[%s2681 + $0xf2] sm:$0xff]
      %v3477 = vld [vmem:[%s2681 + $0xfa] sm:$0xff]
      %v3478 = vld [vmem:[%s2681 + $0x10a] sm:$0xff]
      %v3479 = vld [vmem:[%s2681 + $0x112] sm:$0xff]
      %v3480 = vld [vmem:[%s2681 + $0x122] sm:$0xff]
      %v3481 = vld [vmem:[%s2681 + $0x12a] sm:$0xff]
      %v3482 = vld [vmem:[%s2681 + $0x13a] sm:$0xff]
      %v3483 = vld [vmem:[%s2681 + $0x142] sm:$0xff]
      %v3484 = vld [vmem:[%s2681 + $0x152] sm:$0xff]
      %v3485 = vld [vmem:[%s2681 + $0x15a] sm:$0xff]
      %v3486 = vld [vmem:[%s2681 + $0x16a] sm:$0xff]
      %v3487 = vld [vmem:[%s2681 + $0x172] sm:$0xff]
      %s3488 = scalar_lea.vmem %s1, 64
      %v3489 = vld [vmem:[%s3488] sm:$0xff]
      %v3491 = vsel %vm306, %v3456, 0
      %v3494 = vsel %vm306, %v3457, 0
      %v3497 = vsel %vm306, %v3458, 0
      %v3500 = vsel %vm306, %v3459, 0
      %v3503 = vsel %vm306, %v3460, 0
      %v3506 = vsel %vm306, %v3461, 0
      %v3509 = vsel %vm306, %v3462, 0
      %v3512 = vsel %vm306, %v3463, 0
      %v3515 = vsel %vm306, %v3464, 0
      %v3518 = vsel %vm306, %v3465, 0
      %v3521 = vsel %vm306, %v3466, 0
      %v3524 = vsel %vm306, %v3467, 0
      %v3527 = vsel %vm306, %v3468, 0
      %v3530 = vsel %vm306, %v3469, 0
      %v3533 = vsel %vm306, %v3470, 0
      %v3536 = vsel %vm306, %v3471, 0
      %v3539 = vsel %vm306, %v3472, 0
      %v3542 = vsel %vm306, %v3473, 0
      %v3545 = vsel %vm306, %v3474, 0
      %v3548 = vsel %vm306, %v3475, 0
      %v3551 = vsel %vm306, %v3476, 0
      %v3554 = vsel %vm306, %v3477, 0
      %v3557 = vsel %vm306, %v3478, 0
      %v3560 = vsel %vm306, %v3479, 0
      %v3563 = vsel %vm306, %v3480, 0
      %v3566 = vsel %vm306, %v3481, 0
      %v3569 = vsel %vm306, %v3482, 0
      %v3572 = vsel %vm306, %v3483, 0
      %v3575 = vsel %vm306, %v3484, 0
      %v3578 = vsel %vm306, %v3485, 0
      %v3581 = vsel %vm306, %v3486, 0
      %v3584 = vsel %vm306, %v3487, 0
      %3586 = vmatprep.subr.mxu0 0.0
      %3587 = vmatpush1.msra.mxu0 %v3489
      %3588 = vmatprep.subr.mxu0 0.0
      %3589 = vmatpush1.msra.mxu0 0.0
      %3590 = vmatprep.subr.mxu0 0.0
      %3591 = vmatpush1.msra.mxu0 0.0
      %3592 = vmatprep.subr.mxu0 0.0
      %3593 = vmatpush1.msra.mxu0 0.0
      %3594 = vmatprep.subr.mxu0 0.0
      %3595 = vmatpush1.msra.mxu0 0.0
      %3596 = vmatprep.subr.mxu0 0.0
      %3597 = vmatpush1.msra.mxu0 0.0
      %3598 = vmatprep.subr.mxu0 0.0
      %3599 = vmatpush1.msra.mxu0 0.0
      %3600 = vmatprep.subr.mxu0 0.0
      %3601 = vmatpush1.msra.mxu0 0.0
      %3602 = vmatprep.subr.mxu0 0.0
      %3603 = vmatpush1.msra.mxu0 0.0
      %3604 = vmatprep.subr.mxu0 0.0
      %3605 = vmatpush1.msra.mxu0 0.0
      %3606 = vmatprep.subr.mxu0 0.0
      %3607 = vmatpush1.msra.mxu0 0.0
      %3608 = vmatprep.subr.mxu0 0.0
      %3609 = vmatpush1.msra.mxu0 0.0
      %3610 = vmatprep.subr.mxu0 0.0
      %3611 = vmatpush1.msra.mxu0 0.0
      %3612 = vmatprep.subr.mxu0 0.0
      %3613 = vmatpush1.msra.mxu0 0.0
      %3614 = vmatprep.subr.mxu0 0.0
      %3615 = vmatpush1.msra.mxu0 0.0
      %3616 = vmatprep.subr.mxu0 0.0
      %3617 = vmatpush1.msra.mxu0 0.0
      %3618 = vmatprep.subr.mxu0 0.0
      %3619 = vmatpush1.msra.mxu0 0.0
      %3620 = vmatprep.subr.mxu0 0.0
      %3621 = vmatpush1.msra.mxu0 0.0
      %3622 = vmatprep.subr.mxu0 0.0
      %3623 = vmatpush1.msra.mxu0 0.0
      %3624 = vmatprep.subr.mxu0 0.0
      %3625 = vmatpush1.msra.mxu0 0.0
      %3626 = vmatprep.subr.mxu0 0.0
      %3627 = vmatpush1.msra.mxu0 0.0
      %3628 = vmatprep.subr.mxu0 0.0
      %3629 = vmatpush1.msra.mxu0 0.0
      %3630 = vmatprep.subr.mxu0 0.0
      %3631 = vmatpush1.msra.mxu0 0.0
      %3632 = vmatprep.subr.mxu0 0.0
      %3633 = vmatpush1.msra.mxu0 0.0
      %3634 = vmatprep.subr.mxu0 0.0
      %3635 = vmatpush1.msra.mxu0 0.0
      %3636 = vmatprep.subr.mxu0 0.0
      %3637 = vmatpush1.msra.mxu0 0.0
      %3638 = vmatprep.subr.mxu0 0.0
      %3639 = vmatpush1.msra.mxu0 0.0
      %3640 = vmatprep.subr.mxu0 0.0
      %3641 = vmatpush1.msra.mxu0 0.0
      %3642 = vmatprep.subr.mxu0 0.0
      %3643 = vmatpush1.msra.mxu0 0.0
      %3644 = vmatprep.subr.mxu0 0.0
      %3645 = vmatpush1.msra.mxu0 0.0
      %3646 = vmatprep.subr.mxu0 0.0
      %3647 = vmatpush1.msra.mxu0 0.0
      %3648 = vmatprep.subr.mxu0 0.0
      %3649 = vmatpush1.msra.mxu0 0.0
      %3650 = vmatprep.mubr.f32.mxu0 0.0
      %3651 = vmatmul.mubr.f32.gmra.mrb[0].mxu0 %v3491
      %v3652 = vpop.f32.mrb[0].mxu0
      %v3653 = vadd.f32 0.0, %v3652
      %v3654 = vpop.f32.mrb[0].mxu0
      %3655 = vmatprep.mubr.f32.mxu0 0.0
      %3656 = vmatmul.mubr.f32.gmra.mrb[0].mxu0 %v3494
      %v3657 = vpop.f32.mrb[0].mxu0
      %v3658 = vadd.f32 0.0, %v3657
      %v3659 = vpop.f32.mrb[0].mxu0
      %3660 = vmatprep.mubr.f32.mxu0 0.0
      %3661 = vmatmul.mubr.f32.gmra.mrb[0].mxu0 %v3497
      %v3662 = vpop.f32.mrb[0].mxu0
      %v3663 = vadd.f32 0.0, %v3662
      %v3664 = vpop.f32.mrb[0].mxu0
      %3665 = vmatprep.mubr.f32.mxu0 0.0
      %3666 = vmatmul.mubr.f32.gmra.mrb[0].mxu0 %v3500
      %v3667 = vpop.f32.mrb[0].mxu0
      %v3668 = vadd.f32 0.0, %v3667
      %v3669 = vpop.f32.mrb[0].mxu0
      %3670 = vmatprep.mubr.f32.mxu0 0.0
      %3671 = vmatmul.mubr.f32.gmra.mrb[0].mxu0 %v3503
      %v3672 = vpop.f32.mrb[0].mxu0
      %v3673 = vadd.f32 0.0, %v3672
      %v3674 = vpop.f32.mrb[0].mxu0
      %3675 = vmatprep.mubr.f32.mxu0 0.0
      %3676 = vmatmul.mubr.f32.gmra.mrb[0].mxu0 %v3506
      %v3677 = vpop.f32.mrb[0].mxu0
      %v3678 = vadd.f32 0.0, %v3677
      %v3679 = vpop.f32.mrb[0].mxu0
      %3680 = vmatprep.mubr.f32.mxu0 0.0
      %3681 = vmatmul.mubr.f32.gmra.mrb[0].mxu0 %v3509
      %v3682 = vpop.f32.mrb[0].mxu0
      %v3683 = vadd.f32 0.0, %v3682
      %v3684 = vpop.f32.mrb[0].mxu0
      %3685 = vmatprep.mubr.f32.mxu0 0.0
      %3686 = vmatmul.mubr.f32.gmra.mrb[0].mxu0 %v3512
      %v3687 = vpop.f32.mrb[0].mxu0
      %v3688 = vadd.f32 0.0, %v3687
      %v3689 = vpop.f32.mrb[0].mxu0
      %3690 = vmatprep.mubr.f32.mxu0 0.0
      %3691 = vmatmul.mubr.f32.gmra.mrb[0].mxu0 %v3515
      %v3692 = vpop.f32.mrb[0].mxu0
      %v3693 = vadd.f32 0.0, %v3692
      %v3694 = vpop.f32.mrb[0].mxu0
      %3695 = vmatprep.mubr.f32.mxu0 0.0
      %3696 = vmatmul.mubr.f32.gmra.mrb[0].mxu0 %v3518
      %v3697 = vpop.f32.mrb[0].mxu0
      %v3698 = vadd.f32 0.0, %v3697
      %v3699 = vpop.f32.mrb[0].mxu0
      %3700 = vmatprep.mubr.f32.mxu0 0.0
      %3701 = vmatmul.mubr.f32.gmra.mrb[0].mxu0 %v3521
      %v3702 = vpop.f32.mrb[0].mxu0
      %v3703 = vadd.f32 0.0, %v3702
      %v3704 = vpop.f32.mrb[0].mxu0
      %3705 = vmatprep.mubr.f32.mxu0 0.0
      %3706 = vmatmul.mubr.f32.gmra.mrb[0].mxu0 %v3524
      %v3707 = vpop.f32.mrb[0].mxu0
      %v3708 = vadd.f32 0.0, %v3707
      %v3709 = vpop.f32.mrb[0].mxu0
      %3710 = vmatprep.mubr.f32.mxu0 0.0
      %3711 = vmatmul.mubr.f32.gmra.mrb[0].mxu0 %v3527
      %v3712 = vpop.f32.mrb[0].mxu0
      %v3713 = vadd.f32 0.0, %v3712
      %v3714 = vpop.f32.mrb[0].mxu0
      %3715 = vmatprep.mubr.f32.mxu0 0.0
      %3716 = vmatmul.mubr.f32.gmra.mrb[0].mxu0 %v3530
      %v3717 = vpop.f32.mrb[0].mxu0
      %v3718 = vadd.f32 0.0, %v3717
      %v3719 = vpop.f32.mrb[0].mxu0
      %3720 = vmatprep.mubr.f32.mxu0 0.0
      %3721 = vmatmul.mubr.f32.gmra.mrb[0].mxu0 %v3533
      %v3722 = vpop.f32.mrb[0].mxu0
      %v3723 = vadd.f32 0.0, %v3722
      %v3724 = vpop.f32.mrb[0].mxu0
      %3725 = vmatprep.mubr.f32.mxu0 0.0
      %3726 = vmatmul.mubr.f32.gmra.mrb[0].mxu0 %v3536
      %v3727 = vpop.f32.mrb[0].mxu0
      %v3728 = vadd.f32 0.0, %v3727
      %v3729 = vpop.f32.mrb[0].mxu0
      %3730 = vmatprep.mubr.f32.mxu0 0.0
      %3731 = vmatmul.mubr.f32.gmra.mrb[0].mxu0 %v3539
      %v3732 = vpop.f32.mrb[0].mxu0
      %v3733 = vadd.f32 0.0, %v3732
      %v3734 = vpop.f32.mrb[0].mxu0
      %3735 = vmatprep.mubr.f32.mxu0 0.0
      %3736 = vmatmul.mubr.f32.gmra.mrb[0].mxu0 %v3542
      %v3737 = vpop.f32.mrb[0].mxu0
      %v3738 = vadd.f32 0.0, %v3737
      %v3739 = vpop.f32.mrb[0].mxu0
      %3740 = vmatprep.mubr.f32.mxu0 0.0
      %3741 = vmatmul.mubr.f32.gmra.mrb[0].mxu0 %v3545
      %v3742 = vpop.f32.mrb[0].mxu0
      %v3743 = vadd.f32 0.0, %v3742
      %v3744 = vpop.f32.mrb[0].mxu0
      %3745 = vmatprep.mubr.f32.mxu0 0.0
      %3746 = vmatmul.mubr.f32.gmra.mrb[0].mxu0 %v3548
      %v3747 = vpop.f32.mrb[0].mxu0
      %v3748 = vadd.f32 0.0, %v3747
      %v3749 = vpop.f32.mrb[0].mxu0
      %3750 = vmatprep.mubr.f32.mxu0 0.0
      %3751 = vmatmul.mubr.f32.gmra.mrb[0].mxu0 %v3551
      %v3752 = vpop.f32.mrb[0].mxu0
      %v3753 = vadd.f32 0.0, %v3752
      %v3754 = vpop.f32.mrb[0].mxu0
      %3755 = vmatprep.mubr.f32.mxu0 0.0
      %3756 = vmatmul.mubr.f32.gmra.mrb[0].mxu0 %v3554
      %v3757 = vpop.f32.mrb[0].mxu0
      %v3758 = vadd.f32 0.0, %v3757
      %v3759 = vpop.f32.mrb[0].mxu0
      %3760 = vmatprep.mubr.f32.mxu0 0.0
      %3761 = vmatmul.mubr.f32.gmra.mrb[0].mxu0 %v3557
      %v3762 = vpop.f32.mrb[0].mxu0
      %v3763 = vadd.f32 0.0, %v3762
      %v3764 = vpop.f32.mrb[0].mxu0
      %3765 = vmatprep.mubr.f32.mxu0 0.0
      %3766 = vmatmul.mubr.f32.gmra.mrb[0].mxu0 %v3560
      %v3767 = vpop.f32.mrb[0].mxu0
      %v3768 = vadd.f32 0.0, %v3767
      %v3769 = vpop.f32.mrb[0].mxu0
      %3770 = vmatprep.mubr.f32.mxu0 0.0
      %3771 = vmatmul.mubr.f32.gmra.mrb[0].mxu0 %v3563
      %v3772 = vpop.f32.mrb[0].mxu0
      %v3773 = vadd.f32 0.0, %v3772
      %v3774 = vpop.f32.mrb[0].mxu0
      %3775 = vmatprep.mubr.f32.mxu0 0.0
      %3776 = vmatmul.mubr.f32.gmra.mrb[0].mxu0 %v3566
      %v3777 = vpop.f32.mrb[0].mxu0
      %v3778 = vadd.f32 0.0, %v3777
      %v3779 = vpop.f32.mrb[0].mxu0
      %3780 = vmatprep.mubr.f32.mxu0 0.0
      %3781 = vmatmul.mubr.f32.gmra.mrb[0].mxu0 %v3569
      %v3782 = vpop.f32.mrb[0].mxu0
      %v3783 = vadd.f32 0.0, %v3782
      %v3784 = vpop.f32.mrb[0].mxu0
      %3785 = vmatprep.mubr.f32.mxu0 0.0
      %3786 = vmatmul.mubr.f32.gmra.mrb[0].mxu0 %v3572
      %v3787 = vpop.f32.mrb[0].mxu0
      %v3788 = vadd.f32 0.0, %v3787
      %v3789 = vpop.f32.mrb[0].mxu0
      %3790 = vmatprep.mubr.f32.mxu0 0.0
      %3791 = vmatmul.mubr.f32.gmra.mrb[0].mxu0 %v3575
      %v3792 = vpop.f32.mrb[0].mxu0
      %v3793 = vadd.f32 0.0, %v3792
      %v3794 = vpop.f32.mrb[0].mxu0
      %3795 = vmatprep.mubr.f32.mxu0 0.0
      %3796 = vmatmul.mubr.f32.gmra.mrb[0].mxu0 %v3578
      %v3797 = vpop.f32.mrb[0].mxu0
      %v3798 = vadd.f32 0.0, %v3797
      %v3799 = vpop.f32.mrb[0].mxu0
      %3800 = vmatprep.mubr.f32.mxu0 0.0
      %3801 = vmatmul.mubr.f32.gmra.mrb[0].mxu0 %v3581
      %v3802 = vpop.f32.mrb[0].mxu0
      %v3803 = vadd.f32 0.0, %v3802
      %v3804 = vpop.f32.mrb[0].mxu0
      %3805 = vmatprep.mubr.f32.mxu0 0.0
      %3806 = vmatmul.mubr.f32.gmra.mrb[0].mxu0 %v3584
      %v3807 = vpop.f32.mrb[0].mxu0
      %v3808 = vadd.f32 0.0, %v3807
      %v3809 = vpop.f32.mrb[0].mxu0
      %3810 = vdwg.mxu0
      %v3811 = vadd.f32 %v3424, %v3653
      %v3812 = vadd.f32 %v3425, %v3658
      %v3813 = vadd.f32 %v3426, %v3663
      %v3814 = vadd.f32 %v3427, %v3668
      %v3815 = vadd.f32 %v3428, %v3673
      %v3816 = vadd.f32 %v3429, %v3678
      %v3817 = vadd.f32 %v3430, %v3683
      %v3818 = vadd.f32 %v3431, %v3688
      %v3819 = vadd.f32 %v3432, %v3693
      %v3820 = vadd.f32 %v3433, %v3698
      %v3821 = vadd.f32 %v3434, %v3703
      %v3822 = vadd.f32 %v3435, %v3708
      %v3823 = vadd.f32 %v3436, %v3713
      %v3824 = vadd.f32 %v3437, %v3718
      %v3825 = vadd.f32 %v3438, %v3723
      %v3826 = vadd.f32 %v3439, %v3728
      %v3827 = vadd.f32 %v3440, %v3733
      %v3828 = vadd.f32 %v3441, %v3738
      %v3829 = vadd.f32 %v3442, %v3743
      %v3830 = vadd.f32 %v3443, %v3748
      %v3831 = vadd.f32 %v3444, %v3753
      %v3832 = vadd.f32 %v3445, %v3758
      %v3833 = vadd.f32 %v3446, %v3763
      %v3834 = vadd.f32 %v3447, %v3768
      %v3835 = vadd.f32 %v3448, %v3773
      %v3836 = vadd.f32 %v3449, %v3778
      %v3837 = vadd.f32 %v3450, %v3783
      %v3838 = vadd.f32 %v3451, %v3788
      %v3839 = vadd.f32 %v3452, %v3793
      %v3840 = vadd.f32 %v3453, %v3798
      %v3841 = vadd.f32 %v3454, %v3803
      %v3842 = vadd.f32 %v3455, %v3808
      %v3843 = vld [vmem:[%s2] sm:$0x1]
      %v3845 = vlaneseq
      %v3846 = vshrl.u32 %v3845, 7
      %v3847 = vsub.s32 0, %v3846
      %v3848 = vrot.slane %v3843, %v3847
      %v3850 = vadd.f32 %v3811, %v3848
      %v3851 = vadd.f32 %v3812, %v3848
      %v3852 = vadd.f32 %v3813, %v3848
      %v3853 = vadd.f32 %v3814, %v3848
      %v3854 = vadd.f32 %v3815, %v3848
      %v3855 = vadd.f32 %v3816, %v3848
      %v3856 = vadd.f32 %v3817, %v3848
      %v3857 = vadd.f32 %v3818, %v3848
      %v3858 = vadd.f32 %v3819, %v3848
      %v3859 = vadd.f32 %v3820, %v3848
      %v3860 = vadd.f32 %v3821, %v3848
      %v3861 = vadd.f32 %v3822, %v3848
      %v3862 = vadd.f32 %v3823, %v3848
      %v3863 = vadd.f32 %v3824, %v3848
      %v3864 = vadd.f32 %v3825, %v3848
      %v3865 = vadd.f32 %v3826, %v3848
      %v3866 = vadd.f32 %v3827, %v3848
      %v3867 = vadd.f32 %v3828, %v3848
      %v3868 = vadd.f32 %v3829, %v3848
      %v3869 = vadd.f32 %v3830, %v3848
      %v3870 = vadd.f32 %v3831, %v3848
      %v3871 = vadd.f32 %v3832, %v3848
      %v3872 = vadd.f32 %v3833, %v3848
      %v3873 = vadd.f32 %v3834, %v3848
      %v3874 = vadd.f32 %v3835, %v3848
      %v3875 = vadd.f32 %v3836, %v3848
      %v3876 = vadd.f32 %v3837, %v3848
      %v3877 = vadd.f32 %v3838, %v3848
      %v3878 = vadd.f32 %v3839, %v3848
      %v3879 = vadd.f32 %v3840, %v3848
      %v3880 = vadd.f32 %v3841, %v3848
      %v3881 = vadd.f32 %v3842, %v3848
      %v3882 = vmax.f32 %v3850, 0.0
      %v3883 = vmax.f32 %v3851, 0.0
      %v3884 = vmax.f32 %v3852, 0.0
      %v3885 = vmax.f32 %v3853, 0.0
      %v3886 = vmax.f32 %v3854, 0.0
      %v3887 = vmax.f32 %v3855, 0.0
      %v3888 = vmax.f32 %v3856, 0.0
      %v3889 = vmax.f32 %v3857, 0.0
      %v3890 = vmax.f32 %v3858, 0.0
      %v3891 = vmax.f32 %v3859, 0.0
      %v3892 = vmax.f32 %v3860, 0.0
      %v3893 = vmax.f32 %v3861, 0.0
      %v3894 = vmax.f32 %v3862, 0.0
      %v3895 = vmax.f32 %v3863, 0.0
      %v3896 = vmax.f32 %v3864, 0.0
      %v3897 = vmax.f32 %v3865, 0.0
      %v3898 = vmax.f32 %v3866, 0.0
      %v3899 = vmax.f32 %v3867, 0.0
      %v3900 = vmax.f32 %v3868, 0.0
      %v3901 = vmax.f32 %v3869, 0.0
      %v3902 = vmax.f32 %v3870, 0.0
      %v3903 = vmax.f32 %v3871, 0.0
      %v3904 = vmax.f32 %v3872, 0.0
      %v3905 = vmax.f32 %v3873, 0.0
      %v3906 = vmax.f32 %v3874, 0.0
      %v3907 = vmax.f32 %v3875, 0.0
      %v3908 = vmax.f32 %v3876, 0.0
      %v3909 = vmax.f32 %v3877, 0.0
      %v3910 = vmax.f32 %v3878, 0.0
      %v3911 = vmax.f32 %v3879, 0.0
      %v3912 = vmax.f32 %v3880, 0.0
      %v3913 = vmax.f32 %v3881, 0.0
      %s3914 = scalar_lea.vmem [#allocation2], 48
      %3915 = vst.msk [vmem:[%s3914 + $0x2] sm:$0xff] %vm306, %v3882
      %3916 = vst.msk [vmem:[%s3914 + $0xa] sm:$0xff] %vm306, %v3883
      %3917 = vst.msk [vmem:[%s3914 + $0x1a] sm:$0xff] %vm306, %v3884
      %3918 = vst.msk [vmem:[%s3914 + $0x22] sm:$0xff] %vm306, %v3885
      %3919 = vst.msk [vmem:[%s3914 + $0x32] sm:$0xff] %vm306, %v3886
      %3920 = vst.msk [vmem:[%s3914 + $0x3a] sm:$0xff] %vm306, %v3887
      %3921 = vst.msk [vmem:[%s3914 + $0x4a] sm:$0xff] %vm306, %v3888
      %3922 = vst.msk [vmem:[%s3914 + $0x52] sm:$0xff] %vm306, %v3889
      %3923 = vst.msk [vmem:[%s3914 + $0x62] sm:$0xff] %vm306, %v3890
      %3924 = vst.msk [vmem:[%s3914 + $0x6a] sm:$0xff] %vm306, %v3891
      %3925 = vst.msk [vmem:[%s3914 + $0x7a] sm:$0xff] %vm306, %v3892
      %3926 = vst.msk [vmem:[%s3914 + $0x82] sm:$0xff] %vm306, %v3893
      %3927 = vst.msk [vmem:[%s3914 + $0x92] sm:$0xff] %vm306, %v3894
      %3928 = vst.msk [vmem:[%s3914 + $0x9a] sm:$0xff] %vm306, %v3895
      %3929 = vst.msk [vmem:[%s3914 + $0xaa] sm:$0xff] %vm306, %v3896
      %3930 = vst.msk [vmem:[%s3914 + $0xb2] sm:$0xff] %vm306, %v3897
      %3931 = vst.msk [vmem:[%s3914 + $0xc2] sm:$0xff] %vm306, %v3898
      %3932 = vst.msk [vmem:[%s3914 + $0xca] sm:$0xff] %vm306, %v3899
      %3933 = vst.msk [vmem:[%s3914 + $0xda] sm:$0xff] %vm306, %v3900
      %3934 = vst.msk [vmem:[%s3914 + $0xe2] sm:$0xff] %vm306, %v3901
      %3935 = vst.msk [vmem:[%s3914 + $0xf2] sm:$0xff] %vm306, %v3902
      %3936 = vst.msk [vmem:[%s3914 + $0xfa] sm:$0xff] %vm306, %v3903
      %3937 = vst.msk [vmem:[%s3914 + $0x10a] sm:$0xff] %vm306, %v3904
      %3938 = vst.msk [vmem:[%s3914 + $0x112] sm:$0xff] %vm306, %v3905
      %3939 = vst.msk [vmem:[%s3914 + $0x122] sm:$0xff] %vm306, %v3906
      %3940 = vst.msk [vmem:[%s3914 + $0x12a] sm:$0xff] %vm306, %v3907
      %3941 = vst.msk [vmem:[%s3914 + $0x13a] sm:$0xff] %vm306, %v3908
      %3942 = vst.msk [vmem:[%s3914 + $0x142] sm:$0xff] %vm306, %v3909
      %3943 = vst.msk [vmem:[%s3914 + $0x152] sm:$0xff] %vm306, %v3910
      %3944 = vst.msk [vmem:[%s3914 + $0x15a] sm:$0xff] %vm306, %v3911
      %3945 = vst.msk [vmem:[%s3914 + $0x16a] sm:$0xff] %vm306, %v3912
      %3946 = vst.msk [vmem:[%s3914 + $0x172] sm:$0xff] %vm306, %v3913
      %v3947 = vld [vmem:[%s3914] sm:$0xff]
      %v3948 = vld [vmem:[%s3914 + $0x8] sm:$0xff]
      %v3949 = vld [vmem:[%s3914 + $0x18] sm:$0xff]
      %v3950 = vld [vmem:[%s3914 + $0x20] sm:$0xff]
      %v3951 = vld [vmem:[%s3914 + $0x30] sm:$0xff]
      %v3952 = vld [vmem:[%s3914 + $0x38] sm:$0xff]
      %v3953 = vld [vmem:[%s3914 + $0x48] sm:$0xff]
      %v3954 = vld [vmem:[%s3914 + $0x50] sm:$0xff]
      %v3955 = vld [vmem:[%s3914 + $0x60] sm:$0xff]
      %v3956 = vld [vmem:[%s3914 + $0x68] sm:$0xff]
      %v3957 = vld [vmem:[%s3914 + $0x78] sm:$0xff]
      %v3958 = vld [vmem:[%s3914 + $0x80] sm:$0xff]
      %v3959 = vld [vmem:[%s3914 + $0x90] sm:$0xff]
      %v3960 = vld [vmem:[%s3914 + $0x98] sm:$0xff]
      %v3961 = vld [vmem:[%s3914 + $0xa8] sm:$0xff]
      %v3962 = vld [vmem:[%s3914 + $0xb0] sm:$0xff]
      %v3963 = vld [vmem:[%s3914 + $0xc0] sm:$0xff]
      %v3964 = vld [vmem:[%s3914 + $0xc8] sm:$0xff]
      %v3965 = vld [vmem:[%s3914 + $0xd8] sm:$0xff]
      %v3966 = vld [vmem:[%s3914 + $0xe0] sm:$0xff]
      %v3967 = vld [vmem:[%s3914 + $0xf0] sm:$0xff]
      %v3968 = vld [vmem:[%s3914 + $0xf8] sm:$0xff]
      %v3969 = vld [vmem:[%s3914 + $0x108] sm:$0xff]
      %v3970 = vld [vmem:[%s3914 + $0x110] sm:$0xff]
      %v3971 = vld [vmem:[%s3914 + $0x120] sm:$0xff]
      %v3972 = vld [vmem:[%s3914 + $0x128] sm:$0xff]
      %v3973 = vld [vmem:[%s3914 + $0x138] sm:$0xff]
      %v3974 = vld [vmem:[%s3914 + $0x140] sm:$0xff]
      %v3975 = vld [vmem:[%s3914 + $0x150] sm:$0xff]
      %v3976 = vld [vmem:[%s3914 + $0x158] sm:$0xff]
      %v3977 = vld [vmem:[%s3914 + $0x168] sm:$0xff]
      %v3978 = vld [vmem:[%s3914 + $0x170] sm:$0xff]
      %v3979 = vld [vmem:[%s3] sm:$0xff]
      %v3980 = vld [vmem:[#allocation2 + $0x2] sm:$0xff]
      %v3981 = vld [vmem:[#allocation2 + $0xa] sm:$0xff]
      %v3982 = vld [vmem:[#allocation2 + $0x1a] sm:$0xff]
      %v3983 = vld [vmem:[#allocation2 + $0x22] sm:$0xff]
      %v3984 = vld [vmem:[#allocation2 + $0x32] sm:$0xff]
      %v3985 = vld [vmem:[#allocation2 + $0x3a] sm:$0xff]
      %v3986 = vld [vmem:[#allocation2 + $0x4a] sm:$0xff]
      %v3987 = vld [vmem:[#allocation2 + $0x52] sm:$0xff]
      %v3988 = vld [vmem:[#allocation2 + $0x62] sm:$0xff]
      %v3989 = vld [vmem:[#allocation2 + $0x6a] sm:$0xff]
      %v3990 = vld [vmem:[#allocation2 + $0x7a] sm:$0xff]
      %v3991 = vld [vmem:[#allocation2 + $0x82] sm:$0xff]
      %v3992 = vld [vmem:[#allocation2 + $0x92] sm:$0xff]
      %v3993 = vld [vmem:[#allocation2 + $0x9a] sm:$0xff]
      %v3994 = vld [vmem:[#allocation2 + $0xaa] sm:$0xff]
      %v3995 = vld [vmem:[#allocation2 + $0xb2] sm:$0xff]
      %v3996 = vld [vmem:[#allocation2 + $0xc2] sm:$0xff]
      %v3997 = vld [vmem:[#allocation2 + $0xca] sm:$0xff]
      %v3998 = vld [vmem:[#allocation2 + $0xda] sm:$0xff]
      %v3999 = vld [vmem:[#allocation2 + $0xe2] sm:$0xff]
      %v4000 = vld [vmem:[#allocation2 + $0xf2] sm:$0xff]
      %v4001 = vld [vmem:[#allocation2 + $0xfa] sm:$0xff]
      %v4002 = vld [vmem:[#allocation2 + $0x10a] sm:$0xff]
      %v4003 = vld [vmem:[#allocation2 + $0x112] sm:$0xff]
      %v4004 = vld [vmem:[#allocation2 + $0x122] sm:$0xff]
      %v4005 = vld [vmem:[#allocation2 + $0x12a] sm:$0xff]
      %v4006 = vld [vmem:[#allocation2 + $0x13a] sm:$0xff]
      %v4007 = vld [vmem:[#allocation2 + $0x142] sm:$0xff]
      %v4008 = vld [vmem:[#allocation2 + $0x152] sm:$0xff]
      %v4009 = vld [vmem:[#allocation2 + $0x15a] sm:$0xff]
      %v4010 = vld [vmem:[#allocation2 + $0x16a] sm:$0xff]
      %v4011 = vld [vmem:[#allocation2 + $0x172] sm:$0xff]
      %v4012 = vld [vmem:[%s4] sm:$0xff]
      %v4014 = vsel %vm306, %v3980, 0
      %v4017 = vsel %vm306, %v3981, 0
      %v4020 = vsel %vm306, %v3982, 0
      %v4023 = vsel %vm306, %v3983, 0
      %v4026 = vsel %vm306, %v3984, 0
      %v4029 = vsel %vm306, %v3985, 0
      %v4032 = vsel %vm306, %v3986, 0
      %v4035 = vsel %vm306, %v3987, 0
      %v4038 = vsel %vm306, %v3988, 0
      %v4041 = vsel %vm306, %v3989, 0
      %v4044 = vsel %vm306, %v3990, 0
      %v4047 = vsel %vm306, %v3991, 0
      %v4050 = vsel %vm306, %v3992, 0
      %v4053 = vsel %vm306, %v3993, 0
      %v4056 = vsel %vm306, %v3994, 0
      %v4059 = vsel %vm306, %v3995, 0
      %v4062 = vsel %vm306, %v3996, 0
      %v4065 = vsel %vm306, %v3997, 0
      %v4068 = vsel %vm306, %v3998, 0
      %v4071 = vsel %vm306, %v3999, 0
      %v4074 = vsel %vm306, %v4000, 0
      %v4077 = vsel %vm306, %v4001, 0
      %v4080 = vsel %vm306, %v4002, 0
      %v4083 = vsel %vm306, %v4003, 0
      %v4086 = vsel %vm306, %v4004, 0
      %v4089 = vsel %vm306, %v4005, 0
      %v4092 = vsel %vm306, %v4006, 0
      %v4095 = vsel %vm306, %v4007, 0
      %v4098 = vsel %vm306, %v4008, 0
      %v4101 = vsel %vm306, %v4009, 0
      %v4104 = vsel %vm306, %v4010, 0
      %v4107 = vsel %vm306, %v4011, 0
      %4109 = vmatprep.subr.mxu0 0.0
      %4110 = vmatpush1.msra.mxu0 %v4012
      %4111 = vmatprep.subr.mxu0 0.0
      %4112 = vmatpush1.msra.mxu0 0.0
      %4113 = vmatprep.subr.mxu0 0.0
      %4114 = vmatpush1.msra.mxu0 0.0
      %4115 = vmatprep.subr.mxu0 0.0
      %4116 = vmatpush1.msra.mxu0 0.0
      %4117 = vmatprep.subr.mxu0 0.0
      %4118 = vmatpush1.msra.mxu0 0.0
      %4119 = vmatprep.subr.mxu0 0.0
      %4120 = vmatpush1.msra.mxu0 0.0
      %4121 = vmatprep.subr.mxu0 0.0
      %4122 = vmatpush1.msra.mxu0 0.0
      %4123 = vmatprep.subr.mxu0 0.0
      %4124 = vmatpush1.msra.mxu0 0.0
      %4125 = vmatprep.subr.mxu0 0.0
      %4126 = vmatpush1.msra.mxu0 0.0
      %4127 = vmatprep.subr.mxu0 0.0
      %4128 = vmatpush1.msra.mxu0 0.0
      %4129 = vmatprep.subr.mxu0 0.0
      %4130 = vmatpush1.msra.mxu0 0.0
      %4131 = vmatprep.subr.mxu0 0.0
      %4132 = vmatpush1.msra.mxu0 0.0
      %4133 = vmatprep.subr.mxu0 0.0
      %4134 = vmatpush1.msra.mxu0 0.0
      %4135 = vmatprep.subr.mxu0 0.0
      %4136 = vmatpush1.msra.mxu0 0.0
      %4137 = vmatprep.subr.mxu0 0.0
      %4138 = vmatpush1.msra.mxu0 0.0
      %4139 = vmatprep.subr.mxu0 0.0
      %4140 = vmatpush1.msra.mxu0 0.0
      %4141 = vmatprep.subr.mxu0 0.0
      %4142 = vmatpush1.msra.mxu0 0.0
      %4143 = vmatprep.subr.mxu0 0.0
      %4144 = vmatpush1.msra.mxu0 0.0
      %4145 = vmatprep.subr.mxu0 0.0
      %4146 = vmatpush1.msra.mxu0 0.0
      %4147 = vmatprep.subr.mxu0 0.0
      %4148 = vmatpush1.msra.mxu0 0.0
      %4149 = vmatprep.subr.mxu0 0.0
      %4150 = vmatpush1.msra.mxu0 0.0
      %4151 = vmatprep.subr.mxu0 0.0
      %4152 = vmatpush1.msra.mxu0 0.0
      %4153 = vmatprep.subr.mxu0 0.0
      %4154 = vmatpush1.msra.mxu0 0.0
      %4155 = vmatprep.subr.mxu0 0.0
      %4156 = vmatpush1.msra.mxu0 0.0
      %4157 = vmatprep.subr.mxu0 0.0
      %4158 = vmatpush1.msra.mxu0 0.0
      %4159 = vmatprep.subr.mxu0 0.0
      %4160 = vmatpush1.msra.mxu0 0.0
      %4161 = vmatprep.subr.mxu0 0.0
      %4162 = vmatpush1.msra.mxu0 0.0
      %4163 = vmatprep.subr.mxu0 0.0
      %4164 = vmatpush1.msra.mxu0 0.0
      %4165 = vmatprep.subr.mxu0 0.0
      %4166 = vmatpush1.msra.mxu0 0.0
      %4167 = vmatprep.subr.mxu0 0.0
      %4168 = vmatpush1.msra.mxu0 0.0
      %4169 = vmatprep.subr.mxu0 0.0
      %4170 = vmatpush1.msra.mxu0 0.0
      %4171 = vmatprep.subr.mxu0 0.0
      %4172 = vmatpush1.msra.mxu0 0.0
      %4173 = vmatprep.mubr.f32.mxu0 0.0
      %4174 = vmatmul.mubr.f32.gmra.mrb[0].mxu0 %v4014
      %v4175 = vpop.f32.mrb[0].mxu0
      %v4176 = vadd.f32 0.0, %v4175
      %v4177 = vpop.f32.mrb[0].mxu0
      %4178 = vmatprep.mubr.f32.mxu0 0.0
      %4179 = vmatmul.mubr.f32.gmra.mrb[0].mxu0 %v4017
      %v4180 = vpop.f32.mrb[0].mxu0
      %v4181 = vadd.f32 0.0, %v4180
      %v4182 = vpop.f32.mrb[0].mxu0
      %4183 = vmatprep.mubr.f32.mxu0 0.0
      %4184 = vmatmul.mubr.f32.gmra.mrb[0].mxu0 %v4020
      %v4185 = vpop.f32.mrb[0].mxu0
      %v4186 = vadd.f32 0.0, %v4185
      %v4187 = vpop.f32.mrb[0].mxu0
      %4188 = vmatprep.mubr.f32.mxu0 0.0
      %4189 = vmatmul.mubr.f32.gmra.mrb[0].mxu0 %v4023
      %v4190 = vpop.f32.mrb[0].mxu0
      %v4191 = vadd.f32 0.0, %v4190
      %v4192 = vpop.f32.mrb[0].mxu0
      %4193 = vmatprep.mubr.f32.mxu0 0.0
      %4194 = vmatmul.mubr.f32.gmra.mrb[0].mxu0 %v4026
      %v4195 = vpop.f32.mrb[0].mxu0
      %v4196 = vadd.f32 0.0, %v4195
      %v4197 = vpop.f32.mrb[0].mxu0
      %4198 = vmatprep.mubr.f32.mxu0 0.0
      %4199 = vmatmul.mubr.f32.gmra.mrb[0].mxu0 %v4029
      %v4200 = vpop.f32.mrb[0].mxu0
      %v4201 = vadd.f32 0.0, %v4200
      %v4202 = vpop.f32.mrb[0].mxu0
      %4203 = vmatprep.mubr.f32.mxu0 0.0
      %4204 = vmatmul.mubr.f32.gmra.mrb[0].mxu0 %v4032
      %v4205 = vpop.f32.mrb[0].mxu0
      %v4206 = vadd.f32 0.0, %v4205
      %v4207 = vpop.f32.mrb[0].mxu0
      %4208 = vmatprep.mubr.f32.mxu0 0.0
      %4209 = vmatmul.mubr.f32.gmra.mrb[0].mxu0 %v4035
      %v4210 = vpop.f32.mrb[0].mxu0
      %v4211 = vadd.f32 0.0, %v4210
      %v4212 = vpop.f32.mrb[0].mxu0
      %4213 = vmatprep.mubr.f32.mxu0 0.0
      %4214 = vmatmul.mubr.f32.gmra.mrb[0].mxu0 %v4038
      %v4215 = vpop.f32.mrb[0].mxu0
      %v4216 = vadd.f32 0.0, %v4215
      %v4217 = vpop.f32.mrb[0].mxu0
      %4218 = vmatprep.mubr.f32.mxu0 0.0
      %4219 = vmatmul.mubr.f32.gmra.mrb[0].mxu0 %v4041
      %v4220 = vpop.f32.mrb[0].mxu0
      %v4221 = vadd.f32 0.0, %v4220
      %v4222 = vpop.f32.mrb[0].mxu0
      %4223 = vmatprep.mubr.f32.mxu0 0.0
      %4224 = vmatmul.mubr.f32.gmra.mrb[0].mxu0 %v4044
      %v4225 = vpop.f32.mrb[0].mxu0
      %v4226 = vadd.f32 0.0, %v4225
      %v4227 = vpop.f32.mrb[0].mxu0
      %4228 = vmatprep.mubr.f32.mxu0 0.0
      %4229 = vmatmul.mubr.f32.gmra.mrb[0].mxu0 %v4047
      %v4230 = vpop.f32.mrb[0].mxu0
      %v4231 = vadd.f32 0.0, %v4230
      %v4232 = vpop.f32.mrb[0].mxu0
      %4233 = vmatprep.mubr.f32.mxu0 0.0
      %4234 = vmatmul.mubr.f32.gmra.mrb[0].mxu0 %v4050
      %v4235 = vpop.f32.mrb[0].mxu0
      %v4236 = vadd.f32 0.0, %v4235
      %v4237 = vpop.f32.mrb[0].mxu0
      %4238 = vmatprep.mubr.f32.mxu0 0.0
      %4239 = vmatmul.mubr.f32.gmra.mrb[0].mxu0 %v4053
      %v4240 = vpop.f32.mrb[0].mxu0
      %v4241 = vadd.f32 0.0, %v4240
      %v4242 = vpop.f32.mrb[0].mxu0
      %4243 = vmatprep.mubr.f32.mxu0 0.0
      %4244 = vmatmul.mubr.f32.gmra.mrb[0].mxu0 %v4056
      %v4245 = vpop.f32.mrb[0].mxu0
      %v4246 = vadd.f32 0.0, %v4245
      %v4247 = vpop.f32.mrb[0].mxu0
      %4248 = vmatprep.mubr.f32.mxu0 0.0
      %4249 = vmatmul.mubr.f32.gmra.mrb[0].mxu0 %v4059
      %v4250 = vpop.f32.mrb[0].mxu0
      %v4251 = vadd.f32 0.0, %v4250
      %v4252 = vpop.f32.mrb[0].mxu0
      %4253 = vmatprep.mubr.f32.mxu0 0.0
      %4254 = vmatmul.mubr.f32.gmra.mrb[0].mxu0 %v4062
      %v4255 = vpop.f32.mrb[0].mxu0
      %v4256 = vadd.f32 0.0, %v4255
      %v4257 = vpop.f32.mrb[0].mxu0
      %4258 = vmatprep.mubr.f32.mxu0 0.0
      %4259 = vmatmul.mubr.f32.gmra.mrb[0].mxu0 %v4065
      %v4260 = vpop.f32.mrb[0].mxu0
      %v4261 = vadd.f32 0.0, %v4260
      %v4262 = vpop.f32.mrb[0].mxu0
      %4263 = vmatprep.mubr.f32.mxu0 0.0
      %4264 = vmatmul.mubr.f32.gmra.mrb[0].mxu0 %v4068
      %v4265 = vpop.f32.mrb[0].mxu0
      %v4266 = vadd.f32 0.0, %v4265
      %v4267 = vpop.f32.mrb[0].mxu0
      %4268 = vmatprep.mubr.f32.mxu0 0.0
      %4269 = vmatmul.mubr.f32.gmra.mrb[0].mxu0 %v4071
      %v4270 = vpop.f32.mrb[0].mxu0
      %v4271 = vadd.f32 0.0, %v4270
      %v4272 = vpop.f32.mrb[0].mxu0
      %4273 = vmatprep.mubr.f32.mxu0 0.0
      %4274 = vmatmul.mubr.f32.gmra.mrb[0].mxu0 %v4074
      %v4275 = vpop.f32.mrb[0].mxu0
      %v4276 = vadd.f32 0.0, %v4275
      %v4277 = vpop.f32.mrb[0].mxu0
      %4278 = vmatprep.mubr.f32.mxu0 0.0
      %4279 = vmatmul.mubr.f32.gmra.mrb[0].mxu0 %v4077
      %v4280 = vpop.f32.mrb[0].mxu0
      %v4281 = vadd.f32 0.0, %v4280
      %v4282 = vpop.f32.mrb[0].mxu0
      %4283 = vmatprep.mubr.f32.mxu0 0.0
      %4284 = vmatmul.mubr.f32.gmra.mrb[0].mxu0 %v4080
      %v4285 = vpop.f32.mrb[0].mxu0
      %v4286 = vadd.f32 0.0, %v4285
      %v4287 = vpop.f32.mrb[0].mxu0
      %4288 = vmatprep.mubr.f32.mxu0 0.0
      %4289 = vmatmul.mubr.f32.gmra.mrb[0].mxu0 %v4083
      %v4290 = vpop.f32.mrb[0].mxu0
      %v4291 = vadd.f32 0.0, %v4290
      %v4292 = vpop.f32.mrb[0].mxu0
      %4293 = vmatprep.mubr.f32.mxu0 0.0
      %4294 = vmatmul.mubr.f32.gmra.mrb[0].mxu0 %v4086
      %v4295 = vpop.f32.mrb[0].mxu0
      %v4296 = vadd.f32 0.0, %v4295
      %v4297 = vpop.f32.mrb[0].mxu0
      %4298 = vmatprep.mubr.f32.mxu0 0.0
      %4299 = vmatmul.mubr.f32.gmra.mrb[0].mxu0 %v4089
      %v4300 = vpop.f32.mrb[0].mxu0
      %v4301 = vadd.f32 0.0, %v4300
      %v4302 = vpop.f32.mrb[0].mxu0
      %4303 = vmatprep.mubr.f32.mxu0 0.0
      %4304 = vmatmul.mubr.f32.gmra.mrb[0].mxu0 %v4092
      %v4305 = vpop.f32.mrb[0].mxu0
      %v4306 = vadd.f32 0.0, %v4305
      %v4307 = vpop.f32.mrb[0].mxu0
      %4308 = vmatprep.mubr.f32.mxu0 0.0
      %4309 = vmatmul.mubr.f32.gmra.mrb[0].mxu0 %v4095
      %v4310 = vpop.f32.mrb[0].mxu0
      %v4311 = vadd.f32 0.0, %v4310
      %v4312 = vpop.f32.mrb[0].mxu0
      %4313 = vmatprep.mubr.f32.mxu0 0.0
      %4314 = vmatmul.mubr.f32.gmra.mrb[0].mxu0 %v4098
      %v4315 = vpop.f32.mrb[0].mxu0
      %v4316 = vadd.f32 0.0, %v4315
      %v4317 = vpop.f32.mrb[0].mxu0
      %4318 = vmatprep.mubr.f32.mxu0 0.0
      %4319 = vmatmul.mubr.f32.gmra.mrb[0].mxu0 %v4101
      %v4320 = vpop.f32.mrb[0].mxu0
      %v4321 = vadd.f32 0.0, %v4320
      %v4322 = vpop.f32.mrb[0].mxu0
      %4323 = vmatprep.mubr.f32.mxu0 0.0
      %4324 = vmatmul.mubr.f32.gmra.mrb[0].mxu0 %v4104
      %v4325 = vpop.f32.mrb[0].mxu0
      %v4326 = vadd.f32 0.0, %v4325
      %v4327 = vpop.f32.mrb[0].mxu0
      %4328 = vmatprep.mubr.f32.mxu0 0.0
      %4329 = vmatmul.mubr.f32.gmra.mrb[0].mxu0 %v4107
      %v4330 = vpop.f32.mrb[0].mxu0
      %v4331 = vadd.f32 0.0, %v4330
      %v4332 = vpop.f32.mrb[0].mxu0
      %4333 = vdwg.mxu0
      %v4335 = vsel %vm306, %v3947, 0
      %v4338 = vsel %vm306, %v3948, 0
      %v4341 = vsel %vm306, %v3949, 0
      %v4344 = vsel %vm306, %v3950, 0
      %v4347 = vsel %vm306, %v3951, 0
      %v4350 = vsel %vm306, %v3952, 0
      %v4353 = vsel %vm306, %v3953, 0
      %v4356 = vsel %vm306, %v3954, 0
      %v4359 = vsel %vm306, %v3955, 0
      %v4362 = vsel %vm306, %v3956, 0
      %v4365 = vsel %vm306, %v3957, 0
      %v4368 = vsel %vm306, %v3958, 0
      %v4371 = vsel %vm306, %v3959, 0
      %v4374 = vsel %vm306, %v3960, 0
      %v4377 = vsel %vm306, %v3961, 0
      %v4380 = vsel %vm306, %v3962, 0
      %v4383 = vsel %vm306, %v3963, 0
      %v4386 = vsel %vm306, %v3964, 0
      %v4389 = vsel %vm306, %v3965, 0
      %v4392 = vsel %vm306, %v3966, 0
      %v4395 = vsel %vm306, %v3967, 0
      %v4398 = vsel %vm306, %v3968, 0
      %v4401 = vsel %vm306, %v3969, 0
      %v4404 = vsel %vm306, %v3970, 0
      %v4407 = vsel %vm306, %v3971, 0
      %v4410 = vsel %vm306, %v3972, 0
      %v4413 = vsel %vm306, %v3973, 0
      %v4416 = vsel %vm306, %v3974, 0
      %v4419 = vsel %vm306, %v3975, 0
      %v4422 = vsel %vm306, %v3976, 0
      %v4425 = vsel %vm306, %v3977, 0
      %v4428 = vsel %vm306, %v3978, 0
      %4430 = vmatprep.subr.mxu0 0.0
      %4431 = vmatpush1.msra.mxu0 %v3979
      %4432 = vmatprep.subr.mxu0 0.0
      %4433 = vmatpush1.msra.mxu0 0.0
      %4434 = vmatprep.subr.mxu0 0.0
      %4435 = vmatpush1.msra.mxu0 0.0
      %4436 = vmatprep.subr.mxu0 0.0
      %4437 = vmatpush1.msra.mxu0 0.0
      %4438 = vmatprep.subr.mxu0 0.0
      %4439 = vmatpush1.msra.mxu0 0.0
      %4440 = vmatprep.subr.mxu0 0.0
      %4441 = vmatpush1.msra.mxu0 0.0
      %4442 = vmatprep.subr.mxu0 0.0
      %4443 = vmatpush1.msra.mxu0 0.0
      %4444 = vmatprep.subr.mxu0 0.0
      %4445 = vmatpush1.msra.mxu0 0.0
      %4446 = vmatprep.subr.mxu0 0.0
      %4447 = vmatpush1.msra.mxu0 0.0
      %4448 = vmatprep.subr.mxu0 0.0
      %4449 = vmatpush1.msra.mxu0 0.0
      %4450 = vmatprep.subr.mxu0 0.0
      %4451 = vmatpush1.msra.mxu0 0.0
      %4452 = vmatprep.subr.mxu0 0.0
      %4453 = vmatpush1.msra.mxu0 0.0
      %4454 = vmatprep.subr.mxu0 0.0
      %4455 = vmatpush1.msra.mxu0 0.0
      %4456 = vmatprep.subr.mxu0 0.0
      %4457 = vmatpush1.msra.mxu0 0.0
      %4458 = vmatprep.subr.mxu0 0.0
      %4459 = vmatpush1.msra.mxu0 0.0
      %4460 = vmatprep.subr.mxu0 0.0
      %4461 = vmatpush1.msra.mxu0 0.0
      %4462 = vmatprep.subr.mxu0 0.0
      %4463 = vmatpush1.msra.mxu0 0.0
      %4464 = vmatprep.subr.mxu0 0.0
      %4465 = vmatpush1.msra.mxu0 0.0
      %4466 = vmatprep.subr.mxu0 0.0
      %4467 = vmatpush1.msra.mxu0 0.0
      %4468 = vmatprep.subr.mxu0 0.0
      %4469 = vmatpush1.msra.mxu0 0.0
      %4470 = vmatprep.subr.mxu0 0.0
      %4471 = vmatpush1.msra.mxu0 0.0
      %4472 = vmatprep.subr.mxu0 0.0
      %4473 = vmatpush1.msra.mxu0 0.0
      %4474 = vmatprep.subr.mxu0 0.0
      %4475 = vmatpush1.msra.mxu0 0.0
      %4476 = vmatprep.subr.mxu0 0.0
      %4477 = vmatpush1.msra.mxu0 0.0
      %4478 = vmatprep.subr.mxu0 0.0
      %4479 = vmatpush1.msra.mxu0 0.0
      %4480 = vmatprep.subr.mxu0 0.0
      %4481 = vmatpush1.msra.mxu0 0.0
      %4482 = vmatprep.subr.mxu0 0.0
      %4483 = vmatpush1.msra.mxu0 0.0
      %4484 = vmatprep.subr.mxu0 0.0
      %4485 = vmatpush1.msra.mxu0 0.0
      %4486 = vmatprep.subr.mxu0 0.0
      %4487 = vmatpush1.msra.mxu0 0.0
      %4488 = vmatprep.subr.mxu0 0.0
      %4489 = vmatpush1.msra.mxu0 0.0
      %4490 = vmatprep.subr.mxu0 0.0
      %4491 = vmatpush1.msra.mxu0 0.0
      %4492 = vmatprep.subr.mxu0 0.0
      %4493 = vmatpush1.msra.mxu0 0.0
      %4494 = vmatprep.mubr.f32.mxu0 0.0
      %4495 = vmatmul.mubr.f32.gmra.mrb[0].mxu0 %v4335
      %v4496 = vpop.f32.mrb[0].mxu0
      %v4497 = vadd.f32 %v4176, %v4496
      %v4498 = vpop.f32.mrb[0].mxu0
      %4499 = vmatprep.mubr.f32.mxu0 0.0
      %4500 = vmatmul.mubr.f32.gmra.mrb[0].mxu0 %v4338
      %v4501 = vpop.f32.mrb[0].mxu0
      %v4502 = vadd.f32 %v4181, %v4501
      %v4503 = vpop.f32.mrb[0].mxu0
      %4504 = vmatprep.mubr.f32.mxu0 0.0
      %4505 = vmatmul.mubr.f32.gmra.mrb[0].mxu0 %v4341
      %v4506 = vpop.f32.mrb[0].mxu0
      %v4507 = vadd.f32 %v4186, %v4506
      %v4508 = vpop.f32.mrb[0].mxu0
      %4509 = vmatprep.mubr.f32.mxu0 0.0
      %4510 = vmatmul.mubr.f32.gmra.mrb[0].mxu0 %v4344
      %v4511 = vpop.f32.mrb[0].mxu0
      %v4512 = vadd.f32 %v4191, %v4511
      %v4513 = vpop.f32.mrb[0].mxu0
      %4514 = vmatprep.mubr.f32.mxu0 0.0
      %4515 = vmatmul.mubr.f32.gmra.mrb[0].mxu0 %v4347
      %v4516 = vpop.f32.mrb[0].mxu0
      %v4517 = vadd.f32 %v4196, %v4516
      %v4518 = vpop.f32.mrb[0].mxu0
      %4519 = vmatprep.mubr.f32.mxu0 0.0
      %4520 = vmatmul.mubr.f32.gmra.mrb[0].mxu0 %v4350
      %v4521 = vpop.f32.mrb[0].mxu0
      %v4522 = vadd.f32 %v4201, %v4521
      %v4523 = vpop.f32.mrb[0].mxu0
      %4524 = vmatprep.mubr.f32.mxu0 0.0
      %4525 = vmatmul.mubr.f32.gmra.mrb[0].mxu0 %v4353
      %v4526 = vpop.f32.mrb[0].mxu0
      %v4527 = vadd.f32 %v4206, %v4526
      %v4528 = vpop.f32.mrb[0].mxu0
      %4529 = vmatprep.mubr.f32.mxu0 0.0
      %4530 = vmatmul.mubr.f32.gmra.mrb[0].mxu0 %v4356
      %v4531 = vpop.f32.mrb[0].mxu0
      %v4532 = vadd.f32 %v4211, %v4531
      %v4533 = vpop.f32.mrb[0].mxu0
      %4534 = vmatprep.mubr.f32.mxu0 0.0
      %4535 = vmatmul.mubr.f32.gmra.mrb[0].mxu0 %v4359
      %v4536 = vpop.f32.mrb[0].mxu0
      %v4537 = vadd.f32 %v4216, %v4536
      %v4538 = vpop.f32.mrb[0].mxu0
      %4539 = vmatprep.mubr.f32.mxu0 0.0
      %4540 = vmatmul.mubr.f32.gmra.mrb[0].mxu0 %v4362
      %v4541 = vpop.f32.mrb[0].mxu0
      %v4542 = vadd.f32 %v4221, %v4541
      %v4543 = vpop.f32.mrb[0].mxu0
      %4544 = vmatprep.mubr.f32.mxu0 0.0
      %4545 = vmatmul.mubr.f32.gmra.mrb[0].mxu0 %v4365
      %v4546 = vpop.f32.mrb[0].mxu0
      %v4547 = vadd.f32 %v4226, %v4546
      %v4548 = vpop.f32.mrb[0].mxu0
      %4549 = vmatprep.mubr.f32.mxu0 0.0
      %4550 = vmatmul.mubr.f32.gmra.mrb[0].mxu0 %v4368
      %v4551 = vpop.f32.mrb[0].mxu0
      %v4552 = vadd.f32 %v4231, %v4551
      %v4553 = vpop.f32.mrb[0].mxu0
      %4554 = vmatprep.mubr.f32.mxu0 0.0
      %4555 = vmatmul.mubr.f32.gmra.mrb[0].mxu0 %v4371
      %v4556 = vpop.f32.mrb[0].mxu0
      %v4557 = vadd.f32 %v4236, %v4556
      %v4558 = vpop.f32.mrb[0].mxu0
      %4559 = vmatprep.mubr.f32.mxu0 0.0
      %4560 = vmatmul.mubr.f32.gmra.mrb[0].mxu0 %v4374
      %v4561 = vpop.f32.mrb[0].mxu0
      %v4562 = vadd.f32 %v4241, %v4561
      %v4563 = vpop.f32.mrb[0].mxu0
      %4564 = vmatprep.mubr.f32.mxu0 0.0
      %4565 = vmatmul.mubr.f32.gmra.mrb[0].mxu0 %v4377
      %v4566 = vpop.f32.mrb[0].mxu0
      %v4567 = vadd.f32 %v4246, %v4566
      %v4568 = vpop.f32.mrb[0].mxu0
      %4569 = vmatprep.mubr.f32.mxu0 0.0
      %4570 = vmatmul.mubr.f32.gmra.mrb[0].mxu0 %v4380
      %v4571 = vpop.f32.mrb[0].mxu0
      %v4572 = vadd.f32 %v4251, %v4571
      %v4573 = vpop.f32.mrb[0].mxu0
      %4574 = vmatprep.mubr.f32.mxu0 0.0
      %4575 = vmatmul.mubr.f32.gmra.mrb[0].mxu0 %v4383
      %v4576 = vpop.f32.mrb[0].mxu0
      %v4577 = vadd.f32 %v4256, %v4576
      %v4578 = vpop.f32.mrb[0].mxu0
      %4579 = vmatprep.mubr.f32.mxu0 0.0
      %4580 = vmatmul.mubr.f32.gmra.mrb[0].mxu0 %v4386
      %v4581 = vpop.f32.mrb[0].mxu0
      %v4582 = vadd.f32 %v4261, %v4581
      %v4583 = vpop.f32.mrb[0].mxu0
      %4584 = vmatprep.mubr.f32.mxu0 0.0
      %4585 = vmatmul.mubr.f32.gmra.mrb[0].mxu0 %v4389
      %v4586 = vpop.f32.mrb[0].mxu0
      %v4587 = vadd.f32 %v4266, %v4586
      %v4588 = vpop.f32.mrb[0].mxu0
      %4589 = vmatprep.mubr.f32.mxu0 0.0
      %4590 = vmatmul.mubr.f32.gmra.mrb[0].mxu0 %v4392
      %v4591 = vpop.f32.mrb[0].mxu0
      %v4592 = vadd.f32 %v4271, %v4591
      %v4593 = vpop.f32.mrb[0].mxu0
      %4594 = vmatprep.mubr.f32.mxu0 0.0
      %4595 = vmatmul.mubr.f32.gmra.mrb[0].mxu0 %v4395
      %v4596 = vpop.f32.mrb[0].mxu0
      %v4597 = vadd.f32 %v4276, %v4596
      %v4598 = vpop.f32.mrb[0].mxu0
      %4599 = vmatprep.mubr.f32.mxu0 0.0
      %4600 = vmatmul.mubr.f32.gmra.mrb[0].mxu0 %v4398
      %v4601 = vpop.f32.mrb[0].mxu0
      %v4602 = vadd.f32 %v4281, %v4601
      %v4603 = vpop.f32.mrb[0].mxu0
      %4604 = vmatprep.mubr.f32.mxu0 0.0
      %4605 = vmatmul.mubr.f32.gmra.mrb[0].mxu0 %v4401
      %v4606 = vpop.f32.mrb[0].mxu0
      %v4607 = vadd.f32 %v4286, %v4606
      %v4608 = vpop.f32.mrb[0].mxu0
      %4609 = vmatprep.mubr.f32.mxu0 0.0
      %4610 = vmatmul.mubr.f32.gmra.mrb[0].mxu0 %v4404
      %v4611 = vpop.f32.mrb[0].mxu0
      %v4612 = vadd.f32 %v4291, %v4611
      %v4613 = vpop.f32.mrb[0].mxu0
      %4614 = vmatprep.mubr.f32.mxu0 0.0
      %4615 = vmatmul.mubr.f32.gmra.mrb[0].mxu0 %v4407
      %v4616 = vpop.f32.mrb[0].mxu0
      %v4617 = vadd.f32 %v4296, %v4616
      %v4618 = vpop.f32.mrb[0].mxu0
      %4619 = vmatprep.mubr.f32.mxu0 0.0
      %4620 = vmatmul.mubr.f32.gmra.mrb[0].mxu0 %v4410
      %v4621 = vpop.f32.mrb[0].mxu0
      %v4622 = vadd.f32 %v4301, %v4621
      %v4623 = vpop.f32.mrb[0].mxu0
      %4624 = vmatprep.mubr.f32.mxu0 0.0
      %4625 = vmatmul.mubr.f32.gmra.mrb[0].mxu0 %v4413
      %v4626 = vpop.f32.mrb[0].mxu0
      %v4627 = vadd.f32 %v4306, %v4626
      %v4628 = vpop.f32.mrb[0].mxu0
      %4629 = vmatprep.mubr.f32.mxu0 0.0
      %4630 = vmatmul.mubr.f32.gmra.mrb[0].mxu0 %v4416
      %v4631 = vpop.f32.mrb[0].mxu0
      %v4632 = vadd.f32 %v4311, %v4631
      %v4633 = vpop.f32.mrb[0].mxu0
      %4634 = vmatprep.mubr.f32.mxu0 0.0
      %4635 = vmatmul.mubr.f32.gmra.mrb[0].mxu0 %v4419
      %v4636 = vpop.f32.mrb[0].mxu0
      %v4637 = vadd.f32 %v4316, %v4636
      %v4638 = vpop.f32.mrb[0].mxu0
      %4639 = vmatprep.mubr.f32.mxu0 0.0
      %4640 = vmatmul.mubr.f32.gmra.mrb[0].mxu0 %v4422
      %v4641 = vpop.f32.mrb[0].mxu0
      %v4642 = vadd.f32 %v4321, %v4641
      %v4643 = vpop.f32.mrb[0].mxu0
      %4644 = vmatprep.mubr.f32.mxu0 0.0
      %4645 = vmatmul.mubr.f32.gmra.mrb[0].mxu0 %v4425
      %v4646 = vpop.f32.mrb[0].mxu0
      %v4647 = vadd.f32 %v4326, %v4646
      %v4648 = vpop.f32.mrb[0].mxu0
      %4649 = vmatprep.mubr.f32.mxu0 0.0
      %4650 = vmatmul.mubr.f32.gmra.mrb[0].mxu0 %v4428
      %v4651 = vpop.f32.mrb[0].mxu0
      %v4652 = vadd.f32 %v4331, %v4651
      %v4653 = vpop.f32.mrb[0].mxu0
      %4654 = vdwg.mxu0
      %v4655 = vld [vmem:[%s3914 + $0x1] sm:$0xff]
      %v4656 = vld [vmem:[%s3914 + $0x9] sm:$0xff]
      %v4657 = vld [vmem:[%s3914 + $0x19] sm:$0xff]
      %v4658 = vld [vmem:[%s3914 + $0x21] sm:$0xff]
      %v4659 = vld [vmem:[%s3914 + $0x31] sm:$0xff]
      %v4660 = vld [vmem:[%s3914 + $0x39] sm:$0xff]
      %v4661 = vld [vmem:[%s3914 + $0x49] sm:$0xff]
      %v4662 = vld [vmem:[%s3914 + $0x51] sm:$0xff]
      %v4663 = vld [vmem:[%s3914 + $0x61] sm:$0xff]
      %v4664 = vld [vmem:[%s3914 + $0x69] sm:$0xff]
      %v4665 = vld [vmem:[%s3914 + $0x79] sm:$0xff]
      %v4666 = vld [vmem:[%s3914 + $0x81] sm:$0xff]
      %v4667 = vld [vmem:[%s3914 + $0x91] sm:$0xff]
      %v4668 = vld [vmem:[%s3914 + $0x99] sm:$0xff]
      %v4669 = vld [vmem:[%s3914 + $0xa9] sm:$0xff]
      %v4670 = vld [vmem:[%s3914 + $0xb1] sm:$0xff]
      %v4671 = vld [vmem:[%s3914 + $0xc1] sm:$0xff]
      %v4672 = vld [vmem:[%s3914 + $0xc9] sm:$0xff]
      %v4673 = vld [vmem:[%s3914 + $0xd9] sm:$0xff]
      %v4674 = vld [vmem:[%s3914 + $0xe1] sm:$0xff]
      %v4675 = vld [vmem:[%s3914 + $0xf1] sm:$0xff]
      %v4676 = vld [vmem:[%s3914 + $0xf9] sm:$0xff]
      %v4677 = vld [vmem:[%s3914 + $0x109] sm:$0xff]
      %v4678 = vld [vmem:[%s3914 + $0x111] sm:$0xff]
      %v4679 = vld [vmem:[%s3914 + $0x121] sm:$0xff]
      %v4680 = vld [vmem:[%s3914 + $0x129] sm:$0xff]
      %v4681 = vld [vmem:[%s3914 + $0x139] sm:$0xff]
      %v4682 = vld [vmem:[%s3914 + $0x141] sm:$0xff]
      %v4683 = vld [vmem:[%s3914 + $0x151] sm:$0xff]
      %v4684 = vld [vmem:[%s3914 + $0x159] sm:$0xff]
      %v4685 = vld [vmem:[%s3914 + $0x169] sm:$0xff]
      %v4686 = vld [vmem:[%s3914 + $0x171] sm:$0xff]
      %s4687 = scalar_lea.vmem %s3, 8
      %v4688 = vld [vmem:[%s4687] sm:$0xff]
      %v4690 = vsel %vm306, %v4655, 0
      %v4693 = vsel %vm306, %v4656, 0
      %v4696 = vsel %vm306, %v4657, 0
      %v4699 = vsel %vm306, %v4658, 0
      %v4702 = vsel %vm306, %v4659, 0
      %v4705 = vsel %vm306, %v4660, 0
      %v4708 = vsel %vm306, %v4661, 0
      %v4711 = vsel %vm306, %v4662, 0
      %v4714 = vsel %vm306, %v4663, 0
      %v4717 = vsel %vm306, %v4664, 0
      %v4720 = vsel %vm306, %v4665, 0
      %v4723 = vsel %vm306, %v4666, 0
      %v4726 = vsel %vm306, %v4667, 0
      %v4729 = vsel %vm306, %v4668, 0
      %v4732 = vsel %vm306, %v4669, 0
      %v4735 = vsel %vm306, %v4670, 0
      %v4738 = vsel %vm306, %v4671, 0
      %v4741 = vsel %vm306, %v4672, 0
      %v4744 = vsel %vm306, %v4673, 0
      %v4747 = vsel %vm306, %v4674, 0
      %v4750 = vsel %vm306, %v4675, 0
      %v4753 = vsel %vm306, %v4676, 0
      %v4756 = vsel %vm306, %v4677, 0
      %v4759 = vsel %vm306, %v4678, 0
      %v4762 = vsel %vm306, %v4679, 0
      %v4765 = vsel %vm306, %v4680, 0
      %v4768 = vsel %vm306, %v4681, 0
      %v4771 = vsel %vm306, %v4682, 0
      %v4774 = vsel %vm306, %v4683, 0
      %v4777 = vsel %vm306, %v4684, 0
      %v4780 = vsel %vm306, %v4685, 0
      %v4783 = vsel %vm306, %v4686, 0
      %4785 = vmatprep.subr.mxu0 0.0
      %4786 = vmatpush1.msra.mxu0 %v4688
      %4787 = vmatprep.subr.mxu0 0.0
      %4788 = vmatpush1.msra.mxu0 0.0
      %4789 = vmatprep.subr.mxu0 0.0
      %4790 = vmatpush1.msra.mxu0 0.0
      %4791 = vmatprep.subr.mxu0 0.0
      %4792 = vmatpush1.msra.mxu0 0.0
      %4793 = vmatprep.subr.mxu0 0.0
      %4794 = vmatpush1.msra.mxu0 0.0
      %4795 = vmatprep.subr.mxu0 0.0
      %4796 = vmatpush1.msra.mxu0 0.0
      %4797 = vmatprep.subr.mxu0 0.0
      %4798 = vmatpush1.msra.mxu0 0.0
      %4799 = vmatprep.subr.mxu0 0.0
      %4800 = vmatpush1.msra.mxu0 0.0
      %4801 = vmatprep.subr.mxu0 0.0
      %4802 = vmatpush1.msra.mxu0 0.0
      %4803 = vmatprep.subr.mxu0 0.0
      %4804 = vmatpush1.msra.mxu0 0.0
      %4805 = vmatprep.subr.mxu0 0.0
      %4806 = vmatpush1.msra.mxu0 0.0
      %4807 = vmatprep.subr.mxu0 0.0
      %4808 = vmatpush1.msra.mxu0 0.0
      %4809 = vmatprep.subr.mxu0 0.0
      %4810 = vmatpush1.msra.mxu0 0.0
      %4811 = vmatprep.subr.mxu0 0.0
      %4812 = vmatpush1.msra.mxu0 0.0
      %4813 = vmatprep.subr.mxu0 0.0
      %4814 = vmatpush1.msra.mxu0 0.0
      %4815 = vmatprep.subr.mxu0 0.0
      %4816 = vmatpush1.msra.mxu0 0.0
      %4817 = vmatprep.subr.mxu0 0.0
      %4818 = vmatpush1.msra.mxu0 0.0
      %4819 = vmatprep.subr.mxu0 0.0
      %4820 = vmatpush1.msra.mxu0 0.0
      %4821 = vmatprep.subr.mxu0 0.0
      %4822 = vmatpush1.msra.mxu0 0.0
      %4823 = vmatprep.subr.mxu0 0.0
      %4824 = vmatpush1.msra.mxu0 0.0
      %4825 = vmatprep.subr.mxu0 0.0
      %4826 = vmatpush1.msra.mxu0 0.0
      %4827 = vmatprep.subr.mxu0 0.0
      %4828 = vmatpush1.msra.mxu0 0.0
      %4829 = vmatprep.subr.mxu0 0.0
      %4830 = vmatpush1.msra.mxu0 0.0
      %4831 = vmatprep.subr.mxu0 0.0
      %4832 = vmatpush1.msra.mxu0 0.0
      %4833 = vmatprep.subr.mxu0 0.0
      %4834 = vmatpush1.msra.mxu0 0.0
      %4835 = vmatprep.subr.mxu0 0.0
      %4836 = vmatpush1.msra.mxu0 0.0
      %4837 = vmatprep.subr.mxu0 0.0
      %4838 = vmatpush1.msra.mxu0 0.0
      %4839 = vmatprep.subr.mxu0 0.0
      %4840 = vmatpush1.msra.mxu0 0.0
      %4841 = vmatprep.subr.mxu0 0.0
      %4842 = vmatpush1.msra.mxu0 0.0
      %4843 = vmatprep.subr.mxu0 0.0
      %4844 = vmatpush1.msra.mxu0 0.0
      %4845 = vmatprep.subr.mxu0 0.0
      %4846 = vmatpush1.msra.mxu0 0.0
      %4847 = vmatprep.subr.mxu0 0.0
      %4848 = vmatpush1.msra.mxu0 0.0
      %4849 = vmatprep.mubr.f32.mxu0 0.0
      %4850 = vmatmul.mubr.f32.gmra.mrb[0].mxu0 %v4690
      %v4851 = vpop.f32.mrb[0].mxu0
      %v4852 = vadd.f32 0.0, %v4851
      %v4853 = vpop.f32.mrb[0].mxu0
      %4854 = vmatprep.mubr.f32.mxu0 0.0
      %4855 = vmatmul.mubr.f32.gmra.mrb[0].mxu0 %v4693
      %v4856 = vpop.f32.mrb[0].mxu0
      %v4857 = vadd.f32 0.0, %v4856
      %v4858 = vpop.f32.mrb[0].mxu0
      %4859 = vmatprep.mubr.f32.mxu0 0.0
      %4860 = vmatmul.mubr.f32.gmra.mrb[0].mxu0 %v4696
      %v4861 = vpop.f32.mrb[0].mxu0
      %v4862 = vadd.f32 0.0, %v4861
      %v4863 = vpop.f32.mrb[0].mxu0
      %4864 = vmatprep.mubr.f32.mxu0 0.0
      %4865 = vmatmul.mubr.f32.gmra.mrb[0].mxu0 %v4699
      %v4866 = vpop.f32.mrb[0].mxu0
      %v4867 = vadd.f32 0.0, %v4866
      %v4868 = vpop.f32.mrb[0].mxu0
      %4869 = vmatprep.mubr.f32.mxu0 0.0
      %4870 = vmatmul.mubr.f32.gmra.mrb[0].mxu0 %v4702
      %v4871 = vpop.f32.mrb[0].mxu0
      %v4872 = vadd.f32 0.0, %v4871
      %v4873 = vpop.f32.mrb[0].mxu0
      %4874 = vmatprep.mubr.f32.mxu0 0.0
      %4875 = vmatmul.mubr.f32.gmra.mrb[0].mxu0 %v4705
      %v4876 = vpop.f32.mrb[0].mxu0
      %v4877 = vadd.f32 0.0, %v4876
      %v4878 = vpop.f32.mrb[0].mxu0
      %4879 = vmatprep.mubr.f32.mxu0 0.0
      %4880 = vmatmul.mubr.f32.gmra.mrb[0].mxu0 %v4708
      %v4881 = vpop.f32.mrb[0].mxu0
      %v4882 = vadd.f32 0.0, %v4881
      %v4883 = vpop.f32.mrb[0].mxu0
      %4884 = vmatprep.mubr.f32.mxu0 0.0
      %4885 = vmatmul.mubr.f32.gmra.mrb[0].mxu0 %v4711
      %v4886 = vpop.f32.mrb[0].mxu0
      %v4887 = vadd.f32 0.0, %v4886
      %v4888 = vpop.f32.mrb[0].mxu0
      %4889 = vmatprep.mubr.f32.mxu0 0.0
      %4890 = vmatmul.mubr.f32.gmra.mrb[0].mxu0 %v4714
      %v4891 = vpop.f32.mrb[0].mxu0
      %v4892 = vadd.f32 0.0, %v4891
      %v4893 = vpop.f32.mrb[0].mxu0
      %4894 = vmatprep.mubr.f32.mxu0 0.0
      %4895 = vmatmul.mubr.f32.gmra.mrb[0].mxu0 %v4717
      %v4896 = vpop.f32.mrb[0].mxu0
      %v4897 = vadd.f32 0.0, %v4896
      %v4898 = vpop.f32.mrb[0].mxu0
      %4899 = vmatprep.mubr.f32.mxu0 0.0
      %4900 = vmatmul.mubr.f32.gmra.mrb[0].mxu0 %v4720
      %v4901 = vpop.f32.mrb[0].mxu0
      %v4902 = vadd.f32 0.0, %v4901
      %v4903 = vpop.f32.mrb[0].mxu0
      %4904 = vmatprep.mubr.f32.mxu0 0.0
      %4905 = vmatmul.mubr.f32.gmra.mrb[0].mxu0 %v4723
      %v4906 = vpop.f32.mrb[0].mxu0
      %v4907 = vadd.f32 0.0, %v4906
      %v4908 = vpop.f32.mrb[0].mxu0
      %4909 = vmatprep.mubr.f32.mxu0 0.0
      %4910 = vmatmul.mubr.f32.gmra.mrb[0].mxu0 %v4726
      %v4911 = vpop.f32.mrb[0].mxu0
      %v4912 = vadd.f32 0.0, %v4911
      %v4913 = vpop.f32.mrb[0].mxu0
      %4914 = vmatprep.mubr.f32.mxu0 0.0
      %4915 = vmatmul.mubr.f32.gmra.mrb[0].mxu0 %v4729
      %v4916 = vpop.f32.mrb[0].mxu0
      %v4917 = vadd.f32 0.0, %v4916
      %v4918 = vpop.f32.mrb[0].mxu0
      %4919 = vmatprep.mubr.f32.mxu0 0.0
      %4920 = vmatmul.mubr.f32.gmra.mrb[0].mxu0 %v4732
      %v4921 = vpop.f32.mrb[0].mxu0
      %v4922 = vadd.f32 0.0, %v4921
      %v4923 = vpop.f32.mrb[0].mxu0
      %4924 = vmatprep.mubr.f32.mxu0 0.0
      %4925 = vmatmul.mubr.f32.gmra.mrb[0].mxu0 %v4735
      %v4926 = vpop.f32.mrb[0].mxu0
      %v4927 = vadd.f32 0.0, %v4926
      %v4928 = vpop.f32.mrb[0].mxu0
      %4929 = vmatprep.mubr.f32.mxu0 0.0
      %4930 = vmatmul.mubr.f32.gmra.mrb[0].mxu0 %v4738
      %v4931 = vpop.f32.mrb[0].mxu0
      %v4932 = vadd.f32 0.0, %v4931
      %v4933 = vpop.f32.mrb[0].mxu0
      %4934 = vmatprep.mubr.f32.mxu0 0.0
      %4935 = vmatmul.mubr.f32.gmra.mrb[0].mxu0 %v4741
      %v4936 = vpop.f32.mrb[0].mxu0
      %v4937 = vadd.f32 0.0, %v4936
      %v4938 = vpop.f32.mrb[0].mxu0
      %4939 = vmatprep.mubr.f32.mxu0 0.0
      %4940 = vmatmul.mubr.f32.gmra.mrb[0].mxu0 %v4744
      %v4941 = vpop.f32.mrb[0].mxu0
      %v4942 = vadd.f32 0.0, %v4941
      %v4943 = vpop.f32.mrb[0].mxu0
      %4944 = vmatprep.mubr.f32.mxu0 0.0
      %4945 = vmatmul.mubr.f32.gmra.mrb[0].mxu0 %v4747
      %v4946 = vpop.f32.mrb[0].mxu0
      %v4947 = vadd.f32 0.0, %v4946
      %v4948 = vpop.f32.mrb[0].mxu0
      %4949 = vmatprep.mubr.f32.mxu0 0.0
      %4950 = vmatmul.mubr.f32.gmra.mrb[0].mxu0 %v4750
      %v4951 = vpop.f32.mrb[0].mxu0
      %v4952 = vadd.f32 0.0, %v4951
      %v4953 = vpop.f32.mrb[0].mxu0
      %4954 = vmatprep.mubr.f32.mxu0 0.0
      %4955 = vmatmul.mubr.f32.gmra.mrb[0].mxu0 %v4753
      %v4956 = vpop.f32.mrb[0].mxu0
      %v4957 = vadd.f32 0.0, %v4956
      %v4958 = vpop.f32.mrb[0].mxu0
      %4959 = vmatprep.mubr.f32.mxu0 0.0
      %4960 = vmatmul.mubr.f32.gmra.mrb[0].mxu0 %v4756
      %v4961 = vpop.f32.mrb[0].mxu0
      %v4962 = vadd.f32 0.0, %v4961
      %v4963 = vpop.f32.mrb[0].mxu0
      %4964 = vmatprep.mubr.f32.mxu0 0.0
      %4965 = vmatmul.mubr.f32.gmra.mrb[0].mxu0 %v4759
      %v4966 = vpop.f32.mrb[0].mxu0
      %v4967 = vadd.f32 0.0, %v4966
      %v4968 = vpop.f32.mrb[0].mxu0
      %4969 = vmatprep.mubr.f32.mxu0 0.0
      %4970 = vmatmul.mubr.f32.gmra.mrb[0].mxu0 %v4762
      %v4971 = vpop.f32.mrb[0].mxu0
      %v4972 = vadd.f32 0.0, %v4971
      %v4973 = vpop.f32.mrb[0].mxu0
      %4974 = vmatprep.mubr.f32.mxu0 0.0
      %4975 = vmatmul.mubr.f32.gmra.mrb[0].mxu0 %v4765
      %v4976 = vpop.f32.mrb[0].mxu0
      %v4977 = vadd.f32 0.0, %v4976
      %v4978 = vpop.f32.mrb[0].mxu0
      %4979 = vmatprep.mubr.f32.mxu0 0.0
      %4980 = vmatmul.mubr.f32.gmra.mrb[0].mxu0 %v4768
      %v4981 = vpop.f32.mrb[0].mxu0
      %v4982 = vadd.f32 0.0, %v4981
      %v4983 = vpop.f32.mrb[0].mxu0
      %4984 = vmatprep.mubr.f32.mxu0 0.0
      %4985 = vmatmul.mubr.f32.gmra.mrb[0].mxu0 %v4771
      %v4986 = vpop.f32.mrb[0].mxu0
      %v4987 = vadd.f32 0.0, %v4986
      %v4988 = vpop.f32.mrb[0].mxu0
      %4989 = vmatprep.mubr.f32.mxu0 0.0
      %4990 = vmatmul.mubr.f32.gmra.mrb[0].mxu0 %v4774
      %v4991 = vpop.f32.mrb[0].mxu0
      %v4992 = vadd.f32 0.0, %v4991
      %v4993 = vpop.f32.mrb[0].mxu0
      %4994 = vmatprep.mubr.f32.mxu0 0.0
      %4995 = vmatmul.mubr.f32.gmra.mrb[0].mxu0 %v4777
      %v4996 = vpop.f32.mrb[0].mxu0
      %v4997 = vadd.f32 0.0, %v4996
      %v4998 = vpop.f32.mrb[0].mxu0
      %4999 = vmatprep.mubr.f32.mxu0 0.0
      %5000 = vmatmul.mubr.f32.gmra.mrb[0].mxu0 %v4780
      %v5001 = vpop.f32.mrb[0].mxu0
      %v5002 = vadd.f32 0.0, %v5001
      %v5003 = vpop.f32.mrb[0].mxu0
      %5004 = vmatprep.mubr.f32.mxu0 0.0
      %5005 = vmatmul.mubr.f32.gmra.mrb[0].mxu0 %v4783
      %v5006 = vpop.f32.mrb[0].mxu0
      %v5007 = vadd.f32 0.0, %v5006
      %v5008 = vpop.f32.mrb[0].mxu0
      %5009 = vdwg.mxu0
      %v5010 = vadd.f32 %v4497, %v4852
      %v5011 = vadd.f32 %v4502, %v4857
      %v5012 = vadd.f32 %v4507, %v4862
      %v5013 = vadd.f32 %v4512, %v4867
      %v5014 = vadd.f32 %v4517, %v4872
      %v5015 = vadd.f32 %v4522, %v4877
      %v5016 = vadd.f32 %v4527, %v4882
      %v5017 = vadd.f32 %v4532, %v4887
      %v5018 = vadd.f32 %v4537, %v4892
      %v5019 = vadd.f32 %v4542, %v4897
      %v5020 = vadd.f32 %v4547, %v4902
      %v5021 = vadd.f32 %v4552, %v4907
      %v5022 = vadd.f32 %v4557, %v4912
      %v5023 = vadd.f32 %v4562, %v4917
      %v5024 = vadd.f32 %v4567, %v4922
      %v5025 = vadd.f32 %v4572, %v4927
      %v5026 = vadd.f32 %v4577, %v4932
      %v5027 = vadd.f32 %v4582, %v4937
      %v5028 = vadd.f32 %v4587, %v4942
      %v5029 = vadd.f32 %v4592, %v4947
      %v5030 = vadd.f32 %v4597, %v4952
      %v5031 = vadd.f32 %v4602, %v4957
      %v5032 = vadd.f32 %v4607, %v4962
      %v5033 = vadd.f32 %v4612, %v4967
      %v5034 = vadd.f32 %v4617, %v4972
      %v5035 = vadd.f32 %v4622, %v4977
      %v5036 = vadd.f32 %v4627, %v4982
      %v5037 = vadd.f32 %v4632, %v4987
      %v5038 = vadd.f32 %v4637, %v4992
      %v5039 = vadd.f32 %v4642, %v4997
      %v5040 = vadd.f32 %v4647, %v5002
      %v5041 = vadd.f32 %v4652, %v5007
      %s5042 = scalar_lea.vmem [#allocation2], 24
      %v5043 = vld [vmem:[%s5042 + $0x2] sm:$0xff]
      %v5044 = vld [vmem:[%s5042 + $0xa] sm:$0xff]
      %v5045 = vld [vmem:[%s5042 + $0x1a] sm:$0xff]
      %v5046 = vld [vmem:[%s5042 + $0x22] sm:$0xff]
      %v5047 = vld [vmem:[%s5042 + $0x32] sm:$0xff]
      %v5048 = vld [vmem:[%s5042 + $0x3a] sm:$0xff]
      %v5049 = vld [vmem:[%s5042 + $0x4a] sm:$0xff]
      %v5050 = vld [vmem:[%s5042 + $0x52] sm:$0xff]
      %v5051 = vld [vmem:[%s5042 + $0x62] sm:$0xff]
      %v5052 = vld [vmem:[%s5042 + $0x6a] sm:$0xff]
      %v5053 = vld [vmem:[%s5042 + $0x7a] sm:$0xff]
      %v5054 = vld [vmem:[%s5042 + $0x82] sm:$0xff]
      %v5055 = vld [vmem:[%s5042 + $0x92] sm:$0xff]
      %v5056 = vld [vmem:[%s5042 + $0x9a] sm:$0xff]
      %v5057 = vld [vmem:[%s5042 + $0xaa] sm:$0xff]
      %v5058 = vld [vmem:[%s5042 + $0xb2] sm:$0xff]
      %v5059 = vld [vmem:[%s5042 + $0xc2] sm:$0xff]
      %v5060 = vld [vmem:[%s5042 + $0xca] sm:$0xff]
      %v5061 = vld [vmem:[%s5042 + $0xda] sm:$0xff]
      %v5062 = vld [vmem:[%s5042 + $0xe2] sm:$0xff]
      %v5063 = vld [vmem:[%s5042 + $0xf2] sm:$0xff]
      %v5064 = vld [vmem:[%s5042 + $0xfa] sm:$0xff]
      %v5065 = vld [vmem:[%s5042 + $0x10a] sm:$0xff]
      %v5066 = vld [vmem:[%s5042 + $0x112] sm:$0xff]
      %v5067 = vld [vmem:[%s5042 + $0x122] sm:$0xff]
      %v5068 = vld [vmem:[%s5042 + $0x12a] sm:$0xff]
      %v5069 = vld [vmem:[%s5042 + $0x13a] sm:$0xff]
      %v5070 = vld [vmem:[%s5042 + $0x142] sm:$0xff]
      %v5071 = vld [vmem:[%s5042 + $0x152] sm:$0xff]
      %v5072 = vld [vmem:[%s5042 + $0x15a] sm:$0xff]
      %v5073 = vld [vmem:[%s5042 + $0x16a] sm:$0xff]
      %v5074 = vld [vmem:[%s5042 + $0x172] sm:$0xff]
      %s5075 = scalar_lea.vmem %s4, 8
      %v5076 = vld [vmem:[%s5075] sm:$0xff]
      %v5078 = vsel %vm306, %v5043, 0
      %v5081 = vsel %vm306, %v5044, 0
      %v5084 = vsel %vm306, %v5045, 0
      %v5087 = vsel %vm306, %v5046, 0
      %v5090 = vsel %vm306, %v5047, 0
      %v5093 = vsel %vm306, %v5048, 0
      %v5096 = vsel %vm306, %v5049, 0
      %v5099 = vsel %vm306, %v5050, 0
      %v5102 = vsel %vm306, %v5051, 0
      %v5105 = vsel %vm306, %v5052, 0
      %v5108 = vsel %vm306, %v5053, 0
      %v5111 = vsel %vm306, %v5054, 0
      %v5114 = vsel %vm306, %v5055, 0
      %v5117 = vsel %vm306, %v5056, 0
      %v5120 = vsel %vm306, %v5057, 0
      %v5123 = vsel %vm306, %v5058, 0
      %v5126 = vsel %vm306, %v5059, 0
      %v5129 = vsel %vm306, %v5060, 0
      %v5132 = vsel %vm306, %v5061, 0
      %v5135 = vsel %vm306, %v5062, 0
      %v5138 = vsel %vm306, %v5063, 0
      %v5141 = vsel %vm306, %v5064, 0
      %v5144 = vsel %vm306, %v5065, 0
      %v5147 = vsel %vm306, %v5066, 0
      %v5150 = vsel %vm306, %v5067, 0
      %v5153 = vsel %vm306, %v5068, 0
      %v5156 = vsel %vm306, %v5069, 0
      %v5159 = vsel %vm306, %v5070, 0
      %v5162 = vsel %vm306, %v5071, 0
      %v5165 = vsel %vm306, %v5072, 0
      %v5168 = vsel %vm306, %v5073, 0
      %v5171 = vsel %vm306, %v5074, 0
      %5173 = vmatprep.subr.mxu0 0.0
      %5174 = vmatpush1.msra.mxu0 %v5076
      %5175 = vmatprep.subr.mxu0 0.0
      %5176 = vmatpush1.msra.mxu0 0.0
      %5177 = vmatprep.subr.mxu0 0.0
      %5178 = vmatpush1.msra.mxu0 0.0
      %5179 = vmatprep.subr.mxu0 0.0
      %5180 = vmatpush1.msra.mxu0 0.0
      %5181 = vmatprep.subr.mxu0 0.0
      %5182 = vmatpush1.msra.mxu0 0.0
      %5183 = vmatprep.subr.mxu0 0.0
      %5184 = vmatpush1.msra.mxu0 0.0
      %5185 = vmatprep.subr.mxu0 0.0
      %5186 = vmatpush1.msra.mxu0 0.0
      %5187 = vmatprep.subr.mxu0 0.0
      %5188 = vmatpush1.msra.mxu0 0.0
      %5189 = vmatprep.subr.mxu0 0.0
      %5190 = vmatpush1.msra.mxu0 0.0
      %5191 = vmatprep.subr.mxu0 0.0
      %5192 = vmatpush1.msra.mxu0 0.0
      %5193 = vmatprep.subr.mxu0 0.0
      %5194 = vmatpush1.msra.mxu0 0.0
      %5195 = vmatprep.subr.mxu0 0.0
      %5196 = vmatpush1.msra.mxu0 0.0
      %5197 = vmatprep.subr.mxu0 0.0
      %5198 = vmatpush1.msra.mxu0 0.0
      %5199 = vmatprep.subr.mxu0 0.0
      %5200 = vmatpush1.msra.mxu0 0.0
      %5201 = vmatprep.subr.mxu0 0.0
      %5202 = vmatpush1.msra.mxu0 0.0
      %5203 = vmatprep.subr.mxu0 0.0
      %5204 = vmatpush1.msra.mxu0 0.0
      %5205 = vmatprep.subr.mxu0 0.0
      %5206 = vmatpush1.msra.mxu0 0.0
      %5207 = vmatprep.subr.mxu0 0.0
      %5208 = vmatpush1.msra.mxu0 0.0
      %5209 = vmatprep.subr.mxu0 0.0
      %5210 = vmatpush1.msra.mxu0 0.0
      %5211 = vmatprep.subr.mxu0 0.0
      %5212 = vmatpush1.msra.mxu0 0.0
      %5213 = vmatprep.subr.mxu0 0.0
      %5214 = vmatpush1.msra.mxu0 0.0
      %5215 = vmatprep.subr.mxu0 0.0
      %5216 = vmatpush1.msra.mxu0 0.0
      %5217 = vmatprep.subr.mxu0 0.0
      %5218 = vmatpush1.msra.mxu0 0.0
      %5219 = vmatprep.subr.mxu0 0.0
      %5220 = vmatpush1.msra.mxu0 0.0
      %5221 = vmatprep.subr.mxu0 0.0
      %5222 = vmatpush1.msra.mxu0 0.0
      %5223 = vmatprep.subr.mxu0 0.0
      %5224 = vmatpush1.msra.mxu0 0.0
      %5225 = vmatprep.subr.mxu0 0.0
      %5226 = vmatpush1.msra.mxu0 0.0
      %5227 = vmatprep.subr.mxu0 0.0
      %5228 = vmatpush1.msra.mxu0 0.0
      %5229 = vmatprep.subr.mxu0 0.0
      %5230 = vmatpush1.msra.mxu0 0.0
      %5231 = vmatprep.subr.mxu0 0.0
      %5232 = vmatpush1.msra.mxu0 0.0
      %5233 = vmatprep.subr.mxu0 0.0
      %5234 = vmatpush1.msra.mxu0 0.0
      %5235 = vmatprep.subr.mxu0 0.0
      %5236 = vmatpush1.msra.mxu0 0.0
      %5237 = vmatprep.mubr.f32.mxu0 0.0
      %5238 = vmatmul.mubr.f32.gmra.mrb[0].mxu0 %v5078
      %v5239 = vpop.f32.mrb[0].mxu0
      %v5240 = vadd.f32 0.0, %v5239
      %v5241 = vpop.f32.mrb[0].mxu0
      %5242 = vmatprep.mubr.f32.mxu0 0.0
      %5243 = vmatmul.mubr.f32.gmra.mrb[0].mxu0 %v5081
      %v5244 = vpop.f32.mrb[0].mxu0
      %v5245 = vadd.f32 0.0, %v5244
      %v5246 = vpop.f32.mrb[0].mxu0
      %5247 = vmatprep.mubr.f32.mxu0 0.0
      %5248 = vmatmul.mubr.f32.gmra.mrb[0].mxu0 %v5084
      %v5249 = vpop.f32.mrb[0].mxu0
      %v5250 = vadd.f32 0.0, %v5249
      %v5251 = vpop.f32.mrb[0].mxu0
      %5252 = vmatprep.mubr.f32.mxu0 0.0
      %5253 = vmatmul.mubr.f32.gmra.mrb[0].mxu0 %v5087
      %v5254 = vpop.f32.mrb[0].mxu0
      %v5255 = vadd.f32 0.0, %v5254
      %v5256 = vpop.f32.mrb[0].mxu0
      %5257 = vmatprep.mubr.f32.mxu0 0.0
      %5258 = vmatmul.mubr.f32.gmra.mrb[0].mxu0 %v5090
      %v5259 = vpop.f32.mrb[0].mxu0
      %v5260 = vadd.f32 0.0, %v5259
      %v5261 = vpop.f32.mrb[0].mxu0
      %5262 = vmatprep.mubr.f32.mxu0 0.0
      %5263 = vmatmul.mubr.f32.gmra.mrb[0].mxu0 %v5093
      %v5264 = vpop.f32.mrb[0].mxu0
      %v5265 = vadd.f32 0.0, %v5264
      %v5266 = vpop.f32.mrb[0].mxu0
      %5267 = vmatprep.mubr.f32.mxu0 0.0
      %5268 = vmatmul.mubr.f32.gmra.mrb[0].mxu0 %v5096
      %v5269 = vpop.f32.mrb[0].mxu0
      %v5270 = vadd.f32 0.0, %v5269
      %v5271 = vpop.f32.mrb[0].mxu0
      %5272 = vmatprep.mubr.f32.mxu0 0.0
      %5273 = vmatmul.mubr.f32.gmra.mrb[0].mxu0 %v5099
      %v5274 = vpop.f32.mrb[0].mxu0
      %v5275 = vadd.f32 0.0, %v5274
      %v5276 = vpop.f32.mrb[0].mxu0
      %5277 = vmatprep.mubr.f32.mxu0 0.0
      %5278 = vmatmul.mubr.f32.gmra.mrb[0].mxu0 %v5102
      %v5279 = vpop.f32.mrb[0].mxu0
      %v5280 = vadd.f32 0.0, %v5279
      %v5281 = vpop.f32.mrb[0].mxu0
      %5282 = vmatprep.mubr.f32.mxu0 0.0
      %5283 = vmatmul.mubr.f32.gmra.mrb[0].mxu0 %v5105
      %v5284 = vpop.f32.mrb[0].mxu0
      %v5285 = vadd.f32 0.0, %v5284
      %v5286 = vpop.f32.mrb[0].mxu0
      %5287 = vmatprep.mubr.f32.mxu0 0.0
      %5288 = vmatmul.mubr.f32.gmra.mrb[0].mxu0 %v5108
      %v5289 = vpop.f32.mrb[0].mxu0
      %v5290 = vadd.f32 0.0, %v5289
      %v5291 = vpop.f32.mrb[0].mxu0
      %5292 = vmatprep.mubr.f32.mxu0 0.0
      %5293 = vmatmul.mubr.f32.gmra.mrb[0].mxu0 %v5111
      %v5294 = vpop.f32.mrb[0].mxu0
      %v5295 = vadd.f32 0.0, %v5294
      %v5296 = vpop.f32.mrb[0].mxu0
      %5297 = vmatprep.mubr.f32.mxu0 0.0
      %5298 = vmatmul.mubr.f32.gmra.mrb[0].mxu0 %v5114
      %v5299 = vpop.f32.mrb[0].mxu0
      %v5300 = vadd.f32 0.0, %v5299
      %v5301 = vpop.f32.mrb[0].mxu0
      %5302 = vmatprep.mubr.f32.mxu0 0.0
      %5303 = vmatmul.mubr.f32.gmra.mrb[0].mxu0 %v5117
      %v5304 = vpop.f32.mrb[0].mxu0
      %v5305 = vadd.f32 0.0, %v5304
      %v5306 = vpop.f32.mrb[0].mxu0
      %5307 = vmatprep.mubr.f32.mxu0 0.0
      %5308 = vmatmul.mubr.f32.gmra.mrb[0].mxu0 %v5120
      %v5309 = vpop.f32.mrb[0].mxu0
      %v5310 = vadd.f32 0.0, %v5309
      %v5311 = vpop.f32.mrb[0].mxu0
      %5312 = vmatprep.mubr.f32.mxu0 0.0
      %5313 = vmatmul.mubr.f32.gmra.mrb[0].mxu0 %v5123
      %v5314 = vpop.f32.mrb[0].mxu0
      %v5315 = vadd.f32 0.0, %v5314
      %v5316 = vpop.f32.mrb[0].mxu0
      %5317 = vmatprep.mubr.f32.mxu0 0.0
      %5318 = vmatmul.mubr.f32.gmra.mrb[0].mxu0 %v5126
      %v5319 = vpop.f32.mrb[0].mxu0
      %v5320 = vadd.f32 0.0, %v5319
      %v5321 = vpop.f32.mrb[0].mxu0
      %5322 = vmatprep.mubr.f32.mxu0 0.0
      %5323 = vmatmul.mubr.f32.gmra.mrb[0].mxu0 %v5129
      %v5324 = vpop.f32.mrb[0].mxu0
      %v5325 = vadd.f32 0.0, %v5324
      %v5326 = vpop.f32.mrb[0].mxu0
      %5327 = vmatprep.mubr.f32.mxu0 0.0
      %5328 = vmatmul.mubr.f32.gmra.mrb[0].mxu0 %v5132
      %v5329 = vpop.f32.mrb[0].mxu0
      %v5330 = vadd.f32 0.0, %v5329
      %v5331 = vpop.f32.mrb[0].mxu0
      %5332 = vmatprep.mubr.f32.mxu0 0.0
      %5333 = vmatmul.mubr.f32.gmra.mrb[0].mxu0 %v5135
      %v5334 = vpop.f32.mrb[0].mxu0
      %v5335 = vadd.f32 0.0, %v5334
      %v5336 = vpop.f32.mrb[0].mxu0
      %5337 = vmatprep.mubr.f32.mxu0 0.0
      %5338 = vmatmul.mubr.f32.gmra.mrb[0].mxu0 %v5138
      %v5339 = vpop.f32.mrb[0].mxu0
      %v5340 = vadd.f32 0.0, %v5339
      %v5341 = vpop.f32.mrb[0].mxu0
      %5342 = vmatprep.mubr.f32.mxu0 0.0
      %5343 = vmatmul.mubr.f32.gmra.mrb[0].mxu0 %v5141
      %v5344 = vpop.f32.mrb[0].mxu0
      %v5345 = vadd.f32 0.0, %v5344
      %v5346 = vpop.f32.mrb[0].mxu0
      %5347 = vmatprep.mubr.f32.mxu0 0.0
      %5348 = vmatmul.mubr.f32.gmra.mrb[0].mxu0 %v5144
      %v5349 = vpop.f32.mrb[0].mxu0
      %v5350 = vadd.f32 0.0, %v5349
      %v5351 = vpop.f32.mrb[0].mxu0
      %5352 = vmatprep.mubr.f32.mxu0 0.0
      %5353 = vmatmul.mubr.f32.gmra.mrb[0].mxu0 %v5147
      %v5354 = vpop.f32.mrb[0].mxu0
      %v5355 = vadd.f32 0.0, %v5354
      %v5356 = vpop.f32.mrb[0].mxu0
      %5357 = vmatprep.mubr.f32.mxu0 0.0
      %5358 = vmatmul.mubr.f32.gmra.mrb[0].mxu0 %v5150
      %v5359 = vpop.f32.mrb[0].mxu0
      %v5360 = vadd.f32 0.0, %v5359
      %v5361 = vpop.f32.mrb[0].mxu0
      %5362 = vmatprep.mubr.f32.mxu0 0.0
      %5363 = vmatmul.mubr.f32.gmra.mrb[0].mxu0 %v5153
      %v5364 = vpop.f32.mrb[0].mxu0
      %v5365 = vadd.f32 0.0, %v5364
      %v5366 = vpop.f32.mrb[0].mxu0
      %5367 = vmatprep.mubr.f32.mxu0 0.0
      %5368 = vmatmul.mubr.f32.gmra.mrb[0].mxu0 %v5156
      %v5369 = vpop.f32.mrb[0].mxu0
      %v5370 = vadd.f32 0.0, %v5369
      %v5371 = vpop.f32.mrb[0].mxu0
      %5372 = vmatprep.mubr.f32.mxu0 0.0
      %5373 = vmatmul.mubr.f32.gmra.mrb[0].mxu0 %v5159
      %v5374 = vpop.f32.mrb[0].mxu0
      %v5375 = vadd.f32 0.0, %v5374
      %v5376 = vpop.f32.mrb[0].mxu0
      %5377 = vmatprep.mubr.f32.mxu0 0.0
      %5378 = vmatmul.mubr.f32.gmra.mrb[0].mxu0 %v5162
      %v5379 = vpop.f32.mrb[0].mxu0
      %v5380 = vadd.f32 0.0, %v5379
      %v5381 = vpop.f32.mrb[0].mxu0
      %5382 = vmatprep.mubr.f32.mxu0 0.0
      %5383 = vmatmul.mubr.f32.gmra.mrb[0].mxu0 %v5165
      %v5384 = vpop.f32.mrb[0].mxu0
      %v5385 = vadd.f32 0.0, %v5384
      %v5386 = vpop.f32.mrb[0].mxu0
      %5387 = vmatprep.mubr.f32.mxu0 0.0
      %5388 = vmatmul.mubr.f32.gmra.mrb[0].mxu0 %v5168
      %v5389 = vpop.f32.mrb[0].mxu0
      %v5390 = vadd.f32 0.0, %v5389
      %v5391 = vpop.f32.mrb[0].mxu0
      %5392 = vmatprep.mubr.f32.mxu0 0.0
      %5393 = vmatmul.mubr.f32.gmra.mrb[0].mxu0 %v5171
      %v5394 = vpop.f32.mrb[0].mxu0
      %v5395 = vadd.f32 0.0, %v5394
      %v5396 = vpop.f32.mrb[0].mxu0
      %5397 = vdwg.mxu0
      %v5398 = vadd.f32 %v5010, %v5240
      %v5399 = vadd.f32 %v5011, %v5245
      %v5400 = vadd.f32 %v5012, %v5250
      %v5401 = vadd.f32 %v5013, %v5255
      %v5402 = vadd.f32 %v5014, %v5260
      %v5403 = vadd.f32 %v5015, %v5265
      %v5404 = vadd.f32 %v5016, %v5270
      %v5405 = vadd.f32 %v5017, %v5275
      %v5406 = vadd.f32 %v5018, %v5280
      %v5407 = vadd.f32 %v5019, %v5285
      %v5408 = vadd.f32 %v5020, %v5290
      %v5409 = vadd.f32 %v5021, %v5295
      %v5410 = vadd.f32 %v5022, %v5300
      %v5411 = vadd.f32 %v5023, %v5305
      %v5412 = vadd.f32 %v5024, %v5310
      %v5413 = vadd.f32 %v5025, %v5315
      %v5414 = vadd.f32 %v5026, %v5320
      %v5415 = vadd.f32 %v5027, %v5325
      %v5416 = vadd.f32 %v5028, %v5330
      %v5417 = vadd.f32 %v5029, %v5335
      %v5418 = vadd.f32 %v5030, %v5340
      %v5419 = vadd.f32 %v5031, %v5345
      %v5420 = vadd.f32 %v5032, %v5350
      %v5421 = vadd.f32 %v5033, %v5355
      %v5422 = vadd.f32 %v5034, %v5360
      %v5423 = vadd.f32 %v5035, %v5365
      %v5424 = vadd.f32 %v5036, %v5370
      %v5425 = vadd.f32 %v5037, %v5375
      %v5426 = vadd.f32 %v5038, %v5380
      %v5427 = vadd.f32 %v5039, %v5385
      %v5428 = vadd.f32 %v5040, %v5390
      %v5429 = vadd.f32 %v5041, %v5395
      %v5430 = vld [vmem:[%s3914 + $0x2] sm:$0xff]
      %v5431 = vld [vmem:[%s3914 + $0xa] sm:$0xff]
      %v5432 = vld [vmem:[%s3914 + $0x1a] sm:$0xff]
      %v5433 = vld [vmem:[%s3914 + $0x22] sm:$0xff]
      %v5434 = vld [vmem:[%s3914 + $0x32] sm:$0xff]
      %v5435 = vld [vmem:[%s3914 + $0x3a] sm:$0xff]
      %v5436 = vld [vmem:[%s3914 + $0x4a] sm:$0xff]
      %v5437 = vld [vmem:[%s3914 + $0x52] sm:$0xff]
      %v5438 = vld [vmem:[%s3914 + $0x62] sm:$0xff]
      %v5439 = vld [vmem:[%s3914 + $0x6a] sm:$0xff]
      %v5440 = vld [vmem:[%s3914 + $0x7a] sm:$0xff]
      %v5441 = vld [vmem:[%s3914 + $0x82] sm:$0xff]
      %v5442 = vld [vmem:[%s3914 + $0x92] sm:$0xff]
      %v5443 = vld [vmem:[%s3914 + $0x9a] sm:$0xff]
      %v5444 = vld [vmem:[%s3914 + $0xaa] sm:$0xff]
      %v5445 = vld [vmem:[%s3914 + $0xb2] sm:$0xff]
      %v5446 = vld [vmem:[%s3914 + $0xc2] sm:$0xff]
      %v5447 = vld [vmem:[%s3914 + $0xca] sm:$0xff]
      %v5448 = vld [vmem:[%s3914 + $0xda] sm:$0xff]
      %v5449 = vld [vmem:[%s3914 + $0xe2] sm:$0xff]
      %v5450 = vld [vmem:[%s3914 + $0xf2] sm:$0xff]
      %v5451 = vld [vmem:[%s3914 + $0xfa] sm:$0xff]
      %v5452 = vld [vmem:[%s3914 + $0x10a] sm:$0xff]
      %v5453 = vld [vmem:[%s3914 + $0x112] sm:$0xff]
      %v5454 = vld [vmem:[%s3914 + $0x122] sm:$0xff]
      %v5455 = vld [vmem:[%s3914 + $0x12a] sm:$0xff]
      %v5456 = vld [vmem:[%s3914 + $0x13a] sm:$0xff]
      %v5457 = vld [vmem:[%s3914 + $0x142] sm:$0xff]
      %v5458 = vld [vmem:[%s3914 + $0x152] sm:$0xff]
      %v5459 = vld [vmem:[%s3914 + $0x15a] sm:$0xff]
      %v5460 = vld [vmem:[%s3914 + $0x16a] sm:$0xff]
      %v5461 = vld [vmem:[%s3914 + $0x172] sm:$0xff]
      %s5462 = scalar_lea.vmem %s3, 16
      %v5463 = vld [vmem:[%s5462] sm:$0xff]
      %v5465 = vsel %vm306, %v5430, 0
      %v5468 = vsel %vm306, %v5431, 0
      %v5471 = vsel %vm306, %v5432, 0
      %v5474 = vsel %vm306, %v5433, 0
      %v5477 = vsel %vm306, %v5434, 0
      %v5480 = vsel %vm306, %v5435, 0
      %v5483 = vsel %vm306, %v5436, 0
      %v5486 = vsel %vm306, %v5437, 0
      %v5489 = vsel %vm306, %v5438, 0
      %v5492 = vsel %vm306, %v5439, 0
      %v5495 = vsel %vm306, %v5440, 0
      %v5498 = vsel %vm306, %v5441, 0
      %v5501 = vsel %vm306, %v5442, 0
      %v5504 = vsel %vm306, %v5443, 0
      %v5507 = vsel %vm306, %v5444, 0
      %v5510 = vsel %vm306, %v5445, 0
      %v5513 = vsel %vm306, %v5446, 0
      %v5516 = vsel %vm306, %v5447, 0
      %v5519 = vsel %vm306, %v5448, 0
      %v5522 = vsel %vm306, %v5449, 0
      %v5525 = vsel %vm306, %v5450, 0
      %v5528 = vsel %vm306, %v5451, 0
      %v5531 = vsel %vm306, %v5452, 0
      %v5534 = vsel %vm306, %v5453, 0
      %v5537 = vsel %vm306, %v5454, 0
      %v5540 = vsel %vm306, %v5455, 0
      %v5543 = vsel %vm306, %v5456, 0
      %v5546 = vsel %vm306, %v5457, 0
      %v5549 = vsel %vm306, %v5458, 0
      %v5552 = vsel %vm306, %v5459, 0
      %v5555 = vsel %vm306, %v5460, 0
      %v5558 = vsel %vm306, %v5461, 0
      %5560 = vmatprep.subr.mxu0 0.0
      %5561 = vmatpush1.msra.mxu0 %v5463
      %5562 = vmatprep.subr.mxu0 0.0
      %5563 = vmatpush1.msra.mxu0 0.0
      %5564 = vmatprep.subr.mxu0 0.0
      %5565 = vmatpush1.msra.mxu0 0.0
      %5566 = vmatprep.subr.mxu0 0.0
      %5567 = vmatpush1.msra.mxu0 0.0
      %5568 = vmatprep.subr.mxu0 0.0
      %5569 = vmatpush1.msra.mxu0 0.0
      %5570 = vmatprep.subr.mxu0 0.0
      %5571 = vmatpush1.msra.mxu0 0.0
      %5572 = vmatprep.subr.mxu0 0.0
      %5573 = vmatpush1.msra.mxu0 0.0
      %5574 = vmatprep.subr.mxu0 0.0
      %5575 = vmatpush1.msra.mxu0 0.0
      %5576 = vmatprep.subr.mxu0 0.0
      %5577 = vmatpush1.msra.mxu0 0.0
      %5578 = vmatprep.subr.mxu0 0.0
      %5579 = vmatpush1.msra.mxu0 0.0
      %5580 = vmatprep.subr.mxu0 0.0
      %5581 = vmatpush1.msra.mxu0 0.0
      %5582 = vmatprep.subr.mxu0 0.0
      %5583 = vmatpush1.msra.mxu0 0.0
      %5584 = vmatprep.subr.mxu0 0.0
      %5585 = vmatpush1.msra.mxu0 0.0
      %5586 = vmatprep.subr.mxu0 0.0
      %5587 = vmatpush1.msra.mxu0 0.0
      %5588 = vmatprep.subr.mxu0 0.0
      %5589 = vmatpush1.msra.mxu0 0.0
      %5590 = vmatprep.subr.mxu0 0.0
      %5591 = vmatpush1.msra.mxu0 0.0
      %5592 = vmatprep.subr.mxu0 0.0
      %5593 = vmatpush1.msra.mxu0 0.0
      %5594 = vmatprep.subr.mxu0 0.0
      %5595 = vmatpush1.msra.mxu0 0.0
      %5596 = vmatprep.subr.mxu0 0.0
      %5597 = vmatpush1.msra.mxu0 0.0
      %5598 = vmatprep.subr.mxu0 0.0
      %5599 = vmatpush1.msra.mxu0 0.0
      %5600 = vmatprep.subr.mxu0 0.0
      %5601 = vmatpush1.msra.mxu0 0.0
      %5602 = vmatprep.subr.mxu0 0.0
      %5603 = vmatpush1.msra.mxu0 0.0
      %5604 = vmatprep.subr.mxu0 0.0
      %5605 = vmatpush1.msra.mxu0 0.0
      %5606 = vmatprep.subr.mxu0 0.0
      %5607 = vmatpush1.msra.mxu0 0.0
      %5608 = vmatprep.subr.mxu0 0.0
      %5609 = vmatpush1.msra.mxu0 0.0
      %5610 = vmatprep.subr.mxu0 0.0
      %5611 = vmatpush1.msra.mxu0 0.0
      %5612 = vmatprep.subr.mxu0 0.0
      %5613 = vmatpush1.msra.mxu0 0.0
      %5614 = vmatprep.subr.mxu0 0.0
      %5615 = vmatpush1.msra.mxu0 0.0
      %5616 = vmatprep.subr.mxu0 0.0
      %5617 = vmatpush1.msra.mxu0 0.0
      %5618 = vmatprep.subr.mxu0 0.0
      %5619 = vmatpush1.msra.mxu0 0.0
      %5620 = vmatprep.subr.mxu0 0.0
      %5621 = vmatpush1.msra.mxu0 0.0
      %5622 = vmatprep.subr.mxu0 0.0
      %5623 = vmatpush1.msra.mxu0 0.0
      %5624 = vmatprep.mubr.f32.mxu0 0.0
      %5625 = vmatmul.mubr.f32.gmra.mrb[0].mxu0 %v5465
      %v5626 = vpop.f32.mrb[0].mxu0
      %v5627 = vadd.f32 0.0, %v5626
      %v5628 = vpop.f32.mrb[0].mxu0
      %5629 = vmatprep.mubr.f32.mxu0 0.0
      %5630 = vmatmul.mubr.f32.gmra.mrb[0].mxu0 %v5468
      %v5631 = vpop.f32.mrb[0].mxu0
      %v5632 = vadd.f32 0.0, %v5631
      %v5633 = vpop.f32.mrb[0].mxu0
      %5634 = vmatprep.mubr.f32.mxu0 0.0
      %5635 = vmatmul.mubr.f32.gmra.mrb[0].mxu0 %v5471
      %v5636 = vpop.f32.mrb[0].mxu0
      %v5637 = vadd.f32 0.0, %v5636
      %v5638 = vpop.f32.mrb[0].mxu0
      %5639 = vmatprep.mubr.f32.mxu0 0.0
      %5640 = vmatmul.mubr.f32.gmra.mrb[0].mxu0 %v5474
      %v5641 = vpop.f32.mrb[0].mxu0
      %v5642 = vadd.f32 0.0, %v5641
      %v5643 = vpop.f32.mrb[0].mxu0
      %5644 = vmatprep.mubr.f32.mxu0 0.0
      %5645 = vmatmul.mubr.f32.gmra.mrb[0].mxu0 %v5477
      %v5646 = vpop.f32.mrb[0].mxu0
      %v5647 = vadd.f32 0.0, %v5646
      %v5648 = vpop.f32.mrb[0].mxu0
      %5649 = vmatprep.mubr.f32.mxu0 0.0
      %5650 = vmatmul.mubr.f32.gmra.mrb[0].mxu0 %v5480
      %v5651 = vpop.f32.mrb[0].mxu0
      %v5652 = vadd.f32 0.0, %v5651
      %v5653 = vpop.f32.mrb[0].mxu0
      %5654 = vmatprep.mubr.f32.mxu0 0.0
      %5655 = vmatmul.mubr.f32.gmra.mrb[0].mxu0 %v5483
      %v5656 = vpop.f32.mrb[0].mxu0
      %v5657 = vadd.f32 0.0, %v5656
      %v5658 = vpop.f32.mrb[0].mxu0
      %5659 = vmatprep.mubr.f32.mxu0 0.0
      %5660 = vmatmul.mubr.f32.gmra.mrb[0].mxu0 %v5486
      %v5661 = vpop.f32.mrb[0].mxu0
      %v5662 = vadd.f32 0.0, %v5661
      %v5663 = vpop.f32.mrb[0].mxu0
      %5664 = vmatprep.mubr.f32.mxu0 0.0
      %5665 = vmatmul.mubr.f32.gmra.mrb[0].mxu0 %v5489
      %v5666 = vpop.f32.mrb[0].mxu0
      %v5667 = vadd.f32 0.0, %v5666
      %v5668 = vpop.f32.mrb[0].mxu0
      %5669 = vmatprep.mubr.f32.mxu0 0.0
      %5670 = vmatmul.mubr.f32.gmra.mrb[0].mxu0 %v5492
      %v5671 = vpop.f32.mrb[0].mxu0
      %v5672 = vadd.f32 0.0, %v5671
      %v5673 = vpop.f32.mrb[0].mxu0
      %5674 = vmatprep.mubr.f32.mxu0 0.0
      %5675 = vmatmul.mubr.f32.gmra.mrb[0].mxu0 %v5495
      %v5676 = vpop.f32.mrb[0].mxu0
      %v5677 = vadd.f32 0.0, %v5676
      %v5678 = vpop.f32.mrb[0].mxu0
      %5679 = vmatprep.mubr.f32.mxu0 0.0
      %5680 = vmatmul.mubr.f32.gmra.mrb[0].mxu0 %v5498
      %v5681 = vpop.f32.mrb[0].mxu0
      %v5682 = vadd.f32 0.0, %v5681
      %v5683 = vpop.f32.mrb[0].mxu0
      %5684 = vmatprep.mubr.f32.mxu0 0.0
      %5685 = vmatmul.mubr.f32.gmra.mrb[0].mxu0 %v5501
      %v5686 = vpop.f32.mrb[0].mxu0
      %v5687 = vadd.f32 0.0, %v5686
      %v5688 = vpop.f32.mrb[0].mxu0
      %5689 = vmatprep.mubr.f32.mxu0 0.0
      %5690 = vmatmul.mubr.f32.gmra.mrb[0].mxu0 %v5504
      %v5691 = vpop.f32.mrb[0].mxu0
      %v5692 = vadd.f32 0.0, %v5691
      %v5693 = vpop.f32.mrb[0].mxu0
      %5694 = vmatprep.mubr.f32.mxu0 0.0
      %5695 = vmatmul.mubr.f32.gmra.mrb[0].mxu0 %v5507
      %v5696 = vpop.f32.mrb[0].mxu0
      %v5697 = vadd.f32 0.0, %v5696
      %v5698 = vpop.f32.mrb[0].mxu0
      %5699 = vmatprep.mubr.f32.mxu0 0.0
      %5700 = vmatmul.mubr.f32.gmra.mrb[0].mxu0 %v5510
      %v5701 = vpop.f32.mrb[0].mxu0
      %v5702 = vadd.f32 0.0, %v5701
      %v5703 = vpop.f32.mrb[0].mxu0
      %5704 = vmatprep.mubr.f32.mxu0 0.0
      %5705 = vmatmul.mubr.f32.gmra.mrb[0].mxu0 %v5513
      %v5706 = vpop.f32.mrb[0].mxu0
      %v5707 = vadd.f32 0.0, %v5706
      %v5708 = vpop.f32.mrb[0].mxu0
      %5709 = vmatprep.mubr.f32.mxu0 0.0
      %5710 = vmatmul.mubr.f32.gmra.mrb[0].mxu0 %v5516
      %v5711 = vpop.f32.mrb[0].mxu0
      %v5712 = vadd.f32 0.0, %v5711
      %v5713 = vpop.f32.mrb[0].mxu0
      %5714 = vmatprep.mubr.f32.mxu0 0.0
      %5715 = vmatmul.mubr.f32.gmra.mrb[0].mxu0 %v5519
      %v5716 = vpop.f32.mrb[0].mxu0
      %v5717 = vadd.f32 0.0, %v5716
      %v5718 = vpop.f32.mrb[0].mxu0
      %5719 = vmatprep.mubr.f32.mxu0 0.0
      %5720 = vmatmul.mubr.f32.gmra.mrb[0].mxu0 %v5522
      %v5721 = vpop.f32.mrb[0].mxu0
      %v5722 = vadd.f32 0.0, %v5721
      %v5723 = vpop.f32.mrb[0].mxu0
      %5724 = vmatprep.mubr.f32.mxu0 0.0
      %5725 = vmatmul.mubr.f32.gmra.mrb[0].mxu0 %v5525
      %v5726 = vpop.f32.mrb[0].mxu0
      %v5727 = vadd.f32 0.0, %v5726
      %v5728 = vpop.f32.mrb[0].mxu0
      %5729 = vmatprep.mubr.f32.mxu0 0.0
      %5730 = vmatmul.mubr.f32.gmra.mrb[0].mxu0 %v5528
      %v5731 = vpop.f32.mrb[0].mxu0
      %v5732 = vadd.f32 0.0, %v5731
      %v5733 = vpop.f32.mrb[0].mxu0
      %5734 = vmatprep.mubr.f32.mxu0 0.0
      %5735 = vmatmul.mubr.f32.gmra.mrb[0].mxu0 %v5531
      %v5736 = vpop.f32.mrb[0].mxu0
      %v5737 = vadd.f32 0.0, %v5736
      %v5738 = vpop.f32.mrb[0].mxu0
      %5739 = vmatprep.mubr.f32.mxu0 0.0
      %5740 = vmatmul.mubr.f32.gmra.mrb[0].mxu0 %v5534
      %v5741 = vpop.f32.mrb[0].mxu0
      %v5742 = vadd.f32 0.0, %v5741
      %v5743 = vpop.f32.mrb[0].mxu0
      %5744 = vmatprep.mubr.f32.mxu0 0.0
      %5745 = vmatmul.mubr.f32.gmra.mrb[0].mxu0 %v5537
      %v5746 = vpop.f32.mrb[0].mxu0
      %v5747 = vadd.f32 0.0, %v5746
      %v5748 = vpop.f32.mrb[0].mxu0
      %5749 = vmatprep.mubr.f32.mxu0 0.0
      %5750 = vmatmul.mubr.f32.gmra.mrb[0].mxu0 %v5540
      %v5751 = vpop.f32.mrb[0].mxu0
      %v5752 = vadd.f32 0.0, %v5751
      %v5753 = vpop.f32.mrb[0].mxu0
      %5754 = vmatprep.mubr.f32.mxu0 0.0
      %5755 = vmatmul.mubr.f32.gmra.mrb[0].mxu0 %v5543
      %v5756 = vpop.f32.mrb[0].mxu0
      %v5757 = vadd.f32 0.0, %v5756
      %v5758 = vpop.f32.mrb[0].mxu0
      %5759 = vmatprep.mubr.f32.mxu0 0.0
      %5760 = vmatmul.mubr.f32.gmra.mrb[0].mxu0 %v5546
      %v5761 = vpop.f32.mrb[0].mxu0
      %v5762 = vadd.f32 0.0, %v5761
      %v5763 = vpop.f32.mrb[0].mxu0
      %5764 = vmatprep.mubr.f32.mxu0 0.0
      %5765 = vmatmul.mubr.f32.gmra.mrb[0].mxu0 %v5549
      %v5766 = vpop.f32.mrb[0].mxu0
      %v5767 = vadd.f32 0.0, %v5766
      %v5768 = vpop.f32.mrb[0].mxu0
      %5769 = vmatprep.mubr.f32.mxu0 0.0
      %5770 = vmatmul.mubr.f32.gmra.mrb[0].mxu0 %v5552
      %v5771 = vpop.f32.mrb[0].mxu0
      %v5772 = vadd.f32 0.0, %v5771
      %v5773 = vpop.f32.mrb[0].mxu0
      %5774 = vmatprep.mubr.f32.mxu0 0.0
      %5775 = vmatmul.mubr.f32.gmra.mrb[0].mxu0 %v5555
      %v5776 = vpop.f32.mrb[0].mxu0
      %v5777 = vadd.f32 0.0, %v5776
      %v5778 = vpop.f32.mrb[0].mxu0
      %5779 = vmatprep.mubr.f32.mxu0 0.0
      %5780 = vmatmul.mubr.f32.gmra.mrb[0].mxu0 %v5558
      %v5781 = vpop.f32.mrb[0].mxu0
      %v5782 = vadd.f32 0.0, %v5781
      %v5783 = vpop.f32.mrb[0].mxu0
      %5784 = vdwg.mxu0
      %v5785 = vadd.f32 %v5398, %v5627
      %v5786 = vadd.f32 %v5399, %v5632
      %v5787 = vadd.f32 %v5400, %v5637
      %v5788 = vadd.f32 %v5401, %v5642
      %v5789 = vadd.f32 %v5402, %v5647
      %v5790 = vadd.f32 %v5403, %v5652
      %v5791 = vadd.f32 %v5404, %v5657
      %v5792 = vadd.f32 %v5405, %v5662
      %v5793 = vadd.f32 %v5406, %v5667
      %v5794 = vadd.f32 %v5407, %v5672
      %v5795 = vadd.f32 %v5408, %v5677
      %v5796 = vadd.f32 %v5409, %v5682
      %v5797 = vadd.f32 %v5410, %v5687
      %v5798 = vadd.f32 %v5411, %v5692
      %v5799 = vadd.f32 %v5412, %v5697
      %v5800 = vadd.f32 %v5413, %v5702
      %v5801 = vadd.f32 %v5414, %v5707
      %v5802 = vadd.f32 %v5415, %v5712
      %v5803 = vadd.f32 %v5416, %v5717
      %v5804 = vadd.f32 %v5417, %v5722
      %v5805 = vadd.f32 %v5418, %v5727
      %v5806 = vadd.f32 %v5419, %v5732
      %v5807 = vadd.f32 %v5420, %v5737
      %v5808 = vadd.f32 %v5421, %v5742
      %v5809 = vadd.f32 %v5422, %v5747
      %v5810 = vadd.f32 %v5423, %v5752
      %v5811 = vadd.f32 %v5424, %v5757
      %v5812 = vadd.f32 %v5425, %v5762
      %v5813 = vadd.f32 %v5426, %v5767
      %v5814 = vadd.f32 %v5427, %v5772
      %v5815 = vadd.f32 %v5428, %v5777
      %v5816 = vadd.f32 %v5429, %v5782
      %s5817 = scalar_lea.vmem %s4, 16
      %v5818 = vld [vmem:[%s5817] sm:$0xff]
      %5819 = vmatprep.subr.mxu0 0.0
      %5820 = vmatpush1.msra.mxu0 %v5818
      %5821 = vmatprep.subr.mxu0 0.0
      %5822 = vmatpush1.msra.mxu0 0.0
      %5823 = vmatprep.subr.mxu0 0.0
      %5824 = vmatpush1.msra.mxu0 0.0
      %5825 = vmatprep.subr.mxu0 0.0
      %5826 = vmatpush1.msra.mxu0 0.0
      %5827 = vmatprep.subr.mxu0 0.0
      %5828 = vmatpush1.msra.mxu0 0.0
      %5829 = vmatprep.subr.mxu0 0.0
      %5830 = vmatpush1.msra.mxu0 0.0
      %5831 = vmatprep.subr.mxu0 0.0
      %5832 = vmatpush1.msra.mxu0 0.0
      %5833 = vmatprep.subr.mxu0 0.0
      %5834 = vmatpush1.msra.mxu0 0.0
      %5835 = vmatprep.subr.mxu0 0.0
      %5836 = vmatpush1.msra.mxu0 0.0
      %5837 = vmatprep.subr.mxu0 0.0
      %5838 = vmatpush1.msra.mxu0 0.0
      %5839 = vmatprep.subr.mxu0 0.0
      %5840 = vmatpush1.msra.mxu0 0.0
      %5841 = vmatprep.subr.mxu0 0.0
      %5842 = vmatpush1.msra.mxu0 0.0
      %5843 = vmatprep.subr.mxu0 0.0
      %5844 = vmatpush1.msra.mxu0 0.0
      %5845 = vmatprep.subr.mxu0 0.0
      %5846 = vmatpush1.msra.mxu0 0.0
      %5847 = vmatprep.subr.mxu0 0.0
      %5848 = vmatpush1.msra.mxu0 0.0
      %5849 = vmatprep.subr.mxu0 0.0
      %5850 = vmatpush1.msra.mxu0 0.0
      %5851 = vmatprep.subr.mxu0 0.0
      %5852 = vmatpush1.msra.mxu0 0.0
      %5853 = vmatprep.subr.mxu0 0.0
      %5854 = vmatpush1.msra.mxu0 0.0
      %5855 = vmatprep.subr.mxu0 0.0
      %5856 = vmatpush1.msra.mxu0 0.0
      %5857 = vmatprep.subr.mxu0 0.0
      %5858 = vmatpush1.msra.mxu0 0.0
      %5859 = vmatprep.subr.mxu0 0.0
      %5860 = vmatpush1.msra.mxu0 0.0
      %5861 = vmatprep.subr.mxu0 0.0
      %5862 = vmatpush1.msra.mxu0 0.0
      %5863 = vmatprep.subr.mxu0 0.0
      %5864 = vmatpush1.msra.mxu0 0.0
      %5865 = vmatprep.subr.mxu0 0.0
      %5866 = vmatpush1.msra.mxu0 0.0
      %5867 = vmatprep.subr.mxu0 0.0
      %5868 = vmatpush1.msra.mxu0 0.0
      %5869 = vmatprep.subr.mxu0 0.0
      %5870 = vmatpush1.msra.mxu0 0.0
      %5871 = vmatprep.subr.mxu0 0.0
      %5872 = vmatpush1.msra.mxu0 0.0
      %5873 = vmatprep.subr.mxu0 0.0
      %5874 = vmatpush1.msra.mxu0 0.0
      %5875 = vmatprep.subr.mxu0 0.0
      %5876 = vmatpush1.msra.mxu0 0.0
      %5877 = vmatprep.subr.mxu0 0.0
      %5878 = vmatpush1.msra.mxu0 0.0
      %5879 = vmatprep.subr.mxu0 0.0
      %5880 = vmatpush1.msra.mxu0 0.0
      %5881 = vmatprep.subr.mxu0 0.0
      %5882 = vmatpush1.msra.mxu0 0.0
      %5883 = vmatprep.mubr.f32.mxu0 0.0
      %5884 = vmatmul.mubr.f32.gmra.mrb[0].mxu0 %v5465
      %v5885 = vpop.f32.mrb[0].mxu0
      %v5886 = vadd.f32 0.0, %v5885
      %v5887 = vpop.f32.mrb[0].mxu0
      %5888 = vmatprep.mubr.f32.mxu0 0.0
      %5889 = vmatmul.mubr.f32.gmra.mrb[0].mxu0 %v5468
      %v5890 = vpop.f32.mrb[0].mxu0
      %v5891 = vadd.f32 0.0, %v5890
      %v5892 = vpop.f32.mrb[0].mxu0
      %5893 = vmatprep.mubr.f32.mxu0 0.0
      %5894 = vmatmul.mubr.f32.gmra.mrb[0].mxu0 %v5471
      %v5895 = vpop.f32.mrb[0].mxu0
      %v5896 = vadd.f32 0.0, %v5895
      %v5897 = vpop.f32.mrb[0].mxu0
      %5898 = vmatprep.mubr.f32.mxu0 0.0
      %5899 = vmatmul.mubr.f32.gmra.mrb[0].mxu0 %v5474
      %v5900 = vpop.f32.mrb[0].mxu0
      %v5901 = vadd.f32 0.0, %v5900
      %v5902 = vpop.f32.mrb[0].mxu0
      %5903 = vmatprep.mubr.f32.mxu0 0.0
      %5904 = vmatmul.mubr.f32.gmra.mrb[0].mxu0 %v5477
      %v5905 = vpop.f32.mrb[0].mxu0
      %v5906 = vadd.f32 0.0, %v5905
      %v5907 = vpop.f32.mrb[0].mxu0
      %5908 = vmatprep.mubr.f32.mxu0 0.0
      %5909 = vmatmul.mubr.f32.gmra.mrb[0].mxu0 %v5480
      %v5910 = vpop.f32.mrb[0].mxu0
      %v5911 = vadd.f32 0.0, %v5910
      %v5912 = vpop.f32.mrb[0].mxu0
      %5913 = vmatprep.mubr.f32.mxu0 0.0
      %5914 = vmatmul.mubr.f32.gmra.mrb[0].mxu0 %v5483
      %v5915 = vpop.f32.mrb[0].mxu0
      %v5916 = vadd.f32 0.0, %v5915
      %v5917 = vpop.f32.mrb[0].mxu0
      %5918 = vmatprep.mubr.f32.mxu0 0.0
      %5919 = vmatmul.mubr.f32.gmra.mrb[0].mxu0 %v5486
      %v5920 = vpop.f32.mrb[0].mxu0
      %v5921 = vadd.f32 0.0, %v5920
      %v5922 = vpop.f32.mrb[0].mxu0
      %5923 = vmatprep.mubr.f32.mxu0 0.0
      %5924 = vmatmul.mubr.f32.gmra.mrb[0].mxu0 %v5489
      %v5925 = vpop.f32.mrb[0].mxu0
      %v5926 = vadd.f32 0.0, %v5925
      %v5927 = vpop.f32.mrb[0].mxu0
      %5928 = vmatprep.mubr.f32.mxu0 0.0
      %5929 = vmatmul.mubr.f32.gmra.mrb[0].mxu0 %v5492
      %v5930 = vpop.f32.mrb[0].mxu0
      %v5931 = vadd.f32 0.0, %v5930
      %v5932 = vpop.f32.mrb[0].mxu0
      %5933 = vmatprep.mubr.f32.mxu0 0.0
      %5934 = vmatmul.mubr.f32.gmra.mrb[0].mxu0 %v5495
      %v5935 = vpop.f32.mrb[0].mxu0
      %v5936 = vadd.f32 0.0, %v5935
      %v5937 = vpop.f32.mrb[0].mxu0
      %5938 = vmatprep.mubr.f32.mxu0 0.0
      %5939 = vmatmul.mubr.f32.gmra.mrb[0].mxu0 %v5498
      %v5940 = vpop.f32.mrb[0].mxu0
      %v5941 = vadd.f32 0.0, %v5940
      %v5942 = vpop.f32.mrb[0].mxu0
      %5943 = vmatprep.mubr.f32.mxu0 0.0
      %5944 = vmatmul.mubr.f32.gmra.mrb[0].mxu0 %v5501
      %v5945 = vpop.f32.mrb[0].mxu0
      %v5946 = vadd.f32 0.0, %v5945
      %v5947 = vpop.f32.mrb[0].mxu0
      %5948 = vmatprep.mubr.f32.mxu0 0.0
      %5949 = vmatmul.mubr.f32.gmra.mrb[0].mxu0 %v5504
      %v5950 = vpop.f32.mrb[0].mxu0
      %v5951 = vadd.f32 0.0, %v5950
      %v5952 = vpop.f32.mrb[0].mxu0
      %5953 = vmatprep.mubr.f32.mxu0 0.0
      %5954 = vmatmul.mubr.f32.gmra.mrb[0].mxu0 %v5507
      %v5955 = vpop.f32.mrb[0].mxu0
      %v5956 = vadd.f32 0.0, %v5955
      %v5957 = vpop.f32.mrb[0].mxu0
      %5958 = vmatprep.mubr.f32.mxu0 0.0
      %5959 = vmatmul.mubr.f32.gmra.mrb[0].mxu0 %v5510
      %v5960 = vpop.f32.mrb[0].mxu0
      %v5961 = vadd.f32 0.0, %v5960
      %v5962 = vpop.f32.mrb[0].mxu0
      %5963 = vmatprep.mubr.f32.mxu0 0.0
      %5964 = vmatmul.mubr.f32.gmra.mrb[0].mxu0 %v5513
      %v5965 = vpop.f32.mrb[0].mxu0
      %v5966 = vadd.f32 0.0, %v5965
      %v5967 = vpop.f32.mrb[0].mxu0
      %5968 = vmatprep.mubr.f32.mxu0 0.0
      %5969 = vmatmul.mubr.f32.gmra.mrb[0].mxu0 %v5516
      %v5970 = vpop.f32.mrb[0].mxu0
      %v5971 = vadd.f32 0.0, %v5970
      %v5972 = vpop.f32.mrb[0].mxu0
      %5973 = vmatprep.mubr.f32.mxu0 0.0
      %5974 = vmatmul.mubr.f32.gmra.mrb[0].mxu0 %v5519
      %v5975 = vpop.f32.mrb[0].mxu0
      %v5976 = vadd.f32 0.0, %v5975
      %v5977 = vpop.f32.mrb[0].mxu0
      %5978 = vmatprep.mubr.f32.mxu0 0.0
      %5979 = vmatmul.mubr.f32.gmra.mrb[0].mxu0 %v5522
      %v5980 = vpop.f32.mrb[0].mxu0
      %v5981 = vadd.f32 0.0, %v5980
      %v5982 = vpop.f32.mrb[0].mxu0
      %5983 = vmatprep.mubr.f32.mxu0 0.0
      %5984 = vmatmul.mubr.f32.gmra.mrb[0].mxu0 %v5525
      %v5985 = vpop.f32.mrb[0].mxu0
      %v5986 = vadd.f32 0.0, %v5985
      %v5987 = vpop.f32.mrb[0].mxu0
      %5988 = vmatprep.mubr.f32.mxu0 0.0
      %5989 = vmatmul.mubr.f32.gmra.mrb[0].mxu0 %v5528
      %v5990 = vpop.f32.mrb[0].mxu0
      %v5991 = vadd.f32 0.0, %v5990
      %v5992 = vpop.f32.mrb[0].mxu0
      %5993 = vmatprep.mubr.f32.mxu0 0.0
      %5994 = vmatmul.mubr.f32.gmra.mrb[0].mxu0 %v5531
      %v5995 = vpop.f32.mrb[0].mxu0
      %v5996 = vadd.f32 0.0, %v5995
      %v5997 = vpop.f32.mrb[0].mxu0
      %5998 = vmatprep.mubr.f32.mxu0 0.0
      %5999 = vmatmul.mubr.f32.gmra.mrb[0].mxu0 %v5534
      %v6000 = vpop.f32.mrb[0].mxu0
      %v6001 = vadd.f32 0.0, %v6000
      %v6002 = vpop.f32.mrb[0].mxu0
      %6003 = vmatprep.mubr.f32.mxu0 0.0
      %6004 = vmatmul.mubr.f32.gmra.mrb[0].mxu0 %v5537
      %v6005 = vpop.f32.mrb[0].mxu0
      %v6006 = vadd.f32 0.0, %v6005
      %v6007 = vpop.f32.mrb[0].mxu0
      %6008 = vmatprep.mubr.f32.mxu0 0.0
      %6009 = vmatmul.mubr.f32.gmra.mrb[0].mxu0 %v5540
      %v6010 = vpop.f32.mrb[0].mxu0
      %v6011 = vadd.f32 0.0, %v6010
      %v6012 = vpop.f32.mrb[0].mxu0
      %6013 = vmatprep.mubr.f32.mxu0 0.0
      %6014 = vmatmul.mubr.f32.gmra.mrb[0].mxu0 %v5543
      %v6015 = vpop.f32.mrb[0].mxu0
      %v6016 = vadd.f32 0.0, %v6015
      %v6017 = vpop.f32.mrb[0].mxu0
      %6018 = vmatprep.mubr.f32.mxu0 0.0
      %6019 = vmatmul.mubr.f32.gmra.mrb[0].mxu0 %v5546
      %v6020 = vpop.f32.mrb[0].mxu0
      %v6021 = vadd.f32 0.0, %v6020
      %v6022 = vpop.f32.mrb[0].mxu0
      %6023 = vmatprep.mubr.f32.mxu0 0.0
      %6024 = vmatmul.mubr.f32.gmra.mrb[0].mxu0 %v5549
      %v6025 = vpop.f32.mrb[0].mxu0
      %v6026 = vadd.f32 0.0, %v6025
      %v6027 = vpop.f32.mrb[0].mxu0
      %6028 = vmatprep.mubr.f32.mxu0 0.0
      %6029 = vmatmul.mubr.f32.gmra.mrb[0].mxu0 %v5552
      %v6030 = vpop.f32.mrb[0].mxu0
      %v6031 = vadd.f32 0.0, %v6030
      %v6032 = vpop.f32.mrb[0].mxu0
      %6033 = vmatprep.mubr.f32.mxu0 0.0
      %6034 = vmatmul.mubr.f32.gmra.mrb[0].mxu0 %v5555
      %v6035 = vpop.f32.mrb[0].mxu0
      %v6036 = vadd.f32 0.0, %v6035
      %v6037 = vpop.f32.mrb[0].mxu0
      %6038 = vmatprep.mubr.f32.mxu0 0.0
      %6039 = vmatmul.mubr.f32.gmra.mrb[0].mxu0 %v5558
      %v6040 = vpop.f32.mrb[0].mxu0
      %v6041 = vadd.f32 0.0, %v6040
      %v6042 = vpop.f32.mrb[0].mxu0
      %6043 = vdwg.mxu0
      %v6044 = vadd.f32 %v5785, %v5886
      %v6045 = vadd.f32 %v5786, %v5891
      %v6046 = vadd.f32 %v5787, %v5896
      %v6047 = vadd.f32 %v5788, %v5901
      %v6048 = vadd.f32 %v5789, %v5906
      %v6049 = vadd.f32 %v5790, %v5911
      %v6050 = vadd.f32 %v5791, %v5916
      %v6051 = vadd.f32 %v5792, %v5921
      %v6052 = vadd.f32 %v5793, %v5926
      %v6053 = vadd.f32 %v5794, %v5931
      %v6054 = vadd.f32 %v5795, %v5936
      %v6055 = vadd.f32 %v5796, %v5941
      %v6056 = vadd.f32 %v5797, %v5946
      %v6057 = vadd.f32 %v5798, %v5951
      %v6058 = vadd.f32 %v5799, %v5956
      %v6059 = vadd.f32 %v5800, %v5961
      %v6060 = vadd.f32 %v5801, %v5966
      %v6061 = vadd.f32 %v5802, %v5971
      %v6062 = vadd.f32 %v5803, %v5976
      %v6063 = vadd.f32 %v5804, %v5981
      %v6064 = vadd.f32 %v5805, %v5986
      %v6065 = vadd.f32 %v5806, %v5991
      %v6066 = vadd.f32 %v5807, %v5996
      %v6067 = vadd.f32 %v5808, %v6001
      %v6068 = vadd.f32 %v5809, %v6006
      %v6069 = vadd.f32 %v5810, %v6011
      %v6070 = vadd.f32 %v5811, %v6016
      %v6071 = vadd.f32 %v5812, %v6021
      %v6072 = vadd.f32 %v5813, %v6026
      %v6073 = vadd.f32 %v5814, %v6031
      %v6074 = vadd.f32 %v5815, %v6036
      %v6075 = vadd.f32 %v5816, %v6041
      %v6076 = vld [vmem:[%s3914 + $0x3] sm:$0xff]
      %v6077 = vld [vmem:[%s3914 + $0xb] sm:$0xff]
      %v6078 = vld [vmem:[%s3914 + $0x1b] sm:$0xff]
      %v6079 = vld [vmem:[%s3914 + $0x23] sm:$0xff]
      %v6080 = vld [vmem:[%s3914 + $0x33] sm:$0xff]
      %v6081 = vld [vmem:[%s3914 + $0x3b] sm:$0xff]
      %v6082 = vld [vmem:[%s3914 + $0x4b] sm:$0xff]
      %v6083 = vld [vmem:[%s3914 + $0x53] sm:$0xff]
      %v6084 = vld [vmem:[%s3914 + $0x63] sm:$0xff]
      %v6085 = vld [vmem:[%s3914 + $0x6b] sm:$0xff]
      %v6086 = vld [vmem:[%s3914 + $0x7b] sm:$0xff]
      %v6087 = vld [vmem:[%s3914 + $0x83] sm:$0xff]
      %v6088 = vld [vmem:[%s3914 + $0x93] sm:$0xff]
      %v6089 = vld [vmem:[%s3914 + $0x9b] sm:$0xff]
      %v6090 = vld [vmem:[%s3914 + $0xab] sm:$0xff]
      %v6091 = vld [vmem:[%s3914 + $0xb3] sm:$0xff]
      %v6092 = vld [vmem:[%s3914 + $0xc3] sm:$0xff]
      %v6093 = vld [vmem:[%s3914 + $0xcb] sm:$0xff]
      %v6094 = vld [vmem:[%s3914 + $0xdb] sm:$0xff]
      %v6095 = vld [vmem:[%s3914 + $0xe3] sm:$0xff]
      %v6096 = vld [vmem:[%s3914 + $0xf3] sm:$0xff]
      %v6097 = vld [vmem:[%s3914 + $0xfb] sm:$0xff]
      %v6098 = vld [vmem:[%s3914 + $0x10b] sm:$0xff]
      %v6099 = vld [vmem:[%s3914 + $0x113] sm:$0xff]
      %v6100 = vld [vmem:[%s3914 + $0x123] sm:$0xff]
      %v6101 = vld [vmem:[%s3914 + $0x12b] sm:$0xff]
      %v6102 = vld [vmem:[%s3914 + $0x13b] sm:$0xff]
      %v6103 = vld [vmem:[%s3914 + $0x143] sm:$0xff]
      %v6104 = vld [vmem:[%s3914 + $0x153] sm:$0xff]
      %v6105 = vld [vmem:[%s3914 + $0x15b] sm:$0xff]
      %v6106 = vld [vmem:[%s3914 + $0x16b] sm:$0xff]
      %v6107 = vld [vmem:[%s3914 + $0x173] sm:$0xff]
      %s6108 = scalar_lea.vmem %s3, 24
      %v6109 = vld [vmem:[%s6108] sm:$0xff]
      %v6111 = vsel %vm306, %v6076, 0
      %v6114 = vsel %vm306, %v6077, 0
      %v6117 = vsel %vm306, %v6078, 0
      %v6120 = vsel %vm306, %v6079, 0
      %v6123 = vsel %vm306, %v6080, 0
      %v6126 = vsel %vm306, %v6081, 0
      %v6129 = vsel %vm306, %v6082, 0
      %v6132 = vsel %vm306, %v6083, 0
      %v6135 = vsel %vm306, %v6084, 0
      %v6138 = vsel %vm306, %v6085, 0
      %v6141 = vsel %vm306, %v6086, 0
      %v6144 = vsel %vm306, %v6087, 0
      %v6147 = vsel %vm306, %v6088, 0
      %v6150 = vsel %vm306, %v6089, 0
      %v6153 = vsel %vm306, %v6090, 0
      %v6156 = vsel %vm306, %v6091, 0
      %v6159 = vsel %vm306, %v6092, 0
      %v6162 = vsel %vm306, %v6093, 0
      %v6165 = vsel %vm306, %v6094, 0
      %v6168 = vsel %vm306, %v6095, 0
      %v6171 = vsel %vm306, %v6096, 0
      %v6174 = vsel %vm306, %v6097, 0
      %v6177 = vsel %vm306, %v6098, 0
      %v6180 = vsel %vm306, %v6099, 0
      %v6183 = vsel %vm306, %v6100, 0
      %v6186 = vsel %vm306, %v6101, 0
      %v6189 = vsel %vm306, %v6102, 0
      %v6192 = vsel %vm306, %v6103, 0
      %v6195 = vsel %vm306, %v6104, 0
      %v6198 = vsel %vm306, %v6105, 0
      %v6201 = vsel %vm306, %v6106, 0
      %v6204 = vsel %vm306, %v6107, 0
      %6206 = vmatprep.subr.mxu0 0.0
      %6207 = vmatpush1.msra.mxu0 %v6109
      %6208 = vmatprep.subr.mxu0 0.0
      %6209 = vmatpush1.msra.mxu0 0.0
      %6210 = vmatprep.subr.mxu0 0.0
      %6211 = vmatpush1.msra.mxu0 0.0
      %6212 = vmatprep.subr.mxu0 0.0
      %6213 = vmatpush1.msra.mxu0 0.0
      %6214 = vmatprep.subr.mxu0 0.0
      %6215 = vmatpush1.msra.mxu0 0.0
      %6216 = vmatprep.subr.mxu0 0.0
      %6217 = vmatpush1.msra.mxu0 0.0
      %6218 = vmatprep.subr.mxu0 0.0
      %6219 = vmatpush1.msra.mxu0 0.0
      %6220 = vmatprep.subr.mxu0 0.0
      %6221 = vmatpush1.msra.mxu0 0.0
      %6222 = vmatprep.subr.mxu0 0.0
      %6223 = vmatpush1.msra.mxu0 0.0
      %6224 = vmatprep.subr.mxu0 0.0
      %6225 = vmatpush1.msra.mxu0 0.0
      %6226 = vmatprep.subr.mxu0 0.0
      %6227 = vmatpush1.msra.mxu0 0.0
      %6228 = vmatprep.subr.mxu0 0.0
      %6229 = vmatpush1.msra.mxu0 0.0
      %6230 = vmatprep.subr.mxu0 0.0
      %6231 = vmatpush1.msra.mxu0 0.0
      %6232 = vmatprep.subr.mxu0 0.0
      %6233 = vmatpush1.msra.mxu0 0.0
      %6234 = vmatprep.subr.mxu0 0.0
      %6235 = vmatpush1.msra.mxu0 0.0
      %6236 = vmatprep.subr.mxu0 0.0
      %6237 = vmatpush1.msra.mxu0 0.0
      %6238 = vmatprep.subr.mxu0 0.0
      %6239 = vmatpush1.msra.mxu0 0.0
      %6240 = vmatprep.subr.mxu0 0.0
      %6241 = vmatpush1.msra.mxu0 0.0
      %6242 = vmatprep.subr.mxu0 0.0
      %6243 = vmatpush1.msra.mxu0 0.0
      %6244 = vmatprep.subr.mxu0 0.0
      %6245 = vmatpush1.msra.mxu0 0.0
      %6246 = vmatprep.subr.mxu0 0.0
      %6247 = vmatpush1.msra.mxu0 0.0
      %6248 = vmatprep.subr.mxu0 0.0
      %6249 = vmatpush1.msra.mxu0 0.0
      %6250 = vmatprep.subr.mxu0 0.0
      %6251 = vmatpush1.msra.mxu0 0.0
      %6252 = vmatprep.subr.mxu0 0.0
      %6253 = vmatpush1.msra.mxu0 0.0
      %6254 = vmatprep.subr.mxu0 0.0
      %6255 = vmatpush1.msra.mxu0 0.0
      %6256 = vmatprep.subr.mxu0 0.0
      %6257 = vmatpush1.msra.mxu0 0.0
      %6258 = vmatprep.subr.mxu0 0.0
      %6259 = vmatpush1.msra.mxu0 0.0
      %6260 = vmatprep.subr.mxu0 0.0
      %6261 = vmatpush1.msra.mxu0 0.0
      %6262 = vmatprep.subr.mxu0 0.0
      %6263 = vmatpush1.msra.mxu0 0.0
      %6264 = vmatprep.subr.mxu0 0.0
      %6265 = vmatpush1.msra.mxu0 0.0
      %6266 = vmatprep.subr.mxu0 0.0
      %6267 = vmatpush1.msra.mxu0 0.0
      %6268 = vmatprep.subr.mxu0 0.0
      %6269 = vmatpush1.msra.mxu0 0.0
      %6270 = vmatprep.mubr.f32.mxu0 0.0
      %6271 = vmatmul.mubr.f32.gmra.mrb[0].mxu0 %v6111
      %v6272 = vpop.f32.mrb[0].mxu0
      %v6273 = vadd.f32 0.0, %v6272
      %v6274 = vpop.f32.mrb[0].mxu0
      %6275 = vmatprep.mubr.f32.mxu0 0.0
      %6276 = vmatmul.mubr.f32.gmra.mrb[0].mxu0 %v6114
      %v6277 = vpop.f32.mrb[0].mxu0
      %v6278 = vadd.f32 0.0, %v6277
      %v6279 = vpop.f32.mrb[0].mxu0
      %6280 = vmatprep.mubr.f32.mxu0 0.0
      %6281 = vmatmul.mubr.f32.gmra.mrb[0].mxu0 %v6117
      %v6282 = vpop.f32.mrb[0].mxu0
      %v6283 = vadd.f32 0.0, %v6282
      %v6284 = vpop.f32.mrb[0].mxu0
      %6285 = vmatprep.mubr.f32.mxu0 0.0
      %6286 = vmatmul.mubr.f32.gmra.mrb[0].mxu0 %v6120
      %v6287 = vpop.f32.mrb[0].mxu0
      %v6288 = vadd.f32 0.0, %v6287
      %v6289 = vpop.f32.mrb[0].mxu0
      %6290 = vmatprep.mubr.f32.mxu0 0.0
      %6291 = vmatmul.mubr.f32.gmra.mrb[0].mxu0 %v6123
      %v6292 = vpop.f32.mrb[0].mxu0
      %v6293 = vadd.f32 0.0, %v6292
      %v6294 = vpop.f32.mrb[0].mxu0
      %6295 = vmatprep.mubr.f32.mxu0 0.0
      %6296 = vmatmul.mubr.f32.gmra.mrb[0].mxu0 %v6126
      %v6297 = vpop.f32.mrb[0].mxu0
      %v6298 = vadd.f32 0.0, %v6297
      %v6299 = vpop.f32.mrb[0].mxu0
      %6300 = vmatprep.mubr.f32.mxu0 0.0
      %6301 = vmatmul.mubr.f32.gmra.mrb[0].mxu0 %v6129
      %v6302 = vpop.f32.mrb[0].mxu0
      %v6303 = vadd.f32 0.0, %v6302
      %v6304 = vpop.f32.mrb[0].mxu0
      %6305 = vmatprep.mubr.f32.mxu0 0.0
      %6306 = vmatmul.mubr.f32.gmra.mrb[0].mxu0 %v6132
      %v6307 = vpop.f32.mrb[0].mxu0
      %v6308 = vadd.f32 0.0, %v6307
      %v6309 = vpop.f32.mrb[0].mxu0
      %6310 = vmatprep.mubr.f32.mxu0 0.0
      %6311 = vmatmul.mubr.f32.gmra.mrb[0].mxu0 %v6135
      %v6312 = vpop.f32.mrb[0].mxu0
      %v6313 = vadd.f32 0.0, %v6312
      %v6314 = vpop.f32.mrb[0].mxu0
      %6315 = vmatprep.mubr.f32.mxu0 0.0
      %6316 = vmatmul.mubr.f32.gmra.mrb[0].mxu0 %v6138
      %v6317 = vpop.f32.mrb[0].mxu0
      %v6318 = vadd.f32 0.0, %v6317
      %v6319 = vpop.f32.mrb[0].mxu0
      %6320 = vmatprep.mubr.f32.mxu0 0.0
      %6321 = vmatmul.mubr.f32.gmra.mrb[0].mxu0 %v6141
      %v6322 = vpop.f32.mrb[0].mxu0
      %v6323 = vadd.f32 0.0, %v6322
      %v6324 = vpop.f32.mrb[0].mxu0
      %6325 = vmatprep.mubr.f32.mxu0 0.0
      %6326 = vmatmul.mubr.f32.gmra.mrb[0].mxu0 %v6144
      %v6327 = vpop.f32.mrb[0].mxu0
      %v6328 = vadd.f32 0.0, %v6327
      %v6329 = vpop.f32.mrb[0].mxu0
      %6330 = vmatprep.mubr.f32.mxu0 0.0
      %6331 = vmatmul.mubr.f32.gmra.mrb[0].mxu0 %v6147
      %v6332 = vpop.f32.mrb[0].mxu0
      %v6333 = vadd.f32 0.0, %v6332
      %v6334 = vpop.f32.mrb[0].mxu0
      %6335 = vmatprep.mubr.f32.mxu0 0.0
      %6336 = vmatmul.mubr.f32.gmra.mrb[0].mxu0 %v6150
      %v6337 = vpop.f32.mrb[0].mxu0
      %v6338 = vadd.f32 0.0, %v6337
      %v6339 = vpop.f32.mrb[0].mxu0
      %6340 = vmatprep.mubr.f32.mxu0 0.0
      %6341 = vmatmul.mubr.f32.gmra.mrb[0].mxu0 %v6153
      %v6342 = vpop.f32.mrb[0].mxu0
      %v6343 = vadd.f32 0.0, %v6342
      %v6344 = vpop.f32.mrb[0].mxu0
      %6345 = vmatprep.mubr.f32.mxu0 0.0
      %6346 = vmatmul.mubr.f32.gmra.mrb[0].mxu0 %v6156
      %v6347 = vpop.f32.mrb[0].mxu0
      %v6348 = vadd.f32 0.0, %v6347
      %v6349 = vpop.f32.mrb[0].mxu0
      %6350 = vmatprep.mubr.f32.mxu0 0.0
      %6351 = vmatmul.mubr.f32.gmra.mrb[0].mxu0 %v6159
      %v6352 = vpop.f32.mrb[0].mxu0
      %v6353 = vadd.f32 0.0, %v6352
      %v6354 = vpop.f32.mrb[0].mxu0
      %6355 = vmatprep.mubr.f32.mxu0 0.0
      %6356 = vmatmul.mubr.f32.gmra.mrb[0].mxu0 %v6162
      %v6357 = vpop.f32.mrb[0].mxu0
      %v6358 = vadd.f32 0.0, %v6357
      %v6359 = vpop.f32.mrb[0].mxu0
      %6360 = vmatprep.mubr.f32.mxu0 0.0
      %6361 = vmatmul.mubr.f32.gmra.mrb[0].mxu0 %v6165
      %v6362 = vpop.f32.mrb[0].mxu0
      %v6363 = vadd.f32 0.0, %v6362
      %v6364 = vpop.f32.mrb[0].mxu0
      %6365 = vmatprep.mubr.f32.mxu0 0.0
      %6366 = vmatmul.mubr.f32.gmra.mrb[0].mxu0 %v6168
      %v6367 = vpop.f32.mrb[0].mxu0
      %v6368 = vadd.f32 0.0, %v6367
      %v6369 = vpop.f32.mrb[0].mxu0
      %6370 = vmatprep.mubr.f32.mxu0 0.0
      %6371 = vmatmul.mubr.f32.gmra.mrb[0].mxu0 %v6171
      %v6372 = vpop.f32.mrb[0].mxu0
      %v6373 = vadd.f32 0.0, %v6372
      %v6374 = vpop.f32.mrb[0].mxu0
      %6375 = vmatprep.mubr.f32.mxu0 0.0
      %6376 = vmatmul.mubr.f32.gmra.mrb[0].mxu0 %v6174
      %v6377 = vpop.f32.mrb[0].mxu0
      %v6378 = vadd.f32 0.0, %v6377
      %v6379 = vpop.f32.mrb[0].mxu0
      %6380 = vmatprep.mubr.f32.mxu0 0.0
      %6381 = vmatmul.mubr.f32.gmra.mrb[0].mxu0 %v6177
      %v6382 = vpop.f32.mrb[0].mxu0
      %v6383 = vadd.f32 0.0, %v6382
      %v6384 = vpop.f32.mrb[0].mxu0
      %6385 = vmatprep.mubr.f32.mxu0 0.0
      %6386 = vmatmul.mubr.f32.gmra.mrb[0].mxu0 %v6180
      %v6387 = vpop.f32.mrb[0].mxu0
      %v6388 = vadd.f32 0.0, %v6387
      %v6389 = vpop.f32.mrb[0].mxu0
      %6390 = vmatprep.mubr.f32.mxu0 0.0
      %6391 = vmatmul.mubr.f32.gmra.mrb[0].mxu0 %v6183
      %v6392 = vpop.f32.mrb[0].mxu0
      %v6393 = vadd.f32 0.0, %v6392
      %v6394 = vpop.f32.mrb[0].mxu0
      %6395 = vmatprep.mubr.f32.mxu0 0.0
      %6396 = vmatmul.mubr.f32.gmra.mrb[0].mxu0 %v6186
      %v6397 = vpop.f32.mrb[0].mxu0
      %v6398 = vadd.f32 0.0, %v6397
      %v6399 = vpop.f32.mrb[0].mxu0
      %6400 = vmatprep.mubr.f32.mxu0 0.0
      %6401 = vmatmul.mubr.f32.gmra.mrb[0].mxu0 %v6189
      %v6402 = vpop.f32.mrb[0].mxu0
      %v6403 = vadd.f32 0.0, %v6402
      %v6404 = vpop.f32.mrb[0].mxu0
      %6405 = vmatprep.mubr.f32.mxu0 0.0
      %6406 = vmatmul.mubr.f32.gmra.mrb[0].mxu0 %v6192
      %v6407 = vpop.f32.mrb[0].mxu0
      %v6408 = vadd.f32 0.0, %v6407
      %v6409 = vpop.f32.mrb[0].mxu0
      %6410 = vmatprep.mubr.f32.mxu0 0.0
      %6411 = vmatmul.mubr.f32.gmra.mrb[0].mxu0 %v6195
      %v6412 = vpop.f32.mrb[0].mxu0
      %v6413 = vadd.f32 0.0, %v6412
      %v6414 = vpop.f32.mrb[0].mxu0
      %6415 = vmatprep.mubr.f32.mxu0 0.0
      %6416 = vmatmul.mubr.f32.gmra.mrb[0].mxu0 %v6198
      %v6417 = vpop.f32.mrb[0].mxu0
      %v6418 = vadd.f32 0.0, %v6417
      %v6419 = vpop.f32.mrb[0].mxu0
      %6420 = vmatprep.mubr.f32.mxu0 0.0
      %6421 = vmatmul.mubr.f32.gmra.mrb[0].mxu0 %v6201
      %v6422 = vpop.f32.mrb[0].mxu0
      %v6423 = vadd.f32 0.0, %v6422
      %v6424 = vpop.f32.mrb[0].mxu0
      %6425 = vmatprep.mubr.f32.mxu0 0.0
      %6426 = vmatmul.mubr.f32.gmra.mrb[0].mxu0 %v6204
      %v6427 = vpop.f32.mrb[0].mxu0
      %v6428 = vadd.f32 0.0, %v6427
      %v6429 = vpop.f32.mrb[0].mxu0
      %6430 = vdwg.mxu0
      %v6431 = vadd.f32 %v6044, %v6273
      %v6432 = vadd.f32 %v6045, %v6278
      %v6433 = vadd.f32 %v6046, %v6283
      %v6434 = vadd.f32 %v6047, %v6288
      %v6435 = vadd.f32 %v6048, %v6293
      %v6436 = vadd.f32 %v6049, %v6298
      %v6437 = vadd.f32 %v6050, %v6303
      %v6438 = vadd.f32 %v6051, %v6308
      %v6439 = vadd.f32 %v6052, %v6313
      %v6440 = vadd.f32 %v6053, %v6318
      %v6441 = vadd.f32 %v6054, %v6323
      %v6442 = vadd.f32 %v6055, %v6328
      %v6443 = vadd.f32 %v6056, %v6333
      %v6444 = vadd.f32 %v6057, %v6338
      %v6445 = vadd.f32 %v6058, %v6343
      %v6446 = vadd.f32 %v6059, %v6348
      %v6447 = vadd.f32 %v6060, %v6353
      %v6448 = vadd.f32 %v6061, %v6358
      %v6449 = vadd.f32 %v6062, %v6363
      %v6450 = vadd.f32 %v6063, %v6368
      %v6451 = vadd.f32 %v6064, %v6373
      %v6452 = vadd.f32 %v6065, %v6378
      %v6453 = vadd.f32 %v6066, %v6383
      %v6454 = vadd.f32 %v6067, %v6388
      %v6455 = vadd.f32 %v6068, %v6393
      %v6456 = vadd.f32 %v6069, %v6398
      %v6457 = vadd.f32 %v6070, %v6403
      %v6458 = vadd.f32 %v6071, %v6408
      %v6459 = vadd.f32 %v6072, %v6413
      %v6460 = vadd.f32 %v6073, %v6418
      %v6461 = vadd.f32 %v6074, %v6423
      %v6462 = vadd.f32 %v6075, %v6428
      %s6463 = scalar_lea.vmem [#allocation2], 72
      %v6464 = vld [vmem:[%s6463 + $0x2] sm:$0xff]
      %v6465 = vld [vmem:[%s6463 + $0xa] sm:$0xff]
      %v6466 = vld [vmem:[%s6463 + $0x1a] sm:$0xff]
      %v6467 = vld [vmem:[%s6463 + $0x22] sm:$0xff]
      %v6468 = vld [vmem:[%s6463 + $0x32] sm:$0xff]
      %v6469 = vld [vmem:[%s6463 + $0x3a] sm:$0xff]
      %v6470 = vld [vmem:[%s6463 + $0x4a] sm:$0xff]
      %v6471 = vld [vmem:[%s6463 + $0x52] sm:$0xff]
      %v6472 = vld [vmem:[%s6463 + $0x62] sm:$0xff]
      %v6473 = vld [vmem:[%s6463 + $0x6a] sm:$0xff]
      %v6474 = vld [vmem:[%s6463 + $0x7a] sm:$0xff]
      %v6475 = vld [vmem:[%s6463 + $0x82] sm:$0xff]
      %v6476 = vld [vmem:[%s6463 + $0x92] sm:$0xff]
      %v6477 = vld [vmem:[%s6463 + $0x9a] sm:$0xff]
      %v6478 = vld [vmem:[%s6463 + $0xaa] sm:$0xff]
      %v6479 = vld [vmem:[%s6463 + $0xb2] sm:$0xff]
      %v6480 = vld [vmem:[%s6463 + $0xc2] sm:$0xff]
      %v6481 = vld [vmem:[%s6463 + $0xca] sm:$0xff]
      %v6482 = vld [vmem:[%s6463 + $0xda] sm:$0xff]
      %v6483 = vld [vmem:[%s6463 + $0xe2] sm:$0xff]
      %v6484 = vld [vmem:[%s6463 + $0xf2] sm:$0xff]
      %v6485 = vld [vmem:[%s6463 + $0xfa] sm:$0xff]
      %v6486 = vld [vmem:[%s6463 + $0x10a] sm:$0xff]
      %v6487 = vld [vmem:[%s6463 + $0x112] sm:$0xff]
      %v6488 = vld [vmem:[%s6463 + $0x122] sm:$0xff]
      %v6489 = vld [vmem:[%s6463 + $0x12a] sm:$0xff]
      %v6490 = vld [vmem:[%s6463 + $0x13a] sm:$0xff]
      %v6491 = vld [vmem:[%s6463 + $0x142] sm:$0xff]
      %v6492 = vld [vmem:[%s6463 + $0x152] sm:$0xff]
      %v6493 = vld [vmem:[%s6463 + $0x15a] sm:$0xff]
      %v6494 = vld [vmem:[%s6463 + $0x16a] sm:$0xff]
      %v6495 = vld [vmem:[%s6463 + $0x172] sm:$0xff]
      %s6496 = scalar_lea.vmem %s4, 24
      %v6497 = vld [vmem:[%s6496] sm:$0xff]
      %v6499 = vsel %vm306, %v6464, 0
      %v6502 = vsel %vm306, %v6465, 0
      %v6505 = vsel %vm306, %v6466, 0
      %v6508 = vsel %vm306, %v6467, 0
      %v6511 = vsel %vm306, %v6468, 0
      %v6514 = vsel %vm306, %v6469, 0
      %v6517 = vsel %vm306, %v6470, 0
      %v6520 = vsel %vm306, %v6471, 0
      %v6523 = vsel %vm306, %v6472, 0
      %v6526 = vsel %vm306, %v6473, 0
      %v6529 = vsel %vm306, %v6474, 0
      %v6532 = vsel %vm306, %v6475, 0
      %v6535 = vsel %vm306, %v6476, 0
      %v6538 = vsel %vm306, %v6477, 0
      %v6541 = vsel %vm306, %v6478, 0
      %v6544 = vsel %vm306, %v6479, 0
      %v6547 = vsel %vm306, %v6480, 0
      %v6550 = vsel %vm306, %v6481, 0
      %v6553 = vsel %vm306, %v6482, 0
      %v6556 = vsel %vm306, %v6483, 0
      %v6559 = vsel %vm306, %v6484, 0
      %v6562 = vsel %vm306, %v6485, 0
      %v6565 = vsel %vm306, %v6486, 0
      %v6568 = vsel %vm306, %v6487, 0
      %v6571 = vsel %vm306, %v6488, 0
      %v6574 = vsel %vm306, %v6489, 0
      %v6577 = vsel %vm306, %v6490, 0
      %v6580 = vsel %vm306, %v6491, 0
      %v6583 = vsel %vm306, %v6492, 0
      %v6586 = vsel %vm306, %v6493, 0
      %v6589 = vsel %vm306, %v6494, 0
      %v6592 = vsel %vm306, %v6495, 0
      %6594 = vmatprep.subr.mxu0 0.0
      %6595 = vmatpush1.msra.mxu0 %v6497
      %6596 = vmatprep.subr.mxu0 0.0
      %6597 = vmatpush1.msra.mxu0 0.0
      %6598 = vmatprep.subr.mxu0 0.0
      %6599 = vmatpush1.msra.mxu0 0.0
      %6600 = vmatprep.subr.mxu0 0.0
      %6601 = vmatpush1.msra.mxu0 0.0
      %6602 = vmatprep.subr.mxu0 0.0
      %6603 = vmatpush1.msra.mxu0 0.0
      %6604 = vmatprep.subr.mxu0 0.0
      %6605 = vmatpush1.msra.mxu0 0.0
      %6606 = vmatprep.subr.mxu0 0.0
      %6607 = vmatpush1.msra.mxu0 0.0
      %6608 = vmatprep.subr.mxu0 0.0
      %6609 = vmatpush1.msra.mxu0 0.0
      %6610 = vmatprep.subr.mxu0 0.0
      %6611 = vmatpush1.msra.mxu0 0.0
      %6612 = vmatprep.subr.mxu0 0.0
      %6613 = vmatpush1.msra.mxu0 0.0
      %6614 = vmatprep.subr.mxu0 0.0
      %6615 = vmatpush1.msra.mxu0 0.0
      %6616 = vmatprep.subr.mxu0 0.0
      %6617 = vmatpush1.msra.mxu0 0.0
      %6618 = vmatprep.subr.mxu0 0.0
      %6619 = vmatpush1.msra.mxu0 0.0
      %6620 = vmatprep.subr.mxu0 0.0
      %6621 = vmatpush1.msra.mxu0 0.0
      %6622 = vmatprep.subr.mxu0 0.0
      %6623 = vmatpush1.msra.mxu0 0.0
      %6624 = vmatprep.subr.mxu0 0.0
      %6625 = vmatpush1.msra.mxu0 0.0
      %6626 = vmatprep.subr.mxu0 0.0
      %6627 = vmatpush1.msra.mxu0 0.0
      %6628 = vmatprep.subr.mxu0 0.0
      %6629 = vmatpush1.msra.mxu0 0.0
      %6630 = vmatprep.subr.mxu0 0.0
      %6631 = vmatpush1.msra.mxu0 0.0
      %6632 = vmatprep.subr.mxu0 0.0
      %6633 = vmatpush1.msra.mxu0 0.0
      %6634 = vmatprep.subr.mxu0 0.0
      %6635 = vmatpush1.msra.mxu0 0.0
      %6636 = vmatprep.subr.mxu0 0.0
      %6637 = vmatpush1.msra.mxu0 0.0
      %6638 = vmatprep.subr.mxu0 0.0
      %6639 = vmatpush1.msra.mxu0 0.0
      %6640 = vmatprep.subr.mxu0 0.0
      %6641 = vmatpush1.msra.mxu0 0.0
      %6642 = vmatprep.subr.mxu0 0.0
      %6643 = vmatpush1.msra.mxu0 0.0
      %6644 = vmatprep.subr.mxu0 0.0
      %6645 = vmatpush1.msra.mxu0 0.0
      %6646 = vmatprep.subr.mxu0 0.0
      %6647 = vmatpush1.msra.mxu0 0.0
      %6648 = vmatprep.subr.mxu0 0.0
      %6649 = vmatpush1.msra.mxu0 0.0
      %6650 = vmatprep.subr.mxu0 0.0
      %6651 = vmatpush1.msra.mxu0 0.0
      %6652 = vmatprep.subr.mxu0 0.0
      %6653 = vmatpush1.msra.mxu0 0.0
      %6654 = vmatprep.subr.mxu0 0.0
      %6655 = vmatpush1.msra.mxu0 0.0
      %6656 = vmatprep.subr.mxu0 0.0
      %6657 = vmatpush1.msra.mxu0 0.0
      %6658 = vmatprep.mubr.f32.mxu0 0.0
      %6659 = vmatmul.mubr.f32.gmra.mrb[0].mxu0 %v6499
      %v6660 = vpop.f32.mrb[0].mxu0
      %v6661 = vadd.f32 0.0, %v6660
      %v6662 = vpop.f32.mrb[0].mxu0
      %6663 = vmatprep.mubr.f32.mxu0 0.0
      %6664 = vmatmul.mubr.f32.gmra.mrb[0].mxu0 %v6502
      %v6665 = vpop.f32.mrb[0].mxu0
      %v6666 = vadd.f32 0.0, %v6665
      %v6667 = vpop.f32.mrb[0].mxu0
      %6668 = vmatprep.mubr.f32.mxu0 0.0
      %6669 = vmatmul.mubr.f32.gmra.mrb[0].mxu0 %v6505
      %v6670 = vpop.f32.mrb[0].mxu0
      %v6671 = vadd.f32 0.0, %v6670
      %v6672 = vpop.f32.mrb[0].mxu0
      %6673 = vmatprep.mubr.f32.mxu0 0.0
      %6674 = vmatmul.mubr.f32.gmra.mrb[0].mxu0 %v6508
      %v6675 = vpop.f32.mrb[0].mxu0
      %v6676 = vadd.f32 0.0, %v6675
      %v6677 = vpop.f32.mrb[0].mxu0
      %6678 = vmatprep.mubr.f32.mxu0 0.0
      %6679 = vmatmul.mubr.f32.gmra.mrb[0].mxu0 %v6511
      %v6680 = vpop.f32.mrb[0].mxu0
      %v6681 = vadd.f32 0.0, %v6680
      %v6682 = vpop.f32.mrb[0].mxu0
      %6683 = vmatprep.mubr.f32.mxu0 0.0
      %6684 = vmatmul.mubr.f32.gmra.mrb[0].mxu0 %v6514
      %v6685 = vpop.f32.mrb[0].mxu0
      %v6686 = vadd.f32 0.0, %v6685
      %v6687 = vpop.f32.mrb[0].mxu0
      %6688 = vmatprep.mubr.f32.mxu0 0.0
      %6689 = vmatmul.mubr.f32.gmra.mrb[0].mxu0 %v6517
      %v6690 = vpop.f32.mrb[0].mxu0
      %v6691 = vadd.f32 0.0, %v6690
      %v6692 = vpop.f32.mrb[0].mxu0
      %6693 = vmatprep.mubr.f32.mxu0 0.0
      %6694 = vmatmul.mubr.f32.gmra.mrb[0].mxu0 %v6520
      %v6695 = vpop.f32.mrb[0].mxu0
      %v6696 = vadd.f32 0.0, %v6695
      %v6697 = vpop.f32.mrb[0].mxu0
      %6698 = vmatprep.mubr.f32.mxu0 0.0
      %6699 = vmatmul.mubr.f32.gmra.mrb[0].mxu0 %v6523
      %v6700 = vpop.f32.mrb[0].mxu0
      %v6701 = vadd.f32 0.0, %v6700
      %v6702 = vpop.f32.mrb[0].mxu0
      %6703 = vmatprep.mubr.f32.mxu0 0.0
      %6704 = vmatmul.mubr.f32.gmra.mrb[0].mxu0 %v6526
      %v6705 = vpop.f32.mrb[0].mxu0
      %v6706 = vadd.f32 0.0, %v6705
      %v6707 = vpop.f32.mrb[0].mxu0
      %6708 = vmatprep.mubr.f32.mxu0 0.0
      %6709 = vmatmul.mubr.f32.gmra.mrb[0].mxu0 %v6529
      %v6710 = vpop.f32.mrb[0].mxu0
      %v6711 = vadd.f32 0.0, %v6710
      %v6712 = vpop.f32.mrb[0].mxu0
      %6713 = vmatprep.mubr.f32.mxu0 0.0
      %6714 = vmatmul.mubr.f32.gmra.mrb[0].mxu0 %v6532
      %v6715 = vpop.f32.mrb[0].mxu0
      %v6716 = vadd.f32 0.0, %v6715
      %v6717 = vpop.f32.mrb[0].mxu0
      %6718 = vmatprep.mubr.f32.mxu0 0.0
      %6719 = vmatmul.mubr.f32.gmra.mrb[0].mxu0 %v6535
      %v6720 = vpop.f32.mrb[0].mxu0
      %v6721 = vadd.f32 0.0, %v6720
      %v6722 = vpop.f32.mrb[0].mxu0
      %6723 = vmatprep.mubr.f32.mxu0 0.0
      %6724 = vmatmul.mubr.f32.gmra.mrb[0].mxu0 %v6538
      %v6725 = vpop.f32.mrb[0].mxu0
      %v6726 = vadd.f32 0.0, %v6725
      %v6727 = vpop.f32.mrb[0].mxu0
      %6728 = vmatprep.mubr.f32.mxu0 0.0
      %6729 = vmatmul.mubr.f32.gmra.mrb[0].mxu0 %v6541
      %v6730 = vpop.f32.mrb[0].mxu0
      %v6731 = vadd.f32 0.0, %v6730
      %v6732 = vpop.f32.mrb[0].mxu0
      %6733 = vmatprep.mubr.f32.mxu0 0.0
      %6734 = vmatmul.mubr.f32.gmra.mrb[0].mxu0 %v6544
      %v6735 = vpop.f32.mrb[0].mxu0
      %v6736 = vadd.f32 0.0, %v6735
      %v6737 = vpop.f32.mrb[0].mxu0
      %6738 = vmatprep.mubr.f32.mxu0 0.0
      %6739 = vmatmul.mubr.f32.gmra.mrb[0].mxu0 %v6547
      %v6740 = vpop.f32.mrb[0].mxu0
      %v6741 = vadd.f32 0.0, %v6740
      %v6742 = vpop.f32.mrb[0].mxu0
      %6743 = vmatprep.mubr.f32.mxu0 0.0
      %6744 = vmatmul.mubr.f32.gmra.mrb[0].mxu0 %v6550
      %v6745 = vpop.f32.mrb[0].mxu0
      %v6746 = vadd.f32 0.0, %v6745
      %v6747 = vpop.f32.mrb[0].mxu0
      %6748 = vmatprep.mubr.f32.mxu0 0.0
      %6749 = vmatmul.mubr.f32.gmra.mrb[0].mxu0 %v6553
      %v6750 = vpop.f32.mrb[0].mxu0
      %v6751 = vadd.f32 0.0, %v6750
      %v6752 = vpop.f32.mrb[0].mxu0
      %6753 = vmatprep.mubr.f32.mxu0 0.0
      %6754 = vmatmul.mubr.f32.gmra.mrb[0].mxu0 %v6556
      %v6755 = vpop.f32.mrb[0].mxu0
      %v6756 = vadd.f32 0.0, %v6755
      %v6757 = vpop.f32.mrb[0].mxu0
      %6758 = vmatprep.mubr.f32.mxu0 0.0
      %6759 = vmatmul.mubr.f32.gmra.mrb[0].mxu0 %v6559
      %v6760 = vpop.f32.mrb[0].mxu0
      %v6761 = vadd.f32 0.0, %v6760
      %v6762 = vpop.f32.mrb[0].mxu0
      %6763 = vmatprep.mubr.f32.mxu0 0.0
      %6764 = vmatmul.mubr.f32.gmra.mrb[0].mxu0 %v6562
      %v6765 = vpop.f32.mrb[0].mxu0
      %v6766 = vadd.f32 0.0, %v6765
      %v6767 = vpop.f32.mrb[0].mxu0
      %6768 = vmatprep.mubr.f32.mxu0 0.0
      %6769 = vmatmul.mubr.f32.gmra.mrb[0].mxu0 %v6565
      %v6770 = vpop.f32.mrb[0].mxu0
      %v6771 = vadd.f32 0.0, %v6770
      %v6772 = vpop.f32.mrb[0].mxu0
      %6773 = vmatprep.mubr.f32.mxu0 0.0
      %6774 = vmatmul.mubr.f32.gmra.mrb[0].mxu0 %v6568
      %v6775 = vpop.f32.mrb[0].mxu0
      %v6776 = vadd.f32 0.0, %v6775
      %v6777 = vpop.f32.mrb[0].mxu0
      %6778 = vmatprep.mubr.f32.mxu0 0.0
      %6779 = vmatmul.mubr.f32.gmra.mrb[0].mxu0 %v6571
      %v6780 = vpop.f32.mrb[0].mxu0
      %v6781 = vadd.f32 0.0, %v6780
      %v6782 = vpop.f32.mrb[0].mxu0
      %6783 = vmatprep.mubr.f32.mxu0 0.0
      %6784 = vmatmul.mubr.f32.gmra.mrb[0].mxu0 %v6574
      %v6785 = vpop.f32.mrb[0].mxu0
      %v6786 = vadd.f32 0.0, %v6785
      %v6787 = vpop.f32.mrb[0].mxu0
      %6788 = vmatprep.mubr.f32.mxu0 0.0
      %6789 = vmatmul.mubr.f32.gmra.mrb[0].mxu0 %v6577
      %v6790 = vpop.f32.mrb[0].mxu0
      %v6791 = vadd.f32 0.0, %v6790
      %v6792 = vpop.f32.mrb[0].mxu0
      %6793 = vmatprep.mubr.f32.mxu0 0.0
      %6794 = vmatmul.mubr.f32.gmra.mrb[0].mxu0 %v6580
      %v6795 = vpop.f32.mrb[0].mxu0
      %v6796 = vadd.f32 0.0, %v6795
      %v6797 = vpop.f32.mrb[0].mxu0
      %6798 = vmatprep.mubr.f32.mxu0 0.0
      %6799 = vmatmul.mubr.f32.gmra.mrb[0].mxu0 %v6583
      %v6800 = vpop.f32.mrb[0].mxu0
      %v6801 = vadd.f32 0.0, %v6800
      %v6802 = vpop.f32.mrb[0].mxu0
      %6803 = vmatprep.mubr.f32.mxu0 0.0
      %6804 = vmatmul.mubr.f32.gmra.mrb[0].mxu0 %v6586
      %v6805 = vpop.f32.mrb[0].mxu0
      %v6806 = vadd.f32 0.0, %v6805
      %v6807 = vpop.f32.mrb[0].mxu0
      %6808 = vmatprep.mubr.f32.mxu0 0.0
      %6809 = vmatmul.mubr.f32.gmra.mrb[0].mxu0 %v6589
      %v6810 = vpop.f32.mrb[0].mxu0
      %v6811 = vadd.f32 0.0, %v6810
      %v6812 = vpop.f32.mrb[0].mxu0
      %6813 = vmatprep.mubr.f32.mxu0 0.0
      %6814 = vmatmul.mubr.f32.gmra.mrb[0].mxu0 %v6592
      %v6815 = vpop.f32.mrb[0].mxu0
      %v6816 = vadd.f32 0.0, %v6815
      %v6817 = vpop.f32.mrb[0].mxu0
      %6818 = vdwg.mxu0
      %v6819 = vadd.f32 %v6431, %v6661
      %v6820 = vadd.f32 %v6432, %v6666
      %v6821 = vadd.f32 %v6433, %v6671
      %v6822 = vadd.f32 %v6434, %v6676
      %v6823 = vadd.f32 %v6435, %v6681
      %v6824 = vadd.f32 %v6436, %v6686
      %v6825 = vadd.f32 %v6437, %v6691
      %v6826 = vadd.f32 %v6438, %v6696
      %v6827 = vadd.f32 %v6439, %v6701
      %v6828 = vadd.f32 %v6440, %v6706
      %v6829 = vadd.f32 %v6441, %v6711
      %v6830 = vadd.f32 %v6442, %v6716
      %v6831 = vadd.f32 %v6443, %v6721
      %v6832 = vadd.f32 %v6444, %v6726
      %v6833 = vadd.f32 %v6445, %v6731
      %v6834 = vadd.f32 %v6446, %v6736
      %v6835 = vadd.f32 %v6447, %v6741
      %v6836 = vadd.f32 %v6448, %v6746
      %v6837 = vadd.f32 %v6449, %v6751
      %v6838 = vadd.f32 %v6450, %v6756
      %v6839 = vadd.f32 %v6451, %v6761
      %v6840 = vadd.f32 %v6452, %v6766
      %v6841 = vadd.f32 %v6453, %v6771
      %v6842 = vadd.f32 %v6454, %v6776
      %v6843 = vadd.f32 %v6455, %v6781
      %v6844 = vadd.f32 %v6456, %v6786
      %v6845 = vadd.f32 %v6457, %v6791
      %v6846 = vadd.f32 %v6458, %v6796
      %v6847 = vadd.f32 %v6459, %v6801
      %v6848 = vadd.f32 %v6460, %v6806
      %v6849 = vadd.f32 %v6461, %v6811
      %v6850 = vadd.f32 %v6462, %v6816
      %v6851 = vld [vmem:[%s3914 + $0x4] sm:$0xff]
      %v6852 = vld [vmem:[%s3914 + $0xc] sm:$0xff]
      %v6853 = vld [vmem:[%s3914 + $0x1c] sm:$0xff]
      %v6854 = vld [vmem:[%s3914 + $0x24] sm:$0xff]
      %v6855 = vld [vmem:[%s3914 + $0x34] sm:$0xff]
      %v6856 = vld [vmem:[%s3914 + $0x3c] sm:$0xff]
      %v6857 = vld [vmem:[%s3914 + $0x4c] sm:$0xff]
      %v6858 = vld [vmem:[%s3914 + $0x54] sm:$0xff]
      %v6859 = vld [vmem:[%s3914 + $0x64] sm:$0xff]
      %v6860 = vld [vmem:[%s3914 + $0x6c] sm:$0xff]
      %v6861 = vld [vmem:[%s3914 + $0x7c] sm:$0xff]
      %v6862 = vld [vmem:[%s3914 + $0x84] sm:$0xff]
      %v6863 = vld [vmem:[%s3914 + $0x94] sm:$0xff]
      %v6864 = vld [vmem:[%s3914 + $0x9c] sm:$0xff]
      %v6865 = vld [vmem:[%s3914 + $0xac] sm:$0xff]
      %v6866 = vld [vmem:[%s3914 + $0xb4] sm:$0xff]
      %v6867 = vld [vmem:[%s3914 + $0xc4] sm:$0xff]
      %v6868 = vld [vmem:[%s3914 + $0xcc] sm:$0xff]
      %v6869 = vld [vmem:[%s3914 + $0xdc] sm:$0xff]
      %v6870 = vld [vmem:[%s3914 + $0xe4] sm:$0xff]
      %v6871 = vld [vmem:[%s3914 + $0xf4] sm:$0xff]
      %v6872 = vld [vmem:[%s3914 + $0xfc] sm:$0xff]
      %v6873 = vld [vmem:[%s3914 + $0x10c] sm:$0xff]
      %v6874 = vld [vmem:[%s3914 + $0x114] sm:$0xff]
      %v6875 = vld [vmem:[%s3914 + $0x124] sm:$0xff]
      %v6876 = vld [vmem:[%s3914 + $0x12c] sm:$0xff]
      %v6877 = vld [vmem:[%s3914 + $0x13c] sm:$0xff]
      %v6878 = vld [vmem:[%s3914 + $0x144] sm:$0xff]
      %v6879 = vld [vmem:[%s3914 + $0x154] sm:$0xff]
      %v6880 = vld [vmem:[%s3914 + $0x15c] sm:$0xff]
      %v6881 = vld [vmem:[%s3914 + $0x16c] sm:$0xff]
      %v6882 = vld [vmem:[%s3914 + $0x174] sm:$0xff]
      %s6883 = scalar_lea.vmem %s3, 32
      %v6884 = vld [vmem:[%s6883] sm:$0xff]
      %v6886 = vsel %vm306, %v6851, 0
      %v6889 = vsel %vm306, %v6852, 0
      %v6892 = vsel %vm306, %v6853, 0
      %v6895 = vsel %vm306, %v6854, 0
      %v6898 = vsel %vm306, %v6855, 0
      %v6901 = vsel %vm306, %v6856, 0
      %v6904 = vsel %vm306, %v6857, 0
      %v6907 = vsel %vm306, %v6858, 0
      %v6910 = vsel %vm306, %v6859, 0
      %v6913 = vsel %vm306, %v6860, 0
      %v6916 = vsel %vm306, %v6861, 0
      %v6919 = vsel %vm306, %v6862, 0
      %v6922 = vsel %vm306, %v6863, 0
      %v6925 = vsel %vm306, %v6864, 0
      %v6928 = vsel %vm306, %v6865, 0
      %v6931 = vsel %vm306, %v6866, 0
      %v6934 = vsel %vm306, %v6867, 0
      %v6937 = vsel %vm306, %v6868, 0
      %v6940 = vsel %vm306, %v6869, 0
      %v6943 = vsel %vm306, %v6870, 0
      %v6946 = vsel %vm306, %v6871, 0
      %v6949 = vsel %vm306, %v6872, 0
      %v6952 = vsel %vm306, %v6873, 0
      %v6955 = vsel %vm306, %v6874, 0
      %v6958 = vsel %vm306, %v6875, 0
      %v6961 = vsel %vm306, %v6876, 0
      %v6964 = vsel %vm306, %v6877, 0
      %v6967 = vsel %vm306, %v6878, 0
      %v6970 = vsel %vm306, %v6879, 0
      %v6973 = vsel %vm306, %v6880, 0
      %v6976 = vsel %vm306, %v6881, 0
      %v6979 = vsel %vm306, %v6882, 0
      %6981 = vmatprep.subr.mxu0 0.0
      %6982 = vmatpush1.msra.mxu0 %v6884
      %6983 = vmatprep.subr.mxu0 0.0
      %6984 = vmatpush1.msra.mxu0 0.0
      %6985 = vmatprep.subr.mxu0 0.0
      %6986 = vmatpush1.msra.mxu0 0.0
      %6987 = vmatprep.subr.mxu0 0.0
      %6988 = vmatpush1.msra.mxu0 0.0
      %6989 = vmatprep.subr.mxu0 0.0
      %6990 = vmatpush1.msra.mxu0 0.0
      %6991 = vmatprep.subr.mxu0 0.0
      %6992 = vmatpush1.msra.mxu0 0.0
      %6993 = vmatprep.subr.mxu0 0.0
      %6994 = vmatpush1.msra.mxu0 0.0
      %6995 = vmatprep.subr.mxu0 0.0
      %6996 = vmatpush1.msra.mxu0 0.0
      %6997 = vmatprep.subr.mxu0 0.0
      %6998 = vmatpush1.msra.mxu0 0.0
      %6999 = vmatprep.subr.mxu0 0.0
      %7000 = vmatpush1.msra.mxu0 0.0
      %7001 = vmatprep.subr.mxu0 0.0
      %7002 = vmatpush1.msra.mxu0 0.0
      %7003 = vmatprep.subr.mxu0 0.0
      %7004 = vmatpush1.msra.mxu0 0.0
      %7005 = vmatprep.subr.mxu0 0.0
      %7006 = vmatpush1.msra.mxu0 0.0
      %7007 = vmatprep.subr.mxu0 0.0
      %7008 = vmatpush1.msra.mxu0 0.0
      %7009 = vmatprep.subr.mxu0 0.0
      %7010 = vmatpush1.msra.mxu0 0.0
      %7011 = vmatprep.subr.mxu0 0.0
      %7012 = vmatpush1.msra.mxu0 0.0
      %7013 = vmatprep.subr.mxu0 0.0
      %7014 = vmatpush1.msra.mxu0 0.0
      %7015 = vmatprep.subr.mxu0 0.0
      %7016 = vmatpush1.msra.mxu0 0.0
      %7017 = vmatprep.subr.mxu0 0.0
      %7018 = vmatpush1.msra.mxu0 0.0
      %7019 = vmatprep.subr.mxu0 0.0
      %7020 = vmatpush1.msra.mxu0 0.0
      %7021 = vmatprep.subr.mxu0 0.0
      %7022 = vmatpush1.msra.mxu0 0.0
      %7023 = vmatprep.subr.mxu0 0.0
      %7024 = vmatpush1.msra.mxu0 0.0
      %7025 = vmatprep.subr.mxu0 0.0
      %7026 = vmatpush1.msra.mxu0 0.0
      %7027 = vmatprep.subr.mxu0 0.0
      %7028 = vmatpush1.msra.mxu0 0.0
      %7029 = vmatprep.subr.mxu0 0.0
      %7030 = vmatpush1.msra.mxu0 0.0
      %7031 = vmatprep.subr.mxu0 0.0
      %7032 = vmatpush1.msra.mxu0 0.0
      %7033 = vmatprep.subr.mxu0 0.0
      %7034 = vmatpush1.msra.mxu0 0.0
      %7035 = vmatprep.subr.mxu0 0.0
      %7036 = vmatpush1.msra.mxu0 0.0
      %7037 = vmatprep.subr.mxu0 0.0
      %7038 = vmatpush1.msra.mxu0 0.0
      %7039 = vmatprep.subr.mxu0 0.0
      %7040 = vmatpush1.msra.mxu0 0.0
      %7041 = vmatprep.subr.mxu0 0.0
      %7042 = vmatpush1.msra.mxu0 0.0
      %7043 = vmatprep.subr.mxu0 0.0
      %7044 = vmatpush1.msra.mxu0 0.0
      %7045 = vmatprep.mubr.f32.mxu0 0.0
      %7046 = vmatmul.mubr.f32.gmra.mrb[0].mxu0 %v6886
      %v7047 = vpop.f32.mrb[0].mxu0
      %v7048 = vadd.f32 0.0, %v7047
      %v7049 = vpop.f32.mrb[0].mxu0
      %7050 = vmatprep.mubr.f32.mxu0 0.0
      %7051 = vmatmul.mubr.f32.gmra.mrb[0].mxu0 %v6889
      %v7052 = vpop.f32.mrb[0].mxu0
      %v7053 = vadd.f32 0.0, %v7052
      %v7054 = vpop.f32.mrb[0].mxu0
      %7055 = vmatprep.mubr.f32.mxu0 0.0
      %7056 = vmatmul.mubr.f32.gmra.mrb[0].mxu0 %v6892
      %v7057 = vpop.f32.mrb[0].mxu0
      %v7058 = vadd.f32 0.0, %v7057
      %v7059 = vpop.f32.mrb[0].mxu0
      %7060 = vmatprep.mubr.f32.mxu0 0.0
      %7061 = vmatmul.mubr.f32.gmra.mrb[0].mxu0 %v6895
      %v7062 = vpop.f32.mrb[0].mxu0
      %v7063 = vadd.f32 0.0, %v7062
      %v7064 = vpop.f32.mrb[0].mxu0
      %7065 = vmatprep.mubr.f32.mxu0 0.0
      %7066 = vmatmul.mubr.f32.gmra.mrb[0].mxu0 %v6898
      %v7067 = vpop.f32.mrb[0].mxu0
      %v7068 = vadd.f32 0.0, %v7067
      %v7069 = vpop.f32.mrb[0].mxu0
      %7070 = vmatprep.mubr.f32.mxu0 0.0
      %7071 = vmatmul.mubr.f32.gmra.mrb[0].mxu0 %v6901
      %v7072 = vpop.f32.mrb[0].mxu0
      %v7073 = vadd.f32 0.0, %v7072
      %v7074 = vpop.f32.mrb[0].mxu0
      %7075 = vmatprep.mubr.f32.mxu0 0.0
      %7076 = vmatmul.mubr.f32.gmra.mrb[0].mxu0 %v6904
      %v7077 = vpop.f32.mrb[0].mxu0
      %v7078 = vadd.f32 0.0, %v7077
      %v7079 = vpop.f32.mrb[0].mxu0
      %7080 = vmatprep.mubr.f32.mxu0 0.0
      %7081 = vmatmul.mubr.f32.gmra.mrb[0].mxu0 %v6907
      %v7082 = vpop.f32.mrb[0].mxu0
      %v7083 = vadd.f32 0.0, %v7082
      %v7084 = vpop.f32.mrb[0].mxu0
      %7085 = vmatprep.mubr.f32.mxu0 0.0
      %7086 = vmatmul.mubr.f32.gmra.mrb[0].mxu0 %v6910
      %v7087 = vpop.f32.mrb[0].mxu0
      %v7088 = vadd.f32 0.0, %v7087
      %v7089 = vpop.f32.mrb[0].mxu0
      %7090 = vmatprep.mubr.f32.mxu0 0.0
      %7091 = vmatmul.mubr.f32.gmra.mrb[0].mxu0 %v6913
      %v7092 = vpop.f32.mrb[0].mxu0
      %v7093 = vadd.f32 0.0, %v7092
      %v7094 = vpop.f32.mrb[0].mxu0
      %7095 = vmatprep.mubr.f32.mxu0 0.0
      %7096 = vmatmul.mubr.f32.gmra.mrb[0].mxu0 %v6916
      %v7097 = vpop.f32.mrb[0].mxu0
      %v7098 = vadd.f32 0.0, %v7097
      %v7099 = vpop.f32.mrb[0].mxu0
      %7100 = vmatprep.mubr.f32.mxu0 0.0
      %7101 = vmatmul.mubr.f32.gmra.mrb[0].mxu0 %v6919
      %v7102 = vpop.f32.mrb[0].mxu0
      %v7103 = vadd.f32 0.0, %v7102
      %v7104 = vpop.f32.mrb[0].mxu0
      %7105 = vmatprep.mubr.f32.mxu0 0.0
      %7106 = vmatmul.mubr.f32.gmra.mrb[0].mxu0 %v6922
      %v7107 = vpop.f32.mrb[0].mxu0
      %v7108 = vadd.f32 0.0, %v7107
      %v7109 = vpop.f32.mrb[0].mxu0
      %7110 = vmatprep.mubr.f32.mxu0 0.0
      %7111 = vmatmul.mubr.f32.gmra.mrb[0].mxu0 %v6925
      %v7112 = vpop.f32.mrb[0].mxu0
      %v7113 = vadd.f32 0.0, %v7112
      %v7114 = vpop.f32.mrb[0].mxu0
      %7115 = vmatprep.mubr.f32.mxu0 0.0
      %7116 = vmatmul.mubr.f32.gmra.mrb[0].mxu0 %v6928
      %v7117 = vpop.f32.mrb[0].mxu0
      %v7118 = vadd.f32 0.0, %v7117
      %v7119 = vpop.f32.mrb[0].mxu0
      %7120 = vmatprep.mubr.f32.mxu0 0.0
      %7121 = vmatmul.mubr.f32.gmra.mrb[0].mxu0 %v6931
      %v7122 = vpop.f32.mrb[0].mxu0
      %v7123 = vadd.f32 0.0, %v7122
      %v7124 = vpop.f32.mrb[0].mxu0
      %7125 = vmatprep.mubr.f32.mxu0 0.0
      %7126 = vmatmul.mubr.f32.gmra.mrb[0].mxu0 %v6934
      %v7127 = vpop.f32.mrb[0].mxu0
      %v7128 = vadd.f32 0.0, %v7127
      %v7129 = vpop.f32.mrb[0].mxu0
      %7130 = vmatprep.mubr.f32.mxu0 0.0
      %7131 = vmatmul.mubr.f32.gmra.mrb[0].mxu0 %v6937
      %v7132 = vpop.f32.mrb[0].mxu0
      %v7133 = vadd.f32 0.0, %v7132
      %v7134 = vpop.f32.mrb[0].mxu0
      %7135 = vmatprep.mubr.f32.mxu0 0.0
      %7136 = vmatmul.mubr.f32.gmra.mrb[0].mxu0 %v6940
      %v7137 = vpop.f32.mrb[0].mxu0
      %v7138 = vadd.f32 0.0, %v7137
      %v7139 = vpop.f32.mrb[0].mxu0
      %7140 = vmatprep.mubr.f32.mxu0 0.0
      %7141 = vmatmul.mubr.f32.gmra.mrb[0].mxu0 %v6943
      %v7142 = vpop.f32.mrb[0].mxu0
      %v7143 = vadd.f32 0.0, %v7142
      %v7144 = vpop.f32.mrb[0].mxu0
      %7145 = vmatprep.mubr.f32.mxu0 0.0
      %7146 = vmatmul.mubr.f32.gmra.mrb[0].mxu0 %v6946
      %v7147 = vpop.f32.mrb[0].mxu0
      %v7148 = vadd.f32 0.0, %v7147
      %v7149 = vpop.f32.mrb[0].mxu0
      %7150 = vmatprep.mubr.f32.mxu0 0.0
      %7151 = vmatmul.mubr.f32.gmra.mrb[0].mxu0 %v6949
      %v7152 = vpop.f32.mrb[0].mxu0
      %v7153 = vadd.f32 0.0, %v7152
      %v7154 = vpop.f32.mrb[0].mxu0
      %7155 = vmatprep.mubr.f32.mxu0 0.0
      %7156 = vmatmul.mubr.f32.gmra.mrb[0].mxu0 %v6952
      %v7157 = vpop.f32.mrb[0].mxu0
      %v7158 = vadd.f32 0.0, %v7157
      %v7159 = vpop.f32.mrb[0].mxu0
      %7160 = vmatprep.mubr.f32.mxu0 0.0
      %7161 = vmatmul.mubr.f32.gmra.mrb[0].mxu0 %v6955
      %v7162 = vpop.f32.mrb[0].mxu0
      %v7163 = vadd.f32 0.0, %v7162
      %v7164 = vpop.f32.mrb[0].mxu0
      %7165 = vmatprep.mubr.f32.mxu0 0.0
      %7166 = vmatmul.mubr.f32.gmra.mrb[0].mxu0 %v6958
      %v7167 = vpop.f32.mrb[0].mxu0
      %v7168 = vadd.f32 0.0, %v7167
      %v7169 = vpop.f32.mrb[0].mxu0
      %7170 = vmatprep.mubr.f32.mxu0 0.0
      %7171 = vmatmul.mubr.f32.gmra.mrb[0].mxu0 %v6961
      %v7172 = vpop.f32.mrb[0].mxu0
      %v7173 = vadd.f32 0.0, %v7172
      %v7174 = vpop.f32.mrb[0].mxu0
      %7175 = vmatprep.mubr.f32.mxu0 0.0
      %7176 = vmatmul.mubr.f32.gmra.mrb[0].mxu0 %v6964
      %v7177 = vpop.f32.mrb[0].mxu0
      %v7178 = vadd.f32 0.0, %v7177
      %v7179 = vpop.f32.mrb[0].mxu0
      %7180 = vmatprep.mubr.f32.mxu0 0.0
      %7181 = vmatmul.mubr.f32.gmra.mrb[0].mxu0 %v6967
      %v7182 = vpop.f32.mrb[0].mxu0
      %v7183 = vadd.f32 0.0, %v7182
      %v7184 = vpop.f32.mrb[0].mxu0
      %7185 = vmatprep.mubr.f32.mxu0 0.0
      %7186 = vmatmul.mubr.f32.gmra.mrb[0].mxu0 %v6970
      %v7187 = vpop.f32.mrb[0].mxu0
      %v7188 = vadd.f32 0.0, %v7187
      %v7189 = vpop.f32.mrb[0].mxu0
      %7190 = vmatprep.mubr.f32.mxu0 0.0
      %7191 = vmatmul.mubr.f32.gmra.mrb[0].mxu0 %v6973
      %v7192 = vpop.f32.mrb[0].mxu0
      %v7193 = vadd.f32 0.0, %v7192
      %v7194 = vpop.f32.mrb[0].mxu0
      %7195 = vmatprep.mubr.f32.mxu0 0.0
      %7196 = vmatmul.mubr.f32.gmra.mrb[0].mxu0 %v6976
      %v7197 = vpop.f32.mrb[0].mxu0
      %v7198 = vadd.f32 0.0, %v7197
      %v7199 = vpop.f32.mrb[0].mxu0
      %7200 = vmatprep.mubr.f32.mxu0 0.0
      %7201 = vmatmul.mubr.f32.gmra.mrb[0].mxu0 %v6979
      %v7202 = vpop.f32.mrb[0].mxu0
      %v7203 = vadd.f32 0.0, %v7202
      %v7204 = vpop.f32.mrb[0].mxu0
      %7205 = vdwg.mxu0
      %v7206 = vadd.f32 %v6819, %v7048
      %v7207 = vadd.f32 %v6820, %v7053
      %v7208 = vadd.f32 %v6821, %v7058
      %v7209 = vadd.f32 %v6822, %v7063
      %v7210 = vadd.f32 %v6823, %v7068
      %v7211 = vadd.f32 %v6824, %v7073
      %v7212 = vadd.f32 %v6825, %v7078
      %v7213 = vadd.f32 %v6826, %v7083
      %v7214 = vadd.f32 %v6827, %v7088
      %v7215 = vadd.f32 %v6828, %v7093
      %v7216 = vadd.f32 %v6829, %v7098
      %v7217 = vadd.f32 %v6830, %v7103
      %v7218 = vadd.f32 %v6831, %v7108
      %v7219 = vadd.f32 %v6832, %v7113
      %v7220 = vadd.f32 %v6833, %v7118
      %v7221 = vadd.f32 %v6834, %v7123
      %v7222 = vadd.f32 %v6835, %v7128
      %v7223 = vadd.f32 %v6836, %v7133
      %v7224 = vadd.f32 %v6837, %v7138
      %v7225 = vadd.f32 %v6838, %v7143
      %v7226 = vadd.f32 %v6839, %v7148
      %v7227 = vadd.f32 %v6840, %v7153
      %v7228 = vadd.f32 %v6841, %v7158
      %v7229 = vadd.f32 %v6842, %v7163
      %v7230 = vadd.f32 %v6843, %v7168
      %v7231 = vadd.f32 %v6844, %v7173
      %v7232 = vadd.f32 %v6845, %v7178
      %v7233 = vadd.f32 %v6846, %v7183
      %v7234 = vadd.f32 %v6847, %v7188
      %v7235 = vadd.f32 %v6848, %v7193
      %v7236 = vadd.f32 %v6849, %v7198
      %v7237 = vadd.f32 %v6850, %v7203
      %s7238 = scalar_lea.vmem [#allocation2], 96
      %v7239 = vld [vmem:[%s7238 + $0x2] sm:$0xff]
      %v7240 = vld [vmem:[%s7238 + $0xa] sm:$0xff]
      %v7241 = vld [vmem:[%s7238 + $0x1a] sm:$0xff]
      %v7242 = vld [vmem:[%s7238 + $0x22] sm:$0xff]
      %v7243 = vld [vmem:[%s7238 + $0x32] sm:$0xff]
      %v7244 = vld [vmem:[%s7238 + $0x3a] sm:$0xff]
      %v7245 = vld [vmem:[%s7238 + $0x4a] sm:$0xff]
      %v7246 = vld [vmem:[%s7238 + $0x52] sm:$0xff]
      %v7247 = vld [vmem:[%s7238 + $0x62] sm:$0xff]
      %v7248 = vld [vmem:[%s7238 + $0x6a] sm:$0xff]
      %v7249 = vld [vmem:[%s7238 + $0x7a] sm:$0xff]
      %v7250 = vld [vmem:[%s7238 + $0x82] sm:$0xff]
      %v7251 = vld [vmem:[%s7238 + $0x92] sm:$0xff]
      %v7252 = vld [vmem:[%s7238 + $0x9a] sm:$0xff]
      %v7253 = vld [vmem:[%s7238 + $0xaa] sm:$0xff]
      %v7254 = vld [vmem:[%s7238 + $0xb2] sm:$0xff]
      %v7255 = vld [vmem:[%s7238 + $0xc2] sm:$0xff]
      %v7256 = vld [vmem:[%s7238 + $0xca] sm:$0xff]
      %v7257 = vld [vmem:[%s7238 + $0xda] sm:$0xff]
      %v7258 = vld [vmem:[%s7238 + $0xe2] sm:$0xff]
      %v7259 = vld [vmem:[%s7238 + $0xf2] sm:$0xff]
      %v7260 = vld [vmem:[%s7238 + $0xfa] sm:$0xff]
      %v7261 = vld [vmem:[%s7238 + $0x10a] sm:$0xff]
      %v7262 = vld [vmem:[%s7238 + $0x112] sm:$0xff]
      %v7263 = vld [vmem:[%s7238 + $0x122] sm:$0xff]
      %v7264 = vld [vmem:[%s7238 + $0x12a] sm:$0xff]
      %v7265 = vld [vmem:[%s7238 + $0x13a] sm:$0xff]
      %v7266 = vld [vmem:[%s7238 + $0x142] sm:$0xff]
      %v7267 = vld [vmem:[%s7238 + $0x152] sm:$0xff]
      %v7268 = vld [vmem:[%s7238 + $0x15a] sm:$0xff]
      %v7269 = vld [vmem:[%s7238 + $0x16a] sm:$0xff]
      %v7270 = vld [vmem:[%s7238 + $0x172] sm:$0xff]
      %s7271 = scalar_lea.vmem %s4, 32
      %v7272 = vld [vmem:[%s7271] sm:$0xff]
      %v7274 = vsel %vm306, %v7239, 0
      %v7277 = vsel %vm306, %v7240, 0
      %v7280 = vsel %vm306, %v7241, 0
      %v7283 = vsel %vm306, %v7242, 0
      %v7286 = vsel %vm306, %v7243, 0
      %v7289 = vsel %vm306, %v7244, 0
      %v7292 = vsel %vm306, %v7245, 0
      %v7295 = vsel %vm306, %v7246, 0
      %v7298 = vsel %vm306, %v7247, 0
      %v7301 = vsel %vm306, %v7248, 0
      %v7304 = vsel %vm306, %v7249, 0
      %v7307 = vsel %vm306, %v7250, 0
      %v7310 = vsel %vm306, %v7251, 0
      %v7313 = vsel %vm306, %v7252, 0
      %v7316 = vsel %vm306, %v7253, 0
      %v7319 = vsel %vm306, %v7254, 0
      %v7322 = vsel %vm306, %v7255, 0
      %v7325 = vsel %vm306, %v7256, 0
      %v7328 = vsel %vm306, %v7257, 0
      %v7331 = vsel %vm306, %v7258, 0
      %v7334 = vsel %vm306, %v7259, 0
      %v7337 = vsel %vm306, %v7260, 0
      %v7340 = vsel %vm306, %v7261, 0
      %v7343 = vsel %vm306, %v7262, 0
      %v7346 = vsel %vm306, %v7263, 0
      %v7349 = vsel %vm306, %v7264, 0
      %v7352 = vsel %vm306, %v7265, 0
      %v7355 = vsel %vm306, %v7266, 0
      %v7358 = vsel %vm306, %v7267, 0
      %v7361 = vsel %vm306, %v7268, 0
      %v7364 = vsel %vm306, %v7269, 0
      %v7367 = vsel %vm306, %v7270, 0
      %7369 = vmatprep.subr.mxu0 0.0
      %7370 = vmatpush1.msra.mxu0 %v7272
      %7371 = vmatprep.subr.mxu0 0.0
      %7372 = vmatpush1.msra.mxu0 0.0
      %7373 = vmatprep.subr.mxu0 0.0
      %7374 = vmatpush1.msra.mxu0 0.0
      %7375 = vmatprep.subr.mxu0 0.0
      %7376 = vmatpush1.msra.mxu0 0.0
      %7377 = vmatprep.subr.mxu0 0.0
      %7378 = vmatpush1.msra.mxu0 0.0
      %7379 = vmatprep.subr.mxu0 0.0
      %7380 = vmatpush1.msra.mxu0 0.0
      %7381 = vmatprep.subr.mxu0 0.0
      %7382 = vmatpush1.msra.mxu0 0.0
      %7383 = vmatprep.subr.mxu0 0.0
      %7384 = vmatpush1.msra.mxu0 0.0
      %7385 = vmatprep.subr.mxu0 0.0
      %7386 = vmatpush1.msra.mxu0 0.0
      %7387 = vmatprep.subr.mxu0 0.0
      %7388 = vmatpush1.msra.mxu0 0.0
      %7389 = vmatprep.subr.mxu0 0.0
      %7390 = vmatpush1.msra.mxu0 0.0
      %7391 = vmatprep.subr.mxu0 0.0
      %7392 = vmatpush1.msra.mxu0 0.0
      %7393 = vmatprep.subr.mxu0 0.0
      %7394 = vmatpush1.msra.mxu0 0.0
      %7395 = vmatprep.subr.mxu0 0.0
      %7396 = vmatpush1.msra.mxu0 0.0
      %7397 = vmatprep.subr.mxu0 0.0
      %7398 = vmatpush1.msra.mxu0 0.0
      %7399 = vmatprep.subr.mxu0 0.0
      %7400 = vmatpush1.msra.mxu0 0.0
      %7401 = vmatprep.subr.mxu0 0.0
      %7402 = vmatpush1.msra.mxu0 0.0
      %7403 = vmatprep.subr.mxu0 0.0
      %7404 = vmatpush1.msra.mxu0 0.0
      %7405 = vmatprep.subr.mxu0 0.0
      %7406 = vmatpush1.msra.mxu0 0.0
      %7407 = vmatprep.subr.mxu0 0.0
      %7408 = vmatpush1.msra.mxu0 0.0
      %7409 = vmatprep.subr.mxu0 0.0
      %7410 = vmatpush1.msra.mxu0 0.0
      %7411 = vmatprep.subr.mxu0 0.0
      %7412 = vmatpush1.msra.mxu0 0.0
      %7413 = vmatprep.subr.mxu0 0.0
      %7414 = vmatpush1.msra.mxu0 0.0
      %7415 = vmatprep.subr.mxu0 0.0
      %7416 = vmatpush1.msra.mxu0 0.0
      %7417 = vmatprep.subr.mxu0 0.0
      %7418 = vmatpush1.msra.mxu0 0.0
      %7419 = vmatprep.subr.mxu0 0.0
      %7420 = vmatpush1.msra.mxu0 0.0
      %7421 = vmatprep.subr.mxu0 0.0
      %7422 = vmatpush1.msra.mxu0 0.0
      %7423 = vmatprep.subr.mxu0 0.0
      %7424 = vmatpush1.msra.mxu0 0.0
      %7425 = vmatprep.subr.mxu0 0.0
      %7426 = vmatpush1.msra.mxu0 0.0
      %7427 = vmatprep.subr.mxu0 0.0
      %7428 = vmatpush1.msra.mxu0 0.0
      %7429 = vmatprep.subr.mxu0 0.0
      %7430 = vmatpush1.msra.mxu0 0.0
      %7431 = vmatprep.subr.mxu0 0.0
      %7432 = vmatpush1.msra.mxu0 0.0
      %7433 = vmatprep.mubr.f32.mxu0 0.0
      %7434 = vmatmul.mubr.f32.gmra.mrb[0].mxu0 %v7274
      %v7435 = vpop.f32.mrb[0].mxu0
      %v7436 = vadd.f32 0.0, %v7435
      %v7437 = vpop.f32.mrb[0].mxu0
      %7438 = vmatprep.mubr.f32.mxu0 0.0
      %7439 = vmatmul.mubr.f32.gmra.mrb[0].mxu0 %v7277
      %v7440 = vpop.f32.mrb[0].mxu0
      %v7441 = vadd.f32 0.0, %v7440
      %v7442 = vpop.f32.mrb[0].mxu0
      %7443 = vmatprep.mubr.f32.mxu0 0.0
      %7444 = vmatmul.mubr.f32.gmra.mrb[0].mxu0 %v7280
      %v7445 = vpop.f32.mrb[0].mxu0
      %v7446 = vadd.f32 0.0, %v7445
      %v7447 = vpop.f32.mrb[0].mxu0
      %7448 = vmatprep.mubr.f32.mxu0 0.0
      %7449 = vmatmul.mubr.f32.gmra.mrb[0].mxu0 %v7283
      %v7450 = vpop.f32.mrb[0].mxu0
      %v7451 = vadd.f32 0.0, %v7450
      %v7452 = vpop.f32.mrb[0].mxu0
      %7453 = vmatprep.mubr.f32.mxu0 0.0
      %7454 = vmatmul.mubr.f32.gmra.mrb[0].mxu0 %v7286
      %v7455 = vpop.f32.mrb[0].mxu0
      %v7456 = vadd.f32 0.0, %v7455
      %v7457 = vpop.f32.mrb[0].mxu0
      %7458 = vmatprep.mubr.f32.mxu0 0.0
      %7459 = vmatmul.mubr.f32.gmra.mrb[0].mxu0 %v7289
      %v7460 = vpop.f32.mrb[0].mxu0
      %v7461 = vadd.f32 0.0, %v7460
      %v7462 = vpop.f32.mrb[0].mxu0
      %7463 = vmatprep.mubr.f32.mxu0 0.0
      %7464 = vmatmul.mubr.f32.gmra.mrb[0].mxu0 %v7292
      %v7465 = vpop.f32.mrb[0].mxu0
      %v7466 = vadd.f32 0.0, %v7465
      %v7467 = vpop.f32.mrb[0].mxu0
      %7468 = vmatprep.mubr.f32.mxu0 0.0
      %7469 = vmatmul.mubr.f32.gmra.mrb[0].mxu0 %v7295
      %v7470 = vpop.f32.mrb[0].mxu0
      %v7471 = vadd.f32 0.0, %v7470
      %v7472 = vpop.f32.mrb[0].mxu0
      %7473 = vmatprep.mubr.f32.mxu0 0.0
      %7474 = vmatmul.mubr.f32.gmra.mrb[0].mxu0 %v7298
      %v7475 = vpop.f32.mrb[0].mxu0
      %v7476 = vadd.f32 0.0, %v7475
      %v7477 = vpop.f32.mrb[0].mxu0
      %7478 = vmatprep.mubr.f32.mxu0 0.0
      %7479 = vmatmul.mubr.f32.gmra.mrb[0].mxu0 %v7301
      %v7480 = vpop.f32.mrb[0].mxu0
      %v7481 = vadd.f32 0.0, %v7480
      %v7482 = vpop.f32.mrb[0].mxu0
      %7483 = vmatprep.mubr.f32.mxu0 0.0
      %7484 = vmatmul.mubr.f32.gmra.mrb[0].mxu0 %v7304
      %v7485 = vpop.f32.mrb[0].mxu0
      %v7486 = vadd.f32 0.0, %v7485
      %v7487 = vpop.f32.mrb[0].mxu0
      %7488 = vmatprep.mubr.f32.mxu0 0.0
      %7489 = vmatmul.mubr.f32.gmra.mrb[0].mxu0 %v7307
      %v7490 = vpop.f32.mrb[0].mxu0
      %v7491 = vadd.f32 0.0, %v7490
      %v7492 = vpop.f32.mrb[0].mxu0
      %7493 = vmatprep.mubr.f32.mxu0 0.0
      %7494 = vmatmul.mubr.f32.gmra.mrb[0].mxu0 %v7310
      %v7495 = vpop.f32.mrb[0].mxu0
      %v7496 = vadd.f32 0.0, %v7495
      %v7497 = vpop.f32.mrb[0].mxu0
      %7498 = vmatprep.mubr.f32.mxu0 0.0
      %7499 = vmatmul.mubr.f32.gmra.mrb[0].mxu0 %v7313
      %v7500 = vpop.f32.mrb[0].mxu0
      %v7501 = vadd.f32 0.0, %v7500
      %v7502 = vpop.f32.mrb[0].mxu0
      %7503 = vmatprep.mubr.f32.mxu0 0.0
      %7504 = vmatmul.mubr.f32.gmra.mrb[0].mxu0 %v7316
      %v7505 = vpop.f32.mrb[0].mxu0
      %v7506 = vadd.f32 0.0, %v7505
      %v7507 = vpop.f32.mrb[0].mxu0
      %7508 = vmatprep.mubr.f32.mxu0 0.0
      %7509 = vmatmul.mubr.f32.gmra.mrb[0].mxu0 %v7319
      %v7510 = vpop.f32.mrb[0].mxu0
      %v7511 = vadd.f32 0.0, %v7510
      %v7512 = vpop.f32.mrb[0].mxu0
      %7513 = vmatprep.mubr.f32.mxu0 0.0
      %7514 = vmatmul.mubr.f32.gmra.mrb[0].mxu0 %v7322
      %v7515 = vpop.f32.mrb[0].mxu0
      %v7516 = vadd.f32 0.0, %v7515
      %v7517 = vpop.f32.mrb[0].mxu0
      %7518 = vmatprep.mubr.f32.mxu0 0.0
      %7519 = vmatmul.mubr.f32.gmra.mrb[0].mxu0 %v7325
      %v7520 = vpop.f32.mrb[0].mxu0
      %v7521 = vadd.f32 0.0, %v7520
      %v7522 = vpop.f32.mrb[0].mxu0
      %7523 = vmatprep.mubr.f32.mxu0 0.0
      %7524 = vmatmul.mubr.f32.gmra.mrb[0].mxu0 %v7328
      %v7525 = vpop.f32.mrb[0].mxu0
      %v7526 = vadd.f32 0.0, %v7525
      %v7527 = vpop.f32.mrb[0].mxu0
      %7528 = vmatprep.mubr.f32.mxu0 0.0
      %7529 = vmatmul.mubr.f32.gmra.mrb[0].mxu0 %v7331
      %v7530 = vpop.f32.mrb[0].mxu0
      %v7531 = vadd.f32 0.0, %v7530
      %v7532 = vpop.f32.mrb[0].mxu0
      %7533 = vmatprep.mubr.f32.mxu0 0.0
      %7534 = vmatmul.mubr.f32.gmra.mrb[0].mxu0 %v7334
      %v7535 = vpop.f32.mrb[0].mxu0
      %v7536 = vadd.f32 0.0, %v7535
      %v7537 = vpop.f32.mrb[0].mxu0
      %7538 = vmatprep.mubr.f32.mxu0 0.0
      %7539 = vmatmul.mubr.f32.gmra.mrb[0].mxu0 %v7337
      %v7540 = vpop.f32.mrb[0].mxu0
      %v7541 = vadd.f32 0.0, %v7540
      %v7542 = vpop.f32.mrb[0].mxu0
      %7543 = vmatprep.mubr.f32.mxu0 0.0
      %7544 = vmatmul.mubr.f32.gmra.mrb[0].mxu0 %v7340
      %v7545 = vpop.f32.mrb[0].mxu0
      %v7546 = vadd.f32 0.0, %v7545
      %v7547 = vpop.f32.mrb[0].mxu0
      %7548 = vmatprep.mubr.f32.mxu0 0.0
      %7549 = vmatmul.mubr.f32.gmra.mrb[0].mxu0 %v7343
      %v7550 = vpop.f32.mrb[0].mxu0
      %v7551 = vadd.f32 0.0, %v7550
      %v7552 = vpop.f32.mrb[0].mxu0
      %7553 = vmatprep.mubr.f32.mxu0 0.0
      %7554 = vmatmul.mubr.f32.gmra.mrb[0].mxu0 %v7346
      %v7555 = vpop.f32.mrb[0].mxu0
      %v7556 = vadd.f32 0.0, %v7555
      %v7557 = vpop.f32.mrb[0].mxu0
      %7558 = vmatprep.mubr.f32.mxu0 0.0
      %7559 = vmatmul.mubr.f32.gmra.mrb[0].mxu0 %v7349
      %v7560 = vpop.f32.mrb[0].mxu0
      %v7561 = vadd.f32 0.0, %v7560
      %v7562 = vpop.f32.mrb[0].mxu0
      %7563 = vmatprep.mubr.f32.mxu0 0.0
      %7564 = vmatmul.mubr.f32.gmra.mrb[0].mxu0 %v7352
      %v7565 = vpop.f32.mrb[0].mxu0
      %v7566 = vadd.f32 0.0, %v7565
      %v7567 = vpop.f32.mrb[0].mxu0
      %7568 = vmatprep.mubr.f32.mxu0 0.0
      %7569 = vmatmul.mubr.f32.gmra.mrb[0].mxu0 %v7355
      %v7570 = vpop.f32.mrb[0].mxu0
      %v7571 = vadd.f32 0.0, %v7570
      %v7572 = vpop.f32.mrb[0].mxu0
      %7573 = vmatprep.mubr.f32.mxu0 0.0
      %7574 = vmatmul.mubr.f32.gmra.mrb[0].mxu0 %v7358
      %v7575 = vpop.f32.mrb[0].mxu0
      %v7576 = vadd.f32 0.0, %v7575
      %v7577 = vpop.f32.mrb[0].mxu0
      %7578 = vmatprep.mubr.f32.mxu0 0.0
      %7579 = vmatmul.mubr.f32.gmra.mrb[0].mxu0 %v7361
      %v7580 = vpop.f32.mrb[0].mxu0
      %v7581 = vadd.f32 0.0, %v7580
      %v7582 = vpop.f32.mrb[0].mxu0
      %7583 = vmatprep.mubr.f32.mxu0 0.0
      %7584 = vmatmul.mubr.f32.gmra.mrb[0].mxu0 %v7364
      %v7585 = vpop.f32.mrb[0].mxu0
      %v7586 = vadd.f32 0.0, %v7585
      %v7587 = vpop.f32.mrb[0].mxu0
      %7588 = vmatprep.mubr.f32.mxu0 0.0
      %7589 = vmatmul.mubr.f32.gmra.mrb[0].mxu0 %v7367
      %v7590 = vpop.f32.mrb[0].mxu0
      %v7591 = vadd.f32 0.0, %v7590
      %v7592 = vpop.f32.mrb[0].mxu0
      %7593 = vdwg.mxu0
      %v7594 = vadd.f32 %v7206, %v7436
      %v7595 = vadd.f32 %v7207, %v7441
      %v7596 = vadd.f32 %v7208, %v7446
      %v7597 = vadd.f32 %v7209, %v7451
      %v7598 = vadd.f32 %v7210, %v7456
      %v7599 = vadd.f32 %v7211, %v7461
      %v7600 = vadd.f32 %v7212, %v7466
      %v7601 = vadd.f32 %v7213, %v7471
      %v7602 = vadd.f32 %v7214, %v7476
      %v7603 = vadd.f32 %v7215, %v7481
      %v7604 = vadd.f32 %v7216, %v7486
      %v7605 = vadd.f32 %v7217, %v7491
      %v7606 = vadd.f32 %v7218, %v7496
      %v7607 = vadd.f32 %v7219, %v7501
      %v7608 = vadd.f32 %v7220, %v7506
      %v7609 = vadd.f32 %v7221, %v7511
      %v7610 = vadd.f32 %v7222, %v7516
      %v7611 = vadd.f32 %v7223, %v7521
      %v7612 = vadd.f32 %v7224, %v7526
      %v7613 = vadd.f32 %v7225, %v7531
      %v7614 = vadd.f32 %v7226, %v7536
      %v7615 = vadd.f32 %v7227, %v7541
      %v7616 = vadd.f32 %v7228, %v7546
      %v7617 = vadd.f32 %v7229, %v7551
      %v7618 = vadd.f32 %v7230, %v7556
      %v7619 = vadd.f32 %v7231, %v7561
      %v7620 = vadd.f32 %v7232, %v7566
      %v7621 = vadd.f32 %v7233, %v7571
      %v7622 = vadd.f32 %v7234, %v7576
      %v7623 = vadd.f32 %v7235, %v7581
      %v7624 = vadd.f32 %v7236, %v7586
      %v7625 = vadd.f32 %v7237, %v7591
      %v7626 = vld [vmem:[%s5] sm:$0x1]
      %v7628 = vlaneseq
      %v7629 = vshrl.u32 %v7628, 7
      %v7630 = vsub.s32 0, %v7629
      %v7631 = vrot.slane %v7626, %v7630
      %v7633 = vadd.f32 %v7594, %v7631
      %v7634 = vadd.f32 %v7595, %v7631
      %v7635 = vadd.f32 %v7596, %v7631
      %v7636 = vadd.f32 %v7597, %v7631
      %v7637 = vadd.f32 %v7598, %v7631
      %v7638 = vadd.f32 %v7599, %v7631
      %v7639 = vadd.f32 %v7600, %v7631
      %v7640 = vadd.f32 %v7601, %v7631
      %v7641 = vadd.f32 %v7602, %v7631
      %v7642 = vadd.f32 %v7603, %v7631
      %v7643 = vadd.f32 %v7604, %v7631
      %v7644 = vadd.f32 %v7605, %v7631
      %v7645 = vadd.f32 %v7606, %v7631
      %v7646 = vadd.f32 %v7607, %v7631
      %v7647 = vadd.f32 %v7608, %v7631
      %v7648 = vadd.f32 %v7609, %v7631
      %v7649 = vadd.f32 %v7610, %v7631
      %v7650 = vadd.f32 %v7611, %v7631
      %v7651 = vadd.f32 %v7612, %v7631
      %v7652 = vadd.f32 %v7613, %v7631
      %v7653 = vadd.f32 %v7614, %v7631
      %v7654 = vadd.f32 %v7615, %v7631
      %v7655 = vadd.f32 %v7616, %v7631
      %v7656 = vadd.f32 %v7617, %v7631
      %v7657 = vadd.f32 %v7618, %v7631
      %v7658 = vadd.f32 %v7619, %v7631
      %v7659 = vadd.f32 %v7620, %v7631
      %v7660 = vadd.f32 %v7621, %v7631
      %v7661 = vadd.f32 %v7622, %v7631
      %v7662 = vadd.f32 %v7623, %v7631
      %v7663 = vadd.f32 %v7624, %v7631
      %v7664 = vadd.f32 %v7625, %v7631
      %v7665 = vmax.f32 %v7633, 0.0
      %v7666 = vmax.f32 %v7634, 0.0
      %v7667 = vmax.f32 %v7635, 0.0
      %v7668 = vmax.f32 %v7636, 0.0
      %v7669 = vmax.f32 %v7637, 0.0
      %v7670 = vmax.f32 %v7638, 0.0
      %v7671 = vmax.f32 %v7639, 0.0
      %v7672 = vmax.f32 %v7640, 0.0
      %v7673 = vmax.f32 %v7641, 0.0
      %v7674 = vmax.f32 %v7642, 0.0
      %v7675 = vmax.f32 %v7643, 0.0
      %v7676 = vmax.f32 %v7644, 0.0
      %v7677 = vmax.f32 %v7645, 0.0
      %v7678 = vmax.f32 %v7646, 0.0
      %v7679 = vmax.f32 %v7647, 0.0
      %v7680 = vmax.f32 %v7648, 0.0
      %v7681 = vmax.f32 %v7649, 0.0
      %v7682 = vmax.f32 %v7650, 0.0
      %v7683 = vmax.f32 %v7651, 0.0
      %v7684 = vmax.f32 %v7652, 0.0
      %v7685 = vmax.f32 %v7653, 0.0
      %v7686 = vmax.f32 %v7654, 0.0
      %v7687 = vmax.f32 %v7655, 0.0
      %v7688 = vmax.f32 %v7656, 0.0
      %v7689 = vmax.f32 %v7657, 0.0
      %v7690 = vmax.f32 %v7658, 0.0
      %v7691 = vmax.f32 %v7659, 0.0
      %v7692 = vmax.f32 %v7660, 0.0
      %v7693 = vmax.f32 %v7661, 0.0
      %v7694 = vmax.f32 %v7662, 0.0
      %v7695 = vmax.f32 %v7663, 0.0
      %v7696 = vmax.f32 %v7664, 0.0
      %s7697 = scalar_lea.vmem [#allocation3], 24
      %7698 = vst.msk [vmem:[%s7697 + $0x1] sm:$0xff] %vm306, %v7665
      %7699 = vst.msk [vmem:[%s7697 + $0x9] sm:$0xff] %vm306, %v7666
      %7700 = vst.msk [vmem:[%s7697 + $0x19] sm:$0xff] %vm306, %v7667
      %7701 = vst.msk [vmem:[%s7697 + $0x21] sm:$0xff] %vm306, %v7668
      %7702 = vst.msk [vmem:[%s7697 + $0x31] sm:$0xff] %vm306, %v7669
      %7703 = vst.msk [vmem:[%s7697 + $0x39] sm:$0xff] %vm306, %v7670
      %7704 = vst.msk [vmem:[%s7697 + $0x49] sm:$0xff] %vm306, %v7671
      %7705 = vst.msk [vmem:[%s7697 + $0x51] sm:$0xff] %vm306, %v7672
      %7706 = vst.msk [vmem:[%s7697 + $0x61] sm:$0xff] %vm306, %v7673
      %7707 = vst.msk [vmem:[%s7697 + $0x69] sm:$0xff] %vm306, %v7674
      %7708 = vst.msk [vmem:[%s7697 + $0x79] sm:$0xff] %vm306, %v7675
      %7709 = vst.msk [vmem:[%s7697 + $0x81] sm:$0xff] %vm306, %v7676
      %7710 = vst.msk [vmem:[%s7697 + $0x91] sm:$0xff] %vm306, %v7677
      %7711 = vst.msk [vmem:[%s7697 + $0x99] sm:$0xff] %vm306, %v7678
      %7712 = vst.msk [vmem:[%s7697 + $0xa9] sm:$0xff] %vm306, %v7679
      %7713 = vst.msk [vmem:[%s7697 + $0xb1] sm:$0xff] %vm306, %v7680
      %7714 = vst.msk [vmem:[%s7697 + $0xc1] sm:$0xff] %vm306, %v7681
      %7715 = vst.msk [vmem:[%s7697 + $0xc9] sm:$0xff] %vm306, %v7682
      %7716 = vst.msk [vmem:[%s7697 + $0xd9] sm:$0xff] %vm306, %v7683
      %7717 = vst.msk [vmem:[%s7697 + $0xe1] sm:$0xff] %vm306, %v7684
      %7718 = vst.msk [vmem:[%s7697 + $0xf1] sm:$0xff] %vm306, %v7685
      %7719 = vst.msk [vmem:[%s7697 + $0xf9] sm:$0xff] %vm306, %v7686
      %7720 = vst.msk [vmem:[%s7697 + $0x109] sm:$0xff] %vm306, %v7687
      %7721 = vst.msk [vmem:[%s7697 + $0x111] sm:$0xff] %vm306, %v7688
      %7722 = vst.msk [vmem:[%s7697 + $0x121] sm:$0xff] %vm306, %v7689
      %7723 = vst.msk [vmem:[%s7697 + $0x129] sm:$0xff] %vm306, %v7690
      %7724 = vst.msk [vmem:[%s7697 + $0x139] sm:$0xff] %vm306, %v7691
      %7725 = vst.msk [vmem:[%s7697 + $0x141] sm:$0xff] %vm306, %v7692
      %7726 = vst.msk [vmem:[%s7697 + $0x151] sm:$0xff] %vm306, %v7693
      %7727 = vst.msk [vmem:[%s7697 + $0x159] sm:$0xff] %vm306, %v7694
      %7728 = vst.msk [vmem:[%s7697 + $0x169] sm:$0xff] %vm306, %v7695
      %7729 = vst.msk [vmem:[%s7697 + $0x171] sm:$0xff] %vm306, %v7696
      %v7730 = vld [vmem:[#allocation3] sm:$0xff]
      %v7731 = vld [vmem:[#allocation3 + $0x8] sm:$0xff]
      %v7732 = vld [vmem:[#allocation3 + $0x18] sm:$0xff]
      %v7733 = vld [vmem:[#allocation3 + $0x20] sm:$0xff]
      %v7734 = vld [vmem:[#allocation3 + $0x30] sm:$0xff]
      %v7735 = vld [vmem:[#allocation3 + $0x38] sm:$0xff]
      %v7736 = vld [vmem:[#allocation3 + $0x48] sm:$0xff]
      %v7737 = vld [vmem:[#allocation3 + $0x50] sm:$0xff]
      %v7738 = vld [vmem:[#allocation3 + $0x60] sm:$0xff]
      %v7739 = vld [vmem:[#allocation3 + $0x68] sm:$0xff]
      %v7740 = vld [vmem:[#allocation3 + $0x78] sm:$0xff]
      %v7741 = vld [vmem:[#allocation3 + $0x80] sm:$0xff]
      %v7742 = vld [vmem:[#allocation3 + $0x90] sm:$0xff]
      %v7743 = vld [vmem:[#allocation3 + $0x98] sm:$0xff]
      %v7744 = vld [vmem:[#allocation3 + $0xa8] sm:$0xff]
      %v7745 = vld [vmem:[#allocation3 + $0xb0] sm:$0xff]
      %v7746 = vld [vmem:[#allocation3 + $0xc0] sm:$0xff]
      %v7747 = vld [vmem:[#allocation3 + $0xc8] sm:$0xff]
      %v7748 = vld [vmem:[#allocation3 + $0xd8] sm:$0xff]
      %v7749 = vld [vmem:[#allocation3 + $0xe0] sm:$0xff]
      %v7750 = vld [vmem:[#allocation3 + $0xf0] sm:$0xff]
      %v7751 = vld [vmem:[#allocation3 + $0xf8] sm:$0xff]
      %v7752 = vld [vmem:[#allocation3 + $0x108] sm:$0xff]
      %v7753 = vld [vmem:[#allocation3 + $0x110] sm:$0xff]
      %v7754 = vld [vmem:[#allocation3 + $0x120] sm:$0xff]
      %v7755 = vld [vmem:[#allocation3 + $0x128] sm:$0xff]
      %v7756 = vld [vmem:[#allocation3 + $0x138] sm:$0xff]
      %v7757 = vld [vmem:[#allocation3 + $0x140] sm:$0xff]
      %v7758 = vld [vmem:[#allocation3 + $0x150] sm:$0xff]
      %v7759 = vld [vmem:[#allocation3 + $0x158] sm:$0xff]
      %v7760 = vld [vmem:[#allocation3 + $0x168] sm:$0xff]
      %v7761 = vld [vmem:[#allocation3 + $0x170] sm:$0xff]
      %v7762 = vld [vmem:[%s6] sm:$0xff]
      %v7763 = vld [vmem:[#allocation3 + $0x1] sm:$0xff]
      %v7764 = vld [vmem:[#allocation3 + $0x9] sm:$0xff]
      %v7765 = vld [vmem:[#allocation3 + $0x19] sm:$0xff]
      %v7766 = vld [vmem:[#allocation3 + $0x21] sm:$0xff]
      %v7767 = vld [vmem:[#allocation3 + $0x31] sm:$0xff]
      %v7768 = vld [vmem:[#allocation3 + $0x39] sm:$0xff]
      %v7769 = vld [vmem:[#allocation3 + $0x49] sm:$0xff]
      %v7770 = vld [vmem:[#allocation3 + $0x51] sm:$0xff]
      %v7771 = vld [vmem:[#allocation3 + $0x61] sm:$0xff]
      %v7772 = vld [vmem:[#allocation3 + $0x69] sm:$0xff]
      %v7773 = vld [vmem:[#allocation3 + $0x79] sm:$0xff]
      %v7774 = vld [vmem:[#allocation3 + $0x81] sm:$0xff]
      %v7775 = vld [vmem:[#allocation3 + $0x91] sm:$0xff]
      %v7776 = vld [vmem:[#allocation3 + $0x99] sm:$0xff]
      %v7777 = vld [vmem:[#allocation3 + $0xa9] sm:$0xff]
      %v7778 = vld [vmem:[#allocation3 + $0xb1] sm:$0xff]
      %v7779 = vld [vmem:[#allocation3 + $0xc1] sm:$0xff]
      %v7780 = vld [vmem:[#allocation3 + $0xc9] sm:$0xff]
      %v7781 = vld [vmem:[#allocation3 + $0xd9] sm:$0xff]
      %v7782 = vld [vmem:[#allocation3 + $0xe1] sm:$0xff]
      %v7783 = vld [vmem:[#allocation3 + $0xf1] sm:$0xff]
      %v7784 = vld [vmem:[#allocation3 + $0xf9] sm:$0xff]
      %v7785 = vld [vmem:[#allocation3 + $0x109] sm:$0xff]
      %v7786 = vld [vmem:[#allocation3 + $0x111] sm:$0xff]
      %v7787 = vld [vmem:[#allocation3 + $0x121] sm:$0xff]
      %v7788 = vld [vmem:[#allocation3 + $0x129] sm:$0xff]
      %v7789 = vld [vmem:[#allocation3 + $0x139] sm:$0xff]
      %v7790 = vld [vmem:[#allocation3 + $0x141] sm:$0xff]
      %v7791 = vld [vmem:[#allocation3 + $0x151] sm:$0xff]
      %v7792 = vld [vmem:[#allocation3 + $0x159] sm:$0xff]
      %v7793 = vld [vmem:[#allocation3 + $0x169] sm:$0xff]
      %v7794 = vld [vmem:[#allocation3 + $0x171] sm:$0xff]
      %s7795 = scalar_lea.vmem %s6, 8
      %v7796 = vld [vmem:[%s7795] sm:$0xff]
      %v7798 = vsel %vm306, %v7763, 0
      %v7801 = vsel %vm306, %v7764, 0
      %v7804 = vsel %vm306, %v7765, 0
      %v7807 = vsel %vm306, %v7766, 0
      %v7810 = vsel %vm306, %v7767, 0
      %v7813 = vsel %vm306, %v7768, 0
      %v7816 = vsel %vm306, %v7769, 0
      %v7819 = vsel %vm306, %v7770, 0
      %v7822 = vsel %vm306, %v7771, 0
      %v7825 = vsel %vm306, %v7772, 0
      %v7828 = vsel %vm306, %v7773, 0
      %v7831 = vsel %vm306, %v7774, 0
      %v7834 = vsel %vm306, %v7775, 0
      %v7837 = vsel %vm306, %v7776, 0
      %v7840 = vsel %vm306, %v7777, 0
      %v7843 = vsel %vm306, %v7778, 0
      %v7846 = vsel %vm306, %v7779, 0
      %v7849 = vsel %vm306, %v7780, 0
      %v7852 = vsel %vm306, %v7781, 0
      %v7855 = vsel %vm306, %v7782, 0
      %v7858 = vsel %vm306, %v7783, 0
      %v7861 = vsel %vm306, %v7784, 0
      %v7864 = vsel %vm306, %v7785, 0
      %v7867 = vsel %vm306, %v7786, 0
      %v7870 = vsel %vm306, %v7787, 0
      %v7873 = vsel %vm306, %v7788, 0
      %v7876 = vsel %vm306, %v7789, 0
      %v7879 = vsel %vm306, %v7790, 0
      %v7882 = vsel %vm306, %v7791, 0
      %v7885 = vsel %vm306, %v7792, 0
      %v7888 = vsel %vm306, %v7793, 0
      %v7891 = vsel %vm306, %v7794, 0
      %7893 = vmatprep.subr.mxu0 0.0
      %7894 = vmatpush1.msra.mxu0 %v7796
      %7895 = vmatprep.subr.mxu0 0.0
      %7896 = vmatpush1.msra.mxu0 0.0
      %7897 = vmatprep.subr.mxu0 0.0
      %7898 = vmatpush1.msra.mxu0 0.0
      %7899 = vmatprep.subr.mxu0 0.0
      %7900 = vmatpush1.msra.mxu0 0.0
      %7901 = vmatprep.subr.mxu0 0.0
      %7902 = vmatpush1.msra.mxu0 0.0
      %7903 = vmatprep.subr.mxu0 0.0
      %7904 = vmatpush1.msra.mxu0 0.0
      %7905 = vmatprep.subr.mxu0 0.0
      %7906 = vmatpush1.msra.mxu0 0.0
      %7907 = vmatprep.subr.mxu0 0.0
      %7908 = vmatpush1.msra.mxu0 0.0
      %7909 = vmatprep.subr.mxu0 0.0
      %7910 = vmatpush1.msra.mxu0 0.0
      %7911 = vmatprep.subr.mxu0 0.0
      %7912 = vmatpush1.msra.mxu0 0.0
      %7913 = vmatprep.subr.mxu0 0.0
      %7914 = vmatpush1.msra.mxu0 0.0
      %7915 = vmatprep.subr.mxu0 0.0
      %7916 = vmatpush1.msra.mxu0 0.0
      %7917 = vmatprep.subr.mxu0 0.0
      %7918 = vmatpush1.msra.mxu0 0.0
      %7919 = vmatprep.subr.mxu0 0.0
      %7920 = vmatpush1.msra.mxu0 0.0
      %7921 = vmatprep.subr.mxu0 0.0
      %7922 = vmatpush1.msra.mxu0 0.0
      %7923 = vmatprep.subr.mxu0 0.0
      %7924 = vmatpush1.msra.mxu0 0.0
      %7925 = vmatprep.subr.mxu0 0.0
      %7926 = vmatpush1.msra.mxu0 0.0
      %7927 = vmatprep.subr.mxu0 0.0
      %7928 = vmatpush1.msra.mxu0 0.0
      %7929 = vmatprep.subr.mxu0 0.0
      %7930 = vmatpush1.msra.mxu0 0.0
      %7931 = vmatprep.subr.mxu0 0.0
      %7932 = vmatpush1.msra.mxu0 0.0
      %7933 = vmatprep.subr.mxu0 0.0
      %7934 = vmatpush1.msra.mxu0 0.0
      %7935 = vmatprep.subr.mxu0 0.0
      %7936 = vmatpush1.msra.mxu0 0.0
      %7937 = vmatprep.subr.mxu0 0.0
      %7938 = vmatpush1.msra.mxu0 0.0
      %7939 = vmatprep.subr.mxu0 0.0
      %7940 = vmatpush1.msra.mxu0 0.0
      %7941 = vmatprep.subr.mxu0 0.0
      %7942 = vmatpush1.msra.mxu0 0.0
      %7943 = vmatprep.subr.mxu0 0.0
      %7944 = vmatpush1.msra.mxu0 0.0
      %7945 = vmatprep.subr.mxu0 0.0
      %7946 = vmatpush1.msra.mxu0 0.0
      %7947 = vmatprep.subr.mxu0 0.0
      %7948 = vmatpush1.msra.mxu0 0.0
      %7949 = vmatprep.subr.mxu0 0.0
      %7950 = vmatpush1.msra.mxu0 0.0
      %7951 = vmatprep.subr.mxu0 0.0
      %7952 = vmatpush1.msra.mxu0 0.0
      %7953 = vmatprep.subr.mxu0 0.0
      %7954 = vmatpush1.msra.mxu0 0.0
      %7955 = vmatprep.subr.mxu0 0.0
      %7956 = vmatpush1.msra.mxu0 0.0
      %7957 = vmatprep.mubr.f32.mxu0 0.0
      %7958 = vmatmul.mubr.f32.gmra.mrb[0].mxu0 %v7798
      %v7959 = vpop.f32.mrb[0].mxu0
      %v7960 = vadd.f32 0.0, %v7959
      %v7961 = vpop.f32.mrb[0].mxu0
      %7962 = vmatprep.mubr.f32.mxu0 0.0
      %7963 = vmatmul.mubr.f32.gmra.mrb[0].mxu0 %v7801
      %v7964 = vpop.f32.mrb[0].mxu0
      %v7965 = vadd.f32 0.0, %v7964
      %v7966 = vpop.f32.mrb[0].mxu0
      %7967 = vmatprep.mubr.f32.mxu0 0.0
      %7968 = vmatmul.mubr.f32.gmra.mrb[0].mxu0 %v7804
      %v7969 = vpop.f32.mrb[0].mxu0
      %v7970 = vadd.f32 0.0, %v7969
      %v7971 = vpop.f32.mrb[0].mxu0
      %7972 = vmatprep.mubr.f32.mxu0 0.0
      %7973 = vmatmul.mubr.f32.gmra.mrb[0].mxu0 %v7807
      %v7974 = vpop.f32.mrb[0].mxu0
      %v7975 = vadd.f32 0.0, %v7974
      %v7976 = vpop.f32.mrb[0].mxu0
      %7977 = vmatprep.mubr.f32.mxu0 0.0
      %7978 = vmatmul.mubr.f32.gmra.mrb[0].mxu0 %v7810
      %v7979 = vpop.f32.mrb[0].mxu0
      %v7980 = vadd.f32 0.0, %v7979
      %v7981 = vpop.f32.mrb[0].mxu0
      %7982 = vmatprep.mubr.f32.mxu0 0.0
      %7983 = vmatmul.mubr.f32.gmra.mrb[0].mxu0 %v7813
      %v7984 = vpop.f32.mrb[0].mxu0
      %v7985 = vadd.f32 0.0, %v7984
      %v7986 = vpop.f32.mrb[0].mxu0
      %7987 = vmatprep.mubr.f32.mxu0 0.0
      %7988 = vmatmul.mubr.f32.gmra.mrb[0].mxu0 %v7816
      %v7989 = vpop.f32.mrb[0].mxu0
      %v7990 = vadd.f32 0.0, %v7989
      %v7991 = vpop.f32.mrb[0].mxu0
      %7992 = vmatprep.mubr.f32.mxu0 0.0
      %7993 = vmatmul.mubr.f32.gmra.mrb[0].mxu0 %v7819
      %v7994 = vpop.f32.mrb[0].mxu0
      %v7995 = vadd.f32 0.0, %v7994
      %v7996 = vpop.f32.mrb[0].mxu0
      %7997 = vmatprep.mubr.f32.mxu0 0.0
      %7998 = vmatmul.mubr.f32.gmra.mrb[0].mxu0 %v7822
      %v7999 = vpop.f32.mrb[0].mxu0
      %v8000 = vadd.f32 0.0, %v7999
      %v8001 = vpop.f32.mrb[0].mxu0
      %8002 = vmatprep.mubr.f32.mxu0 0.0
      %8003 = vmatmul.mubr.f32.gmra.mrb[0].mxu0 %v7825
      %v8004 = vpop.f32.mrb[0].mxu0
      %v8005 = vadd.f32 0.0, %v8004
      %v8006 = vpop.f32.mrb[0].mxu0
      %8007 = vmatprep.mubr.f32.mxu0 0.0
      %8008 = vmatmul.mubr.f32.gmra.mrb[0].mxu0 %v7828
      %v8009 = vpop.f32.mrb[0].mxu0
      %v8010 = vadd.f32 0.0, %v8009
      %v8011 = vpop.f32.mrb[0].mxu0
      %8012 = vmatprep.mubr.f32.mxu0 0.0
      %8013 = vmatmul.mubr.f32.gmra.mrb[0].mxu0 %v7831
      %v8014 = vpop.f32.mrb[0].mxu0
      %v8015 = vadd.f32 0.0, %v8014
      %v8016 = vpop.f32.mrb[0].mxu0
      %8017 = vmatprep.mubr.f32.mxu0 0.0
      %8018 = vmatmul.mubr.f32.gmra.mrb[0].mxu0 %v7834
      %v8019 = vpop.f32.mrb[0].mxu0
      %v8020 = vadd.f32 0.0, %v8019
      %v8021 = vpop.f32.mrb[0].mxu0
      %8022 = vmatprep.mubr.f32.mxu0 0.0
      %8023 = vmatmul.mubr.f32.gmra.mrb[0].mxu0 %v7837
      %v8024 = vpop.f32.mrb[0].mxu0
      %v8025 = vadd.f32 0.0, %v8024
      %v8026 = vpop.f32.mrb[0].mxu0
      %8027 = vmatprep.mubr.f32.mxu0 0.0
      %8028 = vmatmul.mubr.f32.gmra.mrb[0].mxu0 %v7840
      %v8029 = vpop.f32.mrb[0].mxu0
      %v8030 = vadd.f32 0.0, %v8029
      %v8031 = vpop.f32.mrb[0].mxu0
      %8032 = vmatprep.mubr.f32.mxu0 0.0
      %8033 = vmatmul.mubr.f32.gmra.mrb[0].mxu0 %v7843
      %v8034 = vpop.f32.mrb[0].mxu0
      %v8035 = vadd.f32 0.0, %v8034
      %v8036 = vpop.f32.mrb[0].mxu0
      %8037 = vmatprep.mubr.f32.mxu0 0.0
      %8038 = vmatmul.mubr.f32.gmra.mrb[0].mxu0 %v7846
      %v8039 = vpop.f32.mrb[0].mxu0
      %v8040 = vadd.f32 0.0, %v8039
      %v8041 = vpop.f32.mrb[0].mxu0
      %8042 = vmatprep.mubr.f32.mxu0 0.0
      %8043 = vmatmul.mubr.f32.gmra.mrb[0].mxu0 %v7849
      %v8044 = vpop.f32.mrb[0].mxu0
      %v8045 = vadd.f32 0.0, %v8044
      %v8046 = vpop.f32.mrb[0].mxu0
      %8047 = vmatprep.mubr.f32.mxu0 0.0
      %8048 = vmatmul.mubr.f32.gmra.mrb[0].mxu0 %v7852
      %v8049 = vpop.f32.mrb[0].mxu0
      %v8050 = vadd.f32 0.0, %v8049
      %v8051 = vpop.f32.mrb[0].mxu0
      %8052 = vmatprep.mubr.f32.mxu0 0.0
      %8053 = vmatmul.mubr.f32.gmra.mrb[0].mxu0 %v7855
      %v8054 = vpop.f32.mrb[0].mxu0
      %v8055 = vadd.f32 0.0, %v8054
      %v8056 = vpop.f32.mrb[0].mxu0
      %8057 = vmatprep.mubr.f32.mxu0 0.0
      %8058 = vmatmul.mubr.f32.gmra.mrb[0].mxu0 %v7858
      %v8059 = vpop.f32.mrb[0].mxu0
      %v8060 = vadd.f32 0.0, %v8059
      %v8061 = vpop.f32.mrb[0].mxu0
      %8062 = vmatprep.mubr.f32.mxu0 0.0
      %8063 = vmatmul.mubr.f32.gmra.mrb[0].mxu0 %v7861
      %v8064 = vpop.f32.mrb[0].mxu0
      %v8065 = vadd.f32 0.0, %v8064
      %v8066 = vpop.f32.mrb[0].mxu0
      %8067 = vmatprep.mubr.f32.mxu0 0.0
      %8068 = vmatmul.mubr.f32.gmra.mrb[0].mxu0 %v7864
      %v8069 = vpop.f32.mrb[0].mxu0
      %v8070 = vadd.f32 0.0, %v8069
      %v8071 = vpop.f32.mrb[0].mxu0
      %8072 = vmatprep.mubr.f32.mxu0 0.0
      %8073 = vmatmul.mubr.f32.gmra.mrb[0].mxu0 %v7867
      %v8074 = vpop.f32.mrb[0].mxu0
      %v8075 = vadd.f32 0.0, %v8074
      %v8076 = vpop.f32.mrb[0].mxu0
      %8077 = vmatprep.mubr.f32.mxu0 0.0
      %8078 = vmatmul.mubr.f32.gmra.mrb[0].mxu0 %v7870
      %v8079 = vpop.f32.mrb[0].mxu0
      %v8080 = vadd.f32 0.0, %v8079
      %v8081 = vpop.f32.mrb[0].mxu0
      %8082 = vmatprep.mubr.f32.mxu0 0.0
      %8083 = vmatmul.mubr.f32.gmra.mrb[0].mxu0 %v7873
      %v8084 = vpop.f32.mrb[0].mxu0
      %v8085 = vadd.f32 0.0, %v8084
      %v8086 = vpop.f32.mrb[0].mxu0
      %8087 = vmatprep.mubr.f32.mxu0 0.0
      %8088 = vmatmul.mubr.f32.gmra.mrb[0].mxu0 %v7876
      %v8089 = vpop.f32.mrb[0].mxu0
      %v8090 = vadd.f32 0.0, %v8089
      %v8091 = vpop.f32.mrb[0].mxu0
      %8092 = vmatprep.mubr.f32.mxu0 0.0
      %8093 = vmatmul.mubr.f32.gmra.mrb[0].mxu0 %v7879
      %v8094 = vpop.f32.mrb[0].mxu0
      %v8095 = vadd.f32 0.0, %v8094
      %v8096 = vpop.f32.mrb[0].mxu0
      %8097 = vmatprep.mubr.f32.mxu0 0.0
      %8098 = vmatmul.mubr.f32.gmra.mrb[0].mxu0 %v7882
      %v8099 = vpop.f32.mrb[0].mxu0
      %v8100 = vadd.f32 0.0, %v8099
      %v8101 = vpop.f32.mrb[0].mxu0
      %8102 = vmatprep.mubr.f32.mxu0 0.0
      %8103 = vmatmul.mubr.f32.gmra.mrb[0].mxu0 %v7885
      %v8104 = vpop.f32.mrb[0].mxu0
      %v8105 = vadd.f32 0.0, %v8104
      %v8106 = vpop.f32.mrb[0].mxu0
      %8107 = vmatprep.mubr.f32.mxu0 0.0
      %8108 = vmatmul.mubr.f32.gmra.mrb[0].mxu0 %v7888
      %v8109 = vpop.f32.mrb[0].mxu0
      %v8110 = vadd.f32 0.0, %v8109
      %v8111 = vpop.f32.mrb[0].mxu0
      %8112 = vmatprep.mubr.f32.mxu0 0.0
      %8113 = vmatmul.mubr.f32.gmra.mrb[0].mxu0 %v7891
      %v8114 = vpop.f32.mrb[0].mxu0
      %v8115 = vadd.f32 0.0, %v8114
      %v8116 = vpop.f32.mrb[0].mxu0
      %8117 = vdwg.mxu0
      %v8119 = vsel %vm306, %v7730, 0
      %v8122 = vsel %vm306, %v7731, 0
      %v8125 = vsel %vm306, %v7732, 0
      %v8128 = vsel %vm306, %v7733, 0
      %v8131 = vsel %vm306, %v7734, 0
      %v8134 = vsel %vm306, %v7735, 0
      %v8137 = vsel %vm306, %v7736, 0
      %v8140 = vsel %vm306, %v7737, 0
      %v8143 = vsel %vm306, %v7738, 0
      %v8146 = vsel %vm306, %v7739, 0
      %v8149 = vsel %vm306, %v7740, 0
      %v8152 = vsel %vm306, %v7741, 0
      %v8155 = vsel %vm306, %v7742, 0
      %v8158 = vsel %vm306, %v7743, 0
      %v8161 = vsel %vm306, %v7744, 0
      %v8164 = vsel %vm306, %v7745, 0
      %v8167 = vsel %vm306, %v7746, 0
      %v8170 = vsel %vm306, %v7747, 0
      %v8173 = vsel %vm306, %v7748, 0
      %v8176 = vsel %vm306, %v7749, 0
      %v8179 = vsel %vm306, %v7750, 0
      %v8182 = vsel %vm306, %v7751, 0
      %v8185 = vsel %vm306, %v7752, 0
      %v8188 = vsel %vm306, %v7753, 0
      %v8191 = vsel %vm306, %v7754, 0
      %v8194 = vsel %vm306, %v7755, 0
      %v8197 = vsel %vm306, %v7756, 0
      %v8200 = vsel %vm306, %v7757, 0
      %v8203 = vsel %vm306, %v7758, 0
      %v8206 = vsel %vm306, %v7759, 0
      %v8209 = vsel %vm306, %v7760, 0
      %v8212 = vsel %vm306, %v7761, 0
      %8214 = vmatprep.subr.mxu0 0.0
      %8215 = vmatpush1.msra.mxu0 %v7762
      %8216 = vmatprep.subr.mxu0 0.0
      %8217 = vmatpush1.msra.mxu0 0.0
      %8218 = vmatprep.subr.mxu0 0.0
      %8219 = vmatpush1.msra.mxu0 0.0
      %8220 = vmatprep.subr.mxu0 0.0
      %8221 = vmatpush1.msra.mxu0 0.0
      %8222 = vmatprep.subr.mxu0 0.0
      %8223 = vmatpush1.msra.mxu0 0.0
      %8224 = vmatprep.subr.mxu0 0.0
      %8225 = vmatpush1.msra.mxu0 0.0
      %8226 = vmatprep.subr.mxu0 0.0
      %8227 = vmatpush1.msra.mxu0 0.0
      %8228 = vmatprep.subr.mxu0 0.0
      %8229 = vmatpush1.msra.mxu0 0.0
      %8230 = vmatprep.subr.mxu0 0.0
      %8231 = vmatpush1.msra.mxu0 0.0
      %8232 = vmatprep.subr.mxu0 0.0
      %8233 = vmatpush1.msra.mxu0 0.0
      %8234 = vmatprep.subr.mxu0 0.0
      %8235 = vmatpush1.msra.mxu0 0.0
      %8236 = vmatprep.subr.mxu0 0.0
      %8237 = vmatpush1.msra.mxu0 0.0
      %8238 = vmatprep.subr.mxu0 0.0
      %8239 = vmatpush1.msra.mxu0 0.0
      %8240 = vmatprep.subr.mxu0 0.0
      %8241 = vmatpush1.msra.mxu0 0.0
      %8242 = vmatprep.subr.mxu0 0.0
      %8243 = vmatpush1.msra.mxu0 0.0
      %8244 = vmatprep.subr.mxu0 0.0
      %8245 = vmatpush1.msra.mxu0 0.0
      %8246 = vmatprep.subr.mxu0 0.0
      %8247 = vmatpush1.msra.mxu0 0.0
      %8248 = vmatprep.subr.mxu0 0.0
      %8249 = vmatpush1.msra.mxu0 0.0
      %8250 = vmatprep.subr.mxu0 0.0
      %8251 = vmatpush1.msra.mxu0 0.0
      %8252 = vmatprep.subr.mxu0 0.0
      %8253 = vmatpush1.msra.mxu0 0.0
      %8254 = vmatprep.subr.mxu0 0.0
      %8255 = vmatpush1.msra.mxu0 0.0
      %8256 = vmatprep.subr.mxu0 0.0
      %8257 = vmatpush1.msra.mxu0 0.0
      %8258 = vmatprep.subr.mxu0 0.0
      %8259 = vmatpush1.msra.mxu0 0.0
      %8260 = vmatprep.subr.mxu0 0.0
      %8261 = vmatpush1.msra.mxu0 0.0
      %8262 = vmatprep.subr.mxu0 0.0
      %8263 = vmatpush1.msra.mxu0 0.0
      %8264 = vmatprep.subr.mxu0 0.0
      %8265 = vmatpush1.msra.mxu0 0.0
      %8266 = vmatprep.subr.mxu0 0.0
      %8267 = vmatpush1.msra.mxu0 0.0
      %8268 = vmatprep.subr.mxu0 0.0
      %8269 = vmatpush1.msra.mxu0 0.0
      %8270 = vmatprep.subr.mxu0 0.0
      %8271 = vmatpush1.msra.mxu0 0.0
      %8272 = vmatprep.subr.mxu0 0.0
      %8273 = vmatpush1.msra.mxu0 0.0
      %8274 = vmatprep.subr.mxu0 0.0
      %8275 = vmatpush1.msra.mxu0 0.0
      %8276 = vmatprep.subr.mxu0 0.0
      %8277 = vmatpush1.msra.mxu0 0.0
      %8278 = vmatprep.mubr.f32.mxu0 0.0
      %8279 = vmatmul.mubr.f32.gmra.mrb[0].mxu0 %v8119
      %v8280 = vpop.f32.mrb[0].mxu0
      %v8281 = vadd.f32 %v7960, %v8280
      %v8282 = vpop.f32.mrb[0].mxu0
      %8283 = vmatprep.mubr.f32.mxu0 0.0
      %8284 = vmatmul.mubr.f32.gmra.mrb[0].mxu0 %v8122
      %v8285 = vpop.f32.mrb[0].mxu0
      %v8286 = vadd.f32 %v7965, %v8285
      %v8287 = vpop.f32.mrb[0].mxu0
      %8288 = vmatprep.mubr.f32.mxu0 0.0
      %8289 = vmatmul.mubr.f32.gmra.mrb[0].mxu0 %v8125
      %v8290 = vpop.f32.mrb[0].mxu0
      %v8291 = vadd.f32 %v7970, %v8290
      %v8292 = vpop.f32.mrb[0].mxu0
      %8293 = vmatprep.mubr.f32.mxu0 0.0
      %8294 = vmatmul.mubr.f32.gmra.mrb[0].mxu0 %v8128
      %v8295 = vpop.f32.mrb[0].mxu0
      %v8296 = vadd.f32 %v7975, %v8295
      %v8297 = vpop.f32.mrb[0].mxu0
      %8298 = vmatprep.mubr.f32.mxu0 0.0
      %8299 = vmatmul.mubr.f32.gmra.mrb[0].mxu0 %v8131
      %v8300 = vpop.f32.mrb[0].mxu0
      %v8301 = vadd.f32 %v7980, %v8300
      %v8302 = vpop.f32.mrb[0].mxu0
      %8303 = vmatprep.mubr.f32.mxu0 0.0
      %8304 = vmatmul.mubr.f32.gmra.mrb[0].mxu0 %v8134
      %v8305 = vpop.f32.mrb[0].mxu0
      %v8306 = vadd.f32 %v7985, %v8305
      %v8307 = vpop.f32.mrb[0].mxu0
      %8308 = vmatprep.mubr.f32.mxu0 0.0
      %8309 = vmatmul.mubr.f32.gmra.mrb[0].mxu0 %v8137
      %v8310 = vpop.f32.mrb[0].mxu0
      %v8311 = vadd.f32 %v7990, %v8310
      %v8312 = vpop.f32.mrb[0].mxu0
      %8313 = vmatprep.mubr.f32.mxu0 0.0
      %8314 = vmatmul.mubr.f32.gmra.mrb[0].mxu0 %v8140
      %v8315 = vpop.f32.mrb[0].mxu0
      %v8316 = vadd.f32 %v7995, %v8315
      %v8317 = vpop.f32.mrb[0].mxu0
      %8318 = vmatprep.mubr.f32.mxu0 0.0
      %8319 = vmatmul.mubr.f32.gmra.mrb[0].mxu0 %v8143
      %v8320 = vpop.f32.mrb[0].mxu0
      %v8321 = vadd.f32 %v8000, %v8320
      %v8322 = vpop.f32.mrb[0].mxu0
      %8323 = vmatprep.mubr.f32.mxu0 0.0
      %8324 = vmatmul.mubr.f32.gmra.mrb[0].mxu0 %v8146
      %v8325 = vpop.f32.mrb[0].mxu0
      %v8326 = vadd.f32 %v8005, %v8325
      %v8327 = vpop.f32.mrb[0].mxu0
      %8328 = vmatprep.mubr.f32.mxu0 0.0
      %8329 = vmatmul.mubr.f32.gmra.mrb[0].mxu0 %v8149
      %v8330 = vpop.f32.mrb[0].mxu0
      %v8331 = vadd.f32 %v8010, %v8330
      %v8332 = vpop.f32.mrb[0].mxu0
      %8333 = vmatprep.mubr.f32.mxu0 0.0
      %8334 = vmatmul.mubr.f32.gmra.mrb[0].mxu0 %v8152
      %v8335 = vpop.f32.mrb[0].mxu0
      %v8336 = vadd.f32 %v8015, %v8335
      %v8337 = vpop.f32.mrb[0].mxu0
      %8338 = vmatprep.mubr.f32.mxu0 0.0
      %8339 = vmatmul.mubr.f32.gmra.mrb[0].mxu0 %v8155
      %v8340 = vpop.f32.mrb[0].mxu0
      %v8341 = vadd.f32 %v8020, %v8340
      %v8342 = vpop.f32.mrb[0].mxu0
      %8343 = vmatprep.mubr.f32.mxu0 0.0
      %8344 = vmatmul.mubr.f32.gmra.mrb[0].mxu0 %v8158
      %v8345 = vpop.f32.mrb[0].mxu0
      %v8346 = vadd.f32 %v8025, %v8345
      %v8347 = vpop.f32.mrb[0].mxu0
      %8348 = vmatprep.mubr.f32.mxu0 0.0
      %8349 = vmatmul.mubr.f32.gmra.mrb[0].mxu0 %v8161
      %v8350 = vpop.f32.mrb[0].mxu0
      %v8351 = vadd.f32 %v8030, %v8350
      %v8352 = vpop.f32.mrb[0].mxu0
      %8353 = vmatprep.mubr.f32.mxu0 0.0
      %8354 = vmatmul.mubr.f32.gmra.mrb[0].mxu0 %v8164
      %v8355 = vpop.f32.mrb[0].mxu0
      %v8356 = vadd.f32 %v8035, %v8355
      %v8357 = vpop.f32.mrb[0].mxu0
      %8358 = vmatprep.mubr.f32.mxu0 0.0
      %8359 = vmatmul.mubr.f32.gmra.mrb[0].mxu0 %v8167
      %v8360 = vpop.f32.mrb[0].mxu0
      %v8361 = vadd.f32 %v8040, %v8360
      %v8362 = vpop.f32.mrb[0].mxu0
      %8363 = vmatprep.mubr.f32.mxu0 0.0
      %8364 = vmatmul.mubr.f32.gmra.mrb[0].mxu0 %v8170
      %v8365 = vpop.f32.mrb[0].mxu0
      %v8366 = vadd.f32 %v8045, %v8365
      %v8367 = vpop.f32.mrb[0].mxu0
      %8368 = vmatprep.mubr.f32.mxu0 0.0
      %8369 = vmatmul.mubr.f32.gmra.mrb[0].mxu0 %v8173
      %v8370 = vpop.f32.mrb[0].mxu0
      %v8371 = vadd.f32 %v8050, %v8370
      %v8372 = vpop.f32.mrb[0].mxu0
      %8373 = vmatprep.mubr.f32.mxu0 0.0
      %8374 = vmatmul.mubr.f32.gmra.mrb[0].mxu0 %v8176
      %v8375 = vpop.f32.mrb[0].mxu0
      %v8376 = vadd.f32 %v8055, %v8375
      %v8377 = vpop.f32.mrb[0].mxu0
      %8378 = vmatprep.mubr.f32.mxu0 0.0
      %8379 = vmatmul.mubr.f32.gmra.mrb[0].mxu0 %v8179
      %v8380 = vpop.f32.mrb[0].mxu0
      %v8381 = vadd.f32 %v8060, %v8380
      %v8382 = vpop.f32.mrb[0].mxu0
      %8383 = vmatprep.mubr.f32.mxu0 0.0
      %8384 = vmatmul.mubr.f32.gmra.mrb[0].mxu0 %v8182
      %v8385 = vpop.f32.mrb[0].mxu0
      %v8386 = vadd.f32 %v8065, %v8385
      %v8387 = vpop.f32.mrb[0].mxu0
      %8388 = vmatprep.mubr.f32.mxu0 0.0
      %8389 = vmatmul.mubr.f32.gmra.mrb[0].mxu0 %v8185
      %v8390 = vpop.f32.mrb[0].mxu0
      %v8391 = vadd.f32 %v8070, %v8390
      %v8392 = vpop.f32.mrb[0].mxu0
      %8393 = vmatprep.mubr.f32.mxu0 0.0
      %8394 = vmatmul.mubr.f32.gmra.mrb[0].mxu0 %v8188
      %v8395 = vpop.f32.mrb[0].mxu0
      %v8396 = vadd.f32 %v8075, %v8395
      %v8397 = vpop.f32.mrb[0].mxu0
      %8398 = vmatprep.mubr.f32.mxu0 0.0
      %8399 = vmatmul.mubr.f32.gmra.mrb[0].mxu0 %v8191
      %v8400 = vpop.f32.mrb[0].mxu0
      %v8401 = vadd.f32 %v8080, %v8400
      %v8402 = vpop.f32.mrb[0].mxu0
      %8403 = vmatprep.mubr.f32.mxu0 0.0
      %8404 = vmatmul.mubr.f32.gmra.mrb[0].mxu0 %v8194
      %v8405 = vpop.f32.mrb[0].mxu0
      %v8406 = vadd.f32 %v8085, %v8405
      %v8407 = vpop.f32.mrb[0].mxu0
      %8408 = vmatprep.mubr.f32.mxu0 0.0
      %8409 = vmatmul.mubr.f32.gmra.mrb[0].mxu0 %v8197
      %v8410 = vpop.f32.mrb[0].mxu0
      %v8411 = vadd.f32 %v8090, %v8410
      %v8412 = vpop.f32.mrb[0].mxu0
      %8413 = vmatprep.mubr.f32.mxu0 0.0
      %8414 = vmatmul.mubr.f32.gmra.mrb[0].mxu0 %v8200
      %v8415 = vpop.f32.mrb[0].mxu0
      %v8416 = vadd.f32 %v8095, %v8415
      %v8417 = vpop.f32.mrb[0].mxu0
      %8418 = vmatprep.mubr.f32.mxu0 0.0
      %8419 = vmatmul.mubr.f32.gmra.mrb[0].mxu0 %v8203
      %v8420 = vpop.f32.mrb[0].mxu0
      %v8421 = vadd.f32 %v8100, %v8420
      %v8422 = vpop.f32.mrb[0].mxu0
      %8423 = vmatprep.mubr.f32.mxu0 0.0
      %8424 = vmatmul.mubr.f32.gmra.mrb[0].mxu0 %v8206
      %v8425 = vpop.f32.mrb[0].mxu0
      %v8426 = vadd.f32 %v8105, %v8425
      %v8427 = vpop.f32.mrb[0].mxu0
      %8428 = vmatprep.mubr.f32.mxu0 0.0
      %8429 = vmatmul.mubr.f32.gmra.mrb[0].mxu0 %v8209
      %v8430 = vpop.f32.mrb[0].mxu0
      %v8431 = vadd.f32 %v8110, %v8430
      %v8432 = vpop.f32.mrb[0].mxu0
      %8433 = vmatprep.mubr.f32.mxu0 0.0
      %8434 = vmatmul.mubr.f32.gmra.mrb[0].mxu0 %v8212
      %v8435 = vpop.f32.mrb[0].mxu0
      %v8436 = vadd.f32 %v8115, %v8435
      %v8437 = vpop.f32.mrb[0].mxu0
      %8438 = vdwg.mxu0
      %v8439 = vld [vmem:[#allocation3 + $0x2] sm:$0xff]
      %v8440 = vld [vmem:[#allocation3 + $0xa] sm:$0xff]
      %v8441 = vld [vmem:[#allocation3 + $0x1a] sm:$0xff]
      %v8442 = vld [vmem:[#allocation3 + $0x22] sm:$0xff]
      %v8443 = vld [vmem:[#allocation3 + $0x32] sm:$0xff]
      %v8444 = vld [vmem:[#allocation3 + $0x3a] sm:$0xff]
      %v8445 = vld [vmem:[#allocation3 + $0x4a] sm:$0xff]
      %v8446 = vld [vmem:[#allocation3 + $0x52] sm:$0xff]
      %v8447 = vld [vmem:[#allocation3 + $0x62] sm:$0xff]
      %v8448 = vld [vmem:[#allocation3 + $0x6a] sm:$0xff]
      %v8449 = vld [vmem:[#allocation3 + $0x7a] sm:$0xff]
      %v8450 = vld [vmem:[#allocation3 + $0x82] sm:$0xff]
      %v8451 = vld [vmem:[#allocation3 + $0x92] sm:$0xff]
      %v8452 = vld [vmem:[#allocation3 + $0x9a] sm:$0xff]
      %v8453 = vld [vmem:[#allocation3 + $0xaa] sm:$0xff]
      %v8454 = vld [vmem:[#allocation3 + $0xb2] sm:$0xff]
      %v8455 = vld [vmem:[#allocation3 + $0xc2] sm:$0xff]
      %v8456 = vld [vmem:[#allocation3 + $0xca] sm:$0xff]
      %v8457 = vld [vmem:[#allocation3 + $0xda] sm:$0xff]
      %v8458 = vld [vmem:[#allocation3 + $0xe2] sm:$0xff]
      %v8459 = vld [vmem:[#allocation3 + $0xf2] sm:$0xff]
      %v8460 = vld [vmem:[#allocation3 + $0xfa] sm:$0xff]
      %v8461 = vld [vmem:[#allocation3 + $0x10a] sm:$0xff]
      %v8462 = vld [vmem:[#allocation3 + $0x112] sm:$0xff]
      %v8463 = vld [vmem:[#allocation3 + $0x122] sm:$0xff]
      %v8464 = vld [vmem:[#allocation3 + $0x12a] sm:$0xff]
      %v8465 = vld [vmem:[#allocation3 + $0x13a] sm:$0xff]
      %v8466 = vld [vmem:[#allocation3 + $0x142] sm:$0xff]
      %v8467 = vld [vmem:[#allocation3 + $0x152] sm:$0xff]
      %v8468 = vld [vmem:[#allocation3 + $0x15a] sm:$0xff]
      %v8469 = vld [vmem:[#allocation3 + $0x16a] sm:$0xff]
      %v8470 = vld [vmem:[#allocation3 + $0x172] sm:$0xff]
      %s8471 = scalar_lea.vmem %s6, 16
      %v8472 = vld [vmem:[%s8471] sm:$0xff]
      %v8474 = vsel %vm306, %v8439, 0
      %v8477 = vsel %vm306, %v8440, 0
      %v8480 = vsel %vm306, %v8441, 0
      %v8483 = vsel %vm306, %v8442, 0
      %v8486 = vsel %vm306, %v8443, 0
      %v8489 = vsel %vm306, %v8444, 0
      %v8492 = vsel %vm306, %v8445, 0
      %v8495 = vsel %vm306, %v8446, 0
      %v8498 = vsel %vm306, %v8447, 0
      %v8501 = vsel %vm306, %v8448, 0
      %v8504 = vsel %vm306, %v8449, 0
      %v8507 = vsel %vm306, %v8450, 0
      %v8510 = vsel %vm306, %v8451, 0
      %v8513 = vsel %vm306, %v8452, 0
      %v8516 = vsel %vm306, %v8453, 0
      %v8519 = vsel %vm306, %v8454, 0
      %v8522 = vsel %vm306, %v8455, 0
      %v8525 = vsel %vm306, %v8456, 0
      %v8528 = vsel %vm306, %v8457, 0
      %v8531 = vsel %vm306, %v8458, 0
      %v8534 = vsel %vm306, %v8459, 0
      %v8537 = vsel %vm306, %v8460, 0
      %v8540 = vsel %vm306, %v8461, 0
      %v8543 = vsel %vm306, %v8462, 0
      %v8546 = vsel %vm306, %v8463, 0
      %v8549 = vsel %vm306, %v8464, 0
      %v8552 = vsel %vm306, %v8465, 0
      %v8555 = vsel %vm306, %v8466, 0
      %v8558 = vsel %vm306, %v8467, 0
      %v8561 = vsel %vm306, %v8468, 0
      %v8564 = vsel %vm306, %v8469, 0
      %v8567 = vsel %vm306, %v8470, 0
      %8569 = vmatprep.subr.mxu0 0.0
      %8570 = vmatpush1.msra.mxu0 %v8472
      %8571 = vmatprep.subr.mxu0 0.0
      %8572 = vmatpush1.msra.mxu0 0.0
      %8573 = vmatprep.subr.mxu0 0.0
      %8574 = vmatpush1.msra.mxu0 0.0
      %8575 = vmatprep.subr.mxu0 0.0
      %8576 = vmatpush1.msra.mxu0 0.0
      %8577 = vmatprep.subr.mxu0 0.0
      %8578 = vmatpush1.msra.mxu0 0.0
      %8579 = vmatprep.subr.mxu0 0.0
      %8580 = vmatpush1.msra.mxu0 0.0
      %8581 = vmatprep.subr.mxu0 0.0
      %8582 = vmatpush1.msra.mxu0 0.0
      %8583 = vmatprep.subr.mxu0 0.0
      %8584 = vmatpush1.msra.mxu0 0.0
      %8585 = vmatprep.subr.mxu0 0.0
      %8586 = vmatpush1.msra.mxu0 0.0
      %8587 = vmatprep.subr.mxu0 0.0
      %8588 = vmatpush1.msra.mxu0 0.0
      %8589 = vmatprep.subr.mxu0 0.0
      %8590 = vmatpush1.msra.mxu0 0.0
      %8591 = vmatprep.subr.mxu0 0.0
      %8592 = vmatpush1.msra.mxu0 0.0
      %8593 = vmatprep.subr.mxu0 0.0
      %8594 = vmatpush1.msra.mxu0 0.0
      %8595 = vmatprep.subr.mxu0 0.0
      %8596 = vmatpush1.msra.mxu0 0.0
      %8597 = vmatprep.subr.mxu0 0.0
      %8598 = vmatpush1.msra.mxu0 0.0
      %8599 = vmatprep.subr.mxu0 0.0
      %8600 = vmatpush1.msra.mxu0 0.0
      %8601 = vmatprep.subr.mxu0 0.0
      %8602 = vmatpush1.msra.mxu0 0.0
      %8603 = vmatprep.subr.mxu0 0.0
      %8604 = vmatpush1.msra.mxu0 0.0
      %8605 = vmatprep.subr.mxu0 0.0
      %8606 = vmatpush1.msra.mxu0 0.0
      %8607 = vmatprep.subr.mxu0 0.0
      %8608 = vmatpush1.msra.mxu0 0.0
      %8609 = vmatprep.subr.mxu0 0.0
      %8610 = vmatpush1.msra.mxu0 0.0
      %8611 = vmatprep.subr.mxu0 0.0
      %8612 = vmatpush1.msra.mxu0 0.0
      %8613 = vmatprep.subr.mxu0 0.0
      %8614 = vmatpush1.msra.mxu0 0.0
      %8615 = vmatprep.subr.mxu0 0.0
      %8616 = vmatpush1.msra.mxu0 0.0
      %8617 = vmatprep.subr.mxu0 0.0
      %8618 = vmatpush1.msra.mxu0 0.0
      %8619 = vmatprep.subr.mxu0 0.0
      %8620 = vmatpush1.msra.mxu0 0.0
      %8621 = vmatprep.subr.mxu0 0.0
      %8622 = vmatpush1.msra.mxu0 0.0
      %8623 = vmatprep.subr.mxu0 0.0
      %8624 = vmatpush1.msra.mxu0 0.0
      %8625 = vmatprep.subr.mxu0 0.0
      %8626 = vmatpush1.msra.mxu0 0.0
      %8627 = vmatprep.subr.mxu0 0.0
      %8628 = vmatpush1.msra.mxu0 0.0
      %8629 = vmatprep.subr.mxu0 0.0
      %8630 = vmatpush1.msra.mxu0 0.0
      %8631 = vmatprep.subr.mxu0 0.0
      %8632 = vmatpush1.msra.mxu0 0.0
      %8633 = vmatprep.mubr.f32.mxu0 0.0
      %8634 = vmatmul.mubr.f32.gmra.mrb[0].mxu0 %v8474
      %v8635 = vpop.f32.mrb[0].mxu0
      %v8636 = vadd.f32 0.0, %v8635
      %v8637 = vpop.f32.mrb[0].mxu0
      %8638 = vmatprep.mubr.f32.mxu0 0.0
      %8639 = vmatmul.mubr.f32.gmra.mrb[0].mxu0 %v8477
      %v8640 = vpop.f32.mrb[0].mxu0
      %v8641 = vadd.f32 0.0, %v8640
      %v8642 = vpop.f32.mrb[0].mxu0
      %8643 = vmatprep.mubr.f32.mxu0 0.0
      %8644 = vmatmul.mubr.f32.gmra.mrb[0].mxu0 %v8480
      %v8645 = vpop.f32.mrb[0].mxu0
      %v8646 = vadd.f32 0.0, %v8645
      %v8647 = vpop.f32.mrb[0].mxu0
      %8648 = vmatprep.mubr.f32.mxu0 0.0
      %8649 = vmatmul.mubr.f32.gmra.mrb[0].mxu0 %v8483
      %v8650 = vpop.f32.mrb[0].mxu0
      %v8651 = vadd.f32 0.0, %v8650
      %v8652 = vpop.f32.mrb[0].mxu0
      %8653 = vmatprep.mubr.f32.mxu0 0.0
      %8654 = vmatmul.mubr.f32.gmra.mrb[0].mxu0 %v8486
      %v8655 = vpop.f32.mrb[0].mxu0
      %v8656 = vadd.f32 0.0, %v8655
      %v8657 = vpop.f32.mrb[0].mxu0
      %8658 = vmatprep.mubr.f32.mxu0 0.0
      %8659 = vmatmul.mubr.f32.gmra.mrb[0].mxu0 %v8489
      %v8660 = vpop.f32.mrb[0].mxu0
      %v8661 = vadd.f32 0.0, %v8660
      %v8662 = vpop.f32.mrb[0].mxu0
      %8663 = vmatprep.mubr.f32.mxu0 0.0
      %8664 = vmatmul.mubr.f32.gmra.mrb[0].mxu0 %v8492
      %v8665 = vpop.f32.mrb[0].mxu0
      %v8666 = vadd.f32 0.0, %v8665
      %v8667 = vpop.f32.mrb[0].mxu0
      %8668 = vmatprep.mubr.f32.mxu0 0.0
      %8669 = vmatmul.mubr.f32.gmra.mrb[0].mxu0 %v8495
      %v8670 = vpop.f32.mrb[0].mxu0
      %v8671 = vadd.f32 0.0, %v8670
      %v8672 = vpop.f32.mrb[0].mxu0
      %8673 = vmatprep.mubr.f32.mxu0 0.0
      %8674 = vmatmul.mubr.f32.gmra.mrb[0].mxu0 %v8498
      %v8675 = vpop.f32.mrb[0].mxu0
      %v8676 = vadd.f32 0.0, %v8675
      %v8677 = vpop.f32.mrb[0].mxu0
      %8678 = vmatprep.mubr.f32.mxu0 0.0
      %8679 = vmatmul.mubr.f32.gmra.mrb[0].mxu0 %v8501
      %v8680 = vpop.f32.mrb[0].mxu0
      %v8681 = vadd.f32 0.0, %v8680
      %v8682 = vpop.f32.mrb[0].mxu0
      %8683 = vmatprep.mubr.f32.mxu0 0.0
      %8684 = vmatmul.mubr.f32.gmra.mrb[0].mxu0 %v8504
      %v8685 = vpop.f32.mrb[0].mxu0
      %v8686 = vadd.f32 0.0, %v8685
      %v8687 = vpop.f32.mrb[0].mxu0
      %8688 = vmatprep.mubr.f32.mxu0 0.0
      %8689 = vmatmul.mubr.f32.gmra.mrb[0].mxu0 %v8507
      %v8690 = vpop.f32.mrb[0].mxu0
      %v8691 = vadd.f32 0.0, %v8690
      %v8692 = vpop.f32.mrb[0].mxu0
      %8693 = vmatprep.mubr.f32.mxu0 0.0
      %8694 = vmatmul.mubr.f32.gmra.mrb[0].mxu0 %v8510
      %v8695 = vpop.f32.mrb[0].mxu0
      %v8696 = vadd.f32 0.0, %v8695
      %v8697 = vpop.f32.mrb[0].mxu0
      %8698 = vmatprep.mubr.f32.mxu0 0.0
      %8699 = vmatmul.mubr.f32.gmra.mrb[0].mxu0 %v8513
      %v8700 = vpop.f32.mrb[0].mxu0
      %v8701 = vadd.f32 0.0, %v8700
      %v8702 = vpop.f32.mrb[0].mxu0
      %8703 = vmatprep.mubr.f32.mxu0 0.0
      %8704 = vmatmul.mubr.f32.gmra.mrb[0].mxu0 %v8516
      %v8705 = vpop.f32.mrb[0].mxu0
      %v8706 = vadd.f32 0.0, %v8705
      %v8707 = vpop.f32.mrb[0].mxu0
      %8708 = vmatprep.mubr.f32.mxu0 0.0
      %8709 = vmatmul.mubr.f32.gmra.mrb[0].mxu0 %v8519
      %v8710 = vpop.f32.mrb[0].mxu0
      %v8711 = vadd.f32 0.0, %v8710
      %v8712 = vpop.f32.mrb[0].mxu0
      %8713 = vmatprep.mubr.f32.mxu0 0.0
      %8714 = vmatmul.mubr.f32.gmra.mrb[0].mxu0 %v8522
      %v8715 = vpop.f32.mrb[0].mxu0
      %v8716 = vadd.f32 0.0, %v8715
      %v8717 = vpop.f32.mrb[0].mxu0
      %8718 = vmatprep.mubr.f32.mxu0 0.0
      %8719 = vmatmul.mubr.f32.gmra.mrb[0].mxu0 %v8525
      %v8720 = vpop.f32.mrb[0].mxu0
      %v8721 = vadd.f32 0.0, %v8720
      %v8722 = vpop.f32.mrb[0].mxu0
      %8723 = vmatprep.mubr.f32.mxu0 0.0
      %8724 = vmatmul.mubr.f32.gmra.mrb[0].mxu0 %v8528
      %v8725 = vpop.f32.mrb[0].mxu0
      %v8726 = vadd.f32 0.0, %v8725
      %v8727 = vpop.f32.mrb[0].mxu0
      %8728 = vmatprep.mubr.f32.mxu0 0.0
      %8729 = vmatmul.mubr.f32.gmra.mrb[0].mxu0 %v8531
      %v8730 = vpop.f32.mrb[0].mxu0
      %v8731 = vadd.f32 0.0, %v8730
      %v8732 = vpop.f32.mrb[0].mxu0
      %8733 = vmatprep.mubr.f32.mxu0 0.0
      %8734 = vmatmul.mubr.f32.gmra.mrb[0].mxu0 %v8534
      %v8735 = vpop.f32.mrb[0].mxu0
      %v8736 = vadd.f32 0.0, %v8735
      %v8737 = vpop.f32.mrb[0].mxu0
      %8738 = vmatprep.mubr.f32.mxu0 0.0
      %8739 = vmatmul.mubr.f32.gmra.mrb[0].mxu0 %v8537
      %v8740 = vpop.f32.mrb[0].mxu0
      %v8741 = vadd.f32 0.0, %v8740
      %v8742 = vpop.f32.mrb[0].mxu0
      %8743 = vmatprep.mubr.f32.mxu0 0.0
      %8744 = vmatmul.mubr.f32.gmra.mrb[0].mxu0 %v8540
      %v8745 = vpop.f32.mrb[0].mxu0
      %v8746 = vadd.f32 0.0, %v8745
      %v8747 = vpop.f32.mrb[0].mxu0
      %8748 = vmatprep.mubr.f32.mxu0 0.0
      %8749 = vmatmul.mubr.f32.gmra.mrb[0].mxu0 %v8543
      %v8750 = vpop.f32.mrb[0].mxu0
      %v8751 = vadd.f32 0.0, %v8750
      %v8752 = vpop.f32.mrb[0].mxu0
      %8753 = vmatprep.mubr.f32.mxu0 0.0
      %8754 = vmatmul.mubr.f32.gmra.mrb[0].mxu0 %v8546
      %v8755 = vpop.f32.mrb[0].mxu0
      %v8756 = vadd.f32 0.0, %v8755
      %v8757 = vpop.f32.mrb[0].mxu0
      %8758 = vmatprep.mubr.f32.mxu0 0.0
      %8759 = vmatmul.mubr.f32.gmra.mrb[0].mxu0 %v8549
      %v8760 = vpop.f32.mrb[0].mxu0
      %v8761 = vadd.f32 0.0, %v8760
      %v8762 = vpop.f32.mrb[0].mxu0
      %8763 = vmatprep.mubr.f32.mxu0 0.0
      %8764 = vmatmul.mubr.f32.gmra.mrb[0].mxu0 %v8552
      %v8765 = vpop.f32.mrb[0].mxu0
      %v8766 = vadd.f32 0.0, %v8765
      %v8767 = vpop.f32.mrb[0].mxu0
      %8768 = vmatprep.mubr.f32.mxu0 0.0
      %8769 = vmatmul.mubr.f32.gmra.mrb[0].mxu0 %v8555
      %v8770 = vpop.f32.mrb[0].mxu0
      %v8771 = vadd.f32 0.0, %v8770
      %v8772 = vpop.f32.mrb[0].mxu0
      %8773 = vmatprep.mubr.f32.mxu0 0.0
      %8774 = vmatmul.mubr.f32.gmra.mrb[0].mxu0 %v8558
      %v8775 = vpop.f32.mrb[0].mxu0
      %v8776 = vadd.f32 0.0, %v8775
      %v8777 = vpop.f32.mrb[0].mxu0
      %8778 = vmatprep.mubr.f32.mxu0 0.0
      %8779 = vmatmul.mubr.f32.gmra.mrb[0].mxu0 %v8561
      %v8780 = vpop.f32.mrb[0].mxu0
      %v8781 = vadd.f32 0.0, %v8780
      %v8782 = vpop.f32.mrb[0].mxu0
      %8783 = vmatprep.mubr.f32.mxu0 0.0
      %8784 = vmatmul.mubr.f32.gmra.mrb[0].mxu0 %v8564
      %v8785 = vpop.f32.mrb[0].mxu0
      %v8786 = vadd.f32 0.0, %v8785
      %v8787 = vpop.f32.mrb[0].mxu0
      %8788 = vmatprep.mubr.f32.mxu0 0.0
      %8789 = vmatmul.mubr.f32.gmra.mrb[0].mxu0 %v8567
      %v8790 = vpop.f32.mrb[0].mxu0
      %v8791 = vadd.f32 0.0, %v8790
      %v8792 = vpop.f32.mrb[0].mxu0
      %8793 = vdwg.mxu0
      %v8794 = vadd.f32 %v8281, %v8636
      %v8795 = vadd.f32 %v8286, %v8641
      %v8796 = vadd.f32 %v8291, %v8646
      %v8797 = vadd.f32 %v8296, %v8651
      %v8798 = vadd.f32 %v8301, %v8656
      %v8799 = vadd.f32 %v8306, %v8661
      %v8800 = vadd.f32 %v8311, %v8666
      %v8801 = vadd.f32 %v8316, %v8671
      %v8802 = vadd.f32 %v8321, %v8676
      %v8803 = vadd.f32 %v8326, %v8681
      %v8804 = vadd.f32 %v8331, %v8686
      %v8805 = vadd.f32 %v8336, %v8691
      %v8806 = vadd.f32 %v8341, %v8696
      %v8807 = vadd.f32 %v8346, %v8701
      %v8808 = vadd.f32 %v8351, %v8706
      %v8809 = vadd.f32 %v8356, %v8711
      %v8810 = vadd.f32 %v8361, %v8716
      %v8811 = vadd.f32 %v8366, %v8721
      %v8812 = vadd.f32 %v8371, %v8726
      %v8813 = vadd.f32 %v8376, %v8731
      %v8814 = vadd.f32 %v8381, %v8736
      %v8815 = vadd.f32 %v8386, %v8741
      %v8816 = vadd.f32 %v8391, %v8746
      %v8817 = vadd.f32 %v8396, %v8751
      %v8818 = vadd.f32 %v8401, %v8756
      %v8819 = vadd.f32 %v8406, %v8761
      %v8820 = vadd.f32 %v8411, %v8766
      %v8821 = vadd.f32 %v8416, %v8771
      %v8822 = vadd.f32 %v8421, %v8776
      %v8823 = vadd.f32 %v8426, %v8781
      %v8824 = vadd.f32 %v8431, %v8786
      %v8825 = vadd.f32 %v8436, %v8791
      %v8826 = vld [vmem:[%s7697] sm:$0xff]
      %v8827 = vld [vmem:[%s7697 + $0x8] sm:$0xff]
      %v8828 = vld [vmem:[%s7697 + $0x18] sm:$0xff]
      %v8829 = vld [vmem:[%s7697 + $0x20] sm:$0xff]
      %v8830 = vld [vmem:[%s7697 + $0x30] sm:$0xff]
      %v8831 = vld [vmem:[%s7697 + $0x38] sm:$0xff]
      %v8832 = vld [vmem:[%s7697 + $0x48] sm:$0xff]
      %v8833 = vld [vmem:[%s7697 + $0x50] sm:$0xff]
      %v8834 = vld [vmem:[%s7697 + $0x60] sm:$0xff]
      %v8835 = vld [vmem:[%s7697 + $0x68] sm:$0xff]
      %v8836 = vld [vmem:[%s7697 + $0x78] sm:$0xff]
      %v8837 = vld [vmem:[%s7697 + $0x80] sm:$0xff]
      %v8838 = vld [vmem:[%s7697 + $0x90] sm:$0xff]
      %v8839 = vld [vmem:[%s7697 + $0x98] sm:$0xff]
      %v8840 = vld [vmem:[%s7697 + $0xa8] sm:$0xff]
      %v8841 = vld [vmem:[%s7697 + $0xb0] sm:$0xff]
      %v8842 = vld [vmem:[%s7697 + $0xc0] sm:$0xff]
      %v8843 = vld [vmem:[%s7697 + $0xc8] sm:$0xff]
      %v8844 = vld [vmem:[%s7697 + $0xd8] sm:$0xff]
      %v8845 = vld [vmem:[%s7697 + $0xe0] sm:$0xff]
      %v8846 = vld [vmem:[%s7697 + $0xf0] sm:$0xff]
      %v8847 = vld [vmem:[%s7697 + $0xf8] sm:$0xff]
      %v8848 = vld [vmem:[%s7697 + $0x108] sm:$0xff]
      %v8849 = vld [vmem:[%s7697 + $0x110] sm:$0xff]
      %v8850 = vld [vmem:[%s7697 + $0x120] sm:$0xff]
      %v8851 = vld [vmem:[%s7697 + $0x128] sm:$0xff]
      %v8852 = vld [vmem:[%s7697 + $0x138] sm:$0xff]
      %v8853 = vld [vmem:[%s7697 + $0x140] sm:$0xff]
      %v8854 = vld [vmem:[%s7697 + $0x150] sm:$0xff]
      %v8855 = vld [vmem:[%s7697 + $0x158] sm:$0xff]
      %v8856 = vld [vmem:[%s7697 + $0x168] sm:$0xff]
      %v8857 = vld [vmem:[%s7697 + $0x170] sm:$0xff]
      %s8858 = scalar_lea.vmem %s6, 24
      %v8859 = vld [vmem:[%s8858] sm:$0xff]
      %v8861 = vsel %vm306, %v8826, 0
      %v8864 = vsel %vm306, %v8827, 0
      %v8867 = vsel %vm306, %v8828, 0
      %v8870 = vsel %vm306, %v8829, 0
      %v8873 = vsel %vm306, %v8830, 0
      %v8876 = vsel %vm306, %v8831, 0
      %v8879 = vsel %vm306, %v8832, 0
      %v8882 = vsel %vm306, %v8833, 0
      %v8885 = vsel %vm306, %v8834, 0
      %v8888 = vsel %vm306, %v8835, 0
      %v8891 = vsel %vm306, %v8836, 0
      %v8894 = vsel %vm306, %v8837, 0
      %v8897 = vsel %vm306, %v8838, 0
      %v8900 = vsel %vm306, %v8839, 0
      %v8903 = vsel %vm306, %v8840, 0
      %v8906 = vsel %vm306, %v8841, 0
      %v8909 = vsel %vm306, %v8842, 0
      %v8912 = vsel %vm306, %v8843, 0
      %v8915 = vsel %vm306, %v8844, 0
      %v8918 = vsel %vm306, %v8845, 0
      %v8921 = vsel %vm306, %v8846, 0
      %v8924 = vsel %vm306, %v8847, 0
      %v8927 = vsel %vm306, %v8848, 0
      %v8930 = vsel %vm306, %v8849, 0
      %v8933 = vsel %vm306, %v8850, 0
      %v8936 = vsel %vm306, %v8851, 0
      %v8939 = vsel %vm306, %v8852, 0
      %v8942 = vsel %vm306, %v8853, 0
      %v8945 = vsel %vm306, %v8854, 0
      %v8948 = vsel %vm306, %v8855, 0
      %v8951 = vsel %vm306, %v8856, 0
      %v8954 = vsel %vm306, %v8857, 0
      %8956 = vmatprep.subr.mxu0 0.0
      %8957 = vmatpush1.msra.mxu0 %v8859
      %8958 = vmatprep.subr.mxu0 0.0
      %8959 = vmatpush1.msra.mxu0 0.0
      %8960 = vmatprep.subr.mxu0 0.0
      %8961 = vmatpush1.msra.mxu0 0.0
      %8962 = vmatprep.subr.mxu0 0.0
      %8963 = vmatpush1.msra.mxu0 0.0
      %8964 = vmatprep.subr.mxu0 0.0
      %8965 = vmatpush1.msra.mxu0 0.0
      %8966 = vmatprep.subr.mxu0 0.0
      %8967 = vmatpush1.msra.mxu0 0.0
      %8968 = vmatprep.subr.mxu0 0.0
      %8969 = vmatpush1.msra.mxu0 0.0
      %8970 = vmatprep.subr.mxu0 0.0
      %8971 = vmatpush1.msra.mxu0 0.0
      %8972 = vmatprep.subr.mxu0 0.0
      %8973 = vmatpush1.msra.mxu0 0.0
      %8974 = vmatprep.subr.mxu0 0.0
      %8975 = vmatpush1.msra.mxu0 0.0
      %8976 = vmatprep.subr.mxu0 0.0
      %8977 = vmatpush1.msra.mxu0 0.0
      %8978 = vmatprep.subr.mxu0 0.0
      %8979 = vmatpush1.msra.mxu0 0.0
      %8980 = vmatprep.subr.mxu0 0.0
      %8981 = vmatpush1.msra.mxu0 0.0
      %8982 = vmatprep.subr.mxu0 0.0
      %8983 = vmatpush1.msra.mxu0 0.0
      %8984 = vmatprep.subr.mxu0 0.0
      %8985 = vmatpush1.msra.mxu0 0.0
      %8986 = vmatprep.subr.mxu0 0.0
      %8987 = vmatpush1.msra.mxu0 0.0
      %8988 = vmatprep.subr.mxu0 0.0
      %8989 = vmatpush1.msra.mxu0 0.0
      %8990 = vmatprep.subr.mxu0 0.0
      %8991 = vmatpush1.msra.mxu0 0.0
      %8992 = vmatprep.subr.mxu0 0.0
      %8993 = vmatpush1.msra.mxu0 0.0
      %8994 = vmatprep.subr.mxu0 0.0
      %8995 = vmatpush1.msra.mxu0 0.0
      %8996 = vmatprep.subr.mxu0 0.0
      %8997 = vmatpush1.msra.mxu0 0.0
      %8998 = vmatprep.subr.mxu0 0.0
      %8999 = vmatpush1.msra.mxu0 0.0
      %9000 = vmatprep.subr.mxu0 0.0
      %9001 = vmatpush1.msra.mxu0 0.0
      %9002 = vmatprep.subr.mxu0 0.0
      %9003 = vmatpush1.msra.mxu0 0.0
      %9004 = vmatprep.subr.mxu0 0.0
      %9005 = vmatpush1.msra.mxu0 0.0
      %9006 = vmatprep.subr.mxu0 0.0
      %9007 = vmatpush1.msra.mxu0 0.0
      %9008 = vmatprep.subr.mxu0 0.0
      %9009 = vmatpush1.msra.mxu0 0.0
      %9010 = vmatprep.subr.mxu0 0.0
      %9011 = vmatpush1.msra.mxu0 0.0
      %9012 = vmatprep.subr.mxu0 0.0
      %9013 = vmatpush1.msra.mxu0 0.0
      %9014 = vmatprep.subr.mxu0 0.0
      %9015 = vmatpush1.msra.mxu0 0.0
      %9016 = vmatprep.subr.mxu0 0.0
      %9017 = vmatpush1.msra.mxu0 0.0
      %9018 = vmatprep.subr.mxu0 0.0
      %9019 = vmatpush1.msra.mxu0 0.0
      %9020 = vmatprep.mubr.f32.mxu0 0.0
      %9021 = vmatmul.mubr.f32.gmra.mrb[0].mxu0 %v8861
      %v9022 = vpop.f32.mrb[0].mxu0
      %v9023 = vadd.f32 0.0, %v9022
      %v9024 = vpop.f32.mrb[0].mxu0
      %9025 = vmatprep.mubr.f32.mxu0 0.0
      %9026 = vmatmul.mubr.f32.gmra.mrb[0].mxu0 %v8864
      %v9027 = vpop.f32.mrb[0].mxu0
      %v9028 = vadd.f32 0.0, %v9027
      %v9029 = vpop.f32.mrb[0].mxu0
      %9030 = vmatprep.mubr.f32.mxu0 0.0
      %9031 = vmatmul.mubr.f32.gmra.mrb[0].mxu0 %v8867
      %v9032 = vpop.f32.mrb[0].mxu0
      %v9033 = vadd.f32 0.0, %v9032
      %v9034 = vpop.f32.mrb[0].mxu0
      %9035 = vmatprep.mubr.f32.mxu0 0.0
      %9036 = vmatmul.mubr.f32.gmra.mrb[0].mxu0 %v8870
      %v9037 = vpop.f32.mrb[0].mxu0
      %v9038 = vadd.f32 0.0, %v9037
      %v9039 = vpop.f32.mrb[0].mxu0
      %9040 = vmatprep.mubr.f32.mxu0 0.0
      %9041 = vmatmul.mubr.f32.gmra.mrb[0].mxu0 %v8873
      %v9042 = vpop.f32.mrb[0].mxu0
      %v9043 = vadd.f32 0.0, %v9042
      %v9044 = vpop.f32.mrb[0].mxu0
      %9045 = vmatprep.mubr.f32.mxu0 0.0
      %9046 = vmatmul.mubr.f32.gmra.mrb[0].mxu0 %v8876
      %v9047 = vpop.f32.mrb[0].mxu0
      %v9048 = vadd.f32 0.0, %v9047
      %v9049 = vpop.f32.mrb[0].mxu0
      %9050 = vmatprep.mubr.f32.mxu0 0.0
      %9051 = vmatmul.mubr.f32.gmra.mrb[0].mxu0 %v8879
      %v9052 = vpop.f32.mrb[0].mxu0
      %v9053 = vadd.f32 0.0, %v9052
      %v9054 = vpop.f32.mrb[0].mxu0
      %9055 = vmatprep.mubr.f32.mxu0 0.0
      %9056 = vmatmul.mubr.f32.gmra.mrb[0].mxu0 %v8882
      %v9057 = vpop.f32.mrb[0].mxu0
      %v9058 = vadd.f32 0.0, %v9057
      %v9059 = vpop.f32.mrb[0].mxu0
      %9060 = vmatprep.mubr.f32.mxu0 0.0
      %9061 = vmatmul.mubr.f32.gmra.mrb[0].mxu0 %v8885
      %v9062 = vpop.f32.mrb[0].mxu0
      %v9063 = vadd.f32 0.0, %v9062
      %v9064 = vpop.f32.mrb[0].mxu0
      %9065 = vmatprep.mubr.f32.mxu0 0.0
      %9066 = vmatmul.mubr.f32.gmra.mrb[0].mxu0 %v8888
      %v9067 = vpop.f32.mrb[0].mxu0
      %v9068 = vadd.f32 0.0, %v9067
      %v9069 = vpop.f32.mrb[0].mxu0
      %9070 = vmatprep.mubr.f32.mxu0 0.0
      %9071 = vmatmul.mubr.f32.gmra.mrb[0].mxu0 %v8891
      %v9072 = vpop.f32.mrb[0].mxu0
      %v9073 = vadd.f32 0.0, %v9072
      %v9074 = vpop.f32.mrb[0].mxu0
      %9075 = vmatprep.mubr.f32.mxu0 0.0
      %9076 = vmatmul.mubr.f32.gmra.mrb[0].mxu0 %v8894
      %v9077 = vpop.f32.mrb[0].mxu0
      %v9078 = vadd.f32 0.0, %v9077
      %v9079 = vpop.f32.mrb[0].mxu0
      %9080 = vmatprep.mubr.f32.mxu0 0.0
      %9081 = vmatmul.mubr.f32.gmra.mrb[0].mxu0 %v8897
      %v9082 = vpop.f32.mrb[0].mxu0
      %v9083 = vadd.f32 0.0, %v9082
      %v9084 = vpop.f32.mrb[0].mxu0
      %9085 = vmatprep.mubr.f32.mxu0 0.0
      %9086 = vmatmul.mubr.f32.gmra.mrb[0].mxu0 %v8900
      %v9087 = vpop.f32.mrb[0].mxu0
      %v9088 = vadd.f32 0.0, %v9087
      %v9089 = vpop.f32.mrb[0].mxu0
      %9090 = vmatprep.mubr.f32.mxu0 0.0
      %9091 = vmatmul.mubr.f32.gmra.mrb[0].mxu0 %v8903
      %v9092 = vpop.f32.mrb[0].mxu0
      %v9093 = vadd.f32 0.0, %v9092
      %v9094 = vpop.f32.mrb[0].mxu0
      %9095 = vmatprep.mubr.f32.mxu0 0.0
      %9096 = vmatmul.mubr.f32.gmra.mrb[0].mxu0 %v8906
      %v9097 = vpop.f32.mrb[0].mxu0
      %v9098 = vadd.f32 0.0, %v9097
      %v9099 = vpop.f32.mrb[0].mxu0
      %9100 = vmatprep.mubr.f32.mxu0 0.0
      %9101 = vmatmul.mubr.f32.gmra.mrb[0].mxu0 %v8909
      %v9102 = vpop.f32.mrb[0].mxu0
      %v9103 = vadd.f32 0.0, %v9102
      %v9104 = vpop.f32.mrb[0].mxu0
      %9105 = vmatprep.mubr.f32.mxu0 0.0
      %9106 = vmatmul.mubr.f32.gmra.mrb[0].mxu0 %v8912
      %v9107 = vpop.f32.mrb[0].mxu0
      %v9108 = vadd.f32 0.0, %v9107
      %v9109 = vpop.f32.mrb[0].mxu0
      %9110 = vmatprep.mubr.f32.mxu0 0.0
      %9111 = vmatmul.mubr.f32.gmra.mrb[0].mxu0 %v8915
      %v9112 = vpop.f32.mrb[0].mxu0
      %v9113 = vadd.f32 0.0, %v9112
      %v9114 = vpop.f32.mrb[0].mxu0
      %9115 = vmatprep.mubr.f32.mxu0 0.0
      %9116 = vmatmul.mubr.f32.gmra.mrb[0].mxu0 %v8918
      %v9117 = vpop.f32.mrb[0].mxu0
      %v9118 = vadd.f32 0.0, %v9117
      %v9119 = vpop.f32.mrb[0].mxu0
      %9120 = vmatprep.mubr.f32.mxu0 0.0
      %9121 = vmatmul.mubr.f32.gmra.mrb[0].mxu0 %v8921
      %v9122 = vpop.f32.mrb[0].mxu0
      %v9123 = vadd.f32 0.0, %v9122
      %v9124 = vpop.f32.mrb[0].mxu0
      %9125 = vmatprep.mubr.f32.mxu0 0.0
      %9126 = vmatmul.mubr.f32.gmra.mrb[0].mxu0 %v8924
      %v9127 = vpop.f32.mrb[0].mxu0
      %v9128 = vadd.f32 0.0, %v9127
      %v9129 = vpop.f32.mrb[0].mxu0
      %9130 = vmatprep.mubr.f32.mxu0 0.0
      %9131 = vmatmul.mubr.f32.gmra.mrb[0].mxu0 %v8927
      %v9132 = vpop.f32.mrb[0].mxu0
      %v9133 = vadd.f32 0.0, %v9132
      %v9134 = vpop.f32.mrb[0].mxu0
      %9135 = vmatprep.mubr.f32.mxu0 0.0
      %9136 = vmatmul.mubr.f32.gmra.mrb[0].mxu0 %v8930
      %v9137 = vpop.f32.mrb[0].mxu0
      %v9138 = vadd.f32 0.0, %v9137
      %v9139 = vpop.f32.mrb[0].mxu0
      %9140 = vmatprep.mubr.f32.mxu0 0.0
      %9141 = vmatmul.mubr.f32.gmra.mrb[0].mxu0 %v8933
      %v9142 = vpop.f32.mrb[0].mxu0
      %v9143 = vadd.f32 0.0, %v9142
      %v9144 = vpop.f32.mrb[0].mxu0
      %9145 = vmatprep.mubr.f32.mxu0 0.0
      %9146 = vmatmul.mubr.f32.gmra.mrb[0].mxu0 %v8936
      %v9147 = vpop.f32.mrb[0].mxu0
      %v9148 = vadd.f32 0.0, %v9147
      %v9149 = vpop.f32.mrb[0].mxu0
      %9150 = vmatprep.mubr.f32.mxu0 0.0
      %9151 = vmatmul.mubr.f32.gmra.mrb[0].mxu0 %v8939
      %v9152 = vpop.f32.mrb[0].mxu0
      %v9153 = vadd.f32 0.0, %v9152
      %v9154 = vpop.f32.mrb[0].mxu0
      %9155 = vmatprep.mubr.f32.mxu0 0.0
      %9156 = vmatmul.mubr.f32.gmra.mrb[0].mxu0 %v8942
      %v9157 = vpop.f32.mrb[0].mxu0
      %v9158 = vadd.f32 0.0, %v9157
      %v9159 = vpop.f32.mrb[0].mxu0
      %9160 = vmatprep.mubr.f32.mxu0 0.0
      %9161 = vmatmul.mubr.f32.gmra.mrb[0].mxu0 %v8945
      %v9162 = vpop.f32.mrb[0].mxu0
      %v9163 = vadd.f32 0.0, %v9162
      %v9164 = vpop.f32.mrb[0].mxu0
      %9165 = vmatprep.mubr.f32.mxu0 0.0
      %9166 = vmatmul.mubr.f32.gmra.mrb[0].mxu0 %v8948
      %v9167 = vpop.f32.mrb[0].mxu0
      %v9168 = vadd.f32 0.0, %v9167
      %v9169 = vpop.f32.mrb[0].mxu0
      %9170 = vmatprep.mubr.f32.mxu0 0.0
      %9171 = vmatmul.mubr.f32.gmra.mrb[0].mxu0 %v8951
      %v9172 = vpop.f32.mrb[0].mxu0
      %v9173 = vadd.f32 0.0, %v9172
      %v9174 = vpop.f32.mrb[0].mxu0
      %9175 = vmatprep.mubr.f32.mxu0 0.0
      %9176 = vmatmul.mubr.f32.gmra.mrb[0].mxu0 %v8954
      %v9177 = vpop.f32.mrb[0].mxu0
      %v9178 = vadd.f32 0.0, %v9177
      %v9179 = vpop.f32.mrb[0].mxu0
      %9180 = vdwg.mxu0
      %v9181 = vadd.f32 %v8794, %v9023
      %v9182 = vadd.f32 %v8795, %v9028
      %v9183 = vadd.f32 %v8796, %v9033
      %v9184 = vadd.f32 %v8797, %v9038
      %v9185 = vadd.f32 %v8798, %v9043
      %v9186 = vadd.f32 %v8799, %v9048
      %v9187 = vadd.f32 %v8800, %v9053
      %v9188 = vadd.f32 %v8801, %v9058
      %v9189 = vadd.f32 %v8802, %v9063
      %v9190 = vadd.f32 %v8803, %v9068
      %v9191 = vadd.f32 %v8804, %v9073
      %v9192 = vadd.f32 %v8805, %v9078
      %v9193 = vadd.f32 %v8806, %v9083
      %v9194 = vadd.f32 %v8807, %v9088
      %v9195 = vadd.f32 %v8808, %v9093
      %v9196 = vadd.f32 %v8809, %v9098
      %v9197 = vadd.f32 %v8810, %v9103
      %v9198 = vadd.f32 %v8811, %v9108
      %v9199 = vadd.f32 %v8812, %v9113
      %v9200 = vadd.f32 %v8813, %v9118
      %v9201 = vadd.f32 %v8814, %v9123
      %v9202 = vadd.f32 %v8815, %v9128
      %v9203 = vadd.f32 %v8816, %v9133
      %v9204 = vadd.f32 %v8817, %v9138
      %v9205 = vadd.f32 %v8818, %v9143
      %v9206 = vadd.f32 %v8819, %v9148
      %v9207 = vadd.f32 %v8820, %v9153
      %v9208 = vadd.f32 %v8821, %v9158
      %v9209 = vadd.f32 %v8822, %v9163
      %v9210 = vadd.f32 %v8823, %v9168
      %v9211 = vadd.f32 %v8824, %v9173
      %v9212 = vadd.f32 %v8825, %v9178
      %v9213 = vld [vmem:[%s7697 + $0x1] sm:$0xff]
      %v9214 = vld [vmem:[%s7697 + $0x9] sm:$0xff]
      %v9215 = vld [vmem:[%s7697 + $0x19] sm:$0xff]
      %v9216 = vld [vmem:[%s7697 + $0x21] sm:$0xff]
      %v9217 = vld [vmem:[%s7697 + $0x31] sm:$0xff]
      %v9218 = vld [vmem:[%s7697 + $0x39] sm:$0xff]
      %v9219 = vld [vmem:[%s7697 + $0x49] sm:$0xff]
      %v9220 = vld [vmem:[%s7697 + $0x51] sm:$0xff]
      %v9221 = vld [vmem:[%s7697 + $0x61] sm:$0xff]
      %v9222 = vld [vmem:[%s7697 + $0x69] sm:$0xff]
      %v9223 = vld [vmem:[%s7697 + $0x79] sm:$0xff]
      %v9224 = vld [vmem:[%s7697 + $0x81] sm:$0xff]
      %v9225 = vld [vmem:[%s7697 + $0x91] sm:$0xff]
      %v9226 = vld [vmem:[%s7697 + $0x99] sm:$0xff]
      %v9227 = vld [vmem:[%s7697 + $0xa9] sm:$0xff]
      %v9228 = vld [vmem:[%s7697 + $0xb1] sm:$0xff]
      %v9229 = vld [vmem:[%s7697 + $0xc1] sm:$0xff]
      %v9230 = vld [vmem:[%s7697 + $0xc9] sm:$0xff]
      %v9231 = vld [vmem:[%s7697 + $0xd9] sm:$0xff]
      %v9232 = vld [vmem:[%s7697 + $0xe1] sm:$0xff]
      %v9233 = vld [vmem:[%s7697 + $0xf1] sm:$0xff]
      %v9234 = vld [vmem:[%s7697 + $0xf9] sm:$0xff]
      %v9235 = vld [vmem:[%s7697 + $0x109] sm:$0xff]
      %v9236 = vld [vmem:[%s7697 + $0x111] sm:$0xff]
      %v9237 = vld [vmem:[%s7697 + $0x121] sm:$0xff]
      %v9238 = vld [vmem:[%s7697 + $0x129] sm:$0xff]
      %v9239 = vld [vmem:[%s7697 + $0x139] sm:$0xff]
      %v9240 = vld [vmem:[%s7697 + $0x141] sm:$0xff]
      %v9241 = vld [vmem:[%s7697 + $0x151] sm:$0xff]
      %v9242 = vld [vmem:[%s7697 + $0x159] sm:$0xff]
      %v9243 = vld [vmem:[%s7697 + $0x169] sm:$0xff]
      %v9244 = vld [vmem:[%s7697 + $0x171] sm:$0xff]
      %s9245 = scalar_lea.vmem %s6, 32
      %v9246 = vld [vmem:[%s9245] sm:$0xff]
      %v9248 = vsel %vm306, %v9213, 0
      %v9251 = vsel %vm306, %v9214, 0
      %v9254 = vsel %vm306, %v9215, 0
      %v9257 = vsel %vm306, %v9216, 0
      %v9260 = vsel %vm306, %v9217, 0
      %v9263 = vsel %vm306, %v9218, 0
      %v9266 = vsel %vm306, %v9219, 0
      %v9269 = vsel %vm306, %v9220, 0
      %v9272 = vsel %vm306, %v9221, 0
      %v9275 = vsel %vm306, %v9222, 0
      %v9278 = vsel %vm306, %v9223, 0
      %v9281 = vsel %vm306, %v9224, 0
      %v9284 = vsel %vm306, %v9225, 0
      %v9287 = vsel %vm306, %v9226, 0
      %v9290 = vsel %vm306, %v9227, 0
      %v9293 = vsel %vm306, %v9228, 0
      %v9296 = vsel %vm306, %v9229, 0
      %v9299 = vsel %vm306, %v9230, 0
      %v9302 = vsel %vm306, %v9231, 0
      %v9305 = vsel %vm306, %v9232, 0
      %v9308 = vsel %vm306, %v9233, 0
      %v9311 = vsel %vm306, %v9234, 0
      %v9314 = vsel %vm306, %v9235, 0
      %v9317 = vsel %vm306, %v9236, 0
      %v9320 = vsel %vm306, %v9237, 0
      %v9323 = vsel %vm306, %v9238, 0
      %v9326 = vsel %vm306, %v9239, 0
      %v9329 = vsel %vm306, %v9240, 0
      %v9332 = vsel %vm306, %v9241, 0
      %v9335 = vsel %vm306, %v9242, 0
      %v9338 = vsel %vm306, %v9243, 0
      %v9341 = vsel %vm306, %v9244, 0
      %9343 = vmatprep.subr.mxu0 0.0
      %9344 = vmatpush1.msra.mxu0 %v9246
      %9345 = vmatprep.subr.mxu0 0.0
      %9346 = vmatpush1.msra.mxu0 0.0
      %9347 = vmatprep.subr.mxu0 0.0
      %9348 = vmatpush1.msra.mxu0 0.0
      %9349 = vmatprep.subr.mxu0 0.0
      %9350 = vmatpush1.msra.mxu0 0.0
      %9351 = vmatprep.subr.mxu0 0.0
      %9352 = vmatpush1.msra.mxu0 0.0
      %9353 = vmatprep.subr.mxu0 0.0
      %9354 = vmatpush1.msra.mxu0 0.0
      %9355 = vmatprep.subr.mxu0 0.0
      %9356 = vmatpush1.msra.mxu0 0.0
      %9357 = vmatprep.subr.mxu0 0.0
      %9358 = vmatpush1.msra.mxu0 0.0
      %9359 = vmatprep.subr.mxu0 0.0
      %9360 = vmatpush1.msra.mxu0 0.0
      %9361 = vmatprep.subr.mxu0 0.0
      %9362 = vmatpush1.msra.mxu0 0.0
      %9363 = vmatprep.subr.mxu0 0.0
      %9364 = vmatpush1.msra.mxu0 0.0
      %9365 = vmatprep.subr.mxu0 0.0
      %9366 = vmatpush1.msra.mxu0 0.0
      %9367 = vmatprep.subr.mxu0 0.0
      %9368 = vmatpush1.msra.mxu0 0.0
      %9369 = vmatprep.subr.mxu0 0.0
      %9370 = vmatpush1.msra.mxu0 0.0
      %9371 = vmatprep.subr.mxu0 0.0
      %9372 = vmatpush1.msra.mxu0 0.0
      %9373 = vmatprep.subr.mxu0 0.0
      %9374 = vmatpush1.msra.mxu0 0.0
      %9375 = vmatprep.subr.mxu0 0.0
      %9376 = vmatpush1.msra.mxu0 0.0
      %9377 = vmatprep.subr.mxu0 0.0
      %9378 = vmatpush1.msra.mxu0 0.0
      %9379 = vmatprep.subr.mxu0 0.0
      %9380 = vmatpush1.msra.mxu0 0.0
      %9381 = vmatprep.subr.mxu0 0.0
      %9382 = vmatpush1.msra.mxu0 0.0
      %9383 = vmatprep.subr.mxu0 0.0
      %9384 = vmatpush1.msra.mxu0 0.0
      %9385 = vmatprep.subr.mxu0 0.0
      %9386 = vmatpush1.msra.mxu0 0.0
      %9387 = vmatprep.subr.mxu0 0.0
      %9388 = vmatpush1.msra.mxu0 0.0
      %9389 = vmatprep.subr.mxu0 0.0
      %9390 = vmatpush1.msra.mxu0 0.0
      %9391 = vmatprep.subr.mxu0 0.0
      %9392 = vmatpush1.msra.mxu0 0.0
      %9393 = vmatprep.subr.mxu0 0.0
      %9394 = vmatpush1.msra.mxu0 0.0
      %9395 = vmatprep.subr.mxu0 0.0
      %9396 = vmatpush1.msra.mxu0 0.0
      %9397 = vmatprep.subr.mxu0 0.0
      %9398 = vmatpush1.msra.mxu0 0.0
      %9399 = vmatprep.subr.mxu0 0.0
      %9400 = vmatpush1.msra.mxu0 0.0
      %9401 = vmatprep.subr.mxu0 0.0
      %9402 = vmatpush1.msra.mxu0 0.0
      %9403 = vmatprep.subr.mxu0 0.0
      %9404 = vmatpush1.msra.mxu0 0.0
      %9405 = vmatprep.subr.mxu0 0.0
      %9406 = vmatpush1.msra.mxu0 0.0
      %9407 = vmatprep.mubr.f32.mxu0 0.0
      %9408 = vmatmul.mubr.f32.gmra.mrb[0].mxu0 %v9248
      %v9409 = vpop.f32.mrb[0].mxu0
      %v9410 = vadd.f32 0.0, %v9409
      %v9411 = vpop.f32.mrb[0].mxu0
      %9412 = vmatprep.mubr.f32.mxu0 0.0
      %9413 = vmatmul.mubr.f32.gmra.mrb[0].mxu0 %v9251
      %v9414 = vpop.f32.mrb[0].mxu0
      %v9415 = vadd.f32 0.0, %v9414
      %v9416 = vpop.f32.mrb[0].mxu0
      %9417 = vmatprep.mubr.f32.mxu0 0.0
      %9418 = vmatmul.mubr.f32.gmra.mrb[0].mxu0 %v9254
      %v9419 = vpop.f32.mrb[0].mxu0
      %v9420 = vadd.f32 0.0, %v9419
      %v9421 = vpop.f32.mrb[0].mxu0
      %9422 = vmatprep.mubr.f32.mxu0 0.0
      %9423 = vmatmul.mubr.f32.gmra.mrb[0].mxu0 %v9257
      %v9424 = vpop.f32.mrb[0].mxu0
      %v9425 = vadd.f32 0.0, %v9424
      %v9426 = vpop.f32.mrb[0].mxu0
      %9427 = vmatprep.mubr.f32.mxu0 0.0
      %9428 = vmatmul.mubr.f32.gmra.mrb[0].mxu0 %v9260
      %v9429 = vpop.f32.mrb[0].mxu0
      %v9430 = vadd.f32 0.0, %v9429
      %v9431 = vpop.f32.mrb[0].mxu0
      %9432 = vmatprep.mubr.f32.mxu0 0.0
      %9433 = vmatmul.mubr.f32.gmra.mrb[0].mxu0 %v9263
      %v9434 = vpop.f32.mrb[0].mxu0
      %v9435 = vadd.f32 0.0, %v9434
      %v9436 = vpop.f32.mrb[0].mxu0
      %9437 = vmatprep.mubr.f32.mxu0 0.0
      %9438 = vmatmul.mubr.f32.gmra.mrb[0].mxu0 %v9266
      %v9439 = vpop.f32.mrb[0].mxu0
      %v9440 = vadd.f32 0.0, %v9439
      %v9441 = vpop.f32.mrb[0].mxu0
      %9442 = vmatprep.mubr.f32.mxu0 0.0
      %9443 = vmatmul.mubr.f32.gmra.mrb[0].mxu0 %v9269
      %v9444 = vpop.f32.mrb[0].mxu0
      %v9445 = vadd.f32 0.0, %v9444
      %v9446 = vpop.f32.mrb[0].mxu0
      %9447 = vmatprep.mubr.f32.mxu0 0.0
      %9448 = vmatmul.mubr.f32.gmra.mrb[0].mxu0 %v9272
      %v9449 = vpop.f32.mrb[0].mxu0
      %v9450 = vadd.f32 0.0, %v9449
      %v9451 = vpop.f32.mrb[0].mxu0
      %9452 = vmatprep.mubr.f32.mxu0 0.0
      %9453 = vmatmul.mubr.f32.gmra.mrb[0].mxu0 %v9275
      %v9454 = vpop.f32.mrb[0].mxu0
      %v9455 = vadd.f32 0.0, %v9454
      %v9456 = vpop.f32.mrb[0].mxu0
      %9457 = vmatprep.mubr.f32.mxu0 0.0
      %9458 = vmatmul.mubr.f32.gmra.mrb[0].mxu0 %v9278
      %v9459 = vpop.f32.mrb[0].mxu0
      %v9460 = vadd.f32 0.0, %v9459
      %v9461 = vpop.f32.mrb[0].mxu0
      %9462 = vmatprep.mubr.f32.mxu0 0.0
      %9463 = vmatmul.mubr.f32.gmra.mrb[0].mxu0 %v9281
      %v9464 = vpop.f32.mrb[0].mxu0
      %v9465 = vadd.f32 0.0, %v9464
      %v9466 = vpop.f32.mrb[0].mxu0
      %9467 = vmatprep.mubr.f32.mxu0 0.0
      %9468 = vmatmul.mubr.f32.gmra.mrb[0].mxu0 %v9284
      %v9469 = vpop.f32.mrb[0].mxu0
      %v9470 = vadd.f32 0.0, %v9469
      %v9471 = vpop.f32.mrb[0].mxu0
      %9472 = vmatprep.mubr.f32.mxu0 0.0
      %9473 = vmatmul.mubr.f32.gmra.mrb[0].mxu0 %v9287
      %v9474 = vpop.f32.mrb[0].mxu0
      %v9475 = vadd.f32 0.0, %v9474
      %v9476 = vpop.f32.mrb[0].mxu0
      %9477 = vmatprep.mubr.f32.mxu0 0.0
      %9478 = vmatmul.mubr.f32.gmra.mrb[0].mxu0 %v9290
      %v9479 = vpop.f32.mrb[0].mxu0
      %v9480 = vadd.f32 0.0, %v9479
      %v9481 = vpop.f32.mrb[0].mxu0
      %9482 = vmatprep.mubr.f32.mxu0 0.0
      %9483 = vmatmul.mubr.f32.gmra.mrb[0].mxu0 %v9293
      %v9484 = vpop.f32.mrb[0].mxu0
      %v9485 = vadd.f32 0.0, %v9484
      %v9486 = vpop.f32.mrb[0].mxu0
      %9487 = vmatprep.mubr.f32.mxu0 0.0
      %9488 = vmatmul.mubr.f32.gmra.mrb[0].mxu0 %v9296
      %v9489 = vpop.f32.mrb[0].mxu0
      %v9490 = vadd.f32 0.0, %v9489
      %v9491 = vpop.f32.mrb[0].mxu0
      %9492 = vmatprep.mubr.f32.mxu0 0.0
      %9493 = vmatmul.mubr.f32.gmra.mrb[0].mxu0 %v9299
      %v9494 = vpop.f32.mrb[0].mxu0
      %v9495 = vadd.f32 0.0, %v9494
      %v9496 = vpop.f32.mrb[0].mxu0
      %9497 = vmatprep.mubr.f32.mxu0 0.0
      %9498 = vmatmul.mubr.f32.gmra.mrb[0].mxu0 %v9302
      %v9499 = vpop.f32.mrb[0].mxu0
      %v9500 = vadd.f32 0.0, %v9499
      %v9501 = vpop.f32.mrb[0].mxu0
      %9502 = vmatprep.mubr.f32.mxu0 0.0
      %9503 = vmatmul.mubr.f32.gmra.mrb[0].mxu0 %v9305
      %v9504 = vpop.f32.mrb[0].mxu0
      %v9505 = vadd.f32 0.0, %v9504
      %v9506 = vpop.f32.mrb[0].mxu0
      %9507 = vmatprep.mubr.f32.mxu0 0.0
      %9508 = vmatmul.mubr.f32.gmra.mrb[0].mxu0 %v9308
      %v9509 = vpop.f32.mrb[0].mxu0
      %v9510 = vadd.f32 0.0, %v9509
      %v9511 = vpop.f32.mrb[0].mxu0
      %9512 = vmatprep.mubr.f32.mxu0 0.0
      %9513 = vmatmul.mubr.f32.gmra.mrb[0].mxu0 %v9311
      %v9514 = vpop.f32.mrb[0].mxu0
      %v9515 = vadd.f32 0.0, %v9514
      %v9516 = vpop.f32.mrb[0].mxu0
      %9517 = vmatprep.mubr.f32.mxu0 0.0
      %9518 = vmatmul.mubr.f32.gmra.mrb[0].mxu0 %v9314
      %v9519 = vpop.f32.mrb[0].mxu0
      %v9520 = vadd.f32 0.0, %v9519
      %v9521 = vpop.f32.mrb[0].mxu0
      %9522 = vmatprep.mubr.f32.mxu0 0.0
      %9523 = vmatmul.mubr.f32.gmra.mrb[0].mxu0 %v9317
      %v9524 = vpop.f32.mrb[0].mxu0
      %v9525 = vadd.f32 0.0, %v9524
      %v9526 = vpop.f32.mrb[0].mxu0
      %9527 = vmatprep.mubr.f32.mxu0 0.0
      %9528 = vmatmul.mubr.f32.gmra.mrb[0].mxu0 %v9320
      %v9529 = vpop.f32.mrb[0].mxu0
      %v9530 = vadd.f32 0.0, %v9529
      %v9531 = vpop.f32.mrb[0].mxu0
      %9532 = vmatprep.mubr.f32.mxu0 0.0
      %9533 = vmatmul.mubr.f32.gmra.mrb[0].mxu0 %v9323
      %v9534 = vpop.f32.mrb[0].mxu0
      %v9535 = vadd.f32 0.0, %v9534
      %v9536 = vpop.f32.mrb[0].mxu0
      %9537 = vmatprep.mubr.f32.mxu0 0.0
      %9538 = vmatmul.mubr.f32.gmra.mrb[0].mxu0 %v9326
      %v9539 = vpop.f32.mrb[0].mxu0
      %v9540 = vadd.f32 0.0, %v9539
      %v9541 = vpop.f32.mrb[0].mxu0
      %9542 = vmatprep.mubr.f32.mxu0 0.0
      %9543 = vmatmul.mubr.f32.gmra.mrb[0].mxu0 %v9329
      %v9544 = vpop.f32.mrb[0].mxu0
      %v9545 = vadd.f32 0.0, %v9544
      %v9546 = vpop.f32.mrb[0].mxu0
      %9547 = vmatprep.mubr.f32.mxu0 0.0
      %9548 = vmatmul.mubr.f32.gmra.mrb[0].mxu0 %v9332
      %v9549 = vpop.f32.mrb[0].mxu0
      %v9550 = vadd.f32 0.0, %v9549
      %v9551 = vpop.f32.mrb[0].mxu0
      %9552 = vmatprep.mubr.f32.mxu0 0.0
      %9553 = vmatmul.mubr.f32.gmra.mrb[0].mxu0 %v9335
      %v9554 = vpop.f32.mrb[0].mxu0
      %v9555 = vadd.f32 0.0, %v9554
      %v9556 = vpop.f32.mrb[0].mxu0
      %9557 = vmatprep.mubr.f32.mxu0 0.0
      %9558 = vmatmul.mubr.f32.gmra.mrb[0].mxu0 %v9338
      %v9559 = vpop.f32.mrb[0].mxu0
      %v9560 = vadd.f32 0.0, %v9559
      %v9561 = vpop.f32.mrb[0].mxu0
      %9562 = vmatprep.mubr.f32.mxu0 0.0
      %9563 = vmatmul.mubr.f32.gmra.mrb[0].mxu0 %v9341
      %v9564 = vpop.f32.mrb[0].mxu0
      %v9565 = vadd.f32 0.0, %v9564
      %v9566 = vpop.f32.mrb[0].mxu0
      %9567 = vdwg.mxu0
      %v9568 = vadd.f32 %v9181, %v9410
      %v9569 = vadd.f32 %v9182, %v9415
      %v9570 = vadd.f32 %v9183, %v9420
      %v9571 = vadd.f32 %v9184, %v9425
      %v9572 = vadd.f32 %v9185, %v9430
      %v9573 = vadd.f32 %v9186, %v9435
      %v9574 = vadd.f32 %v9187, %v9440
      %v9575 = vadd.f32 %v9188, %v9445
      %v9576 = vadd.f32 %v9189, %v9450
      %v9577 = vadd.f32 %v9190, %v9455
      %v9578 = vadd.f32 %v9191, %v9460
      %v9579 = vadd.f32 %v9192, %v9465
      %v9580 = vadd.f32 %v9193, %v9470
      %v9581 = vadd.f32 %v9194, %v9475
      %v9582 = vadd.f32 %v9195, %v9480
      %v9583 = vadd.f32 %v9196, %v9485
      %v9584 = vadd.f32 %v9197, %v9490
      %v9585 = vadd.f32 %v9198, %v9495
      %v9586 = vadd.f32 %v9199, %v9500
      %v9587 = vadd.f32 %v9200, %v9505
      %v9588 = vadd.f32 %v9201, %v9510
      %v9589 = vadd.f32 %v9202, %v9515
      %v9590 = vadd.f32 %v9203, %v9520
      %v9591 = vadd.f32 %v9204, %v9525
      %v9592 = vadd.f32 %v9205, %v9530
      %v9593 = vadd.f32 %v9206, %v9535
      %v9594 = vadd.f32 %v9207, %v9540
      %v9595 = vadd.f32 %v9208, %v9545
      %v9596 = vadd.f32 %v9209, %v9550
      %v9597 = vadd.f32 %v9210, %v9555
      %v9598 = vadd.f32 %v9211, %v9560
      %v9599 = vadd.f32 %v9212, %v9565
      %v9600 = vld [vmem:[%s7697 + $0x2] sm:$0xff]
      %v9601 = vld [vmem:[%s7697 + $0xa] sm:$0xff]
      %v9602 = vld [vmem:[%s7697 + $0x1a] sm:$0xff]
      %v9603 = vld [vmem:[%s7697 + $0x22] sm:$0xff]
      %v9604 = vld [vmem:[%s7697 + $0x32] sm:$0xff]
      %v9605 = vld [vmem:[%s7697 + $0x3a] sm:$0xff]
      %v9606 = vld [vmem:[%s7697 + $0x4a] sm:$0xff]
      %v9607 = vld [vmem:[%s7697 + $0x52] sm:$0xff]
      %v9608 = vld [vmem:[%s7697 + $0x62] sm:$0xff]
      %v9609 = vld [vmem:[%s7697 + $0x6a] sm:$0xff]
      %v9610 = vld [vmem:[%s7697 + $0x7a] sm:$0xff]
      %v9611 = vld [vmem:[%s7697 + $0x82] sm:$0xff]
      %v9612 = vld [vmem:[%s7697 + $0x92] sm:$0xff]
      %v9613 = vld [vmem:[%s7697 + $0x9a] sm:$0xff]
      %v9614 = vld [vmem:[%s7697 + $0xaa] sm:$0xff]
      %v9615 = vld [vmem:[%s7697 + $0xb2] sm:$0xff]
      %v9616 = vld [vmem:[%s7697 + $0xc2] sm:$0xff]
      %v9617 = vld [vmem:[%s7697 + $0xca] sm:$0xff]
      %v9618 = vld [vmem:[%s7697 + $0xda] sm:$0xff]
      %v9619 = vld [vmem:[%s7697 + $0xe2] sm:$0xff]
      %v9620 = vld [vmem:[%s7697 + $0xf2] sm:$0xff]
      %v9621 = vld [vmem:[%s7697 + $0xfa] sm:$0xff]
      %v9622 = vld [vmem:[%s7697 + $0x10a] sm:$0xff]
      %v9623 = vld [vmem:[%s7697 + $0x112] sm:$0xff]
      %v9624 = vld [vmem:[%s7697 + $0x122] sm:$0xff]
      %v9625 = vld [vmem:[%s7697 + $0x12a] sm:$0xff]
      %v9626 = vld [vmem:[%s7697 + $0x13a] sm:$0xff]
      %v9627 = vld [vmem:[%s7697 + $0x142] sm:$0xff]
      %v9628 = vld [vmem:[%s7697 + $0x152] sm:$0xff]
      %v9629 = vld [vmem:[%s7697 + $0x15a] sm:$0xff]
      %v9630 = vld [vmem:[%s7697 + $0x16a] sm:$0xff]
      %v9631 = vld [vmem:[%s7697 + $0x172] sm:$0xff]
      %s9632 = scalar_lea.vmem %s6, 40
      %v9633 = vld [vmem:[%s9632] sm:$0xff]
      %v9635 = vsel %vm306, %v9600, 0
      %v9638 = vsel %vm306, %v9601, 0
      %v9641 = vsel %vm306, %v9602, 0
      %v9644 = vsel %vm306, %v9603, 0
      %v9647 = vsel %vm306, %v9604, 0
      %v9650 = vsel %vm306, %v9605, 0
      %v9653 = vsel %vm306, %v9606, 0
      %v9656 = vsel %vm306, %v9607, 0
      %v9659 = vsel %vm306, %v9608, 0
      %v9662 = vsel %vm306, %v9609, 0
      %v9665 = vsel %vm306, %v9610, 0
      %v9668 = vsel %vm306, %v9611, 0
      %v9671 = vsel %vm306, %v9612, 0
      %v9674 = vsel %vm306, %v9613, 0
      %v9677 = vsel %vm306, %v9614, 0
      %v9680 = vsel %vm306, %v9615, 0
      %v9683 = vsel %vm306, %v9616, 0
      %v9686 = vsel %vm306, %v9617, 0
      %v9689 = vsel %vm306, %v9618, 0
      %v9692 = vsel %vm306, %v9619, 0
      %v9695 = vsel %vm306, %v9620, 0
      %v9698 = vsel %vm306, %v9621, 0
      %v9701 = vsel %vm306, %v9622, 0
      %v9704 = vsel %vm306, %v9623, 0
      %v9707 = vsel %vm306, %v9624, 0
      %v9710 = vsel %vm306, %v9625, 0
      %v9713 = vsel %vm306, %v9626, 0
      %v9716 = vsel %vm306, %v9627, 0
      %v9719 = vsel %vm306, %v9628, 0
      %v9722 = vsel %vm306, %v9629, 0
      %v9725 = vsel %vm306, %v9630, 0
      %v9728 = vsel %vm306, %v9631, 0
      %9730 = vmatprep.subr.mxu0 0.0
      %9731 = vmatpush1.msra.mxu0 %v9633
      %9732 = vmatprep.subr.mxu0 0.0
      %9733 = vmatpush1.msra.mxu0 0.0
      %9734 = vmatprep.subr.mxu0 0.0
      %9735 = vmatpush1.msra.mxu0 0.0
      %9736 = vmatprep.subr.mxu0 0.0
      %9737 = vmatpush1.msra.mxu0 0.0
      %9738 = vmatprep.subr.mxu0 0.0
      %9739 = vmatpush1.msra.mxu0 0.0
      %9740 = vmatprep.subr.mxu0 0.0
      %9741 = vmatpush1.msra.mxu0 0.0
      %9742 = vmatprep.subr.mxu0 0.0
      %9743 = vmatpush1.msra.mxu0 0.0
      %9744 = vmatprep.subr.mxu0 0.0
      %9745 = vmatpush1.msra.mxu0 0.0
      %9746 = vmatprep.subr.mxu0 0.0
      %9747 = vmatpush1.msra.mxu0 0.0
      %9748 = vmatprep.subr.mxu0 0.0
      %9749 = vmatpush1.msra.mxu0 0.0
      %9750 = vmatprep.subr.mxu0 0.0
      %9751 = vmatpush1.msra.mxu0 0.0
      %9752 = vmatprep.subr.mxu0 0.0
      %9753 = vmatpush1.msra.mxu0 0.0
      %9754 = vmatprep.subr.mxu0 0.0
      %9755 = vmatpush1.msra.mxu0 0.0
      %9756 = vmatprep.subr.mxu0 0.0
      %9757 = vmatpush1.msra.mxu0 0.0
      %9758 = vmatprep.subr.mxu0 0.0
      %9759 = vmatpush1.msra.mxu0 0.0
      %9760 = vmatprep.subr.mxu0 0.0
      %9761 = vmatpush1.msra.mxu0 0.0
      %9762 = vmatprep.subr.mxu0 0.0
      %9763 = vmatpush1.msra.mxu0 0.0
      %9764 = vmatprep.subr.mxu0 0.0
      %9765 = vmatpush1.msra.mxu0 0.0
      %9766 = vmatprep.subr.mxu0 0.0
      %9767 = vmatpush1.msra.mxu0 0.0
      %9768 = vmatprep.subr.mxu0 0.0
      %9769 = vmatpush1.msra.mxu0 0.0
      %9770 = vmatprep.subr.mxu0 0.0
      %9771 = vmatpush1.msra.mxu0 0.0
      %9772 = vmatprep.subr.mxu0 0.0
      %9773 = vmatpush1.msra.mxu0 0.0
      %9774 = vmatprep.subr.mxu0 0.0
      %9775 = vmatpush1.msra.mxu0 0.0
      %9776 = vmatprep.subr.mxu0 0.0
      %9777 = vmatpush1.msra.mxu0 0.0
      %9778 = vmatprep.subr.mxu0 0.0
      %9779 = vmatpush1.msra.mxu0 0.0
      %9780 = vmatprep.subr.mxu0 0.0
      %9781 = vmatpush1.msra.mxu0 0.0
      %9782 = vmatprep.subr.mxu0 0.0
      %9783 = vmatpush1.msra.mxu0 0.0
      %9784 = vmatprep.subr.mxu0 0.0
      %9785 = vmatpush1.msra.mxu0 0.0
      %9786 = vmatprep.subr.mxu0 0.0
      %9787 = vmatpush1.msra.mxu0 0.0
      %9788 = vmatprep.subr.mxu0 0.0
      %9789 = vmatpush1.msra.mxu0 0.0
      %9790 = vmatprep.subr.mxu0 0.0
      %9791 = vmatpush1.msra.mxu0 0.0
      %9792 = vmatprep.subr.mxu0 0.0
      %9793 = vmatpush1.msra.mxu0 0.0
      %9794 = vmatprep.mubr.f32.mxu0 0.0
      %9795 = vmatmul.mubr.f32.gmra.mrb[0].mxu0 %v9635
      %v9796 = vpop.f32.mrb[0].mxu0
      %v9797 = vadd.f32 0.0, %v9796
      %v9798 = vpop.f32.mrb[0].mxu0
      %9799 = vmatprep.mubr.f32.mxu0 0.0
      %9800 = vmatmul.mubr.f32.gmra.mrb[0].mxu0 %v9638
      %v9801 = vpop.f32.mrb[0].mxu0
      %v9802 = vadd.f32 0.0, %v9801
      %v9803 = vpop.f32.mrb[0].mxu0
      %9804 = vmatprep.mubr.f32.mxu0 0.0
      %9805 = vmatmul.mubr.f32.gmra.mrb[0].mxu0 %v9641
      %v9806 = vpop.f32.mrb[0].mxu0
      %v9807 = vadd.f32 0.0, %v9806
      %v9808 = vpop.f32.mrb[0].mxu0
      %9809 = vmatprep.mubr.f32.mxu0 0.0
      %9810 = vmatmul.mubr.f32.gmra.mrb[0].mxu0 %v9644
      %v9811 = vpop.f32.mrb[0].mxu0
      %v9812 = vadd.f32 0.0, %v9811
      %v9813 = vpop.f32.mrb[0].mxu0
      %9814 = vmatprep.mubr.f32.mxu0 0.0
      %9815 = vmatmul.mubr.f32.gmra.mrb[0].mxu0 %v9647
      %v9816 = vpop.f32.mrb[0].mxu0
      %v9817 = vadd.f32 0.0, %v9816
      %v9818 = vpop.f32.mrb[0].mxu0
      %9819 = vmatprep.mubr.f32.mxu0 0.0
      %9820 = vmatmul.mubr.f32.gmra.mrb[0].mxu0 %v9650
      %v9821 = vpop.f32.mrb[0].mxu0
      %v9822 = vadd.f32 0.0, %v9821
      %v9823 = vpop.f32.mrb[0].mxu0
      %9824 = vmatprep.mubr.f32.mxu0 0.0
      %9825 = vmatmul.mubr.f32.gmra.mrb[0].mxu0 %v9653
      %v9826 = vpop.f32.mrb[0].mxu0
      %v9827 = vadd.f32 0.0, %v9826
      %v9828 = vpop.f32.mrb[0].mxu0
      %9829 = vmatprep.mubr.f32.mxu0 0.0
      %9830 = vmatmul.mubr.f32.gmra.mrb[0].mxu0 %v9656
      %v9831 = vpop.f32.mrb[0].mxu0
      %v9832 = vadd.f32 0.0, %v9831
      %v9833 = vpop.f32.mrb[0].mxu0
      %9834 = vmatprep.mubr.f32.mxu0 0.0
      %9835 = vmatmul.mubr.f32.gmra.mrb[0].mxu0 %v9659
      %v9836 = vpop.f32.mrb[0].mxu0
      %v9837 = vadd.f32 0.0, %v9836
      %v9838 = vpop.f32.mrb[0].mxu0
      %9839 = vmatprep.mubr.f32.mxu0 0.0
      %9840 = vmatmul.mubr.f32.gmra.mrb[0].mxu0 %v9662
      %v9841 = vpop.f32.mrb[0].mxu0
      %v9842 = vadd.f32 0.0, %v9841
      %v9843 = vpop.f32.mrb[0].mxu0
      %9844 = vmatprep.mubr.f32.mxu0 0.0
      %9845 = vmatmul.mubr.f32.gmra.mrb[0].mxu0 %v9665
      %v9846 = vpop.f32.mrb[0].mxu0
      %v9847 = vadd.f32 0.0, %v9846
      %v9848 = vpop.f32.mrb[0].mxu0
      %9849 = vmatprep.mubr.f32.mxu0 0.0
      %9850 = vmatmul.mubr.f32.gmra.mrb[0].mxu0 %v9668
      %v9851 = vpop.f32.mrb[0].mxu0
      %v9852 = vadd.f32 0.0, %v9851
      %v9853 = vpop.f32.mrb[0].mxu0
      %9854 = vmatprep.mubr.f32.mxu0 0.0
      %9855 = vmatmul.mubr.f32.gmra.mrb[0].mxu0 %v9671
      %v9856 = vpop.f32.mrb[0].mxu0
      %v9857 = vadd.f32 0.0, %v9856
      %v9858 = vpop.f32.mrb[0].mxu0
      %9859 = vmatprep.mubr.f32.mxu0 0.0
      %9860 = vmatmul.mubr.f32.gmra.mrb[0].mxu0 %v9674
      %v9861 = vpop.f32.mrb[0].mxu0
      %v9862 = vadd.f32 0.0, %v9861
      %v9863 = vpop.f32.mrb[0].mxu0
      %9864 = vmatprep.mubr.f32.mxu0 0.0
      %9865 = vmatmul.mubr.f32.gmra.mrb[0].mxu0 %v9677
      %v9866 = vpop.f32.mrb[0].mxu0
      %v9867 = vadd.f32 0.0, %v9866
      %v9868 = vpop.f32.mrb[0].mxu0
      %9869 = vmatprep.mubr.f32.mxu0 0.0
      %9870 = vmatmul.mubr.f32.gmra.mrb[0].mxu0 %v9680
      %v9871 = vpop.f32.mrb[0].mxu0
      %v9872 = vadd.f32 0.0, %v9871
      %v9873 = vpop.f32.mrb[0].mxu0
      %9874 = vmatprep.mubr.f32.mxu0 0.0
      %9875 = vmatmul.mubr.f32.gmra.mrb[0].mxu0 %v9683
      %v9876 = vpop.f32.mrb[0].mxu0
      %v9877 = vadd.f32 0.0, %v9876
      %v9878 = vpop.f32.mrb[0].mxu0
      %9879 = vmatprep.mubr.f32.mxu0 0.0
      %9880 = vmatmul.mubr.f32.gmra.mrb[0].mxu0 %v9686
      %v9881 = vpop.f32.mrb[0].mxu0
      %v9882 = vadd.f32 0.0, %v9881
      %v9883 = vpop.f32.mrb[0].mxu0
      %9884 = vmatprep.mubr.f32.mxu0 0.0
      %9885 = vmatmul.mubr.f32.gmra.mrb[0].mxu0 %v9689
      %v9886 = vpop.f32.mrb[0].mxu0
      %v9887 = vadd.f32 0.0, %v9886
      %v9888 = vpop.f32.mrb[0].mxu0
      %9889 = vmatprep.mubr.f32.mxu0 0.0
      %9890 = vmatmul.mubr.f32.gmra.mrb[0].mxu0 %v9692
      %v9891 = vpop.f32.mrb[0].mxu0
      %v9892 = vadd.f32 0.0, %v9891
      %v9893 = vpop.f32.mrb[0].mxu0
      %9894 = vmatprep.mubr.f32.mxu0 0.0
      %9895 = vmatmul.mubr.f32.gmra.mrb[0].mxu0 %v9695
      %v9896 = vpop.f32.mrb[0].mxu0
      %v9897 = vadd.f32 0.0, %v9896
      %v9898 = vpop.f32.mrb[0].mxu0
      %9899 = vmatprep.mubr.f32.mxu0 0.0
      %9900 = vmatmul.mubr.f32.gmra.mrb[0].mxu0 %v9698
      %v9901 = vpop.f32.mrb[0].mxu0
      %v9902 = vadd.f32 0.0, %v9901
      %v9903 = vpop.f32.mrb[0].mxu0
      %9904 = vmatprep.mubr.f32.mxu0 0.0
      %9905 = vmatmul.mubr.f32.gmra.mrb[0].mxu0 %v9701
      %v9906 = vpop.f32.mrb[0].mxu0
      %v9907 = vadd.f32 0.0, %v9906
      %v9908 = vpop.f32.mrb[0].mxu0
      %9909 = vmatprep.mubr.f32.mxu0 0.0
      %9910 = vmatmul.mubr.f32.gmra.mrb[0].mxu0 %v9704
      %v9911 = vpop.f32.mrb[0].mxu0
      %v9912 = vadd.f32 0.0, %v9911
      %v9913 = vpop.f32.mrb[0].mxu0
      %9914 = vmatprep.mubr.f32.mxu0 0.0
      %9915 = vmatmul.mubr.f32.gmra.mrb[0].mxu0 %v9707
      %v9916 = vpop.f32.mrb[0].mxu0
      %v9917 = vadd.f32 0.0, %v9916
      %v9918 = vpop.f32.mrb[0].mxu0
      %9919 = vmatprep.mubr.f32.mxu0 0.0
      %9920 = vmatmul.mubr.f32.gmra.mrb[0].mxu0 %v9710
      %v9921 = vpop.f32.mrb[0].mxu0
      %v9922 = vadd.f32 0.0, %v9921
      %v9923 = vpop.f32.mrb[0].mxu0
      %9924 = vmatprep.mubr.f32.mxu0 0.0
      %9925 = vmatmul.mubr.f32.gmra.mrb[0].mxu0 %v9713
      %v9926 = vpop.f32.mrb[0].mxu0
      %v9927 = vadd.f32 0.0, %v9926
      %v9928 = vpop.f32.mrb[0].mxu0
      %9929 = vmatprep.mubr.f32.mxu0 0.0
      %9930 = vmatmul.mubr.f32.gmra.mrb[0].mxu0 %v9716
      %v9931 = vpop.f32.mrb[0].mxu0
      %v9932 = vadd.f32 0.0, %v9931
      %v9933 = vpop.f32.mrb[0].mxu0
      %9934 = vmatprep.mubr.f32.mxu0 0.0
      %9935 = vmatmul.mubr.f32.gmra.mrb[0].mxu0 %v9719
      %v9936 = vpop.f32.mrb[0].mxu0
      %v9937 = vadd.f32 0.0, %v9936
      %v9938 = vpop.f32.mrb[0].mxu0
      %9939 = vmatprep.mubr.f32.mxu0 0.0
      %9940 = vmatmul.mubr.f32.gmra.mrb[0].mxu0 %v9722
      %v9941 = vpop.f32.mrb[0].mxu0
      %v9942 = vadd.f32 0.0, %v9941
      %v9943 = vpop.f32.mrb[0].mxu0
      %9944 = vmatprep.mubr.f32.mxu0 0.0
      %9945 = vmatmul.mubr.f32.gmra.mrb[0].mxu0 %v9725
      %v9946 = vpop.f32.mrb[0].mxu0
      %v9947 = vadd.f32 0.0, %v9946
      %v9948 = vpop.f32.mrb[0].mxu0
      %9949 = vmatprep.mubr.f32.mxu0 0.0
      %9950 = vmatmul.mubr.f32.gmra.mrb[0].mxu0 %v9728
      %v9951 = vpop.f32.mrb[0].mxu0
      %v9952 = vadd.f32 0.0, %v9951
      %v9953 = vpop.f32.mrb[0].mxu0
      %9954 = vdwg.mxu0
      %v9955 = vadd.f32 %v9568, %v9797
      %v9956 = vadd.f32 %v9569, %v9802
      %v9957 = vadd.f32 %v9570, %v9807
      %v9958 = vadd.f32 %v9571, %v9812
      %v9959 = vadd.f32 %v9572, %v9817
      %v9960 = vadd.f32 %v9573, %v9822
      %v9961 = vadd.f32 %v9574, %v9827
      %v9962 = vadd.f32 %v9575, %v9832
      %v9963 = vadd.f32 %v9576, %v9837
      %v9964 = vadd.f32 %v9577, %v9842
      %v9965 = vadd.f32 %v9578, %v9847
      %v9966 = vadd.f32 %v9579, %v9852
      %v9967 = vadd.f32 %v9580, %v9857
      %v9968 = vadd.f32 %v9581, %v9862
      %v9969 = vadd.f32 %v9582, %v9867
      %v9970 = vadd.f32 %v9583, %v9872
      %v9971 = vadd.f32 %v9584, %v9877
      %v9972 = vadd.f32 %v9585, %v9882
      %v9973 = vadd.f32 %v9586, %v9887
      %v9974 = vadd.f32 %v9587, %v9892
      %v9975 = vadd.f32 %v9588, %v9897
      %v9976 = vadd.f32 %v9589, %v9902
      %v9977 = vadd.f32 %v9590, %v9907
      %v9978 = vadd.f32 %v9591, %v9912
      %v9979 = vadd.f32 %v9592, %v9917
      %v9980 = vadd.f32 %v9593, %v9922
      %v9981 = vadd.f32 %v9594, %v9927
      %v9982 = vadd.f32 %v9595, %v9932
      %v9983 = vadd.f32 %v9596, %v9937
      %v9984 = vadd.f32 %v9597, %v9942
      %v9985 = vadd.f32 %v9598, %v9947
      %v9986 = vadd.f32 %v9599, %v9952
      %s9987 = scalar_lea.vmem [#allocation3], 48
      %v9988 = vld [vmem:[%s9987] sm:$0xff]
      %v9989 = vld [vmem:[%s9987 + $0x8] sm:$0xff]
      %v9990 = vld [vmem:[%s9987 + $0x18] sm:$0xff]
      %v9991 = vld [vmem:[%s9987 + $0x20] sm:$0xff]
      %v9992 = vld [vmem:[%s9987 + $0x30] sm:$0xff]
      %v9993 = vld [vmem:[%s9987 + $0x38] sm:$0xff]
      %v9994 = vld [vmem:[%s9987 + $0x48] sm:$0xff]
      %v9995 = vld [vmem:[%s9987 + $0x50] sm:$0xff]
      %v9996 = vld [vmem:[%s9987 + $0x60] sm:$0xff]
      %v9997 = vld [vmem:[%s9987 + $0x68] sm:$0xff]
      %v9998 = vld [vmem:[%s9987 + $0x78] sm:$0xff]
      %v9999 = vld [vmem:[%s9987 + $0x80] sm:$0xff]
      %v10000 = vld [vmem:[%s9987 + $0x90] sm:$0xff]
      %v10001 = vld [vmem:[%s9987 + $0x98] sm:$0xff]
      %v10002 = vld [vmem:[%s9987 + $0xa8] sm:$0xff]
      %v10003 = vld [vmem:[%s9987 + $0xb0] sm:$0xff]
      %v10004 = vld [vmem:[%s9987 + $0xc0] sm:$0xff]
      %v10005 = vld [vmem:[%s9987 + $0xc8] sm:$0xff]
      %v10006 = vld [vmem:[%s9987 + $0xd8] sm:$0xff]
      %v10007 = vld [vmem:[%s9987 + $0xe0] sm:$0xff]
      %v10008 = vld [vmem:[%s9987 + $0xf0] sm:$0xff]
      %v10009 = vld [vmem:[%s9987 + $0xf8] sm:$0xff]
      %v10010 = vld [vmem:[%s9987 + $0x108] sm:$0xff]
      %v10011 = vld [vmem:[%s9987 + $0x110] sm:$0xff]
      %v10012 = vld [vmem:[%s9987 + $0x120] sm:$0xff]
      %v10013 = vld [vmem:[%s9987 + $0x128] sm:$0xff]
      %v10014 = vld [vmem:[%s9987 + $0x138] sm:$0xff]
      %v10015 = vld [vmem:[%s9987 + $0x140] sm:$0xff]
      %v10016 = vld [vmem:[%s9987 + $0x150] sm:$0xff]
      %v10017 = vld [vmem:[%s9987 + $0x158] sm:$0xff]
      %v10018 = vld [vmem:[%s9987 + $0x168] sm:$0xff]
      %v10019 = vld [vmem:[%s9987 + $0x170] sm:$0xff]
      %s10020 = scalar_lea.vmem %s6, 48
      %v10021 = vld [vmem:[%s10020] sm:$0xff]
      %v10023 = vsel %vm306, %v9988, 0
      %v10026 = vsel %vm306, %v9989, 0
      %v10029 = vsel %vm306, %v9990, 0
      %v10032 = vsel %vm306, %v9991, 0
      %v10035 = vsel %vm306, %v9992, 0
      %v10038 = vsel %vm306, %v9993, 0
      %v10041 = vsel %vm306, %v9994, 0
      %v10044 = vsel %vm306, %v9995, 0
      %v10047 = vsel %vm306, %v9996, 0
      %v10050 = vsel %vm306, %v9997, 0
      %v10053 = vsel %vm306, %v9998, 0
      %v10056 = vsel %vm306, %v9999, 0
      %v10059 = vsel %vm306, %v10000, 0
      %v10062 = vsel %vm306, %v10001, 0
      %v10065 = vsel %vm306, %v10002, 0
      %v10068 = vsel %vm306, %v10003, 0
      %v10071 = vsel %vm306, %v10004, 0
      %v10074 = vsel %vm306, %v10005, 0
      %v10077 = vsel %vm306, %v10006, 0
      %v10080 = vsel %vm306, %v10007, 0
      %v10083 = vsel %vm306, %v10008, 0
      %v10086 = vsel %vm306, %v10009, 0
      %v10089 = vsel %vm306, %v10010, 0
      %v10092 = vsel %vm306, %v10011, 0
      %v10095 = vsel %vm306, %v10012, 0
      %v10098 = vsel %vm306, %v10013, 0
      %v10101 = vsel %vm306, %v10014, 0
      %v10104 = vsel %vm306, %v10015, 0
      %v10107 = vsel %vm306, %v10016, 0
      %v10110 = vsel %vm306, %v10017, 0
      %v10113 = vsel %vm306, %v10018, 0
      %v10116 = vsel %vm306, %v10019, 0
      %10118 = vmatprep.subr.mxu0 0.0
      %10119 = vmatpush1.msra.mxu0 %v10021
      %10120 = vmatprep.subr.mxu0 0.0
      %10121 = vmatpush1.msra.mxu0 0.0
      %10122 = vmatprep.subr.mxu0 0.0
      %10123 = vmatpush1.msra.mxu0 0.0
      %10124 = vmatprep.subr.mxu0 0.0
      %10125 = vmatpush1.msra.mxu0 0.0
      %10126 = vmatprep.subr.mxu0 0.0
      %10127 = vmatpush1.msra.mxu0 0.0
      %10128 = vmatprep.subr.mxu0 0.0
      %10129 = vmatpush1.msra.mxu0 0.0
      %10130 = vmatprep.subr.mxu0 0.0
      %10131 = vmatpush1.msra.mxu0 0.0
      %10132 = vmatprep.subr.mxu0 0.0
      %10133 = vmatpush1.msra.mxu0 0.0
      %10134 = vmatprep.subr.mxu0 0.0
      %10135 = vmatpush1.msra.mxu0 0.0
      %10136 = vmatprep.subr.mxu0 0.0
      %10137 = vmatpush1.msra.mxu0 0.0
      %10138 = vmatprep.subr.mxu0 0.0
      %10139 = vmatpush1.msra.mxu0 0.0
      %10140 = vmatprep.subr.mxu0 0.0
      %10141 = vmatpush1.msra.mxu0 0.0
      %10142 = vmatprep.subr.mxu0 0.0
      %10143 = vmatpush1.msra.mxu0 0.0
      %10144 = vmatprep.subr.mxu0 0.0
      %10145 = vmatpush1.msra.mxu0 0.0
      %10146 = vmatprep.subr.mxu0 0.0
      %10147 = vmatpush1.msra.mxu0 0.0
      %10148 = vmatprep.subr.mxu0 0.0
      %10149 = vmatpush1.msra.mxu0 0.0
      %10150 = vmatprep.subr.mxu0 0.0
      %10151 = vmatpush1.msra.mxu0 0.0
      %10152 = vmatprep.subr.mxu0 0.0
      %10153 = vmatpush1.msra.mxu0 0.0
      %10154 = vmatprep.subr.mxu0 0.0
      %10155 = vmatpush1.msra.mxu0 0.0
      %10156 = vmatprep.subr.mxu0 0.0
      %10157 = vmatpush1.msra.mxu0 0.0
      %10158 = vmatprep.subr.mxu0 0.0
      %10159 = vmatpush1.msra.mxu0 0.0
      %10160 = vmatprep.subr.mxu0 0.0
      %10161 = vmatpush1.msra.mxu0 0.0
      %10162 = vmatprep.subr.mxu0 0.0
      %10163 = vmatpush1.msra.mxu0 0.0
      %10164 = vmatprep.subr.mxu0 0.0
      %10165 = vmatpush1.msra.mxu0 0.0
      %10166 = vmatprep.subr.mxu0 0.0
      %10167 = vmatpush1.msra.mxu0 0.0
      %10168 = vmatprep.subr.mxu0 0.0
      %10169 = vmatpush1.msra.mxu0 0.0
      %10170 = vmatprep.subr.mxu0 0.0
      %10171 = vmatpush1.msra.mxu0 0.0
      %10172 = vmatprep.subr.mxu0 0.0
      %10173 = vmatpush1.msra.mxu0 0.0
      %10174 = vmatprep.subr.mxu0 0.0
      %10175 = vmatpush1.msra.mxu0 0.0
      %10176 = vmatprep.subr.mxu0 0.0
      %10177 = vmatpush1.msra.mxu0 0.0
      %10178 = vmatprep.subr.mxu0 0.0
      %10179 = vmatpush1.msra.mxu0 0.0
      %10180 = vmatprep.subr.mxu0 0.0
      %10181 = vmatpush1.msra.mxu0 0.0
      %10182 = vmatprep.mubr.f32.mxu0 0.0
      %10183 = vmatmul.mubr.f32.gmra.mrb[0].mxu0 %v10023
      %v10184 = vpop.f32.mrb[0].mxu0
      %v10185 = vadd.f32 0.0, %v10184
      %v10186 = vpop.f32.mrb[0].mxu0
      %10187 = vmatprep.mubr.f32.mxu0 0.0
      %10188 = vmatmul.mubr.f32.gmra.mrb[0].mxu0 %v10026
      %v10189 = vpop.f32.mrb[0].mxu0
      %v10190 = vadd.f32 0.0, %v10189
      %v10191 = vpop.f32.mrb[0].mxu0
      %10192 = vmatprep.mubr.f32.mxu0 0.0
      %10193 = vmatmul.mubr.f32.gmra.mrb[0].mxu0 %v10029
      %v10194 = vpop.f32.mrb[0].mxu0
      %v10195 = vadd.f32 0.0, %v10194
      %v10196 = vpop.f32.mrb[0].mxu0
      %10197 = vmatprep.mubr.f32.mxu0 0.0
      %10198 = vmatmul.mubr.f32.gmra.mrb[0].mxu0 %v10032
      %v10199 = vpop.f32.mrb[0].mxu0
      %v10200 = vadd.f32 0.0, %v10199
      %v10201 = vpop.f32.mrb[0].mxu0
      %10202 = vmatprep.mubr.f32.mxu0 0.0
      %10203 = vmatmul.mubr.f32.gmra.mrb[0].mxu0 %v10035
      %v10204 = vpop.f32.mrb[0].mxu0
      %v10205 = vadd.f32 0.0, %v10204
      %v10206 = vpop.f32.mrb[0].mxu0
      %10207 = vmatprep.mubr.f32.mxu0 0.0
      %10208 = vmatmul.mubr.f32.gmra.mrb[0].mxu0 %v10038
      %v10209 = vpop.f32.mrb[0].mxu0
      %v10210 = vadd.f32 0.0, %v10209
      %v10211 = vpop.f32.mrb[0].mxu0
      %10212 = vmatprep.mubr.f32.mxu0 0.0
      %10213 = vmatmul.mubr.f32.gmra.mrb[0].mxu0 %v10041
      %v10214 = vpop.f32.mrb[0].mxu0
      %v10215 = vadd.f32 0.0, %v10214
      %v10216 = vpop.f32.mrb[0].mxu0
      %10217 = vmatprep.mubr.f32.mxu0 0.0
      %10218 = vmatmul.mubr.f32.gmra.mrb[0].mxu0 %v10044
      %v10219 = vpop.f32.mrb[0].mxu0
      %v10220 = vadd.f32 0.0, %v10219
      %v10221 = vpop.f32.mrb[0].mxu0
      %10222 = vmatprep.mubr.f32.mxu0 0.0
      %10223 = vmatmul.mubr.f32.gmra.mrb[0].mxu0 %v10047
      %v10224 = vpop.f32.mrb[0].mxu0
      %v10225 = vadd.f32 0.0, %v10224
      %v10226 = vpop.f32.mrb[0].mxu0
      %10227 = vmatprep.mubr.f32.mxu0 0.0
      %10228 = vmatmul.mubr.f32.gmra.mrb[0].mxu0 %v10050
      %v10229 = vpop.f32.mrb[0].mxu0
      %v10230 = vadd.f32 0.0, %v10229
      %v10231 = vpop.f32.mrb[0].mxu0
      %10232 = vmatprep.mubr.f32.mxu0 0.0
      %10233 = vmatmul.mubr.f32.gmra.mrb[0].mxu0 %v10053
      %v10234 = vpop.f32.mrb[0].mxu0
      %v10235 = vadd.f32 0.0, %v10234
      %v10236 = vpop.f32.mrb[0].mxu0
      %10237 = vmatprep.mubr.f32.mxu0 0.0
      %10238 = vmatmul.mubr.f32.gmra.mrb[0].mxu0 %v10056
      %v10239 = vpop.f32.mrb[0].mxu0
      %v10240 = vadd.f32 0.0, %v10239
      %v10241 = vpop.f32.mrb[0].mxu0
      %10242 = vmatprep.mubr.f32.mxu0 0.0
      %10243 = vmatmul.mubr.f32.gmra.mrb[0].mxu0 %v10059
      %v10244 = vpop.f32.mrb[0].mxu0
      %v10245 = vadd.f32 0.0, %v10244
      %v10246 = vpop.f32.mrb[0].mxu0
      %10247 = vmatprep.mubr.f32.mxu0 0.0
      %10248 = vmatmul.mubr.f32.gmra.mrb[0].mxu0 %v10062
      %v10249 = vpop.f32.mrb[0].mxu0
      %v10250 = vadd.f32 0.0, %v10249
      %v10251 = vpop.f32.mrb[0].mxu0
      %10252 = vmatprep.mubr.f32.mxu0 0.0
      %10253 = vmatmul.mubr.f32.gmra.mrb[0].mxu0 %v10065
      %v10254 = vpop.f32.mrb[0].mxu0
      %v10255 = vadd.f32 0.0, %v10254
      %v10256 = vpop.f32.mrb[0].mxu0
      %10257 = vmatprep.mubr.f32.mxu0 0.0
      %10258 = vmatmul.mubr.f32.gmra.mrb[0].mxu0 %v10068
      %v10259 = vpop.f32.mrb[0].mxu0
      %v10260 = vadd.f32 0.0, %v10259
      %v10261 = vpop.f32.mrb[0].mxu0
      %10262 = vmatprep.mubr.f32.mxu0 0.0
      %10263 = vmatmul.mubr.f32.gmra.mrb[0].mxu0 %v10071
      %v10264 = vpop.f32.mrb[0].mxu0
      %v10265 = vadd.f32 0.0, %v10264
      %v10266 = vpop.f32.mrb[0].mxu0
      %10267 = vmatprep.mubr.f32.mxu0 0.0
      %10268 = vmatmul.mubr.f32.gmra.mrb[0].mxu0 %v10074
      %v10269 = vpop.f32.mrb[0].mxu0
      %v10270 = vadd.f32 0.0, %v10269
      %v10271 = vpop.f32.mrb[0].mxu0
      %10272 = vmatprep.mubr.f32.mxu0 0.0
      %10273 = vmatmul.mubr.f32.gmra.mrb[0].mxu0 %v10077
      %v10274 = vpop.f32.mrb[0].mxu0
      %v10275 = vadd.f32 0.0, %v10274
      %v10276 = vpop.f32.mrb[0].mxu0
      %10277 = vmatprep.mubr.f32.mxu0 0.0
      %10278 = vmatmul.mubr.f32.gmra.mrb[0].mxu0 %v10080
      %v10279 = vpop.f32.mrb[0].mxu0
      %v10280 = vadd.f32 0.0, %v10279
      %v10281 = vpop.f32.mrb[0].mxu0
      %10282 = vmatprep.mubr.f32.mxu0 0.0
      %10283 = vmatmul.mubr.f32.gmra.mrb[0].mxu0 %v10083
      %v10284 = vpop.f32.mrb[0].mxu0
      %v10285 = vadd.f32 0.0, %v10284
      %v10286 = vpop.f32.mrb[0].mxu0
      %10287 = vmatprep.mubr.f32.mxu0 0.0
      %10288 = vmatmul.mubr.f32.gmra.mrb[0].mxu0 %v10086
      %v10289 = vpop.f32.mrb[0].mxu0
      %v10290 = vadd.f32 0.0, %v10289
      %v10291 = vpop.f32.mrb[0].mxu0
      %10292 = vmatprep.mubr.f32.mxu0 0.0
      %10293 = vmatmul.mubr.f32.gmra.mrb[0].mxu0 %v10089
      %v10294 = vpop.f32.mrb[0].mxu0
      %v10295 = vadd.f32 0.0, %v10294
      %v10296 = vpop.f32.mrb[0].mxu0
      %10297 = vmatprep.mubr.f32.mxu0 0.0
      %10298 = vmatmul.mubr.f32.gmra.mrb[0].mxu0 %v10092
      %v10299 = vpop.f32.mrb[0].mxu0
      %v10300 = vadd.f32 0.0, %v10299
      %v10301 = vpop.f32.mrb[0].mxu0
      %10302 = vmatprep.mubr.f32.mxu0 0.0
      %10303 = vmatmul.mubr.f32.gmra.mrb[0].mxu0 %v10095
      %v10304 = vpop.f32.mrb[0].mxu0
      %v10305 = vadd.f32 0.0, %v10304
      %v10306 = vpop.f32.mrb[0].mxu0
      %10307 = vmatprep.mubr.f32.mxu0 0.0
      %10308 = vmatmul.mubr.f32.gmra.mrb[0].mxu0 %v10098
      %v10309 = vpop.f32.mrb[0].mxu0
      %v10310 = vadd.f32 0.0, %v10309
      %v10311 = vpop.f32.mrb[0].mxu0
      %10312 = vmatprep.mubr.f32.mxu0 0.0
      %10313 = vmatmul.mubr.f32.gmra.mrb[0].mxu0 %v10101
      %v10314 = vpop.f32.mrb[0].mxu0
      %v10315 = vadd.f32 0.0, %v10314
      %v10316 = vpop.f32.mrb[0].mxu0
      %10317 = vmatprep.mubr.f32.mxu0 0.0
      %10318 = vmatmul.mubr.f32.gmra.mrb[0].mxu0 %v10104
      %v10319 = vpop.f32.mrb[0].mxu0
      %v10320 = vadd.f32 0.0, %v10319
      %v10321 = vpop.f32.mrb[0].mxu0
      %10322 = vmatprep.mubr.f32.mxu0 0.0
      %10323 = vmatmul.mubr.f32.gmra.mrb[0].mxu0 %v10107
      %v10324 = vpop.f32.mrb[0].mxu0
      %v10325 = vadd.f32 0.0, %v10324
      %v10326 = vpop.f32.mrb[0].mxu0
      %10327 = vmatprep.mubr.f32.mxu0 0.0
      %10328 = vmatmul.mubr.f32.gmra.mrb[0].mxu0 %v10110
      %v10329 = vpop.f32.mrb[0].mxu0
      %v10330 = vadd.f32 0.0, %v10329
      %v10331 = vpop.f32.mrb[0].mxu0
      %10332 = vmatprep.mubr.f32.mxu0 0.0
      %10333 = vmatmul.mubr.f32.gmra.mrb[0].mxu0 %v10113
      %v10334 = vpop.f32.mrb[0].mxu0
      %v10335 = vadd.f32 0.0, %v10334
      %v10336 = vpop.f32.mrb[0].mxu0
      %10337 = vmatprep.mubr.f32.mxu0 0.0
      %10338 = vmatmul.mubr.f32.gmra.mrb[0].mxu0 %v10116
      %v10339 = vpop.f32.mrb[0].mxu0
      %v10340 = vadd.f32 0.0, %v10339
      %v10341 = vpop.f32.mrb[0].mxu0
      %10342 = vdwg.mxu0
      %v10343 = vadd.f32 %v9955, %v10185
      %v10344 = vadd.f32 %v9956, %v10190
      %v10345 = vadd.f32 %v9957, %v10195
      %v10346 = vadd.f32 %v9958, %v10200
      %v10347 = vadd.f32 %v9959, %v10205
      %v10348 = vadd.f32 %v9960, %v10210
      %v10349 = vadd.f32 %v9961, %v10215
      %v10350 = vadd.f32 %v9962, %v10220
      %v10351 = vadd.f32 %v9963, %v10225
      %v10352 = vadd.f32 %v9964, %v10230
      %v10353 = vadd.f32 %v9965, %v10235
      %v10354 = vadd.f32 %v9966, %v10240
      %v10355 = vadd.f32 %v9967, %v10245
      %v10356 = vadd.f32 %v9968, %v10250
      %v10357 = vadd.f32 %v9969, %v10255
      %v10358 = vadd.f32 %v9970, %v10260
      %v10359 = vadd.f32 %v9971, %v10265
      %v10360 = vadd.f32 %v9972, %v10270
      %v10361 = vadd.f32 %v9973, %v10275
      %v10362 = vadd.f32 %v9974, %v10280
      %v10363 = vadd.f32 %v9975, %v10285
      %v10364 = vadd.f32 %v9976, %v10290
      %v10365 = vadd.f32 %v9977, %v10295
      %v10366 = vadd.f32 %v9978, %v10300
      %v10367 = vadd.f32 %v9979, %v10305
      %v10368 = vadd.f32 %v9980, %v10310
      %v10369 = vadd.f32 %v9981, %v10315
      %v10370 = vadd.f32 %v9982, %v10320
      %v10371 = vadd.f32 %v9983, %v10325
      %v10372 = vadd.f32 %v9984, %v10330
      %v10373 = vadd.f32 %v9985, %v10335
      %v10374 = vadd.f32 %v9986, %v10340
      %v10375 = vld [vmem:[%s9987 + $0x1] sm:$0xff]
      %v10376 = vld [vmem:[%s9987 + $0x9] sm:$0xff]
      %v10377 = vld [vmem:[%s9987 + $0x19] sm:$0xff]
      %v10378 = vld [vmem:[%s9987 + $0x21] sm:$0xff]
      %v10379 = vld [vmem:[%s9987 + $0x31] sm:$0xff]
      %v10380 = vld [vmem:[%s9987 + $0x39] sm:$0xff]
      %v10381 = vld [vmem:[%s9987 + $0x49] sm:$0xff]
      %v10382 = vld [vmem:[%s9987 + $0x51] sm:$0xff]
      %v10383 = vld [vmem:[%s9987 + $0x61] sm:$0xff]
      %v10384 = vld [vmem:[%s9987 + $0x69] sm:$0xff]
      %v10385 = vld [vmem:[%s9987 + $0x79] sm:$0xff]
      %v10386 = vld [vmem:[%s9987 + $0x81] sm:$0xff]
      %v10387 = vld [vmem:[%s9987 + $0x91] sm:$0xff]
      %v10388 = vld [vmem:[%s9987 + $0x99] sm:$0xff]
      %v10389 = vld [vmem:[%s9987 + $0xa9] sm:$0xff]
      %v10390 = vld [vmem:[%s9987 + $0xb1] sm:$0xff]
      %v10391 = vld [vmem:[%s9987 + $0xc1] sm:$0xff]
      %v10392 = vld [vmem:[%s9987 + $0xc9] sm:$0xff]
      %v10393 = vld [vmem:[%s9987 + $0xd9] sm:$0xff]
      %v10394 = vld [vmem:[%s9987 + $0xe1] sm:$0xff]
      %v10395 = vld [vmem:[%s9987 + $0xf1] sm:$0xff]
      %v10396 = vld [vmem:[%s9987 + $0xf9] sm:$0xff]
      %v10397 = vld [vmem:[%s9987 + $0x109] sm:$0xff]
      %v10398 = vld [vmem:[%s9987 + $0x111] sm:$0xff]
      %v10399 = vld [vmem:[%s9987 + $0x121] sm:$0xff]
      %v10400 = vld [vmem:[%s9987 + $0x129] sm:$0xff]
      %v10401 = vld [vmem:[%s9987 + $0x139] sm:$0xff]
      %v10402 = vld [vmem:[%s9987 + $0x141] sm:$0xff]
      %v10403 = vld [vmem:[%s9987 + $0x151] sm:$0xff]
      %v10404 = vld [vmem:[%s9987 + $0x159] sm:$0xff]
      %v10405 = vld [vmem:[%s9987 + $0x169] sm:$0xff]
      %v10406 = vld [vmem:[%s9987 + $0x171] sm:$0xff]
      %s10407 = scalar_lea.vmem %s6, 56
      %v10408 = vld [vmem:[%s10407] sm:$0xff]
      %v10410 = vsel %vm306, %v10375, 0
      %v10413 = vsel %vm306, %v10376, 0
      %v10416 = vsel %vm306, %v10377, 0
      %v10419 = vsel %vm306, %v10378, 0
      %v10422 = vsel %vm306, %v10379, 0
      %v10425 = vsel %vm306, %v10380, 0
      %v10428 = vsel %vm306, %v10381, 0
      %v10431 = vsel %vm306, %v10382, 0
      %v10434 = vsel %vm306, %v10383, 0
      %v10437 = vsel %vm306, %v10384, 0
      %v10440 = vsel %vm306, %v10385, 0
      %v10443 = vsel %vm306, %v10386, 0
      %v10446 = vsel %vm306, %v10387, 0
      %v10449 = vsel %vm306, %v10388, 0
      %v10452 = vsel %vm306, %v10389, 0
      %v10455 = vsel %vm306, %v10390, 0
      %v10458 = vsel %vm306, %v10391, 0
      %v10461 = vsel %vm306, %v10392, 0
      %v10464 = vsel %vm306, %v10393, 0
      %v10467 = vsel %vm306, %v10394, 0
      %v10470 = vsel %vm306, %v10395, 0
      %v10473 = vsel %vm306, %v10396, 0
      %v10476 = vsel %vm306, %v10397, 0
      %v10479 = vsel %vm306, %v10398, 0
      %v10482 = vsel %vm306, %v10399, 0
      %v10485 = vsel %vm306, %v10400, 0
      %v10488 = vsel %vm306, %v10401, 0
      %v10491 = vsel %vm306, %v10402, 0
      %v10494 = vsel %vm306, %v10403, 0
      %v10497 = vsel %vm306, %v10404, 0
      %v10500 = vsel %vm306, %v10405, 0
      %v10503 = vsel %vm306, %v10406, 0
      %10505 = vmatprep.subr.mxu0 0.0
      %10506 = vmatpush1.msra.mxu0 %v10408
      %10507 = vmatprep.subr.mxu0 0.0
      %10508 = vmatpush1.msra.mxu0 0.0
      %10509 = vmatprep.subr.mxu0 0.0
      %10510 = vmatpush1.msra.mxu0 0.0
      %10511 = vmatprep.subr.mxu0 0.0
      %10512 = vmatpush1.msra.mxu0 0.0
      %10513 = vmatprep.subr.mxu0 0.0
      %10514 = vmatpush1.msra.mxu0 0.0
      %10515 = vmatprep.subr.mxu0 0.0
      %10516 = vmatpush1.msra.mxu0 0.0
      %10517 = vmatprep.subr.mxu0 0.0
      %10518 = vmatpush1.msra.mxu0 0.0
      %10519 = vmatprep.subr.mxu0 0.0
      %10520 = vmatpush1.msra.mxu0 0.0
      %10521 = vmatprep.subr.mxu0 0.0
      %10522 = vmatpush1.msra.mxu0 0.0
      %10523 = vmatprep.subr.mxu0 0.0
      %10524 = vmatpush1.msra.mxu0 0.0
      %10525 = vmatprep.subr.mxu0 0.0
      %10526 = vmatpush1.msra.mxu0 0.0
      %10527 = vmatprep.subr.mxu0 0.0
      %10528 = vmatpush1.msra.mxu0 0.0
      %10529 = vmatprep.subr.mxu0 0.0
      %10530 = vmatpush1.msra.mxu0 0.0
      %10531 = vmatprep.subr.mxu0 0.0
      %10532 = vmatpush1.msra.mxu0 0.0
      %10533 = vmatprep.subr.mxu0 0.0
      %10534 = vmatpush1.msra.mxu0 0.0
      %10535 = vmatprep.subr.mxu0 0.0
      %10536 = vmatpush1.msra.mxu0 0.0
      %10537 = vmatprep.subr.mxu0 0.0
      %10538 = vmatpush1.msra.mxu0 0.0
      %10539 = vmatprep.subr.mxu0 0.0
      %10540 = vmatpush1.msra.mxu0 0.0
      %10541 = vmatprep.subr.mxu0 0.0
      %10542 = vmatpush1.msra.mxu0 0.0
      %10543 = vmatprep.subr.mxu0 0.0
      %10544 = vmatpush1.msra.mxu0 0.0
      %10545 = vmatprep.subr.mxu0 0.0
      %10546 = vmatpush1.msra.mxu0 0.0
      %10547 = vmatprep.subr.mxu0 0.0
      %10548 = vmatpush1.msra.mxu0 0.0
      %10549 = vmatprep.subr.mxu0 0.0
      %10550 = vmatpush1.msra.mxu0 0.0
      %10551 = vmatprep.subr.mxu0 0.0
      %10552 = vmatpush1.msra.mxu0 0.0
      %10553 = vmatprep.subr.mxu0 0.0
      %10554 = vmatpush1.msra.mxu0 0.0
      %10555 = vmatprep.subr.mxu0 0.0
      %10556 = vmatpush1.msra.mxu0 0.0
      %10557 = vmatprep.subr.mxu0 0.0
      %10558 = vmatpush1.msra.mxu0 0.0
      %10559 = vmatprep.subr.mxu0 0.0
      %10560 = vmatpush1.msra.mxu0 0.0
      %10561 = vmatprep.subr.mxu0 0.0
      %10562 = vmatpush1.msra.mxu0 0.0
      %10563 = vmatprep.subr.mxu0 0.0
      %10564 = vmatpush1.msra.mxu0 0.0
      %10565 = vmatprep.subr.mxu0 0.0
      %10566 = vmatpush1.msra.mxu0 0.0
      %10567 = vmatprep.subr.mxu0 0.0
      %10568 = vmatpush1.msra.mxu0 0.0
      %10569 = vmatprep.mubr.f32.mxu0 0.0
      %10570 = vmatmul.mubr.f32.gmra.mrb[0].mxu0 %v10410
      %v10571 = vpop.f32.mrb[0].mxu0
      %v10572 = vadd.f32 0.0, %v10571
      %v10573 = vpop.f32.mrb[0].mxu0
      %10574 = vmatprep.mubr.f32.mxu0 0.0
      %10575 = vmatmul.mubr.f32.gmra.mrb[0].mxu0 %v10413
      %v10576 = vpop.f32.mrb[0].mxu0
      %v10577 = vadd.f32 0.0, %v10576
      %v10578 = vpop.f32.mrb[0].mxu0
      %10579 = vmatprep.mubr.f32.mxu0 0.0
      %10580 = vmatmul.mubr.f32.gmra.mrb[0].mxu0 %v10416
      %v10581 = vpop.f32.mrb[0].mxu0
      %v10582 = vadd.f32 0.0, %v10581
      %v10583 = vpop.f32.mrb[0].mxu0
      %10584 = vmatprep.mubr.f32.mxu0 0.0
      %10585 = vmatmul.mubr.f32.gmra.mrb[0].mxu0 %v10419
      %v10586 = vpop.f32.mrb[0].mxu0
      %v10587 = vadd.f32 0.0, %v10586
      %v10588 = vpop.f32.mrb[0].mxu0
      %10589 = vmatprep.mubr.f32.mxu0 0.0
      %10590 = vmatmul.mubr.f32.gmra.mrb[0].mxu0 %v10422
      %v10591 = vpop.f32.mrb[0].mxu0
      %v10592 = vadd.f32 0.0, %v10591
      %v10593 = vpop.f32.mrb[0].mxu0
      %10594 = vmatprep.mubr.f32.mxu0 0.0
      %10595 = vmatmul.mubr.f32.gmra.mrb[0].mxu0 %v10425
      %v10596 = vpop.f32.mrb[0].mxu0
      %v10597 = vadd.f32 0.0, %v10596
      %v10598 = vpop.f32.mrb[0].mxu0
      %10599 = vmatprep.mubr.f32.mxu0 0.0
      %10600 = vmatmul.mubr.f32.gmra.mrb[0].mxu0 %v10428
      %v10601 = vpop.f32.mrb[0].mxu0
      %v10602 = vadd.f32 0.0, %v10601
      %v10603 = vpop.f32.mrb[0].mxu0
      %10604 = vmatprep.mubr.f32.mxu0 0.0
      %10605 = vmatmul.mubr.f32.gmra.mrb[0].mxu0 %v10431
      %v10606 = vpop.f32.mrb[0].mxu0
      %v10607 = vadd.f32 0.0, %v10606
      %v10608 = vpop.f32.mrb[0].mxu0
      %10609 = vmatprep.mubr.f32.mxu0 0.0
      %10610 = vmatmul.mubr.f32.gmra.mrb[0].mxu0 %v10434
      %v10611 = vpop.f32.mrb[0].mxu0
      %v10612 = vadd.f32 0.0, %v10611
      %v10613 = vpop.f32.mrb[0].mxu0
      %10614 = vmatprep.mubr.f32.mxu0 0.0
      %10615 = vmatmul.mubr.f32.gmra.mrb[0].mxu0 %v10437
      %v10616 = vpop.f32.mrb[0].mxu0
      %v10617 = vadd.f32 0.0, %v10616
      %v10618 = vpop.f32.mrb[0].mxu0
      %10619 = vmatprep.mubr.f32.mxu0 0.0
      %10620 = vmatmul.mubr.f32.gmra.mrb[0].mxu0 %v10440
      %v10621 = vpop.f32.mrb[0].mxu0
      %v10622 = vadd.f32 0.0, %v10621
      %v10623 = vpop.f32.mrb[0].mxu0
      %10624 = vmatprep.mubr.f32.mxu0 0.0
      %10625 = vmatmul.mubr.f32.gmra.mrb[0].mxu0 %v10443
      %v10626 = vpop.f32.mrb[0].mxu0
      %v10627 = vadd.f32 0.0, %v10626
      %v10628 = vpop.f32.mrb[0].mxu0
      %10629 = vmatprep.mubr.f32.mxu0 0.0
      %10630 = vmatmul.mubr.f32.gmra.mrb[0].mxu0 %v10446
      %v10631 = vpop.f32.mrb[0].mxu0
      %v10632 = vadd.f32 0.0, %v10631
      %v10633 = vpop.f32.mrb[0].mxu0
      %10634 = vmatprep.mubr.f32.mxu0 0.0
      %10635 = vmatmul.mubr.f32.gmra.mrb[0].mxu0 %v10449
      %v10636 = vpop.f32.mrb[0].mxu0
      %v10637 = vadd.f32 0.0, %v10636
      %v10638 = vpop.f32.mrb[0].mxu0
      %10639 = vmatprep.mubr.f32.mxu0 0.0
      %10640 = vmatmul.mubr.f32.gmra.mrb[0].mxu0 %v10452
      %v10641 = vpop.f32.mrb[0].mxu0
      %v10642 = vadd.f32 0.0, %v10641
      %v10643 = vpop.f32.mrb[0].mxu0
      %10644 = vmatprep.mubr.f32.mxu0 0.0
      %10645 = vmatmul.mubr.f32.gmra.mrb[0].mxu0 %v10455
      %v10646 = vpop.f32.mrb[0].mxu0
      %v10647 = vadd.f32 0.0, %v10646
      %v10648 = vpop.f32.mrb[0].mxu0
      %10649 = vmatprep.mubr.f32.mxu0 0.0
      %10650 = vmatmul.mubr.f32.gmra.mrb[0].mxu0 %v10458
      %v10651 = vpop.f32.mrb[0].mxu0
      %v10652 = vadd.f32 0.0, %v10651
      %v10653 = vpop.f32.mrb[0].mxu0
      %10654 = vmatprep.mubr.f32.mxu0 0.0
      %10655 = vmatmul.mubr.f32.gmra.mrb[0].mxu0 %v10461
      %v10656 = vpop.f32.mrb[0].mxu0
      %v10657 = vadd.f32 0.0, %v10656
      %v10658 = vpop.f32.mrb[0].mxu0
      %10659 = vmatprep.mubr.f32.mxu0 0.0
      %10660 = vmatmul.mubr.f32.gmra.mrb[0].mxu0 %v10464
      %v10661 = vpop.f32.mrb[0].mxu0
      %v10662 = vadd.f32 0.0, %v10661
      %v10663 = vpop.f32.mrb[0].mxu0
      %10664 = vmatprep.mubr.f32.mxu0 0.0
      %10665 = vmatmul.mubr.f32.gmra.mrb[0].mxu0 %v10467
      %v10666 = vpop.f32.mrb[0].mxu0
      %v10667 = vadd.f32 0.0, %v10666
      %v10668 = vpop.f32.mrb[0].mxu0
      %10669 = vmatprep.mubr.f32.mxu0 0.0
      %10670 = vmatmul.mubr.f32.gmra.mrb[0].mxu0 %v10470
      %v10671 = vpop.f32.mrb[0].mxu0
      %v10672 = vadd.f32 0.0, %v10671
      %v10673 = vpop.f32.mrb[0].mxu0
      %10674 = vmatprep.mubr.f32.mxu0 0.0
      %10675 = vmatmul.mubr.f32.gmra.mrb[0].mxu0 %v10473
      %v10676 = vpop.f32.mrb[0].mxu0
      %v10677 = vadd.f32 0.0, %v10676
      %v10678 = vpop.f32.mrb[0].mxu0
      %10679 = vmatprep.mubr.f32.mxu0 0.0
      %10680 = vmatmul.mubr.f32.gmra.mrb[0].mxu0 %v10476
      %v10681 = vpop.f32.mrb[0].mxu0
      %v10682 = vadd.f32 0.0, %v10681
      %v10683 = vpop.f32.mrb[0].mxu0
      %10684 = vmatprep.mubr.f32.mxu0 0.0
      %10685 = vmatmul.mubr.f32.gmra.mrb[0].mxu0 %v10479
      %v10686 = vpop.f32.mrb[0].mxu0
      %v10687 = vadd.f32 0.0, %v10686
      %v10688 = vpop.f32.mrb[0].mxu0
      %10689 = vmatprep.mubr.f32.mxu0 0.0
      %10690 = vmatmul.mubr.f32.gmra.mrb[0].mxu0 %v10482
      %v10691 = vpop.f32.mrb[0].mxu0
      %v10692 = vadd.f32 0.0, %v10691
      %v10693 = vpop.f32.mrb[0].mxu0
      %10694 = vmatprep.mubr.f32.mxu0 0.0
      %10695 = vmatmul.mubr.f32.gmra.mrb[0].mxu0 %v10485
      %v10696 = vpop.f32.mrb[0].mxu0
      %v10697 = vadd.f32 0.0, %v10696
      %v10698 = vpop.f32.mrb[0].mxu0
      %10699 = vmatprep.mubr.f32.mxu0 0.0
      %10700 = vmatmul.mubr.f32.gmra.mrb[0].mxu0 %v10488
      %v10701 = vpop.f32.mrb[0].mxu0
      %v10702 = vadd.f32 0.0, %v10701
      %v10703 = vpop.f32.mrb[0].mxu0
      %10704 = vmatprep.mubr.f32.mxu0 0.0
      %10705 = vmatmul.mubr.f32.gmra.mrb[0].mxu0 %v10491
      %v10706 = vpop.f32.mrb[0].mxu0
      %v10707 = vadd.f32 0.0, %v10706
      %v10708 = vpop.f32.mrb[0].mxu0
      %10709 = vmatprep.mubr.f32.mxu0 0.0
      %10710 = vmatmul.mubr.f32.gmra.mrb[0].mxu0 %v10494
      %v10711 = vpop.f32.mrb[0].mxu0
      %v10712 = vadd.f32 0.0, %v10711
      %v10713 = vpop.f32.mrb[0].mxu0
      %10714 = vmatprep.mubr.f32.mxu0 0.0
      %10715 = vmatmul.mubr.f32.gmra.mrb[0].mxu0 %v10497
      %v10716 = vpop.f32.mrb[0].mxu0
      %v10717 = vadd.f32 0.0, %v10716
      %v10718 = vpop.f32.mrb[0].mxu0
      %10719 = vmatprep.mubr.f32.mxu0 0.0
      %10720 = vmatmul.mubr.f32.gmra.mrb[0].mxu0 %v10500
      %v10721 = vpop.f32.mrb[0].mxu0
      %v10722 = vadd.f32 0.0, %v10721
      %v10723 = vpop.f32.mrb[0].mxu0
      %10724 = vmatprep.mubr.f32.mxu0 0.0
      %10725 = vmatmul.mubr.f32.gmra.mrb[0].mxu0 %v10503
      %v10726 = vpop.f32.mrb[0].mxu0
      %v10727 = vadd.f32 0.0, %v10726
      %v10728 = vpop.f32.mrb[0].mxu0
      %10729 = vdwg.mxu0
      %v10730 = vadd.f32 %v10343, %v10572
      %v10731 = vadd.f32 %v10344, %v10577
      %v10732 = vadd.f32 %v10345, %v10582
      %v10733 = vadd.f32 %v10346, %v10587
      %v10734 = vadd.f32 %v10347, %v10592
      %v10735 = vadd.f32 %v10348, %v10597
      %v10736 = vadd.f32 %v10349, %v10602
      %v10737 = vadd.f32 %v10350, %v10607
      %v10738 = vadd.f32 %v10351, %v10612
      %v10739 = vadd.f32 %v10352, %v10617
      %v10740 = vadd.f32 %v10353, %v10622
      %v10741 = vadd.f32 %v10354, %v10627
      %v10742 = vadd.f32 %v10355, %v10632
      %v10743 = vadd.f32 %v10356, %v10637
      %v10744 = vadd.f32 %v10357, %v10642
      %v10745 = vadd.f32 %v10358, %v10647
      %v10746 = vadd.f32 %v10359, %v10652
      %v10747 = vadd.f32 %v10360, %v10657
      %v10748 = vadd.f32 %v10361, %v10662
      %v10749 = vadd.f32 %v10362, %v10667
      %v10750 = vadd.f32 %v10363, %v10672
      %v10751 = vadd.f32 %v10364, %v10677
      %v10752 = vadd.f32 %v10365, %v10682
      %v10753 = vadd.f32 %v10366, %v10687
      %v10754 = vadd.f32 %v10367, %v10692
      %v10755 = vadd.f32 %v10368, %v10697
      %v10756 = vadd.f32 %v10369, %v10702
      %v10757 = vadd.f32 %v10370, %v10707
      %v10758 = vadd.f32 %v10371, %v10712
      %v10759 = vadd.f32 %v10372, %v10717
      %v10760 = vadd.f32 %v10373, %v10722
      %v10761 = vadd.f32 %v10374, %v10727
      %v10762 = vld [vmem:[%s9987 + $0x2] sm:$0xff]
      %v10763 = vld [vmem:[%s9987 + $0xa] sm:$0xff]
      %v10764 = vld [vmem:[%s9987 + $0x1a] sm:$0xff]
      %v10765 = vld [vmem:[%s9987 + $0x22] sm:$0xff]
      %v10766 = vld [vmem:[%s9987 + $0x32] sm:$0xff]
      %v10767 = vld [vmem:[%s9987 + $0x3a] sm:$0xff]
      %v10768 = vld [vmem:[%s9987 + $0x4a] sm:$0xff]
      %v10769 = vld [vmem:[%s9987 + $0x52] sm:$0xff]
      %v10770 = vld [vmem:[%s9987 + $0x62] sm:$0xff]
      %v10771 = vld [vmem:[%s9987 + $0x6a] sm:$0xff]
      %v10772 = vld [vmem:[%s9987 + $0x7a] sm:$0xff]
      %v10773 = vld [vmem:[%s9987 + $0x82] sm:$0xff]
      %v10774 = vld [vmem:[%s9987 + $0x92] sm:$0xff]
      %v10775 = vld [vmem:[%s9987 + $0x9a] sm:$0xff]
      %v10776 = vld [vmem:[%s9987 + $0xaa] sm:$0xff]
      %v10777 = vld [vmem:[%s9987 + $0xb2] sm:$0xff]
      %v10778 = vld [vmem:[%s9987 + $0xc2] sm:$0xff]
      %v10779 = vld [vmem:[%s9987 + $0xca] sm:$0xff]
      %v10780 = vld [vmem:[%s9987 + $0xda] sm:$0xff]
      %v10781 = vld [vmem:[%s9987 + $0xe2] sm:$0xff]
      %v10782 = vld [vmem:[%s9987 + $0xf2] sm:$0xff]
      %v10783 = vld [vmem:[%s9987 + $0xfa] sm:$0xff]
      %v10784 = vld [vmem:[%s9987 + $0x10a] sm:$0xff]
      %v10785 = vld [vmem:[%s9987 + $0x112] sm:$0xff]
      %v10786 = vld [vmem:[%s9987 + $0x122] sm:$0xff]
      %v10787 = vld [vmem:[%s9987 + $0x12a] sm:$0xff]
      %v10788 = vld [vmem:[%s9987 + $0x13a] sm:$0xff]
      %v10789 = vld [vmem:[%s9987 + $0x142] sm:$0xff]
      %v10790 = vld [vmem:[%s9987 + $0x152] sm:$0xff]
      %v10791 = vld [vmem:[%s9987 + $0x15a] sm:$0xff]
      %v10792 = vld [vmem:[%s9987 + $0x16a] sm:$0xff]
      %v10793 = vld [vmem:[%s9987 + $0x172] sm:$0xff]
      %s10794 = scalar_lea.vmem %s6, 64
      %v10795 = vld [vmem:[%s10794] sm:$0xff]
      %v10797 = vsel %vm306, %v10762, 0
      %v10800 = vsel %vm306, %v10763, 0
      %v10803 = vsel %vm306, %v10764, 0
      %v10806 = vsel %vm306, %v10765, 0
      %v10809 = vsel %vm306, %v10766, 0
      %v10812 = vsel %vm306, %v10767, 0
      %v10815 = vsel %vm306, %v10768, 0
      %v10818 = vsel %vm306, %v10769, 0
      %v10821 = vsel %vm306, %v10770, 0
      %v10824 = vsel %vm306, %v10771, 0
      %v10827 = vsel %vm306, %v10772, 0
      %v10830 = vsel %vm306, %v10773, 0
      %v10833 = vsel %vm306, %v10774, 0
      %v10836 = vsel %vm306, %v10775, 0
      %v10839 = vsel %vm306, %v10776, 0
      %v10842 = vsel %vm306, %v10777, 0
      %v10845 = vsel %vm306, %v10778, 0
      %v10848 = vsel %vm306, %v10779, 0
      %v10851 = vsel %vm306, %v10780, 0
      %v10854 = vsel %vm306, %v10781, 0
      %v10857 = vsel %vm306, %v10782, 0
      %v10860 = vsel %vm306, %v10783, 0
      %v10863 = vsel %vm306, %v10784, 0
      %v10866 = vsel %vm306, %v10785, 0
      %v10869 = vsel %vm306, %v10786, 0
      %v10872 = vsel %vm306, %v10787, 0
      %v10875 = vsel %vm306, %v10788, 0
      %v10878 = vsel %vm306, %v10789, 0
      %v10881 = vsel %vm306, %v10790, 0
      %v10884 = vsel %vm306, %v10791, 0
      %v10887 = vsel %vm306, %v10792, 0
      %v10890 = vsel %vm306, %v10793, 0
      %10892 = vmatprep.subr.mxu0 0.0
      %10893 = vmatpush1.msra.mxu0 %v10795
      %10894 = vmatprep.subr.mxu0 0.0
      %10895 = vmatpush1.msra.mxu0 0.0
      %10896 = vmatprep.subr.mxu0 0.0
      %10897 = vmatpush1.msra.mxu0 0.0
      %10898 = vmatprep.subr.mxu0 0.0
      %10899 = vmatpush1.msra.mxu0 0.0
      %10900 = vmatprep.subr.mxu0 0.0
      %10901 = vmatpush1.msra.mxu0 0.0
      %10902 = vmatprep.subr.mxu0 0.0
      %10903 = vmatpush1.msra.mxu0 0.0
      %10904 = vmatprep.subr.mxu0 0.0
      %10905 = vmatpush1.msra.mxu0 0.0
      %10906 = vmatprep.subr.mxu0 0.0
      %10907 = vmatpush1.msra.mxu0 0.0
      %10908 = vmatprep.subr.mxu0 0.0
      %10909 = vmatpush1.msra.mxu0 0.0
      %10910 = vmatprep.subr.mxu0 0.0
      %10911 = vmatpush1.msra.mxu0 0.0
      %10912 = vmatprep.subr.mxu0 0.0
      %10913 = vmatpush1.msra.mxu0 0.0
      %10914 = vmatprep.subr.mxu0 0.0
      %10915 = vmatpush1.msra.mxu0 0.0
      %10916 = vmatprep.subr.mxu0 0.0
      %10917 = vmatpush1.msra.mxu0 0.0
      %10918 = vmatprep.subr.mxu0 0.0
      %10919 = vmatpush1.msra.mxu0 0.0
      %10920 = vmatprep.subr.mxu0 0.0
      %10921 = vmatpush1.msra.mxu0 0.0
      %10922 = vmatprep.subr.mxu0 0.0
      %10923 = vmatpush1.msra.mxu0 0.0
      %10924 = vmatprep.subr.mxu0 0.0
      %10925 = vmatpush1.msra.mxu0 0.0
      %10926 = vmatprep.subr.mxu0 0.0
      %10927 = vmatpush1.msra.mxu0 0.0
      %10928 = vmatprep.subr.mxu0 0.0
      %10929 = vmatpush1.msra.mxu0 0.0
      %10930 = vmatprep.subr.mxu0 0.0
      %10931 = vmatpush1.msra.mxu0 0.0
      %10932 = vmatprep.subr.mxu0 0.0
      %10933 = vmatpush1.msra.mxu0 0.0
      %10934 = vmatprep.subr.mxu0 0.0
      %10935 = vmatpush1.msra.mxu0 0.0
      %10936 = vmatprep.subr.mxu0 0.0
      %10937 = vmatpush1.msra.mxu0 0.0
      %10938 = vmatprep.subr.mxu0 0.0
      %10939 = vmatpush1.msra.mxu0 0.0
      %10940 = vmatprep.subr.mxu0 0.0
      %10941 = vmatpush1.msra.mxu0 0.0
      %10942 = vmatprep.subr.mxu0 0.0
      %10943 = vmatpush1.msra.mxu0 0.0
      %10944 = vmatprep.subr.mxu0 0.0
      %10945 = vmatpush1.msra.mxu0 0.0
      %10946 = vmatprep.subr.mxu0 0.0
      %10947 = vmatpush1.msra.mxu0 0.0
      %10948 = vmatprep.subr.mxu0 0.0
      %10949 = vmatpush1.msra.mxu0 0.0
      %10950 = vmatprep.subr.mxu0 0.0
      %10951 = vmatpush1.msra.mxu0 0.0
      %10952 = vmatprep.subr.mxu0 0.0
      %10953 = vmatpush1.msra.mxu0 0.0
      %10954 = vmatprep.subr.mxu0 0.0
      %10955 = vmatpush1.msra.mxu0 0.0
      %10956 = vmatprep.mubr.f32.mxu0 0.0
      %10957 = vmatmul.mubr.f32.gmra.mrb[0].mxu0 %v10797
      %v10958 = vpop.f32.mrb[0].mxu0
      %v10959 = vadd.f32 0.0, %v10958
      %v10960 = vpop.f32.mrb[0].mxu0
      %10961 = vmatprep.mubr.f32.mxu0 0.0
      %10962 = vmatmul.mubr.f32.gmra.mrb[0].mxu0 %v10800
      %v10963 = vpop.f32.mrb[0].mxu0
      %v10964 = vadd.f32 0.0, %v10963
      %v10965 = vpop.f32.mrb[0].mxu0
      %10966 = vmatprep.mubr.f32.mxu0 0.0
      %10967 = vmatmul.mubr.f32.gmra.mrb[0].mxu0 %v10803
      %v10968 = vpop.f32.mrb[0].mxu0
      %v10969 = vadd.f32 0.0, %v10968
      %v10970 = vpop.f32.mrb[0].mxu0
      %10971 = vmatprep.mubr.f32.mxu0 0.0
      %10972 = vmatmul.mubr.f32.gmra.mrb[0].mxu0 %v10806
      %v10973 = vpop.f32.mrb[0].mxu0
      %v10974 = vadd.f32 0.0, %v10973
      %v10975 = vpop.f32.mrb[0].mxu0
      %10976 = vmatprep.mubr.f32.mxu0 0.0
      %10977 = vmatmul.mubr.f32.gmra.mrb[0].mxu0 %v10809
      %v10978 = vpop.f32.mrb[0].mxu0
      %v10979 = vadd.f32 0.0, %v10978
      %v10980 = vpop.f32.mrb[0].mxu0
      %10981 = vmatprep.mubr.f32.mxu0 0.0
      %10982 = vmatmul.mubr.f32.gmra.mrb[0].mxu0 %v10812
      %v10983 = vpop.f32.mrb[0].mxu0
      %v10984 = vadd.f32 0.0, %v10983
      %v10985 = vpop.f32.mrb[0].mxu0
      %10986 = vmatprep.mubr.f32.mxu0 0.0
      %10987 = vmatmul.mubr.f32.gmra.mrb[0].mxu0 %v10815
      %v10988 = vpop.f32.mrb[0].mxu0
      %v10989 = vadd.f32 0.0, %v10988
      %v10990 = vpop.f32.mrb[0].mxu0
      %10991 = vmatprep.mubr.f32.mxu0 0.0
      %10992 = vmatmul.mubr.f32.gmra.mrb[0].mxu0 %v10818
      %v10993 = vpop.f32.mrb[0].mxu0
      %v10994 = vadd.f32 0.0, %v10993
      %v10995 = vpop.f32.mrb[0].mxu0
      %10996 = vmatprep.mubr.f32.mxu0 0.0
      %10997 = vmatmul.mubr.f32.gmra.mrb[0].mxu0 %v10821
      %v10998 = vpop.f32.mrb[0].mxu0
      %v10999 = vadd.f32 0.0, %v10998
      %v11000 = vpop.f32.mrb[0].mxu0
      %11001 = vmatprep.mubr.f32.mxu0 0.0
      %11002 = vmatmul.mubr.f32.gmra.mrb[0].mxu0 %v10824
      %v11003 = vpop.f32.mrb[0].mxu0
      %v11004 = vadd.f32 0.0, %v11003
      %v11005 = vpop.f32.mrb[0].mxu0
      %11006 = vmatprep.mubr.f32.mxu0 0.0
      %11007 = vmatmul.mubr.f32.gmra.mrb[0].mxu0 %v10827
      %v11008 = vpop.f32.mrb[0].mxu0
      %v11009 = vadd.f32 0.0, %v11008
      %v11010 = vpop.f32.mrb[0].mxu0
      %11011 = vmatprep.mubr.f32.mxu0 0.0
      %11012 = vmatmul.mubr.f32.gmra.mrb[0].mxu0 %v10830
      %v11013 = vpop.f32.mrb[0].mxu0
      %v11014 = vadd.f32 0.0, %v11013
      %v11015 = vpop.f32.mrb[0].mxu0
      %11016 = vmatprep.mubr.f32.mxu0 0.0
      %11017 = vmatmul.mubr.f32.gmra.mrb[0].mxu0 %v10833
      %v11018 = vpop.f32.mrb[0].mxu0
      %v11019 = vadd.f32 0.0, %v11018
      %v11020 = vpop.f32.mrb[0].mxu0
      %11021 = vmatprep.mubr.f32.mxu0 0.0
      %11022 = vmatmul.mubr.f32.gmra.mrb[0].mxu0 %v10836
      %v11023 = vpop.f32.mrb[0].mxu0
      %v11024 = vadd.f32 0.0, %v11023
      %v11025 = vpop.f32.mrb[0].mxu0
      %11026 = vmatprep.mubr.f32.mxu0 0.0
      %11027 = vmatmul.mubr.f32.gmra.mrb[0].mxu0 %v10839
      %v11028 = vpop.f32.mrb[0].mxu0
      %v11029 = vadd.f32 0.0, %v11028
      %v11030 = vpop.f32.mrb[0].mxu0
      %11031 = vmatprep.mubr.f32.mxu0 0.0
      %11032 = vmatmul.mubr.f32.gmra.mrb[0].mxu0 %v10842
      %v11033 = vpop.f32.mrb[0].mxu0
      %v11034 = vadd.f32 0.0, %v11033
      %v11035 = vpop.f32.mrb[0].mxu0
      %11036 = vmatprep.mubr.f32.mxu0 0.0
      %11037 = vmatmul.mubr.f32.gmra.mrb[0].mxu0 %v10845
      %v11038 = vpop.f32.mrb[0].mxu0
      %v11039 = vadd.f32 0.0, %v11038
      %v11040 = vpop.f32.mrb[0].mxu0
      %11041 = vmatprep.mubr.f32.mxu0 0.0
      %11042 = vmatmul.mubr.f32.gmra.mrb[0].mxu0 %v10848
      %v11043 = vpop.f32.mrb[0].mxu0
      %v11044 = vadd.f32 0.0, %v11043
      %v11045 = vpop.f32.mrb[0].mxu0
      %11046 = vmatprep.mubr.f32.mxu0 0.0
      %11047 = vmatmul.mubr.f32.gmra.mrb[0].mxu0 %v10851
      %v11048 = vpop.f32.mrb[0].mxu0
      %v11049 = vadd.f32 0.0, %v11048
      %v11050 = vpop.f32.mrb[0].mxu0
      %11051 = vmatprep.mubr.f32.mxu0 0.0
      %11052 = vmatmul.mubr.f32.gmra.mrb[0].mxu0 %v10854
      %v11053 = vpop.f32.mrb[0].mxu0
      %v11054 = vadd.f32 0.0, %v11053
      %v11055 = vpop.f32.mrb[0].mxu0
      %11056 = vmatprep.mubr.f32.mxu0 0.0
      %11057 = vmatmul.mubr.f32.gmra.mrb[0].mxu0 %v10857
      %v11058 = vpop.f32.mrb[0].mxu0
      %v11059 = vadd.f32 0.0, %v11058
      %v11060 = vpop.f32.mrb[0].mxu0
      %11061 = vmatprep.mubr.f32.mxu0 0.0
      %11062 = vmatmul.mubr.f32.gmra.mrb[0].mxu0 %v10860
      %v11063 = vpop.f32.mrb[0].mxu0
      %v11064 = vadd.f32 0.0, %v11063
      %v11065 = vpop.f32.mrb[0].mxu0
      %11066 = vmatprep.mubr.f32.mxu0 0.0
      %11067 = vmatmul.mubr.f32.gmra.mrb[0].mxu0 %v10863
      %v11068 = vpop.f32.mrb[0].mxu0
      %v11069 = vadd.f32 0.0, %v11068
      %v11070 = vpop.f32.mrb[0].mxu0
      %11071 = vmatprep.mubr.f32.mxu0 0.0
      %11072 = vmatmul.mubr.f32.gmra.mrb[0].mxu0 %v10866
      %v11073 = vpop.f32.mrb[0].mxu0
      %v11074 = vadd.f32 0.0, %v11073
      %v11075 = vpop.f32.mrb[0].mxu0
      %11076 = vmatprep.mubr.f32.mxu0 0.0
      %11077 = vmatmul.mubr.f32.gmra.mrb[0].mxu0 %v10869
      %v11078 = vpop.f32.mrb[0].mxu0
      %v11079 = vadd.f32 0.0, %v11078
      %v11080 = vpop.f32.mrb[0].mxu0
      %11081 = vmatprep.mubr.f32.mxu0 0.0
      %11082 = vmatmul.mubr.f32.gmra.mrb[0].mxu0 %v10872
      %v11083 = vpop.f32.mrb[0].mxu0
      %v11084 = vadd.f32 0.0, %v11083
      %v11085 = vpop.f32.mrb[0].mxu0
      %11086 = vmatprep.mubr.f32.mxu0 0.0
      %11087 = vmatmul.mubr.f32.gmra.mrb[0].mxu0 %v10875
      %v11088 = vpop.f32.mrb[0].mxu0
      %v11089 = vadd.f32 0.0, %v11088
      %v11090 = vpop.f32.mrb[0].mxu0
      %11091 = vmatprep.mubr.f32.mxu0 0.0
      %11092 = vmatmul.mubr.f32.gmra.mrb[0].mxu0 %v10878
      %v11093 = vpop.f32.mrb[0].mxu0
      %v11094 = vadd.f32 0.0, %v11093
      %v11095 = vpop.f32.mrb[0].mxu0
      %11096 = vmatprep.mubr.f32.mxu0 0.0
      %11097 = vmatmul.mubr.f32.gmra.mrb[0].mxu0 %v10881
      %v11098 = vpop.f32.mrb[0].mxu0
      %v11099 = vadd.f32 0.0, %v11098
      %v11100 = vpop.f32.mrb[0].mxu0
      %11101 = vmatprep.mubr.f32.mxu0 0.0
      %11102 = vmatmul.mubr.f32.gmra.mrb[0].mxu0 %v10884
      %v11103 = vpop.f32.mrb[0].mxu0
      %v11104 = vadd.f32 0.0, %v11103
      %v11105 = vpop.f32.mrb[0].mxu0
      %11106 = vmatprep.mubr.f32.mxu0 0.0
      %11107 = vmatmul.mubr.f32.gmra.mrb[0].mxu0 %v10887
      %v11108 = vpop.f32.mrb[0].mxu0
      %v11109 = vadd.f32 0.0, %v11108
      %v11110 = vpop.f32.mrb[0].mxu0
      %11111 = vmatprep.mubr.f32.mxu0 0.0
      %11112 = vmatmul.mubr.f32.gmra.mrb[0].mxu0 %v10890
      %v11113 = vpop.f32.mrb[0].mxu0
      %v11114 = vadd.f32 0.0, %v11113
      %v11115 = vpop.f32.mrb[0].mxu0
      %11116 = vdwg.mxu0
      %v11117 = vadd.f32 %v10730, %v10959
      %v11118 = vadd.f32 %v10731, %v10964
      %v11119 = vadd.f32 %v10732, %v10969
      %v11120 = vadd.f32 %v10733, %v10974
      %v11121 = vadd.f32 %v10734, %v10979
      %v11122 = vadd.f32 %v10735, %v10984
      %v11123 = vadd.f32 %v10736, %v10989
      %v11124 = vadd.f32 %v10737, %v10994
      %v11125 = vadd.f32 %v10738, %v10999
      %v11126 = vadd.f32 %v10739, %v11004
      %v11127 = vadd.f32 %v10740, %v11009
      %v11128 = vadd.f32 %v10741, %v11014
      %v11129 = vadd.f32 %v10742, %v11019
      %v11130 = vadd.f32 %v10743, %v11024
      %v11131 = vadd.f32 %v10744, %v11029
      %v11132 = vadd.f32 %v10745, %v11034
      %v11133 = vadd.f32 %v10746, %v11039
      %v11134 = vadd.f32 %v10747, %v11044
      %v11135 = vadd.f32 %v10748, %v11049
      %v11136 = vadd.f32 %v10749, %v11054
      %v11137 = vadd.f32 %v10750, %v11059
      %v11138 = vadd.f32 %v10751, %v11064
      %v11139 = vadd.f32 %v10752, %v11069
      %v11140 = vadd.f32 %v10753, %v11074
      %v11141 = vadd.f32 %v10754, %v11079
      %v11142 = vadd.f32 %v10755, %v11084
      %v11143 = vadd.f32 %v10756, %v11089
      %v11144 = vadd.f32 %v10757, %v11094
      %v11145 = vadd.f32 %v10758, %v11099
      %v11146 = vadd.f32 %v10759, %v11104
      %v11147 = vadd.f32 %v10760, %v11109
      %v11148 = vadd.f32 %v10761, %v11114
      %v11149 = vld [vmem:[%s7] sm:$0x1]
      %v11151 = vlaneseq
      %v11152 = vshrl.u32 %v11151, 7
      %v11153 = vsub.s32 0, %v11152
      %v11154 = vrot.slane %v11149, %v11153
      %v11156 = vadd.f32 %v11117, %v11154
      %v11157 = vadd.f32 %v11118, %v11154
      %v11158 = vadd.f32 %v11119, %v11154
      %v11159 = vadd.f32 %v11120, %v11154
      %v11160 = vadd.f32 %v11121, %v11154
      %v11161 = vadd.f32 %v11122, %v11154
      %v11162 = vadd.f32 %v11123, %v11154
      %v11163 = vadd.f32 %v11124, %v11154
      %v11164 = vadd.f32 %v11125, %v11154
      %v11165 = vadd.f32 %v11126, %v11154
      %v11166 = vadd.f32 %v11127, %v11154
      %v11167 = vadd.f32 %v11128, %v11154
      %v11168 = vadd.f32 %v11129, %v11154
      %v11169 = vadd.f32 %v11130, %v11154
      %v11170 = vadd.f32 %v11131, %v11154
      %v11171 = vadd.f32 %v11132, %v11154
      %v11172 = vadd.f32 %v11133, %v11154
      %v11173 = vadd.f32 %v11134, %v11154
      %v11174 = vadd.f32 %v11135, %v11154
      %v11175 = vadd.f32 %v11136, %v11154
      %v11176 = vadd.f32 %v11137, %v11154
      %v11177 = vadd.f32 %v11138, %v11154
      %v11178 = vadd.f32 %v11139, %v11154
      %v11179 = vadd.f32 %v11140, %v11154
      %v11180 = vadd.f32 %v11141, %v11154
      %v11181 = vadd.f32 %v11142, %v11154
      %v11182 = vadd.f32 %v11143, %v11154
      %v11183 = vadd.f32 %v11144, %v11154
      %v11184 = vadd.f32 %v11145, %v11154
      %v11185 = vadd.f32 %v11146, %v11154
      %v11186 = vadd.f32 %v11147, %v11154
      %v11187 = vadd.f32 %v11148, %v11154
      %v11188 = vmax.f32 %v11156, 0.0
      %v11189 = vmax.f32 %v11157, 0.0
      %v11190 = vmax.f32 %v11158, 0.0
      %v11191 = vmax.f32 %v11159, 0.0
      %v11192 = vmax.f32 %v11160, 0.0
      %v11193 = vmax.f32 %v11161, 0.0
      %v11194 = vmax.f32 %v11162, 0.0
      %v11195 = vmax.f32 %v11163, 0.0
      %v11196 = vmax.f32 %v11164, 0.0
      %v11197 = vmax.f32 %v11165, 0.0
      %v11198 = vmax.f32 %v11166, 0.0
      %v11199 = vmax.f32 %v11167, 0.0
      %v11200 = vmax.f32 %v11168, 0.0
      %v11201 = vmax.f32 %v11169, 0.0
      %v11202 = vmax.f32 %v11170, 0.0
      %v11203 = vmax.f32 %v11171, 0.0
      %v11204 = vmax.f32 %v11172, 0.0
      %v11205 = vmax.f32 %v11173, 0.0
      %v11206 = vmax.f32 %v11174, 0.0
      %v11207 = vmax.f32 %v11175, 0.0
      %v11208 = vmax.f32 %v11176, 0.0
      %v11209 = vmax.f32 %v11177, 0.0
      %v11210 = vmax.f32 %v11178, 0.0
      %v11211 = vmax.f32 %v11179, 0.0
      %v11212 = vmax.f32 %v11180, 0.0
      %v11213 = vmax.f32 %v11181, 0.0
      %v11214 = vmax.f32 %v11182, 0.0
      %v11215 = vmax.f32 %v11183, 0.0
      %v11216 = vmax.f32 %v11184, 0.0
      %v11217 = vmax.f32 %v11185, 0.0
      %v11218 = vmax.f32 %v11186, 0.0
      %v11219 = vmax.f32 %v11187, 0.0
      %11220 = vst [vmem:[%s305] sm:$0xff] %v11188
      %11221 = vst [vmem:[%s305 + $0x8] sm:$0xff] %v11189
      %11222 = vst [vmem:[%s305 + $0x10] sm:$0xff] %v11190
      %11223 = vst [vmem:[%s305 + $0x18] sm:$0xff] %v11191
      %11224 = vst [vmem:[%s305 + $0x20] sm:$0xff] %v11192
      %11225 = vst [vmem:[%s305 + $0x28] sm:$0xff] %v11193
      %11226 = vst [vmem:[%s305 + $0x30] sm:$0xff] %v11194
      %11227 = vst [vmem:[%s305 + $0x38] sm:$0xff] %v11195
      %11228 = vst [vmem:[%s305 + $0x40] sm:$0xff] %v11196
      %11229 = vst [vmem:[%s305 + $0x48] sm:$0xff] %v11197
      %11230 = vst [vmem:[%s305 + $0x50] sm:$0xff] %v11198
      %11231 = vst [vmem:[%s305 + $0x58] sm:$0xff] %v11199
      %11232 = vst [vmem:[%s305 + $0x60] sm:$0xff] %v11200
      %11233 = vst [vmem:[%s305 + $0x68] sm:$0xff] %v11201
      %11234 = vst [vmem:[%s305 + $0x70] sm:$0xff] %v11202
      %11235 = vst [vmem:[%s305 + $0x78] sm:$0xff] %v11203
      %11236 = vst [vmem:[%s305 + $0x80] sm:$0xff] %v11204
      %11237 = vst [vmem:[%s305 + $0x88] sm:$0xff] %v11205
      %11238 = vst [vmem:[%s305 + $0x90] sm:$0xff] %v11206
      %11239 = vst [vmem:[%s305 + $0x98] sm:$0xff] %v11207
      %11240 = vst [vmem:[%s305 + $0xa0] sm:$0xff] %v11208
      %11241 = vst [vmem:[%s305 + $0xa8] sm:$0xff] %v11209
      %11242 = vst [vmem:[%s305 + $0xb0] sm:$0xff] %v11210
      %11243 = vst [vmem:[%s305 + $0xb8] sm:$0xff] %v11211
      %11244 = vst [vmem:[%s305 + $0xc0] sm:$0xff] %v11212
      %11245 = vst [vmem:[%s305 + $0xc8] sm:$0xff] %v11213
      %11246 = vst [vmem:[%s305 + $0xd0] sm:$0xff] %v11214
      %11247 = vst [vmem:[%s305 + $0xd8] sm:$0xff] %v11215
      %11248 = vst [vmem:[%s305 + $0xe0] sm:$0xff] %v11216
      %11249 = vst [vmem:[%s305 + $0xe8] sm:$0xff] %v11217
      %11250 = vst [vmem:[%s305 + $0xf0] sm:$0xff] %v11218
      %11251 = vst [vmem:[%s305 + $0xf8] sm:$0xff] %v11219
      %p11252 = scmp.lt.s32.totalorder %s19, 1
      %s11253 = scalar_select %p11252, %s19, 1
      %s11254 = smul.addr %s11253, 32
      %s11255 = smul.addr %s11254, 8
      %s11256 = scalar_lea.vmem %s8, %s11255
      // Predicated region
      $region53: #{_lk_forward.1} parent=51 // pred_check
        %p11257 = pneg %p210
      $region54: #{_lk_forward.1} parent=51 // pred_check_branch
        %11259 = sbr.rel (%p11257) target = $region56
      $region55: #{_lk_forward.1} parent=51 // pred_region
        _
      $region56: #{_lk_forward.1} parent=51 // pred_fallthru
        _
    $region52: #{_lk_forward.1} parent=5 // pred_fallthru
      _
    %p11260 = scmp.le.s32.totalorder 2, %s14
    // Predicated region
    $region57: #{_lk_forward.1} parent=5 // pred_check
      %p11261 = pneg %p11260
    $region58: #{_lk_forward.1} parent=5 // pred_check_branch
      %11263 = sbr.rel (%p11261) target = $region60
    $region59: #{_lk_forward.1} parent=5 // pred_region
      %s11264 = ssub.s32 %s14, 2
      // Predicated region
      $region61: #{_lk_forward.1} parent=59 // pred_check
        %p11265 = pneg %p216
      $region62: #{_lk_forward.1} parent=59 // pred_check_branch
        %11267 = sbr.rel (%p11265) target = $region64
      $region63: #{_lk_forward.1} parent=59 // pred_region
        %p11268 = scmp.lt.s32.totalorder %s20, 1
        %s11269 = scalar_select %p11268, %s20, 1
        %s11270 = smul.addr %s11269, 32
        %s11271 = smul.addr %s11270, 8
        %s11272 = scalar_lea.vmem %s8, %s11271
      $region64: #{_lk_forward.1} parent=59 // pred_fallthru
        _
    $region60: #{_lk_forward.1} parent=5 // pred_fallthru
      _
  $region6: #{_lk_forward.1} parent=0 // loop_footer
    %s18 = sadd.s32 1, %s14
  $region7: #{_lk_forward.1} parent=0 // loop_footer_branch
    %13 = sbr.rel target = $region3
  $region8: #{_lk_forward.1} parent=0 // loop_exit
    _

</llo_original>
